<compile_context>
chip_gen: v7x
topology: tpu7x:2x2x1
jax: 0.10.0
libtpu: 0.0.40
codegen_flags: <defaults>
</compile_context>

<pallas_src>
import functools

import jax
import jax.numpy as jnp
from jax.experimental import pallas as pl
from jax.experimental.pallas import tpu as pltpu


_TILE_V = 128  # lane-dense vocab tile for the final projection


# ----------------------------------------------------------------------------
# Fused decoder-layer kernel (one grid step == one batch element, whole layer)
# ----------------------------------------------------------------------------

def _decoder_layer_kernel(
    x_ref, enc_ref, tmask_ref, smask_ref,
    # masked self-attention (DecoderBlock.attention) + DecoderBlock.norm
    wv1_ref, wk1_ref, wq1_ref, wo1_ref, bo1_ref, g0_ref, be0_ref,
    # cross-attention (TransformerBlock.attention) + norm1
    wv2_ref, wk2_ref, wq2_ref, wo2_ref, bo2_ref, g1_ref, be1_ref,
    # feed-forward + norm2
    wff1_ref, bff1_ref, wff2_ref, bff2_ref, g2_ref, be2_ref,
    o_ref,
    *, heads, head_dim, embed_size, eps):
    x = x_ref[0]           # (L, E)  f32
    enc = enc_ref[0]       # (Ls, E) f32
    tmask = tmask_ref[0]   # (L, L)  f32, 0.0 == masked
    smask = smask_ref[0]   # (L, Ls) f32

    inv_scale = jnp.float32(1.0 / (embed_size ** 0.5))

    def split_heads(t):    # (L, E) f32 -> (heads, L, Dh) f32
        l = t.shape[0]
        return jnp.transpose(t.reshape(l, heads, head_dim), (1, 0, 2))

    def attention(xq, xkv, mask, wv, wk, wq, wo_r, bo):
        # wv / wk / wq are block-diagonal (E, E) bf16 built from the shared
        # per-head (Dh, Dh) weight: one matmul projects every head at once.
        xq_b = xq.astype(jnp.bfloat16)
        xkv_b = xkv.astype(jnp.bfloat16)
        vp = jnp.dot(xkv_b, wv, preferred_element_type=jnp.float32)      # (Lk, E)
        kp = jnp.dot(xkv_b, wk, preferred_element_type=jnp.float32)      # (Lk, E)
        qp = jnp.dot(xq_b, wq, preferred_element_type=jnp.float32)       # (Lq, E)
        # fold 1/sqrt(embed_size) into Q (O(Lq*Dh) instead of O(Lq*Lk) work)
        qp = qp * inv_scale

        qh = split_heads(qp).astype(jnp.bfloat16)   # (H, Lq, Dh)
        kh = split_heads(kp).astype(jnp.bfloat16)   # (H, Lk, Dh)
        vh = split_heads(vp).astype(jnp.bfloat16)   # (H, Lk, Dh)

        energy = jnp.einsum('hqd,hkd->hqk', qh, kh,
                            preferred_element_type=jnp.float32)          # (H, Lq, Lk)
        energy = jnp.where(mask[None, :, :] == 0.0, jnp.float32(-1e20), energy)

        # numerically-stable softmax over keys (f32), approx reciprocal on EUP
        m = jnp.max(energy, axis=-1, keepdims=True)
        p = jnp.exp(energy - m)
        denom = jnp.sum(p, axis=-1, keepdims=True)
        attn = (p * pl.reciprocal(denom, approx=True)).astype(jnp.bfloat16)

        ctx = jnp.einsum('hqk,hkd->hqd', attn, vh,
                         preferred_element_type=jnp.float32)             # (H, Lq, Dh)
        # output projection contracted per head then summed -> no head concat
        outh = jnp.einsum('hqd,hde->hqe', ctx.astype(jnp.bfloat16), wo_r,
                          preferred_element_type=jnp.float32)            # (H, Lq, E)
        return jnp.sum(outh, axis=0) + bo                                # (Lq, E)

    def add_layernorm(a, b, g, beta):
        y = a + b
        mean = jnp.mean(y, axis=-1, keepdims=True)
        c = y - mean
        var = jnp.mean(c * c, axis=-1, keepdims=True)   # biased, like nn.LayerNorm
        return c * jax.lax.rsqrt(var + eps) * g + beta

    # DecoderBlock: masked self-attention + residual + LN (dropout == identity)
    attn1 = attention(x, x, tmask, wv1_ref[...], wk1_ref[...], wq1_ref[...],
                      wo1_ref[...], bo1_ref[...])
    query = add_layernorm(attn1, x, g0_ref[...], be0_ref[...])

    # TransformerBlock: cross-attention (value = key = enc_out) + residual + LN
    attn2 = attention(query, enc, smask, wv2_ref[...], wk2_ref[...], wq2_ref[...],
                      wo2_ref[...], bo2_ref[...])
    xt = add_layernorm(attn2, query, g1_ref[...], be1_ref[...])

    # feed-forward + residual + LN
    h = jnp.dot(xt.astype(jnp.bfloat16), wff1_ref[...],
                preferred_element_type=jnp.float32) + bff1_ref[...]
    h = jnp.maximum(h, 0.0)
    ffo = jnp.dot(h.astype(jnp.bfloat16), wff2_ref[...],
                  preferred_element_type=jnp.float32) + bff2_ref[...]
    o_ref[0] = add_layernorm(ffo, xt, g2_ref[...], be2_ref[...])


def _replicated_spec(arr):
    zeros = (0,) * arr.ndim
    return pl.BlockSpec(arr.shape, lambda b, _z=zeros: _z)


def decoder_layer(x, enc_out, trg_mask, src_mask, lw, *, heads, eps=1e-5):
    N, L, E = x.shape
    Ls = enc_out.shape[1]
    head_dim = E // heads
    kernel = functools.partial(_decoder_layer_kernel, heads=heads,
                               head_dim=head_dim, embed_size=E, eps=eps)
    weights = [
        lw["wv1"], lw["wk1"], lw["wq1"], lw["wo1"], lw["bo1"], lw["g0"], lw["be0"],
        lw["wv2"], lw["wk2"], lw["wq2"], lw["wo2"], lw["bo2"], lw["g1"], lw["be1"],
        lw["wff1"], lw["bff1"], lw["wff2"], lw["bff2"], lw["g2"], lw["be2"],
    ]
    in_specs = [
        pl.BlockSpec((1, L, E), lambda b: (b, 0, 0)),
        pl.BlockSpec((1, Ls, E), lambda b: (b, 0, 0)),
        pl.BlockSpec((1, L, L), lambda b: (b, 0, 0)),
        pl.BlockSpec((1, L, Ls), lambda b: (b, 0, 0)),
    ] + [_replicated_spec(w) for w in weights]
    return pl.pallas_call(
        kernel,
        out_shape=jax.ShapeDtypeStruct((N, L, E), jnp.float32),
        grid=(N,),
        in_specs=in_specs,
        out_specs=pl.BlockSpec((1, L, E), lambda b: (b, 0, 0)),
        compiler_params=pltpu.CompilerParams(
            dimension_semantics=("parallel",)),  # 2 TCs on v7x; serial on v5e/v6e
    )(x, enc_out, trg_mask, src_mask, *weights)


# ----------------------------------------------------------------------------
# Final vocab projection: (N*L, E) slab, vocab padded/tiled to 128 lanes
# ----------------------------------------------------------------------------

def _linear_kernel(x_ref, w_ref, b_ref, o_ref):
    o_ref[...] = jnp.dot(x_ref[...].astype(jnp.bfloat16), w_ref[...],
                         preferred_element_type=jnp.float32) + b_ref[...]


def linear_vocab(x2d, w, b):
    # x2d: (M, E) f32, w: (E, Vp) bf16, b: (1, Vp) f32, Vp % 128 == 0
    M, E = x2d.shape
    Vp = w.shape[1]
    return pl.pallas_call(
        _linear_kernel,
        out_shape=jax.ShapeDtypeStruct((M, Vp), jnp.float32),
        grid=(Vp // _TILE_V,),
        in_specs=[
            pl.BlockSpec((M, E), lambda j: (0, 0)),
            pl.BlockSpec((E, _TILE_V), lambda j: (0, j)),
            pl.BlockSpec((1, _TILE_V), lambda j: (0, j)),
        ],
        out_specs=pl.BlockSpec((M, _TILE_V), lambda j: (0, j)),
        compiler_params=pltpu.CompilerParams(
            dimension_semantics=("parallel",)),
    )(x2d, w, b)


# ----------------------------------------------------------------------------
# Parameter construction (deterministic, synthetic, kernel-ready layout)
# ----------------------------------------------------------------------------

def init_decoder_params(key, *, trg_vocab_size, embed_size, num_layers, heads,
                        forward_expansion, max_length):
    """Synthetic parameters already converted to the layout the kernels expect.

    Mapping from the PyTorch module:
      * SelfAttention.values/keys/queries: nn.Linear(Dh, Dh, bias=False) with a
        single weight shared across heads -> stored as kron(I_heads, W^T), a
        block-diagonal (E, E) matrix, so y = x @ W_bd projects all heads at once.
      * SelfAttention.fc_out: nn.Linear(E, E) -> W^T stored as (heads, Dh, E).
      * feed_forward / fc_out Linear weights stored transposed as (in, out);
        fc_out's weight is zero-padded along vocab to a multiple of 128.
    Matmul weights are bf16 (MXU-native); biases / LayerNorm params stay f32.
    """
    Dh = embed_size // heads
    F = forward_expansion * embed_size
    Vp = ((trg_vocab_size + _TILE_V - 1) // _TILE_V) * _TILE_V

    def nrm(k, shape, scale=0.05):
        return (scale * jax.random.normal(k, shape)).astype(jnp.float32)

    def bdiag(w):  # (Dh, Dh) -> block-diagonal (E, E) bf16
        return jnp.kron(jnp.eye(heads, dtype=jnp.float32), w).astype(jnp.bfloat16)

    keys = jax.random.split(key, 4 + num_layers)
    w_out = nrm(keys[2], (embed_size, trg_vocab_size))
    w_out_p = jnp.zeros((embed_size, Vp), jnp.float32)
    w_out_p = w_out_p.at[:, :trg_vocab_size].set(w_out).astype(jnp.bfloat16)

    params = {
        "word_emb": nrm(keys[0], (trg_vocab_size, embed_size), 0.1),
        "pos_emb": nrm(keys[1], (max_length, embed_size), 0.1),
        "w_out_p": w_out_p,
        "b_out_p": jnp.zeros((1, Vp), jnp.float32),
        "layers": [],
    }
    for li in range(num_layers):
        lk = jax.random.split(keys[4 + li], 10)
        layer = {
            # DecoderBlock masked self-attention
            "wv1": bdiag(nrm(lk[0], (Dh, Dh))),
            "wk1": bdiag(nrm(lk[1], (Dh, Dh))),
            "wq1": bdiag(nrm(lk[2], (Dh, Dh))),
            "wo1": nrm(lk[3], (embed_size, embed_size)).reshape(heads, Dh, embed_size).astype(jnp.bfloat16),
            "bo1": jnp.zeros((1, embed_size), jnp.float32),
            # DecoderBlock.norm
            "g0": jnp.ones((1, embed_size), jnp.float32),
            "be0": jnp.zeros((1, embed_size), jnp.float32),
            # TransformerBlock cross-attention
            "wv2": bdiag(nrm(lk[4], (Dh, Dh))),
            "wk2": bdiag(nrm(lk[5], (Dh, Dh))),
            "wq2": bdiag(nrm(lk[6], (Dh, Dh))),
            "wo2": nrm(lk[7], (embed_size, embed_size)).reshape(heads, Dh, embed_size).astype(jnp.bfloat16),
            "bo2": jnp.zeros((1, embed_size), jnp.float32),
            # TransformerBlock.norm1 / norm2
            "g1": jnp.ones((1, embed_size), jnp.float32),
            "be1": jnp.zeros((1, embed_size), jnp.float32),
            "g2": jnp.ones((1, embed_size), jnp.float32),
            "be2": jnp.zeros((1, embed_size), jnp.float32),
            # feed-forward
            "wff1": nrm(lk[8], (embed_size, F)).astype(jnp.bfloat16),
            "bff1": jnp.zeros((1, F), jnp.float32),
            "wff2": nrm(lk[9], (F, embed_size)).astype(jnp.bfloat16),
            "bff2": jnp.zeros((1, embed_size), jnp.float32),
        }
        params["layers"].append(layer)
    return params


# ----------------------------------------------------------------------------
# Decoder forward (embedding gather in plain JAX glue; layers + head in Pallas)
# ----------------------------------------------------------------------------

def decoder_forward(params, x_tokens, enc_out, src_mask, trg_mask, *, heads,
                    trg_vocab_size):
    N, L = x_tokens.shape
    positions = jnp.arange(L)
    # embedding gather is glue; dropout is identity (eval-mode semantics)
    x = (params["word_emb"][x_tokens]
         + params["pos_emb"][positions][None, :, :]).astype(jnp.float32)

    for lw in params["layers"]:
        x = decoder_layer(x, enc_out, trg_mask, src_mask, lw, heads=heads)

    # final projection: lane-dense (N*L, Vp) slab, vocab tiled by 128
    logits_p = linear_vocab(x.reshape(N * L, -1), params["w_out_p"],
                            params["b_out_p"])
    return logits_p[:, :trg_vocab_size].reshape(N, L, trg_vocab_size)


# ----------------------------------------------------------------------------
# Main
# ----------------------------------------------------------------------------

if __name__ == "__main__":
    trg_vocab_size = 50
    embed_size = 32
    num_layers = 2
    heads = 4
    forward_expansion = 2
    max_length = 16

    N = 2            # batch
    trg_len = 8      # decoder sequence length
    src_len = 8      # encoder sequence length

    key = jax.random.PRNGKey(0)
    kp, kx, ke = jax.random.split(key, 3)

    params = init_decoder_params(
        kp, trg_vocab_size=trg_vocab_size, embed_size=embed_size,
        num_layers=num_layers, heads=heads,
        forward_expansion=forward_expansion, max_length=max_length)

    x_tokens = jax.random.randint(kx, (N, trg_len), 0, trg_vocab_size,
                                  dtype=jnp.int32)
    enc_out = (0.1 * jax.random.normal(ke, (N, src_len, embed_size))
               ).astype(jnp.float32)

    # masks pre-broadcast to (N, Lq, Lk); 0.0 == masked (as in the PyTorch code)
    trg_mask = jnp.tril(jnp.ones((trg_len, trg_len), jnp.float32))[None].repeat(N, axis=0)
    src_mask = jnp.ones((N, trg_len, src_len), jnp.float32)

    fwd = jax.jit(functools.partial(decoder_forward, heads=heads,
                                    trg_vocab_size=trg_vocab_size))
    out = jax.block_until_ready(fwd(params, x_tokens, enc_out, src_mask, trg_mask))

    assert out.shape == (N, trg_len, trg_vocab_size), out.shape
    assert bool(jnp.all(jnp.isfinite(out)))
    print("KERNEL_OK")
</pallas_src>

<mosaic_0001>
module attributes {stable_mosaic.version = 11 : i64} {
  func.func @_linear_kernel(%arg0: i32, %arg1: memref<16x32xf32, #tpu.memory_space<vmem>>, %arg2: memref<32x128xbf16, #tpu.memory_space<vmem>>, %arg3: memref<1x128xf32, #tpu.memory_space<vmem>>, %arg4: memref<16x128xf32, #tpu.memory_space<vmem>>) attributes {dimension_semantics = [#tpu.dimension_semantics<parallel>], iteration_bounds = array<i64: 1>, scalar_prefetch = 0 : i64, scratch_operands = 0 : i64, tpu.core_type = #tpu.core_type<tc>, window_params = [{pipeline_mode = #tpu.pipeline_mode<synchronous>, transform_indices = @transform_0, window_bounds = array<i64: 16, 32>}, {transform_indices = @transform_1, window_bounds = array<i64: 32, 128>}, {transform_indices = @transform_2, window_bounds = array<i64: 1, 128>}, {transform_indices = @transform_3, window_bounds = array<i64: 16, 128>}]} {
    %c0 = arith.constant 0 : index
    %c0_0 = arith.constant 0 : index
    %0 = vector.load %arg1[%c0, %c0_0] : memref<16x32xf32, #tpu.memory_space<vmem>>, vector<16x32xf32>
    %1 = arith.truncf %0 : vector<16x32xf32> to vector<16x32xbf16>
    %c0_1 = arith.constant 0 : index
    %c0_2 = arith.constant 0 : index
    %2 = vector.load %arg2[%c0_1, %c0_2] : memref<32x128xbf16, #tpu.memory_space<vmem>>, vector<32x128xbf16>
    %cst = arith.constant dense<0.000000e+00> : vector<16x128xf32>
    %3 = tpu.matmul %1, %2, %cst {dimension_numbers = #tpu.dot_dimension_numbers<[1], [0], [0], [1], [0, 0, 1, 1], [], []>} : vector<16x32xbf16>, vector<32x128xbf16>, vector<16x128xf32> -> vector<16x128xf32>
    %c0_3 = arith.constant 0 : index
    %c0_4 = arith.constant 0 : index
    %4 = vector.load %arg3[%c0_3, %c0_4] : memref<1x128xf32, #tpu.memory_space<vmem>>, vector<1x128xf32>
    %5 = vector.broadcast %4 : vector<1x128xf32> to vector<16x128xf32>
    %6 = arith.addf %3, %5 : vector<16x128xf32>
    %c0_5 = arith.constant 0 : index
    %c0_6 = arith.constant 0 : index
    %7 = vector.load %arg4[%c0_5, %c0_6] : memref<16x128xf32, #tpu.memory_space<vmem>>, vector<16x128xf32>
    tpu.vector_store %arg4[%c0_5, %c0_6], %6 {strides = array<i32>} : memref<16x128xf32, #tpu.memory_space<vmem>>, vector<16x128xf32>,
    return
  }
  func.func @transform_0(%arg0: i32) -> (i32, i32) {
    %c0_i32 = arith.constant 0 : i32
    %c0_i32_0 = arith.constant 0 : i32
    %c0_i32_1 = arith.constant 0 : i32
    return %c0_i32, %c0_i32_0 : i32, i32
  }
  func.func @transform_1(%arg0: i32) -> (i32, i32) {
    %c0_i32 = arith.constant 0 : i32
    %c0_i32_0 = arith.constant 0 : i32
    return %c0_i32, %arg0 : i32, i32
  }
  func.func @transform_2(%arg0: i32) -> (i32, i32) {
    %c0_i32 = arith.constant 0 : i32
    %c0_i32_0 = arith.constant 0 : i32
    return %c0_i32, %arg0 : i32, i32
  }
  func.func @transform_3(%arg0: i32) -> (i32, i32) {
    %c0_i32 = arith.constant 0 : i32
    %c0_i32_0 = arith.constant 0 : i32
    return %c0_i32, %arg0 : i32, i32
  }
}

module attributes {stable_mosaic.version = 11 : i64} {
  func.func @_decoder_layer_kernel(%arg0: i32, %arg1: memref<1x8x32xf32, #tpu.memory_space<vmem>>, %arg2: memref<1x8x32xf32, #tpu.memory_space<vmem>>, %arg3: memref<1x8x8xf32, #tpu.memory_space<vmem>>, %arg4: memref<1x8x8xf32, #tpu.memory_space<vmem>>, %arg5: memref<32x32xbf16, #tpu.memory_space<vmem>>, %arg6: memref<32x32xbf16, #tpu.memory_space<vmem>>, %arg7: memref<32x32xbf16, #tpu.memory_space<vmem>>, %arg8: memref<4x8x32xbf16, #tpu.memory_space<vmem>>, %arg9: memref<1x32xf32, #tpu.memory_space<vmem>>, %arg10: memref<1x32xf32, #tpu.memory_space<vmem>>, %arg11: memref<1x32xf32, #tpu.memory_space<vmem>>, %arg12: memref<32x32xbf16, #tpu.memory_space<vmem>>, %arg13: memref<32x32xbf16, #tpu.memory_space<vmem>>, %arg14: memref<32x32xbf16, #tpu.memory_space<vmem>>, %arg15: memref<4x8x32xbf16, #tpu.memory_space<vmem>>, %arg16: memref<1x32xf32, #tpu.memory_space<vmem>>, %arg17: memref<1x32xf32, #tpu.memory_space<vmem>>, %arg18: memref<1x32xf32, #tpu.memory_space<vmem>>, %arg19: memref<32x64xbf16, #tpu.memory_space<vmem>>, %arg20: memref<1x64xf32, #tpu.memory_space<vmem>>, %arg21: memref<64x32xbf16, #tpu.memory_space<vmem>>, %arg22: memref<1x32xf32, #tpu.memory_space<vmem>>, %arg23: memref<1x32xf32, #tpu.memory_space<vmem>>, %arg24: memref<1x32xf32, #tpu.memory_space<vmem>>, %arg25: memref<1x8x32xf32, #tpu.memory_space<vmem>>) attributes {dimension_semantics = [#tpu.dimension_semantics<parallel>], iteration_bounds = array<i64: 2>, scalar_prefetch = 0 : i64, scratch_operands = 0 : i64, tpu.core_type = #tpu.core_type<tc>, window_params = [{transform_indices = @transform_0, window_bounds = array<i64: 1, 8, 32>}, {transform_indices = @transform_1, window_bounds = array<i64: 1, 8, 32>}, {transform_indices = @transform_2, window_bounds = array<i64: 1, 8, 8>}, {transform_indices = @transform_3, window_bounds = array<i64: 1, 8, 8>}, {pipeline_mode = #tpu.pipeline_mode<synchronous>, transform_indices = @transform_4, window_bounds = array<i64: 32, 32>}, {pipeline_mode = #tpu.pipeline_mode<synchronous>, transform_indices = @transform_5, window_bounds = array<i64: 32, 32>}, {pipeline_mode = #tpu.pipeline_mode<synchronous>, transform_indices = @transform_6, window_bounds = array<i64: 32, 32>}, {pipeline_mode = #tpu.pipeline_mode<synchronous>, transform_indices = @transform_7, window_bounds = array<i64: 4, 8, 32>}, {pipeline_mode = #tpu.pipeline_mode<synchronous>, transform_indices = @transform_8, window_bounds = array<i64: 1, 32>}, {pipeline_mode = #tpu.pipeline_mode<synchronous>, transform_indices = @transform_9, window_bounds = array<i64: 1, 32>}, {pipeline_mode = #tpu.pipeline_mode<synchronous>, transform_indices = @transform_10, window_bounds = array<i64: 1, 32>}, {pipeline_mode = #tpu.pipeline_mode<synchronous>, transform_indices = @transform_11, window_bounds = array<i64: 32, 32>}, {pipeline_mode = #tpu.pipeline_mode<synchronous>, transform_indices = @transform_12, window_bounds = array<i64: 32, 32>}, {pipeline_mode = #tpu.pipeline_mode<synchronous>, transform_indices = @transform_13, window_bounds = array<i64: 32, 32>}, {pipeline_mode = #tpu.pipeline_mode<synchronous>, transform_indices = @transform_14, window_bounds = array<i64: 4, 8, 32>}, {pipeline_mode = #tpu.pipeline_mode<synchronous>, transform_indices = @transform_15, window_bounds = array<i64: 1, 32>}, {pipeline_mode = #tpu.pipeline_mode<synchronous>, transform_indices = @transform_16, window_bounds = array<i64: 1, 32>}, {pipeline_mode = #tpu.pipeline_mode<synchronous>, transform_indices = @transform_17, window_bounds = array<i64: 1, 32>}, {pipeline_mode = #tpu.pipeline_mode<synchronous>, transform_indices = @transform_18, window_bounds = array<i64: 32, 64>}, {pipeline_mode = #tpu.pipeline_mode<synchronous>, transform_indices = @transform_19, window_bounds = array<i64: 1, 64>}, {pipeline_mode = #tpu.pipeline_mode<synchronous>, transform_indices = @transform_20, window_bounds = array<i64: 64, 32>}, {pipeline_mode = #tpu.pipeline_mode<synchronous>, transform_indices = @transform_21, window_bounds = array<i64: 1, 32>}, {pipeline_mode = #tpu.pipeline_mode<synchronous>, transform_indices = @transform_22, window_bounds = array<i64: 1, 32>}, {pipeline_mode = #tpu.pipeline_mode<synchronous>, transform_indices = @transform_23, window_bounds = array<i64: 1, 32>}, {transform_indices = @transform_24, window_bounds = array<i64: 1, 8, 32>}]} {
    %c0 = arith.constant 0 : index
    %c0_0 = arith.constant 0 : index
    %c0_1 = arith.constant 0 : index
    %0 = vector.load %arg1[%c0, %c0_0, %c0_1] : memref<1x8x32xf32, #tpu.memory_space<vmem>>, vector<1x8x32xf32>
    %1 = vector.shape_cast %0 : vector<1x8x32xf32> to vector<8x32xf32>
    %c0_2 = arith.constant 0 : index
    %c0_3 = arith.constant 0 : index
    %c0_4 = arith.constant 0 : index
    %2 = vector.load %arg2[%c0_2, %c0_3, %c0_4] : memref<1x8x32xf32, #tpu.memory_space<vmem>>, vector<1x8x32xf32>
    %3 = vector.shape_cast %2 : vector<1x8x32xf32> to vector<8x32xf32>
    %c0_5 = arith.constant 0 : index
    %c0_6 = arith.constant 0 : index
    %c0_7 = arith.constant 0 : index
    %4 = vector.load %arg3[%c0_5, %c0_6, %c0_7] : memref<1x8x8xf32, #tpu.memory_space<vmem>>, vector<1x8x8xf32>
    %5 = vector.shape_cast %4 : vector<1x8x8xf32> to vector<8x8xf32>
    %c0_8 = arith.constant 0 : index
    %c0_9 = arith.constant 0 : index
    %c0_10 = arith.constant 0 : index
    %6 = vector.load %arg4[%c0_8, %c0_9, %c0_10] : memref<1x8x8xf32, #tpu.memory_space<vmem>>, vector<1x8x8xf32>
    %7 = vector.shape_cast %6 : vector<1x8x8xf32> to vector<8x8xf32>
    %c0_11 = arith.constant 0 : index
    %c0_12 = arith.constant 0 : index
    %8 = vector.load %arg5[%c0_11, %c0_12] : memref<32x32xbf16, #tpu.memory_space<vmem>>, vector<32x32xbf16>
    %c0_13 = arith.constant 0 : index
    %c0_14 = arith.constant 0 : index
    %9 = vector.load %arg6[%c0_13, %c0_14] : memref<32x32xbf16, #tpu.memory_space<vmem>>, vector<32x32xbf16>
    %c0_15 = arith.constant 0 : index
    %c0_16 = arith.constant 0 : index
    %10 = vector.load %arg7[%c0_15, %c0_16] : memref<32x32xbf16, #tpu.memory_space<vmem>>, vector<32x32xbf16>
    %c0_17 = arith.constant 0 : index
    %c0_18 = arith.constant 0 : index
    %c0_19 = arith.constant 0 : index
    %11 = vector.load %arg8[%c0_17, %c0_18, %c0_19] : memref<4x8x32xbf16, #tpu.memory_space<vmem>>, vector<4x8x32xbf16>
    %c0_20 = arith.constant 0 : index
    %c0_21 = arith.constant 0 : index
    %12 = vector.load %arg9[%c0_20, %c0_21] : memref<1x32xf32, #tpu.memory_space<vmem>>, vector<1x32xf32>
    %13 = arith.truncf %1 : vector<8x32xf32> to vector<8x32xbf16>
    %14 = arith.truncf %1 : vector<8x32xf32> to vector<8x32xbf16>
    %cst = arith.constant dense<0.000000e+00> : vector<8x32xf32>
    %15 = tpu.matmul %14, %8, %cst {dimension_numbers = #tpu.dot_dimension_numbers<[1], [0], [0], [1], [0, 0, 1, 1], [], []>} : vector<8x32xbf16>, vector<32x32xbf16>, vector<8x32xf32> -> vector<8x32xf32>
    %cst_22 = arith.constant dense<0.000000e+00> : vector<8x32xf32>
    %16 = tpu.matmul %14, %9, %cst_22 {dimension_numbers = #tpu.dot_dimension_numbers<[1], [0], [0], [1], [0, 0, 1, 1], [], []>} : vector<8x32xbf16>, vector<32x32xbf16>, vector<8x32xf32> -> vector<8x32xf32>
    %cst_23 = arith.constant dense<0.000000e+00> : vector<8x32xf32>
    %17 = tpu.matmul %13, %10, %cst_23 {dimension_numbers = #tpu.dot_dimension_numbers<[1], [0], [0], [1], [0, 0, 1, 1], [], []>} : vector<8x32xbf16>, vector<32x32xbf16>, vector<8x32xf32> -> vector<8x32xf32>
    %cst_24 = arith.constant 0.176776692 : f32
    %18 = vector.broadcast %cst_24 : f32 to vector<8x32xf32>
    %19 = arith.mulf %17, %18 : vector<8x32xf32>
    %20 = vector.shape_cast %19 : vector<8x32xf32> to vector<8x4x8xf32>
    %21 = tpu.transpose %20, [1, 0, 2] : vector<8x4x8xf32> -> vector<4x8x8xf32>
    %22 = arith.truncf %21 : vector<4x8x8xf32> to vector<4x8x8xbf16>
    %23 = vector.shape_cast %16 : vector<8x32xf32> to vector<8x4x8xf32>
    %24 = tpu.transpose %23, [1, 0, 2] : vector<8x4x8xf32> -> vector<4x8x8xf32>
    %25 = arith.truncf %24 : vector<4x8x8xf32> to vector<4x8x8xbf16>
    %26 = vector.shape_cast %15 : vector<8x32xf32> to vector<8x4x8xf32>
    %27 = tpu.transpose %26, [1, 0, 2] : vector<8x4x8xf32> -> vector<4x8x8xf32>
    %28 = arith.truncf %27 : vector<4x8x8xf32> to vector<4x8x8xbf16>
    "tpu.trace_start"() <{level = 10 : i32, message = "hqd,hkd->hqk"}> : () -> ()
    %cst_25 = arith.constant dense<0.000000e+00> : vector<4x8x8xf32>
    %29 = tpu.matmul %22, %25, %cst_25 {dimension_numbers = #tpu.dot_dimension_numbers<[2], [2], [1], [1], [0, 0, 0, 1, 1, 1], [0], [0]>} : vector<4x8x8xbf16>, vector<4x8x8xbf16>, vector<4x8x8xf32> -> vector<4x8x8xf32>
    "tpu.trace_stop"() : () -> ()
    %30 = vector.shape_cast %5 : vector<8x8xf32> to vector<1x8x8xf32>
    %cst_26 = arith.constant 0.000000e+00 : f32
    %31 = vector.broadcast %cst_26 : f32 to vector<1x8x8xf32>
    %32 = arith.cmpf oeq, %30, %31 : vector<1x8x8xf32>
    %cst_27 = arith.constant -1.000000e+20 : f32
    %33 = vector.shape_cast %32 : vector<1x8x8xi1> to vector<1x8x8xi1>
    %34 = vector.broadcast %33 : vector<1x8x8xi1> to vector<4x8x8xi1>
    %35 = vector.broadcast %cst_27 : f32 to vector<4x8x8xf32>
    %36 = arith.select %34, %35, %29 : vector<4x8x8xi1>, vector<4x8x8xf32>
    %cst_28 = arith.constant dense<0xFF800000> : vector<4x8xf32>
    %37 = vector.multi_reduction <maximumf>, %36, %cst_28 [2] : vector<4x8x8xf32> to vector<4x8xf32>
    %38 = vector.shape_cast %37 : vector<4x8xf32> to vector<4x8x1xf32>
    %39 = vector.broadcast %38 : vector<4x8x1xf32> to vector<4x8x8xf32>
    %40 = arith.subf %36, %39 : vector<4x8x8xf32>
    %41 = math.exp %40 : vector<4x8x8xf32>
    %cst_29 = arith.constant dense<0.000000e+00> : vector<4x8xf32>
    %42 = vector.multi_reduction <add>, %41, %cst_29 [2] : vector<4x8x8xf32> to vector<4x8xf32>
    %43 = vector.shape_cast %42 : vector<4x8xf32> to vector<4x8x1xf32>
    %44 = tpu.reciprocal %43 {approx = true} : vector<4x8x1xf32> -> vector<4x8x1xf32>
    %45 = vector.broadcast %44 : vector<4x8x1xf32> to vector<4x8x8xf32>
    %46 = arith.mulf %41, %45 : vector<4x8x8xf32>
    %47 = arith.truncf %46 : vector<4x8x8xf32> to vector<4x8x8xbf16>
    "tpu.trace_start"() <{level = 10 : i32, message = "hqk,hkd->hqd"}> : () -> ()
    %cst_30 = arith.constant dense<0.000000e+00> : vector<4x8x8xf32>
    %48 = tpu.matmul %47, %28, %cst_30 {dimension_numbers = #tpu.dot_dimension_numbers<[2], [1], [1], [2], [0, 0, 0, 1, 1, 2], [0], [0]>} : vector<4x8x8xbf16>, vector<4x8x8xbf16>, vector<4x8x8xf32> -> vector<4x8x8xf32>
    "tpu.trace_stop"() : () -> ()
    %49 = arith.truncf %48 : vector<4x8x8xf32> to vector<4x8x8xbf16>
    "tpu.trace_start"() <{level = 10 : i32, message = "hqd,hde->hqe"}> : () -> ()
    %cst_31 = arith.constant dense<0.000000e+00> : vector<4x8x32xf32>
    %50 = tpu.matmul %49, %11, %cst_31 {dimension_numbers = #tpu.dot_dimension_numbers<[2], [1], [1], [2], [0, 0, 0, 1, 1, 2], [0], [0]>} : vector<4x8x8xbf16>, vector<4x8x32xbf16>, vector<4x8x32xf32> -> vector<4x8x32xf32>
    "tpu.trace_stop"() : () -> ()
    %cst_32 = arith.constant dense<0.000000e+00> : vector<8x32xf32>
    %51 = vector.multi_reduction <add>, %50, %cst_32 [0] : vector<4x8x32xf32> to vector<8x32xf32>
    %52 = vector.broadcast %12 : vector<1x32xf32> to vector<8x32xf32>
    %53 = arith.addf %51, %52 : vector<8x32xf32>
    %c0_33 = arith.constant 0 : index
    %c0_34 = arith.constant 0 : index
    %54 = vector.load %arg10[%c0_33, %c0_34] : memref<1x32xf32, #tpu.memory_space<vmem>>, vector<1x32xf32>
    %c0_35 = arith.constant 0 : index
    %c0_36 = arith.constant 0 : index
    %55 = vector.load %arg11[%c0_35, %c0_36] : memref<1x32xf32, #tpu.memory_space<vmem>>, vector<1x32xf32>
    %56 = arith.addf %53, %1 : vector<8x32xf32>
    %cst_37 = arith.constant dense<0.000000e+00> : vector<8xf32>
    %57 = vector.multi_reduction <add>, %56, %cst_37 [1] : vector<8x32xf32> to vector<8xf32>
    %58 = vector.shape_cast %57 : vector<8xf32> to vector<8x1xf32>
    %cst_38 = arith.constant 3.200000e+01 : f32
    %59 = vector.broadcast %cst_38 : f32 to vector<8x1xf32>
    %60 = arith.divf %58, %59 : vector<8x1xf32>
    %61 = vector.broadcast %60 : vector<8x1xf32> to vector<8x32xf32>
    %62 = arith.subf %56, %61 : vector<8x32xf32>
    %63 = arith.mulf %62, %62 : vector<8x32xf32>
    %cst_39 = arith.constant dense<0.000000e+00> : vector<8xf32>
    %64 = vector.multi_reduction <add>, %63, %cst_39 [1] : vector<8x32xf32> to vector<8xf32>
    %65 = vector.shape_cast %64 : vector<8xf32> to vector<8x1xf32>
    %cst_40 = arith.constant 3.200000e+01 : f32
    %66 = vector.broadcast %cst_40 : f32 to vector<8x1xf32>
    %67 = arith.divf %65, %66 : vector<8x1xf32>
    %cst_41 = arith.constant 9.99999974E-6 : f32
    %68 = vector.broadcast %cst_41 : f32 to vector<8x1xf32>
    %69 = arith.addf %67, %68 : vector<8x1xf32>
    %70 = math.rsqrt %69 : vector<8x1xf32>
    %71 = vector.broadcast %70 : vector<8x1xf32> to vector<8x32xf32>
    %72 = arith.mulf %62, %71 : vector<8x32xf32>
    %73 = vector.broadcast %54 : vector<1x32xf32> to vector<8x32xf32>
    %74 = arith.mulf %72, %73 : vector<8x32xf32>
    %75 = vector.broadcast %55 : vector<1x32xf32> to vector<8x32xf32>
    %76 = arith.addf %74, %75 : vector<8x32xf32>
    %c0_42 = arith.constant 0 : index
    %c0_43 = arith.constant 0 : index
    %77 = vector.load %arg12[%c0_42, %c0_43] : memref<32x32xbf16, #tpu.memory_space<vmem>>, vector<32x32xbf16>
    %c0_44 = arith.constant 0 : index
    %c0_45 = arith.constant 0 : index
    %78 = vector.load %arg13[%c0_44, %c0_45] : memref<32x32xbf16, #tpu.memory_space<vmem>>, vector<32x32xbf16>
    %c0_46 = arith.constant 0 : index
    %c0_47 = arith.constant 0 : index
    %79 = vector.load %arg14[%c0_46, %c0_47] : memref<32x32xbf16, #tpu.memory_space<vmem>>, vector<32x32xbf16>
    %c0_48 = arith.constant 0 : index
    %c0_49 = arith.constant 0 : index
    %c0_50 = arith.constant 0 : index
    %80 = vector.load %arg15[%c0_48, %c0_49, %c0_50] : memref<4x8x32xbf16, #tpu.memory_space<vmem>>, vector<4x8x32xbf16>
    %c0_51 = arith.constant 0 : index
    %c0_52 = arith.constant 0 : index
    %81 = vector.load %arg16[%c0_51, %c0_52] : memref<1x32xf32, #tpu.memory_space<vmem>>, vector<1x32xf32>
    %82 = arith.truncf %76 : vector<8x32xf32> to vector<8x32xbf16>
    %83 = arith.truncf %3 : vector<8x32xf32> to vector<8x32xbf16>
    %cst_53 = arith.constant dense<0.000000e+00> : vector<8x32xf32>
    %84 = tpu.matmul %83, %77, %cst_53 {dimension_numbers = #tpu.dot_dimension_numbers<[1], [0], [0], [1], [0, 0, 1, 1], [], []>} : vector<8x32xbf16>, vector<32x32xbf16>, vector<8x32xf32> -> vector<8x32xf32>
    %cst_54 = arith.constant dense<0.000000e+00> : vector<8x32xf32>
    %85 = tpu.matmul %83, %78, %cst_54 {dimension_numbers = #tpu.dot_dimension_numbers<[1], [0], [0], [1], [0, 0, 1, 1], [], []>} : vector<8x32xbf16>, vector<32x32xbf16>, vector<8x32xf32> -> vector<8x32xf32>
    %cst_55 = arith.constant dense<0.000000e+00> : vector<8x32xf32>
    %86 = tpu.matmul %82, %79, %cst_55 {dimension_numbers = #tpu.dot_dimension_numbers<[1], [0], [0], [1], [0, 0, 1, 1], [], []>} : vector<8x32xbf16>, vector<32x32xbf16>, vector<8x32xf32> -> vector<8x32xf32>
    %cst_56 = arith.constant 0.176776692 : f32
    %87 = vector.broadcast %cst_56 : f32 to vector<8x32xf32>
    %88 = arith.mulf %86, %87 : vector<8x32xf32>
    %89 = vector.shape_cast %88 : vector<8x32xf32> to vector<8x4x8xf32>
    %90 = tpu.transpose %89, [1, 0, 2] : vector<8x4x8xf32> -> vector<4x8x8xf32>
    %91 = arith.truncf %90 : vector<4x8x8xf32> to vector<4x8x8xbf16>
    %92 = vector.shape_cast %85 : vector<8x32xf32> to vector<8x4x8xf32>
    %93 = tpu.transpose %92, [1, 0, 2] : vector<8x4x8xf32> -> vector<4x8x8xf32>
    %94 = arith.truncf %93 : vector<4x8x8xf32> to vector<4x8x8xbf16>
    %95 = vector.shape_cast %84 : vector<8x32xf32> to vector<8x4x8xf32>
    %96 = tpu.transpose %95, [1, 0, 2] : vector<8x4x8xf32> -> vector<4x8x8xf32>
    %97 = arith.truncf %96 : vector<4x8x8xf32> to vector<4x8x8xbf16>
    "tpu.trace_start"() <{level = 10 : i32, message = "hqd,hkd->hqk"}> : () -> ()
    %cst_57 = arith.constant dense<0.000000e+00> : vector<4x8x8xf32>
    %98 = tpu.matmul %91, %94, %cst_57 {dimension_numbers = #tpu.dot_dimension_numbers<[2], [2], [1], [1], [0, 0, 0, 1, 1, 1], [0], [0]>} : vector<4x8x8xbf16>, vector<4x8x8xbf16>, vector<4x8x8xf32> -> vector<4x8x8xf32>
    "tpu.trace_stop"() : () -> ()
    %99 = vector.shape_cast %7 : vector<8x8xf32> to vector<1x8x8xf32>
    %cst_58 = arith.constant 0.000000e+00 : f32
    %100 = vector.broadcast %cst_58 : f32 to vector<1x8x8xf32>
    %101 = arith.cmpf oeq, %99, %100 : vector<1x8x8xf32>
    %cst_59 = arith.constant -1.000000e+20 : f32
    %102 = vector.shape_cast %101 : vector<1x8x8xi1> to vector<1x8x8xi1>
    %103 = vector.broadcast %102 : vector<1x8x8xi1> to vector<4x8x8xi1>
    %104 = vector.broadcast %cst_59 : f32 to vector<4x8x8xf32>
    %105 = arith.select %103, %104, %98 : vector<4x8x8xi1>, vector<4x8x8xf32>
    %cst_60 = arith.constant dense<0xFF800000> : vector<4x8xf32>
    %106 = vector.multi_reduction <maximumf>, %105, %cst_60 [2] : vector<4x8x8xf32> to vector<4x8xf32>
    %107 = vector.shape_cast %106 : vector<4x8xf32> to vector<4x8x1xf32>
    %108 = vector.broadcast %107 : vector<4x8x1xf32> to vector<4x8x8xf32>
    %109 = arith.subf %105, %108 : vector<4x8x8xf32>
    %110 = math.exp %109 : vector<4x8x8xf32>
    %cst_61 = arith.constant dense<0.000000e+00> : vector<4x8xf32>
    %111 = vector.multi_reduction <add>, %110, %cst_61 [2] : vector<4x8x8xf32> to vector<4x8xf32>
    %112 = vector.shape_cast %111 : vector<4x8xf32> to vector<4x8x1xf32>
    %113 = tpu.reciprocal %112 {approx = true} : vector<4x8x1xf32> -> vector<4x8x1xf32>
    %114 = vector.broadcast %113 : vector<4x8x1xf32> to vector<4x8x8xf32>
    %115 = arith.mulf %110, %114 : vector<4x8x8xf32>
    %116 = arith.truncf %115 : vector<4x8x8xf32> to vector<4x8x8xbf16>
    "tpu.trace_start"() <{level = 10 : i32, message = "hqk,hkd->hqd"}> : () -> ()
    %cst_62 = arith.constant dense<0.000000e+00> : vector<4x8x8xf32>
    %117 = tpu.matmul %116, %97, %cst_62 {dimension_numbers = #tpu.dot_dimension_numbers<[2], [1], [1], [2], [0, 0, 0, 1, 1, 2], [0], [0]>} : vector<4x8x8xbf16>, vector<4x8x8xbf16>, vector<4x8x8xf32> -> vector<4x8x8xf32>
    "tpu.trace_stop"() : () -> ()
    %118 = arith.truncf %117 : vector<4x8x8xf32> to vector<4x8x8xbf16>
    "tpu.trace_start"() <{level = 10 : i32, message = "hqd,hde->hqe"}> : () -> ()
    %cst_63 = arith.constant dense<0.000000e+00> : vector<4x8x32xf32>
    %119 = tpu.matmul %118, %80, %cst_63 {dimension_numbers = #tpu.dot_dimension_numbers<[2], [1], [1], [2], [0, 0, 0, 1, 1, 2], [0], [0]>} : vector<4x8x8xbf16>, vector<4x8x32xbf16>, vector<4x8x32xf32> -> vector<4x8x32xf32>
    "tpu.trace_stop"() : () -> ()
    %cst_64 = arith.constant dense<0.000000e+00> : vector<8x32xf32>
    %120 = vector.multi_reduction <add>, %119, %cst_64 [0] : vector<4x8x32xf32> to vector<8x32xf32>
    %121 = vector.broadcast %81 : vector<1x32xf32> to vector<8x32xf32>
    %122 = arith.addf %120, %121 : vector<8x32xf32>
    %c0_65 = arith.constant 0 : index
    %c0_66 = arith.constant 0 : index
    %123 = vector.load %arg17[%c0_65, %c0_66] : memref<1x32xf32, #tpu.memory_space<vmem>>, vector<1x32xf32>
    %c0_67 = arith.constant 0 : index
    %c0_68 = arith.constant 0 : index
    %124 = vector.load %arg18[%c0_67, %c0_68] : memref<1x32xf32, #tpu.memory_space<vmem>>, vector<1x32xf32>
    %125 = arith.addf %122, %76 : vector<8x32xf32>
    %cst_69 = arith.constant dense<0.000000e+00> : vector<8xf32>
    %126 = vector.multi_reduction <add>, %125, %cst_69 [1] : vector<8x32xf32> to vector<8xf32>
    %127 = vector.shape_cast %126 : vector<8xf32> to vector<8x1xf32>
    %cst_70 = arith.constant 3.200000e+01 : f32
    %128 = vector.broadcast %cst_70 : f32 to vector<8x1xf32>
    %129 = arith.divf %127, %128 : vector<8x1xf32>
    %130 = vector.broadcast %129 : vector<8x1xf32> to vector<8x32xf32>
    %131 = arith.subf %125, %130 : vector<8x32xf32>
    %132 = arith.mulf %131, %131 : vector<8x32xf32>
    %cst_71 = arith.constant dense<0.000000e+00> : vector<8xf32>
    %133 = vector.multi_reduction <add>, %132, %cst_71 [1] : vector<8x32xf32> to vector<8xf32>
    %134 = vector.shape_cast %133 : vector<8xf32> to vector<8x1xf32>
    %cst_72 = arith.constant 3.200000e+01 : f32
    %135 = vector.broadcast %cst_72 : f32 to vector<8x1xf32>
    %136 = arith.divf %134, %135 : vector<8x1xf32>
    %cst_73 = arith.constant 9.99999974E-6 : f32
    %137 = vector.broadcast %cst_73 : f32 to vector<8x1xf32>
    %138 = arith.addf %136, %137 : vector<8x1xf32>
    %139 = math.rsqrt %138 : vector<8x1xf32>
    %140 = vector.broadcast %139 : vector<8x1xf32> to vector<8x32xf32>
    %141 = arith.mulf %131, %140 : vector<8x32xf32>
    %142 = vector.broadcast %123 : vector<1x32xf32> to vector<8x32xf32>
    %143 = arith.mulf %141, %142 : vector<8x32xf32>
    %144 = vector.broadcast %124 : vector<1x32xf32> to vector<8x32xf32>
    %145 = arith.addf %143, %144 : vector<8x32xf32>
    %146 = arith.truncf %145 : vector<8x32xf32> to vector<8x32xbf16>
    %c0_74 = arith.constant 0 : index
    %c0_75 = arith.constant 0 : index
    %147 = vector.load %arg19[%c0_74, %c0_75] : memref<32x64xbf16, #tpu.memory_space<vmem>>, vector<32x64xbf16>
    %cst_76 = arith.constant dense<0.000000e+00> : vector<8x64xf32>
    %148 = tpu.matmul %146, %147, %cst_76 {dimension_numbers = #tpu.dot_dimension_numbers<[1], [0], [0], [1], [0, 0, 1, 1], [], []>} : vector<8x32xbf16>, vector<32x64xbf16>, vector<8x64xf32> -> vector<8x64xf32>
    %c0_77 = arith.constant 0 : index
    %c0_78 = arith.constant 0 : index
    %149 = vector.load %arg20[%c0_77, %c0_78] : memref<1x64xf32, #tpu.memory_space<vmem>>, vector<1x64xf32>
    %150 = vector.broadcast %149 : vector<1x64xf32> to vector<8x64xf32>
    %151 = arith.addf %148, %150 : vector<8x64xf32>
    %cst_79 = arith.constant 0.000000e+00 : f32
    %152 = vector.broadcast %cst_79 : f32 to vector<8x64xf32>
    %153 = arith.maximumf %151, %152 : vector<8x64xf32>
    %154 = arith.truncf %153 : vector<8x64xf32> to vector<8x64xbf16>
    %c0_80 = arith.constant 0 : index
    %c0_81 = arith.constant 0 : index
    %155 = vector.load %arg21[%c0_80, %c0_81] : memref<64x32xbf16, #tpu.memory_space<vmem>>, vector<64x32xbf16>
    %cst_82 = arith.constant dense<0.000000e+00> : vector<8x32xf32>
    %156 = tpu.matmul %154, %155, %cst_82 {dimension_numbers = #tpu.dot_dimension_numbers<[1], [0], [0], [1], [0, 0, 1, 1], [], []>} : vector<8x64xbf16>, vector<64x32xbf16>, vector<8x32xf32> -> vector<8x32xf32>
    %c0_83 = arith.constant 0 : index
    %c0_84 = arith.constant 0 : index
    %157 = vector.load %arg22[%c0_83, %c0_84] : memref<1x32xf32, #tpu.memory_space<vmem>>, vector<1x32xf32>
    %158 = vector.broadcast %157 : vector<1x32xf32> to vector<8x32xf32>
    %159 = arith.addf %156, %158 : vector<8x32xf32>
    %c0_85 = arith.constant 0 : index
    %c0_86 = arith.constant 0 : index
    %160 = vector.load %arg23[%c0_85, %c0_86] : memref<1x32xf32, #tpu.memory_space<vmem>>, vector<1x32xf32>
    %c0_87 = arith.constant 0 : index
    %c0_88 = arith.constant 0 : index
    %161 = vector.load %arg24[%c0_87, %c0_88] : memref<1x32xf32, #tpu.memory_space<vmem>>, vector<1x32xf32>
    %162 = arith.addf %159, %145 : vector<8x32xf32>
    %cst_89 = arith.constant dense<0.000000e+00> : vector<8xf32>
    %163 = vector.multi_reduction <add>, %162, %cst_89 [1] : vector<8x32xf32> to vector<8xf32>
    %164 = vector.shape_cast %163 : vector<8xf32> to vector<8x1xf32>
    %cst_90 = arith.constant 3.200000e+01 : f32
    %165 = vector.broadcast %cst_90 : f32 to vector<8x1xf32>
    %166 = arith.divf %164, %165 : vector<8x1xf32>
    %167 = vector.broadcast %166 : vector<8x1xf32> to vector<8x32xf32>
    %168 = arith.subf %162, %167 : vector<8x32xf32>
    %169 = arith.mulf %168, %168 : vector<8x32xf32>
    %cst_91 = arith.constant dense<0.000000e+00> : vector<8xf32>
    %170 = vector.multi_reduction <add>, %169, %cst_91 [1] : vector<8x32xf32> to vector<8xf32>
    %171 = vector.shape_cast %170 : vector<8xf32> to vector<8x1xf32>
    %cst_92 = arith.constant 3.200000e+01 : f32
    %172 = vector.broadcast %cst_92 : f32 to vector<8x1xf32>
    %173 = arith.divf %171, %172 : vector<8x1xf32>
    %cst_93 = arith.constant 9.99999974E-6 : f32
    %174 = vector.broadcast %cst_93 : f32 to vector<8x1xf32>
    %175 = arith.addf %173, %174 : vector<8x1xf32>
    %176 = math.rsqrt %175 : vector<8x1xf32>
    %177 = vector.broadcast %176 : vector<8x1xf32> to vector<8x32xf32>
    %178 = arith.mulf %168, %177 : vector<8x32xf32>
    %179 = vector.broadcast %160 : vector<1x32xf32> to vector<8x32xf32>
    %180 = arith.mulf %178, %179 : vector<8x32xf32>
    %181 = vector.broadcast %161 : vector<1x32xf32> to vector<8x32xf32>
    %182 = arith.addf %180, %181 : vector<8x32xf32>
    %c0_94 = arith.constant 0 : index
    %c0_95 = arith.constant 0 : index
    %c0_96 = arith.constant 0 : index
    %183 = vector.load %arg25[%c0_94, %c0_95, %c0_96] : memref<1x8x32xf32, #tpu.memory_space<vmem>>, vector<1x8x32xf32>
    %184 = vector.shape_cast %183 : vector<1x8x32xf32> to vector<8x32xf32>
    %185 = vector.shape_cast %182 : vector<8x32xf32> to vector<1x8x32xf32>
    tpu.vector_store %arg25[%c0_94, %c0_95, %c0_96], %185 {strides = array<i32>} : memref<1x8x32xf32, #tpu.memory_space<vmem>>, vector<1x8x32xf32>,
    return
  }
  func.func @transform_0(%arg0: i32) -> (i32, i32, i32) {
    %c0_i32 = arith.constant 0 : i32
    %c0_i32_0 = arith.constant 0 : i32
    %c0_i32_1 = arith.constant 0 : i32
    return %arg0, %c0_i32, %c0_i32_0 : i32, i32, i32
  }
  func.func @transform_1(%arg0: i32) -> (i32, i32, i32) {
    %c0_i32 = arith.constant 0 : i32
    %c0_i32_0 = arith.constant 0 : i32
    %c0_i32_1 = arith.constant 0 : i32
    return %arg0, %c0_i32, %c0_i32_0 : i32, i32, i32
  }
  func.func @transform_2(%arg0: i32) -> (i32, i32, i32) {
    %c0_i32 = arith.constant 0 : i32
    %c0_i32_0 = arith.constant 0 : i32
    %c0_i32_1 = arith.constant 0 : i32
    return %arg0, %c0_i32, %c0_i32_0 : i32, i32, i32
  }
  func.func @transform_3(%arg0: i32) -> (i32, i32, i32) {
    %c0_i32 = arith.constant 0 : i32
    %c0_i32_0 = arith.constant 0 : i32
    %c0_i32_1 = arith.constant 0 : i32
    return %arg0, %c0_i32, %c0_i32_0 : i32, i32, i32
  }
  func.func @transform_4(%arg0: i32) -> (i32, i32) {
    %c0_i32 = arith.constant 0 : i32
    %c0_i32_0 = arith.constant 0 : i32
    %c0_i32_1 = arith.constant 0 : i32
    return %c0_i32, %c0_i32_0 : i32, i32
  }
  func.func @transform_5(%arg0: i32) -> (i32, i32) {
    %c0_i32 = arith.constant 0 : i32
    %c0_i32_0 = arith.constant 0 : i32
    %c0_i32_1 = arith.constant 0 : i32
    return %c0_i32, %c0_i32_0 : i32, i32
  }
  func.func @transform_6(%arg0: i32) -> (i32, i32) {
    %c0_i32 = arith.constant 0 : i32
    %c0_i32_0 = arith.constant 0 : i32
    %c0_i32_1 = arith.constant 0 : i32
    return %c0_i32, %c0_i32_0 : i32, i32
  }
  func.func @transform_7(%arg0: i32) -> (i32, i32, i32) {
    %c0_i32 = arith.constant 0 : i32
    %c0_i32_0 = arith.constant 0 : i32
    %c0_i32_1 = arith.constant 0 : i32
    %c0_i32_2 = arith.constant 0 : i32
    return %c0_i32, %c0_i32_0, %c0_i32_1 : i32, i32, i32
  }
  func.func @transform_8(%arg0: i32) -> (i32, i32) {
    %c0_i32 = arith.constant 0 : i32
    %c0_i32_0 = arith.constant 0 : i32
    %c0_i32_1 = arith.constant 0 : i32
    return %c0_i32, %c0_i32_0 : i32, i32
  }
  func.func @transform_9(%arg0: i32) -> (i32, i32) {
    %c0_i32 = arith.constant 0 : i32
    %c0_i32_0 = arith.constant 0 : i32
    %c0_i32_1 = arith.constant 0 : i32
    return %c0_i32, %c0_i32_0 : i32, i32
  }
  func.func @transform_10(%arg0: i32) -> (i32, i32) {
    %c0_i32 = arith.constant 0 : i32
    %c0_i32_0 = arith.constant 0 : i32
    %c0_i32_1 = arith.constant 0 : i32
    return %c0_i32, %c0_i32_0 : i32, i32
  }
  func.func @transform_11(%arg0: i32) -> (i32, i32) {
    %c0_i32 = arith.constant 0 : i32
    %c0_i32_0 = arith.constant 0 : i32
    %c0_i32_1 = arith.constant 0 : i32
    return %c0_i32, %c0_i32_0 : i32, i32
  }
  func.func @transform_12(%arg0: i32) -> (i32, i32) {
    %c0_i32 = arith.constant 0 : i32
    %c0_i32_0 = arith.constant 0 : i32
    %c0_i32_1 = arith.constant 0 : i32
    return %c0_i32, %c0_i32_0 : i32, i32
  }
  func.func @transform_13(%arg0: i32) -> (i32, i32) {
    %c0_i32 = arith.constant 0 : i32
    %c0_i32_0 = arith.constant 0 : i32
    %c0_i32_1 = arith.constant 0 : i32
    return %c0_i32, %c0_i32_0 : i32, i32
  }
  func.func @transform_14(%arg0: i32) -> (i32, i32, i32) {
    %c0_i32 = arith.constant 0 : i32
    %c0_i32_0 = arith.constant 0 : i32
    %c0_i32_1 = arith.constant 0 : i32
    %c0_i32_2 = arith.constant 0 : i32
    return %c0_i32, %c0_i32_0, %c0_i32_1 : i32, i32, i32
  }
  func.func @transform_15(%arg0: i32) -> (i32, i32) {
    %c0_i32 = arith.constant 0 : i32
    %c0_i32_0 = arith.constant 0 : i32
    %c0_i32_1 = arith.constant 0 : i32
    return %c0_i32, %c0_i32_0 : i32, i32
  }
  func.func @transform_16(%arg0: i32) -> (i32, i32) {
    %c0_i32 = arith.constant 0 : i32
    %c0_i32_0 = arith.constant 0 : i32
    %c0_i32_1 = arith.constant 0 : i32
    return %c0_i32, %c0_i32_0 : i32, i32
  }
  func.func @transform_17(%arg0: i32) -> (i32, i32) {
    %c0_i32 = arith.constant 0 : i32
    %c0_i32_0 = arith.constant 0 : i32
    %c0_i32_1 = arith.constant 0 : i32
    return %c0_i32, %c0_i32_0 : i32, i32
  }
  func.func @transform_18(%arg0: i32) -> (i32, i32) {
    %c0_i32 = arith.constant 0 : i32
    %c0_i32_0 = arith.constant 0 : i32
    %c0_i32_1 = arith.constant 0 : i32
    return %c0_i32, %c0_i32_0 : i32, i32
  }
  func.func @transform_19(%arg0: i32) -> (i32, i32) {
    %c0_i32 = arith.constant 0 : i32
    %c0_i32_0 = arith.constant 0 : i32
    %c0_i32_1 = arith.constant 0 : i32
    return %c0_i32, %c0_i32_0 : i32, i32
  }
  func.func @transform_20(%arg0: i32) -> (i32, i32) {
    %c0_i32 = arith.constant 0 : i32
    %c0_i32_0 = arith.constant 0 : i32
    %c0_i32_1 = arith.constant 0 : i32
    return %c0_i32, %c0_i32_0 : i32, i32
  }
  func.func @transform_21(%arg0: i32) -> (i32, i32) {
    %c0_i32 = arith.constant 0 : i32
    %c0_i32_0 = arith.constant 0 : i32
    %c0_i32_1 = arith.constant 0 : i32
    return %c0_i32, %c0_i32_0 : i32, i32
  }
  func.func @transform_22(%arg0: i32) -> (i32, i32) {
    %c0_i32 = arith.constant 0 : i32
    %c0_i32_0 = arith.constant 0 : i32
    %c0_i32_1 = arith.constant 0 : i32
    return %c0_i32, %c0_i32_0 : i32, i32
  }
  func.func @transform_23(%arg0: i32) -> (i32, i32) {
    %c0_i32 = arith.constant 0 : i32
    %c0_i32_0 = arith.constant 0 : i32
    %c0_i32_1 = arith.constant 0 : i32
    return %c0_i32, %c0_i32_0 : i32, i32
  }
  func.func @transform_24(%arg0: i32) -> (i32, i32, i32) {
    %c0_i32 = arith.constant 0 : i32
    %c0_i32_0 = arith.constant 0 : i32
    %c0_i32_1 = arith.constant 0 : i32
    return %arg0, %c0_i32, %c0_i32_0 : i32, i32, i32
  }
}

module attributes {stable_mosaic.version = 11 : i64} {
  func.func @_decoder_layer_kernel(%arg0: i32, %arg1: memref<1x8x32xf32, #tpu.memory_space<vmem>>, %arg2: memref<1x8x32xf32, #tpu.memory_space<vmem>>, %arg3: memref<1x8x8xf32, #tpu.memory_space<vmem>>, %arg4: memref<1x8x8xf32, #tpu.memory_space<vmem>>, %arg5: memref<32x32xbf16, #tpu.memory_space<vmem>>, %arg6: memref<32x32xbf16, #tpu.memory_space<vmem>>, %arg7: memref<32x32xbf16, #tpu.memory_space<vmem>>, %arg8: memref<4x8x32xbf16, #tpu.memory_space<vmem>>, %arg9: memref<1x32xf32, #tpu.memory_space<vmem>>, %arg10: memref<1x32xf32, #tpu.memory_space<vmem>>, %arg11: memref<1x32xf32, #tpu.memory_space<vmem>>, %arg12: memref<32x32xbf16, #tpu.memory_space<vmem>>, %arg13: memref<32x32xbf16, #tpu.memory_space<vmem>>, %arg14: memref<32x32xbf16, #tpu.memory_space<vmem>>, %arg15: memref<4x8x32xbf16, #tpu.memory_space<vmem>>, %arg16: memref<1x32xf32, #tpu.memory_space<vmem>>, %arg17: memref<1x32xf32, #tpu.memory_space<vmem>>, %arg18: memref<1x32xf32, #tpu.memory_space<vmem>>, %arg19: memref<32x64xbf16, #tpu.memory_space<vmem>>, %arg20: memref<1x64xf32, #tpu.memory_space<vmem>>, %arg21: memref<64x32xbf16, #tpu.memory_space<vmem>>, %arg22: memref<1x32xf32, #tpu.memory_space<vmem>>, %arg23: memref<1x32xf32, #tpu.memory_space<vmem>>, %arg24: memref<1x32xf32, #tpu.memory_space<vmem>>, %arg25: memref<1x8x32xf32, #tpu.memory_space<vmem>>) attributes {dimension_semantics = [#tpu.dimension_semantics<parallel>], iteration_bounds = array<i64: 2>, scalar_prefetch = 0 : i64, scratch_operands = 0 : i64, tpu.core_type = #tpu.core_type<tc>, window_params = [{transform_indices = @transform_0, window_bounds = array<i64: 1, 8, 32>}, {transform_indices = @transform_1, window_bounds = array<i64: 1, 8, 32>}, {transform_indices = @transform_2, window_bounds = array<i64: 1, 8, 8>}, {transform_indices = @transform_3, window_bounds = array<i64: 1, 8, 8>}, {pipeline_mode = #tpu.pipeline_mode<synchronous>, transform_indices = @transform_4, window_bounds = array<i64: 32, 32>}, {pipeline_mode = #tpu.pipeline_mode<synchronous>, transform_indices = @transform_5, window_bounds = array<i64: 32, 32>}, {pipeline_mode = #tpu.pipeline_mode<synchronous>, transform_indices = @transform_6, window_bounds = array<i64: 32, 32>}, {pipeline_mode = #tpu.pipeline_mode<synchronous>, transform_indices = @transform_7, window_bounds = array<i64: 4, 8, 32>}, {pipeline_mode = #tpu.pipeline_mode<synchronous>, transform_indices = @transform_8, window_bounds = array<i64: 1, 32>}, {pipeline_mode = #tpu.pipeline_mode<synchronous>, transform_indices = @transform_9, window_bounds = array<i64: 1, 32>}, {pipeline_mode = #tpu.pipeline_mode<synchronous>, transform_indices = @transform_10, window_bounds = array<i64: 1, 32>}, {pipeline_mode = #tpu.pipeline_mode<synchronous>, transform_indices = @transform_11, window_bounds = array<i64: 32, 32>}, {pipeline_mode = #tpu.pipeline_mode<synchronous>, transform_indices = @transform_12, window_bounds = array<i64: 32, 32>}, {pipeline_mode = #tpu.pipeline_mode<synchronous>, transform_indices = @transform_13, window_bounds = array<i64: 32, 32>}, {pipeline_mode = #tpu.pipeline_mode<synchronous>, transform_indices = @transform_14, window_bounds = array<i64: 4, 8, 32>}, {pipeline_mode = #tpu.pipeline_mode<synchronous>, transform_indices = @transform_15, window_bounds = array<i64: 1, 32>}, {pipeline_mode = #tpu.pipeline_mode<synchronous>, transform_indices = @transform_16, window_bounds = array<i64: 1, 32>}, {pipeline_mode = #tpu.pipeline_mode<synchronous>, transform_indices = @transform_17, window_bounds = array<i64: 1, 32>}, {pipeline_mode = #tpu.pipeline_mode<synchronous>, transform_indices = @transform_18, window_bounds = array<i64: 32, 64>}, {pipeline_mode = #tpu.pipeline_mode<synchronous>, transform_indices = @transform_19, window_bounds = array<i64: 1, 64>}, {pipeline_mode = #tpu.pipeline_mode<synchronous>, transform_indices = @transform_20, window_bounds = array<i64: 64, 32>}, {pipeline_mode = #tpu.pipeline_mode<synchronous>, transform_indices = @transform_21, window_bounds = array<i64: 1, 32>}, {pipeline_mode = #tpu.pipeline_mode<synchronous>, transform_indices = @transform_22, window_bounds = array<i64: 1, 32>}, {pipeline_mode = #tpu.pipeline_mode<synchronous>, transform_indices = @transform_23, window_bounds = array<i64: 1, 32>}, {transform_indices = @transform_24, window_bounds = array<i64: 1, 8, 32>}]} {
    %c0 = arith.constant 0 : index
    %c0_0 = arith.constant 0 : index
    %c0_1 = arith.constant 0 : index
    %0 = vector.load %arg1[%c0, %c0_0, %c0_1] : memref<1x8x32xf32, #tpu.memory_space<vmem>>, vector<1x8x32xf32>
    %1 = vector.shape_cast %0 : vector<1x8x32xf32> to vector<8x32xf32>
    %c0_2 = arith.constant 0 : index
    %c0_3 = arith.constant 0 : index
    %c0_4 = arith.constant 0 : index
    %2 = vector.load %arg2[%c0_2, %c0_3, %c0_4] : memref<1x8x32xf32, #tpu.memory_space<vmem>>, vector<1x8x32xf32>
    %3 = vector.shape_cast %2 : vector<1x8x32xf32> to vector<8x32xf32>
    %c0_5 = arith.constant 0 : index
    %c0_6 = arith.constant 0 : index
    %c0_7 = arith.constant 0 : index
    %4 = vector.load %arg3[%c0_5, %c0_6, %c0_7] : memref<1x8x8xf32, #tpu.memory_space<vmem>>, vector<1x8x8xf32>
    %5 = vector.shape_cast %4 : vector<1x8x8xf32> to vector<8x8xf32>
    %c0_8 = arith.constant 0 : index
    %c0_9 = arith.constant 0 : index
    %c0_10 = arith.constant 0 : index
    %6 = vector.load %arg4[%c0_8, %c0_9, %c0_10] : memref<1x8x8xf32, #tpu.memory_space<vmem>>, vector<1x8x8xf32>
    %7 = vector.shape_cast %6 : vector<1x8x8xf32> to vector<8x8xf32>
    %c0_11 = arith.constant 0 : index
    %c0_12 = arith.constant 0 : index
    %8 = vector.load %arg5[%c0_11, %c0_12] : memref<32x32xbf16, #tpu.memory_space<vmem>>, vector<32x32xbf16>
    %c0_13 = arith.constant 0 : index
    %c0_14 = arith.constant 0 : index
    %9 = vector.load %arg6[%c0_13, %c0_14] : memref<32x32xbf16, #tpu.memory_space<vmem>>, vector<32x32xbf16>
    %c0_15 = arith.constant 0 : index
    %c0_16 = arith.constant 0 : index
    %10 = vector.load %arg7[%c0_15, %c0_16] : memref<32x32xbf16, #tpu.memory_space<vmem>>, vector<32x32xbf16>
    %c0_17 = arith.constant 0 : index
    %c0_18 = arith.constant 0 : index
    %c0_19 = arith.constant 0 : index
    %11 = vector.load %arg8[%c0_17, %c0_18, %c0_19] : memref<4x8x32xbf16, #tpu.memory_space<vmem>>, vector<4x8x32xbf16>
    %c0_20 = arith.constant 0 : index
    %c0_21 = arith.constant 0 : index
    %12 = vector.load %arg9[%c0_20, %c0_21] : memref<1x32xf32, #tpu.memory_space<vmem>>, vector<1x32xf32>
    %13 = arith.truncf %1 : vector<8x32xf32> to vector<8x32xbf16>
    %14 = arith.truncf %1 : vector<8x32xf32> to vector<8x32xbf16>
    %cst = arith.constant dense<0.000000e+00> : vector<8x32xf32>
    %15 = tpu.matmul %14, %8, %cst {dimension_numbers = #tpu.dot_dimension_numbers<[1], [0], [0], [1], [0, 0, 1, 1], [], []>} : vector<8x32xbf16>, vector<32x32xbf16>, vector<8x32xf32> -> vector<8x32xf32>
    %cst_22 = arith.constant dense<0.000000e+00> : vector<8x32xf32>
    %16 = tpu.matmul %14, %9, %cst_22 {dimension_numbers = #tpu.dot_dimension_numbers<[1], [0], [0], [1], [0, 0, 1, 1], [], []>} : vector<8x32xbf16>, vector<32x32xbf16>, vector<8x32xf32> -> vector<8x32xf32>
    %cst_23 = arith.constant dense<0.000000e+00> : vector<8x32xf32>
    %17 = tpu.matmul %13, %10, %cst_23 {dimension_numbers = #tpu.dot_dimension_numbers<[1], [0], [0], [1], [0, 0, 1, 1], [], []>} : vector<8x32xbf16>, vector<32x32xbf16>, vector<8x32xf32> -> vector<8x32xf32>
    %cst_24 = arith.constant 0.176776692 : f32
    %18 = vector.broadcast %cst_24 : f32 to vector<8x32xf32>
    %19 = arith.mulf %17, %18 : vector<8x32xf32>
    %20 = vector.shape_cast %19 : vector<8x32xf32> to vector<8x4x8xf32>
    %21 = tpu.transpose %20, [1, 0, 2] : vector<8x4x8xf32> -> vector<4x8x8xf32>
    %22 = arith.truncf %21 : vector<4x8x8xf32> to vector<4x8x8xbf16>
    %23 = vector.shape_cast %16 : vector<8x32xf32> to vector<8x4x8xf32>
    %24 = tpu.transpose %23, [1, 0, 2] : vector<8x4x8xf32> -> vector<4x8x8xf32>
    %25 = arith.truncf %24 : vector<4x8x8xf32> to vector<4x8x8xbf16>
    %26 = vector.shape_cast %15 : vector<8x32xf32> to vector<8x4x8xf32>
    %27 = tpu.transpose %26, [1, 0, 2] : vector<8x4x8xf32> -> vector<4x8x8xf32>
    %28 = arith.truncf %27 : vector<4x8x8xf32> to vector<4x8x8xbf16>
    "tpu.trace_start"() <{level = 10 : i32, message = "hqd,hkd->hqk"}> : () -> ()
    %cst_25 = arith.constant dense<0.000000e+00> : vector<4x8x8xf32>
    %29 = tpu.matmul %22, %25, %cst_25 {dimension_numbers = #tpu.dot_dimension_numbers<[2], [2], [1], [1], [0, 0, 0, 1, 1, 1], [0], [0]>} : vector<4x8x8xbf16>, vector<4x8x8xbf16>, vector<4x8x8xf32> -> vector<4x8x8xf32>
    "tpu.trace_stop"() : () -> ()
    %30 = vector.shape_cast %5 : vector<8x8xf32> to vector<1x8x8xf32>
    %cst_26 = arith.constant 0.000000e+00 : f32
    %31 = vector.broadcast %cst_26 : f32 to vector<1x8x8xf32>
    %32 = arith.cmpf oeq, %30, %31 : vector<1x8x8xf32>
    %cst_27 = arith.constant -1.000000e+20 : f32
    %33 = vector.shape_cast %32 : vector<1x8x8xi1> to vector<1x8x8xi1>
    %34 = vector.broadcast %33 : vector<1x8x8xi1> to vector<4x8x8xi1>
    %35 = vector.broadcast %cst_27 : f32 to vector<4x8x8xf32>
    %36 = arith.select %34, %35, %29 : vector<4x8x8xi1>, vector<4x8x8xf32>
    %cst_28 = arith.constant dense<0xFF800000> : vector<4x8xf32>
    %37 = vector.multi_reduction <maximumf>, %36, %cst_28 [2] : vector<4x8x8xf32> to vector<4x8xf32>
    %38 = vector.shape_cast %37 : vector<4x8xf32> to vector<4x8x1xf32>
    %39 = vector.broadcast %38 : vector<4x8x1xf32> to vector<4x8x8xf32>
    %40 = arith.subf %36, %39 : vector<4x8x8xf32>
    %41 = math.exp %40 : vector<4x8x8xf32>
    %cst_29 = arith.constant dense<0.000000e+00> : vector<4x8xf32>
    %42 = vector.multi_reduction <add>, %41, %cst_29 [2] : vector<4x8x8xf32> to vector<4x8xf32>
    %43 = vector.shape_cast %42 : vector<4x8xf32> to vector<4x8x1xf32>
    %44 = tpu.reciprocal %43 {approx = true} : vector<4x8x1xf32> -> vector<4x8x1xf32>
    %45 = vector.broadcast %44 : vector<4x8x1xf32> to vector<4x8x8xf32>
    %46 = arith.mulf %41, %45 : vector<4x8x8xf32>
    %47 = arith.truncf %46 : vector<4x8x8xf32> to vector<4x8x8xbf16>
    "tpu.trace_start"() <{level = 10 : i32, message = "hqk,hkd->hqd"}> : () -> ()
    %cst_30 = arith.constant dense<0.000000e+00> : vector<4x8x8xf32>
    %48 = tpu.matmul %47, %28, %cst_30 {dimension_numbers = #tpu.dot_dimension_numbers<[2], [1], [1], [2], [0, 0, 0, 1, 1, 2], [0], [0]>} : vector<4x8x8xbf16>, vector<4x8x8xbf16>, vector<4x8x8xf32> -> vector<4x8x8xf32>
    "tpu.trace_stop"() : () -> ()
    %49 = arith.truncf %48 : vector<4x8x8xf32> to vector<4x8x8xbf16>
    "tpu.trace_start"() <{level = 10 : i32, message = "hqd,hde->hqe"}> : () -> ()
    %cst_31 = arith.constant dense<0.000000e+00> : vector<4x8x32xf32>
    %50 = tpu.matmul %49, %11, %cst_31 {dimension_numbers = #tpu.dot_dimension_numbers<[2], [1], [1], [2], [0, 0, 0, 1, 1, 2], [0], [0]>} : vector<4x8x8xbf16>, vector<4x8x32xbf16>, vector<4x8x32xf32> -> vector<4x8x32xf32>
    "tpu.trace_stop"() : () -> ()
    %cst_32 = arith.constant dense<0.000000e+00> : vector<8x32xf32>
    %51 = vector.multi_reduction <add>, %50, %cst_32 [0] : vector<4x8x32xf32> to vector<8x32xf32>
    %52 = vector.broadcast %12 : vector<1x32xf32> to vector<8x32xf32>
    %53 = arith.addf %51, %52 : vector<8x32xf32>
    %c0_33 = arith.constant 0 : index
    %c0_34 = arith.constant 0 : index
    %54 = vector.load %arg10[%c0_33, %c0_34] : memref<1x32xf32, #tpu.memory_space<vmem>>, vector<1x32xf32>
    %c0_35 = arith.constant 0 : index
    %c0_36 = arith.constant 0 : index
    %55 = vector.load %arg11[%c0_35, %c0_36] : memref<1x32xf32, #tpu.memory_space<vmem>>, vector<1x32xf32>
    %56 = arith.addf %53, %1 : vector<8x32xf32>
    %cst_37 = arith.constant dense<0.000000e+00> : vector<8xf32>
    %57 = vector.multi_reduction <add>, %56, %cst_37 [1] : vector<8x32xf32> to vector<8xf32>
    %58 = vector.shape_cast %57 : vector<8xf32> to vector<8x1xf32>
    %cst_38 = arith.constant 3.200000e+01 : f32
    %59 = vector.broadcast %cst_38 : f32 to vector<8x1xf32>
    %60 = arith.divf %58, %59 : vector<8x1xf32>
    %61 = vector.broadcast %60 : vector<8x1xf32> to vector<8x32xf32>
    %62 = arith.subf %56, %61 : vector<8x32xf32>
    %63 = arith.mulf %62, %62 : vector<8x32xf32>
    %cst_39 = arith.constant dense<0.000000e+00> : vector<8xf32>
    %64 = vector.multi_reduction <add>, %63, %cst_39 [1] : vector<8x32xf32> to vector<8xf32>
    %65 = vector.shape_cast %64 : vector<8xf32> to vector<8x1xf32>
    %cst_40 = arith.constant 3.200000e+01 : f32
    %66 = vector.broadcast %cst_40 : f32 to vector<8x1xf32>
    %67 = arith.divf %65, %66 : vector<8x1xf32>
    %cst_41 = arith.constant 9.99999974E-6 : f32
    %68 = vector.broadcast %cst_41 : f32 to vector<8x1xf32>
    %69 = arith.addf %67, %68 : vector<8x1xf32>
    %70 = math.rsqrt %69 : vector<8x1xf32>
    %71 = vector.broadcast %70 : vector<8x1xf32> to vector<8x32xf32>
    %72 = arith.mulf %62, %71 : vector<8x32xf32>
    %73 = vector.broadcast %54 : vector<1x32xf32> to vector<8x32xf32>
    %74 = arith.mulf %72, %73 : vector<8x32xf32>
    %75 = vector.broadcast %55 : vector<1x32xf32> to vector<8x32xf32>
    %76 = arith.addf %74, %75 : vector<8x32xf32>
    %c0_42 = arith.constant 0 : index
    %c0_43 = arith.constant 0 : index
    %77 = vector.load %arg12[%c0_42, %c0_43] : memref<32x32xbf16, #tpu.memory_space<vmem>>, vector<32x32xbf16>
    %c0_44 = arith.constant 0 : index
    %c0_45 = arith.constant 0 : index
    %78 = vector.load %arg13[%c0_44, %c0_45] : memref<32x32xbf16, #tpu.memory_space<vmem>>, vector<32x32xbf16>
    %c0_46 = arith.constant 0 : index
    %c0_47 = arith.constant 0 : index
    %79 = vector.load %arg14[%c0_46, %c0_47] : memref<32x32xbf16, #tpu.memory_space<vmem>>, vector<32x32xbf16>
    %c0_48 = arith.constant 0 : index
    %c0_49 = arith.constant 0 : index
    %c0_50 = arith.constant 0 : index
    %80 = vector.load %arg15[%c0_48, %c0_49, %c0_50] : memref<4x8x32xbf16, #tpu.memory_space<vmem>>, vector<4x8x32xbf16>
    %c0_51 = arith.constant 0 : index
    %c0_52 = arith.constant 0 : index
    %81 = vector.load %arg16[%c0_51, %c0_52] : memref<1x32xf32, #tpu.memory_space<vmem>>, vector<1x32xf32>
    %82 = arith.truncf %76 : vector<8x32xf32> to vector<8x32xbf16>
    %83 = arith.truncf %3 : vector<8x32xf32> to vector<8x32xbf16>
    %cst_53 = arith.constant dense<0.000000e+00> : vector<8x32xf32>
    %84 = tpu.matmul %83, %77, %cst_53 {dimension_numbers = #tpu.dot_dimension_numbers<[1], [0], [0], [1], [0, 0, 1, 1], [], []>} : vector<8x32xbf16>, vector<32x32xbf16>, vector<8x32xf32> -> vector<8x32xf32>
    %cst_54 = arith.constant dense<0.000000e+00> : vector<8x32xf32>
    %85 = tpu.matmul %83, %78, %cst_54 {dimension_numbers = #tpu.dot_dimension_numbers<[1], [0], [0], [1], [0, 0, 1, 1], [], []>} : vector<8x32xbf16>, vector<32x32xbf16>, vector<8x32xf32> -> vector<8x32xf32>
    %cst_55 = arith.constant dense<0.000000e+00> : vector<8x32xf32>
    %86 = tpu.matmul %82, %79, %cst_55 {dimension_numbers = #tpu.dot_dimension_numbers<[1], [0], [0], [1], [0, 0, 1, 1], [], []>} : vector<8x32xbf16>, vector<32x32xbf16>, vector<8x32xf32> -> vector<8x32xf32>
    %cst_56 = arith.constant 0.176776692 : f32
    %87 = vector.broadcast %cst_56 : f32 to vector<8x32xf32>
    %88 = arith.mulf %86, %87 : vector<8x32xf32>
    %89 = vector.shape_cast %88 : vector<8x32xf32> to vector<8x4x8xf32>
    %90 = tpu.transpose %89, [1, 0, 2] : vector<8x4x8xf32> -> vector<4x8x8xf32>
    %91 = arith.truncf %90 : vector<4x8x8xf32> to vector<4x8x8xbf16>
    %92 = vector.shape_cast %85 : vector<8x32xf32> to vector<8x4x8xf32>
    %93 = tpu.transpose %92, [1, 0, 2] : vector<8x4x8xf32> -> vector<4x8x8xf32>
    %94 = arith.truncf %93 : vector<4x8x8xf32> to vector<4x8x8xbf16>
    %95 = vector.shape_cast %84 : vector<8x32xf32> to vector<8x4x8xf32>
    %96 = tpu.transpose %95, [1, 0, 2] : vector<8x4x8xf32> -> vector<4x8x8xf32>
    %97 = arith.truncf %96 : vector<4x8x8xf32> to vector<4x8x8xbf16>
    "tpu.trace_start"() <{level = 10 : i32, message = "hqd,hkd->hqk"}> : () -> ()
    %cst_57 = arith.constant dense<0.000000e+00> : vector<4x8x8xf32>
    %98 = tpu.matmul %91, %94, %cst_57 {dimension_numbers = #tpu.dot_dimension_numbers<[2], [2], [1], [1], [0, 0, 0, 1, 1, 1], [0], [0]>} : vector<4x8x8xbf16>, vector<4x8x8xbf16>, vector<4x8x8xf32> -> vector<4x8x8xf32>
    "tpu.trace_stop"() : () -> ()
    %99 = vector.shape_cast %7 : vector<8x8xf32> to vector<1x8x8xf32>
    %cst_58 = arith.constant 0.000000e+00 : f32
    %100 = vector.broadcast %cst_58 : f32 to vector<1x8x8xf32>
    %101 = arith.cmpf oeq, %99, %100 : vector<1x8x8xf32>
    %cst_59 = arith.constant -1.000000e+20 : f32
    %102 = vector.shape_cast %101 : vector<1x8x8xi1> to vector<1x8x8xi1>
    %103 = vector.broadcast %102 : vector<1x8x8xi1> to vector<4x8x8xi1>
    %104 = vector.broadcast %cst_59 : f32 to vector<4x8x8xf32>
    %105 = arith.select %103, %104, %98 : vector<4x8x8xi1>, vector<4x8x8xf32>
    %cst_60 = arith.constant dense<0xFF800000> : vector<4x8xf32>
    %106 = vector.multi_reduction <maximumf>, %105, %cst_60 [2] : vector<4x8x8xf32> to vector<4x8xf32>
    %107 = vector.shape_cast %106 : vector<4x8xf32> to vector<4x8x1xf32>
    %108 = vector.broadcast %107 : vector<4x8x1xf32> to vector<4x8x8xf32>
    %109 = arith.subf %105, %108 : vector<4x8x8xf32>
    %110 = math.exp %109 : vector<4x8x8xf32>
    %cst_61 = arith.constant dense<0.000000e+00> : vector<4x8xf32>
    %111 = vector.multi_reduction <add>, %110, %cst_61 [2] : vector<4x8x8xf32> to vector<4x8xf32>
    %112 = vector.shape_cast %111 : vector<4x8xf32> to vector<4x8x1xf32>
    %113 = tpu.reciprocal %112 {approx = true} : vector<4x8x1xf32> -> vector<4x8x1xf32>
    %114 = vector.broadcast %113 : vector<4x8x1xf32> to vector<4x8x8xf32>
    %115 = arith.mulf %110, %114 : vector<4x8x8xf32>
    %116 = arith.truncf %115 : vector<4x8x8xf32> to vector<4x8x8xbf16>
    "tpu.trace_start"() <{level = 10 : i32, message = "hqk,hkd->hqd"}> : () -> ()
    %cst_62 = arith.constant dense<0.000000e+00> : vector<4x8x8xf32>
    %117 = tpu.matmul %116, %97, %cst_62 {dimension_numbers = #tpu.dot_dimension_numbers<[2], [1], [1], [2], [0, 0, 0, 1, 1, 2], [0], [0]>} : vector<4x8x8xbf16>, vector<4x8x8xbf16>, vector<4x8x8xf32> -> vector<4x8x8xf32>
    "tpu.trace_stop"() : () -> ()
    %118 = arith.truncf %117 : vector<4x8x8xf32> to vector<4x8x8xbf16>
    "tpu.trace_start"() <{level = 10 : i32, message = "hqd,hde->hqe"}> : () -> ()
    %cst_63 = arith.constant dense<0.000000e+00> : vector<4x8x32xf32>
    %119 = tpu.matmul %118, %80, %cst_63 {dimension_numbers = #tpu.dot_dimension_numbers<[2], [1], [1], [2], [0, 0, 0, 1, 1, 2], [0], [0]>} : vector<4x8x8xbf16>, vector<4x8x32xbf16>, vector<4x8x32xf32> -> vector<4x8x32xf32>
    "tpu.trace_stop"() : () -> ()
    %cst_64 = arith.constant dense<0.000000e+00> : vector<8x32xf32>
    %120 = vector.multi_reduction <add>, %119, %cst_64 [0] : vector<4x8x32xf32> to vector<8x32xf32>
    %121 = vector.broadcast %81 : vector<1x32xf32> to vector<8x32xf32>
    %122 = arith.addf %120, %121 : vector<8x32xf32>
    %c0_65 = arith.constant 0 : index
    %c0_66 = arith.constant 0 : index
    %123 = vector.load %arg17[%c0_65, %c0_66] : memref<1x32xf32, #tpu.memory_space<vmem>>, vector<1x32xf32>
    %c0_67 = arith.constant 0 : index
    %c0_68 = arith.constant 0 : index
    %124 = vector.load %arg18[%c0_67, %c0_68] : memref<1x32xf32, #tpu.memory_space<vmem>>, vector<1x32xf32>
    %125 = arith.addf %122, %76 : vector<8x32xf32>
    %cst_69 = arith.constant dense<0.000000e+00> : vector<8xf32>
    %126 = vector.multi_reduction <add>, %125, %cst_69 [1] : vector<8x32xf32> to vector<8xf32>
    %127 = vector.shape_cast %126 : vector<8xf32> to vector<8x1xf32>
    %cst_70 = arith.constant 3.200000e+01 : f32
    %128 = vector.broadcast %cst_70 : f32 to vector<8x1xf32>
    %129 = arith.divf %127, %128 : vector<8x1xf32>
    %130 = vector.broadcast %129 : vector<8x1xf32> to vector<8x32xf32>
    %131 = arith.subf %125, %130 : vector<8x32xf32>
    %132 = arith.mulf %131, %131 : vector<8x32xf32>
    %cst_71 = arith.constant dense<0.000000e+00> : vector<8xf32>
    %133 = vector.multi_reduction <add>, %132, %cst_71 [1] : vector<8x32xf32> to vector<8xf32>
    %134 = vector.shape_cast %133 : vector<8xf32> to vector<8x1xf32>
    %cst_72 = arith.constant 3.200000e+01 : f32
    %135 = vector.broadcast %cst_72 : f32 to vector<8x1xf32>
    %136 = arith.divf %134, %135 : vector<8x1xf32>
    %cst_73 = arith.constant 9.99999974E-6 : f32
    %137 = vector.broadcast %cst_73 : f32 to vector<8x1xf32>
    %138 = arith.addf %136, %137 : vector<8x1xf32>
    %139 = math.rsqrt %138 : vector<8x1xf32>
    %140 = vector.broadcast %139 : vector<8x1xf32> to vector<8x32xf32>
    %141 = arith.mulf %131, %140 : vector<8x32xf32>
    %142 = vector.broadcast %123 : vector<1x32xf32> to vector<8x32xf32>
    %143 = arith.mulf %141, %142 : vector<8x32xf32>
    %144 = vector.broadcast %124 : vector<1x32xf32> to vector<8x32xf32>
    %145 = arith.addf %143, %144 : vector<8x32xf32>
    %146 = arith.truncf %145 : vector<8x32xf32> to vector<8x32xbf16>
    %c0_74 = arith.constant 0 : index
    %c0_75 = arith.constant 0 : index
    %147 = vector.load %arg19[%c0_74, %c0_75] : memref<32x64xbf16, #tpu.memory_space<vmem>>, vector<32x64xbf16>
    %cst_76 = arith.constant dense<0.000000e+00> : vector<8x64xf32>
    %148 = tpu.matmul %146, %147, %cst_76 {dimension_numbers = #tpu.dot_dimension_numbers<[1], [0], [0], [1], [0, 0, 1, 1], [], []>} : vector<8x32xbf16>, vector<32x64xbf16>, vector<8x64xf32> -> vector<8x64xf32>
    %c0_77 = arith.constant 0 : index
    %c0_78 = arith.constant 0 : index
    %149 = vector.load %arg20[%c0_77, %c0_78] : memref<1x64xf32, #tpu.memory_space<vmem>>, vector<1x64xf32>
    %150 = vector.broadcast %149 : vector<1x64xf32> to vector<8x64xf32>
    %151 = arith.addf %148, %150 : vector<8x64xf32>
    %cst_79 = arith.constant 0.000000e+00 : f32
    %152 = vector.broadcast %cst_79 : f32 to vector<8x64xf32>
    %153 = arith.maximumf %151, %152 : vector<8x64xf32>
    %154 = arith.truncf %153 : vector<8x64xf32> to vector<8x64xbf16>
    %c0_80 = arith.constant 0 : index
    %c0_81 = arith.constant 0 : index
    %155 = vector.load %arg21[%c0_80, %c0_81] : memref<64x32xbf16, #tpu.memory_space<vmem>>, vector<64x32xbf16>
    %cst_82 = arith.constant dense<0.000000e+00> : vector<8x32xf32>
    %156 = tpu.matmul %154, %155, %cst_82 {dimension_numbers = #tpu.dot_dimension_numbers<[1], [0], [0], [1], [0, 0, 1, 1], [], []>} : vector<8x64xbf16>, vector<64x32xbf16>, vector<8x32xf32> -> vector<8x32xf32>
    %c0_83 = arith.constant 0 : index
    %c0_84 = arith.constant 0 : index
    %157 = vector.load %arg22[%c0_83, %c0_84] : memref<1x32xf32, #tpu.memory_space<vmem>>, vector<1x32xf32>
    %158 = vector.broadcast %157 : vector<1x32xf32> to vector<8x32xf32>
    %159 = arith.addf %156, %158 : vector<8x32xf32>
    %c0_85 = arith.constant 0 : index
    %c0_86 = arith.constant 0 : index
    %160 = vector.load %arg23[%c0_85, %c0_86] : memref<1x32xf32, #tpu.memory_space<vmem>>, vector<1x32xf32>
    %c0_87 = arith.constant 0 : index
    %c0_88 = arith.constant 0 : index
    %161 = vector.load %arg24[%c0_87, %c0_88] : memref<1x32xf32, #tpu.memory_space<vmem>>, vector<1x32xf32>
    %162 = arith.addf %159, %145 : vector<8x32xf32>
    %cst_89 = arith.constant dense<0.000000e+00> : vector<8xf32>
    %163 = vector.multi_reduction <add>, %162, %cst_89 [1] : vector<8x32xf32> to vector<8xf32>
    %164 = vector.shape_cast %163 : vector<8xf32> to vector<8x1xf32>
    %cst_90 = arith.constant 3.200000e+01 : f32
    %165 = vector.broadcast %cst_90 : f32 to vector<8x1xf32>
    %166 = arith.divf %164, %165 : vector<8x1xf32>
    %167 = vector.broadcast %166 : vector<8x1xf32> to vector<8x32xf32>
    %168 = arith.subf %162, %167 : vector<8x32xf32>
    %169 = arith.mulf %168, %168 : vector<8x32xf32>
    %cst_91 = arith.constant dense<0.000000e+00> : vector<8xf32>
    %170 = vector.multi_reduction <add>, %169, %cst_91 [1] : vector<8x32xf32> to vector<8xf32>
    %171 = vector.shape_cast %170 : vector<8xf32> to vector<8x1xf32>
    %cst_92 = arith.constant 3.200000e+01 : f32
    %172 = vector.broadcast %cst_92 : f32 to vector<8x1xf32>
    %173 = arith.divf %171, %172 : vector<8x1xf32>
    %cst_93 = arith.constant 9.99999974E-6 : f32
    %174 = vector.broadcast %cst_93 : f32 to vector<8x1xf32>
    %175 = arith.addf %173, %174 : vector<8x1xf32>
    %176 = math.rsqrt %175 : vector<8x1xf32>
    %177 = vector.broadcast %176 : vector<8x1xf32> to vector<8x32xf32>
    %178 = arith.mulf %168, %177 : vector<8x32xf32>
    %179 = vector.broadcast %160 : vector<1x32xf32> to vector<8x32xf32>
    %180 = arith.mulf %178, %179 : vector<8x32xf32>
    %181 = vector.broadcast %161 : vector<1x32xf32> to vector<8x32xf32>
    %182 = arith.addf %180, %181 : vector<8x32xf32>
    %c0_94 = arith.constant 0 : index
    %c0_95 = arith.constant 0 : index
    %c0_96 = arith.constant 0 : index
    %183 = vector.load %arg25[%c0_94, %c0_95, %c0_96] : memref<1x8x32xf32, #tpu.memory_space<vmem>>, vector<1x8x32xf32>
    %184 = vector.shape_cast %183 : vector<1x8x32xf32> to vector<8x32xf32>
    %185 = vector.shape_cast %182 : vector<8x32xf32> to vector<1x8x32xf32>
    tpu.vector_store %arg25[%c0_94, %c0_95, %c0_96], %185 {strides = array<i32>} : memref<1x8x32xf32, #tpu.memory_space<vmem>>, vector<1x8x32xf32>,
    return
  }
  func.func @transform_0(%arg0: i32) -> (i32, i32, i32) {
    %c0_i32 = arith.constant 0 : i32
    %c0_i32_0 = arith.constant 0 : i32
    %c0_i32_1 = arith.constant 0 : i32
    return %arg0, %c0_i32, %c0_i32_0 : i32, i32, i32
  }
  func.func @transform_1(%arg0: i32) -> (i32, i32, i32) {
    %c0_i32 = arith.constant 0 : i32
    %c0_i32_0 = arith.constant 0 : i32
    %c0_i32_1 = arith.constant 0 : i32
    return %arg0, %c0_i32, %c0_i32_0 : i32, i32, i32
  }
  func.func @transform_2(%arg0: i32) -> (i32, i32, i32) {
    %c0_i32 = arith.constant 0 : i32
    %c0_i32_0 = arith.constant 0 : i32
    %c0_i32_1 = arith.constant 0 : i32
    return %arg0, %c0_i32, %c0_i32_0 : i32, i32, i32
  }
  func.func @transform_3(%arg0: i32) -> (i32, i32, i32) {
    %c0_i32 = arith.constant 0 : i32
    %c0_i32_0 = arith.constant 0 : i32
    %c0_i32_1 = arith.constant 0 : i32
    return %arg0, %c0_i32, %c0_i32_0 : i32, i32, i32
  }
  func.func @transform_4(%arg0: i32) -> (i32, i32) {
    %c0_i32 = arith.constant 0 : i32
    %c0_i32_0 = arith.constant 0 : i32
    %c0_i32_1 = arith.constant 0 : i32
    return %c0_i32, %c0_i32_0 : i32, i32
  }
  func.func @transform_5(%arg0: i32) -> (i32, i32) {
    %c0_i32 = arith.constant 0 : i32
    %c0_i32_0 = arith.constant 0 : i32
    %c0_i32_1 = arith.constant 0 : i32
    return %c0_i32, %c0_i32_0 : i32, i32
  }
  func.func @transform_6(%arg0: i32) -> (i32, i32) {
    %c0_i32 = arith.constant 0 : i32
    %c0_i32_0 = arith.constant 0 : i32
    %c0_i32_1 = arith.constant 0 : i32
    return %c0_i32, %c0_i32_0 : i32, i32
  }
  func.func @transform_7(%arg0: i32) -> (i32, i32, i32) {
    %c0_i32 = arith.constant 0 : i32
    %c0_i32_0 = arith.constant 0 : i32
    %c0_i32_1 = arith.constant 0 : i32
    %c0_i32_2 = arith.constant 0 : i32
    return %c0_i32, %c0_i32_0, %c0_i32_1 : i32, i32, i32
  }
  func.func @transform_8(%arg0: i32) -> (i32, i32) {
    %c0_i32 = arith.constant 0 : i32
    %c0_i32_0 = arith.constant 0 : i32
    %c0_i32_1 = arith.constant 0 : i32
    return %c0_i32, %c0_i32_0 : i32, i32
  }
  func.func @transform_9(%arg0: i32) -> (i32, i32) {
    %c0_i32 = arith.constant 0 : i32
    %c0_i32_0 = arith.constant 0 : i32
    %c0_i32_1 = arith.constant 0 : i32
    return %c0_i32, %c0_i32_0 : i32, i32
  }
  func.func @transform_10(%arg0: i32) -> (i32, i32) {
    %c0_i32 = arith.constant 0 : i32
    %c0_i32_0 = arith.constant 0 : i32
    %c0_i32_1 = arith.constant 0 : i32
    return %c0_i32, %c0_i32_0 : i32, i32
  }
  func.func @transform_11(%arg0: i32) -> (i32, i32) {
    %c0_i32 = arith.constant 0 : i32
    %c0_i32_0 = arith.constant 0 : i32
    %c0_i32_1 = arith.constant 0 : i32
    return %c0_i32, %c0_i32_0 : i32, i32
  }
  func.func @transform_12(%arg0: i32) -> (i32, i32) {
    %c0_i32 = arith.constant 0 : i32
    %c0_i32_0 = arith.constant 0 : i32
    %c0_i32_1 = arith.constant 0 : i32
    return %c0_i32, %c0_i32_0 : i32, i32
  }
  func.func @transform_13(%arg0: i32) -> (i32, i32) {
    %c0_i32 = arith.constant 0 : i32
    %c0_i32_0 = arith.constant 0 : i32
    %c0_i32_1 = arith.constant 0 : i32
    return %c0_i32, %c0_i32_0 : i32, i32
  }
  func.func @transform_14(%arg0: i32) -> (i32, i32, i32) {
    %c0_i32 = arith.constant 0 : i32
    %c0_i32_0 = arith.constant 0 : i32
    %c0_i32_1 = arith.constant 0 : i32
    %c0_i32_2 = arith.constant 0 : i32
    return %c0_i32, %c0_i32_0, %c0_i32_1 : i32, i32, i32
  }
  func.func @transform_15(%arg0: i32) -> (i32, i32) {
    %c0_i32 = arith.constant 0 : i32
    %c0_i32_0 = arith.constant 0 : i32
    %c0_i32_1 = arith.constant 0 : i32
    return %c0_i32, %c0_i32_0 : i32, i32
  }
  func.func @transform_16(%arg0: i32) -> (i32, i32) {
    %c0_i32 = arith.constant 0 : i32
    %c0_i32_0 = arith.constant 0 : i32
    %c0_i32_1 = arith.constant 0 : i32
    return %c0_i32, %c0_i32_0 : i32, i32
  }
  func.func @transform_17(%arg0: i32) -> (i32, i32) {
    %c0_i32 = arith.constant 0 : i32
    %c0_i32_0 = arith.constant 0 : i32
    %c0_i32_1 = arith.constant 0 : i32
    return %c0_i32, %c0_i32_0 : i32, i32
  }
  func.func @transform_18(%arg0: i32) -> (i32, i32) {
    %c0_i32 = arith.constant 0 : i32
    %c0_i32_0 = arith.constant 0 : i32
    %c0_i32_1 = arith.constant 0 : i32
    return %c0_i32, %c0_i32_0 : i32, i32
  }
  func.func @transform_19(%arg0: i32) -> (i32, i32) {
    %c0_i32 = arith.constant 0 : i32
    %c0_i32_0 = arith.constant 0 : i32
    %c0_i32_1 = arith.constant 0 : i32
    return %c0_i32, %c0_i32_0 : i32, i32
  }
  func.func @transform_20(%arg0: i32) -> (i32, i32) {
    %c0_i32 = arith.constant 0 : i32
    %c0_i32_0 = arith.constant 0 : i32
    %c0_i32_1 = arith.constant 0 : i32
    return %c0_i32, %c0_i32_0 : i32, i32
  }
  func.func @transform_21(%arg0: i32) -> (i32, i32) {
    %c0_i32 = arith.constant 0 : i32
    %c0_i32_0 = arith.constant 0 : i32
    %c0_i32_1 = arith.constant 0 : i32
    return %c0_i32, %c0_i32_0 : i32, i32
  }
  func.func @transform_22(%arg0: i32) -> (i32, i32) {
    %c0_i32 = arith.constant 0 : i32
    %c0_i32_0 = arith.constant 0 : i32
    %c0_i32_1 = arith.constant 0 : i32
    return %c0_i32, %c0_i32_0 : i32, i32
  }
  func.func @transform_23(%arg0: i32) -> (i32, i32) {
    %c0_i32 = arith.constant 0 : i32
    %c0_i32_0 = arith.constant 0 : i32
    %c0_i32_1 = arith.constant 0 : i32
    return %c0_i32, %c0_i32_0 : i32, i32
  }
  func.func @transform_24(%arg0: i32) -> (i32, i32, i32) {
    %c0_i32 = arith.constant 0 : i32
    %c0_i32_0 = arith.constant 0 : i32
    %c0_i32_1 = arith.constant 0 : i32
    return %arg0, %c0_i32, %c0_i32_0 : i32, i32, i32
  }
}

</mosaic_0001>

<llo_original>
// kernel: decoder_forward.5
$region0: #{decoder_forward.5}
  #allocation0 [shape = 'u32[]', space=smem, size = 0x4, offset = 0x4, fixed_abs, tag = 'smem constant byte address 0x4 - core index']
  #allocation1 [shape = 'u32[144,128]{1,0:T(1,128)}', space=vmem, size = 0x12000, scoped, tag = 'internal scratch']
  %s0 = inlined_call_operand.vmem [shape: f32[16,32], index: 0, kind: input, shape index: {}]
  %s1 = inlined_call_operand.vmem [shape: bf16[32,128], index: 1, kind: input, shape index: {}]
  %s2 = inlined_call_operand.vmem [shape: f32[1,128], index: 2, kind: input, shape index: {}]
  %s3 = inlined_call_operand.vmem [shape: f32[16,128], index: 3, kind: output, shape index: {}]
  %s4 = sld [smem:[#allocation0]]
  $region22: #{decoder_forward.5} parent=0
    _
  %s6 = ssub.s32 1, %s4
  %s7 = scalar_select 0, %s6, %s4
  // Predicated region
  $region2: #{decoder_forward.5} parent=0 // pred_check
    _
  $region3: #{decoder_forward.5} parent=0 // pred_check_branch
    %9 = sbr.rel (0) target = $region5
  $region4: #{decoder_forward.5} parent=0 // pred_region
    _
  $region5: #{decoder_forward.5} parent=0 // pred_fallthru
    _
  // Predicated region
  $region6: #{decoder_forward.5} parent=0 // pred_check
    _
  $region7: #{decoder_forward.5} parent=0 // pred_check_branch
    %11 = sbr.rel (0) target = $region9
  $region8: #{decoder_forward.5} parent=0 // pred_region
    _
  $region9: #{decoder_forward.5} parent=0 // pred_fallthru
    _
  // Predicated region
  $region10: #{decoder_forward.5} parent=0 // pred_check
    _
  $region11: #{decoder_forward.5} parent=0 // pred_check_branch
    %13 = sbr.rel (0) target = $region13
  $region12: #{decoder_forward.5} parent=0 // pred_region
    _
  $region13: #{decoder_forward.5} parent=0 // pred_fallthru
    _
  %v15 = vld [vmem:[%s0] sm:$0xff]
  %v16 = vld [vmem:[%s0 + $0x8] sm:$0xff]
  %v17 = vpack.c.bf16 %v16, %v15
  %v18 = vld [vmem:[%s1] sm:$0xf]
  %v19 = vld [vmem:[%s1 + $0x4] sm:$0xf]
  %v20 = vld [vmem:[%s1 + $0x8] sm:$0xf]
  %v21 = vld [vmem:[%s1 + $0xc] sm:$0xf]
  %v22 = vld [vmem:[%s2] sm:$0x1]
  %v24 = vlaneseq
  %v25 = vshrl.u32 %v24, 7
  %v26 = vsub.s32 0, %v25
  %v27 = vrot.slane %v22, %v26
  %v33 = vunpack.c.l.b16 %v18
  %v34 = vunpack.c.l.b16 %v19
  %v35 = vunpack.c.l.b16 %v20
  %v36 = vunpack.c.l.b16 %v21
  %v37 = vpack.c.b16 %v34, %v33
  %v38 = vpack.c.b16 %v36, %v35
  %vm41 = vcmask 261120
  %v43 = vsel %vm41, %v17, 0
  %45 = vmatprep.subr.bf16.mxu0 0
  %46 = vmatpush1.bf16.msra.mxu0 %v37
  %47 = vmatprep.subr.bf16.mxu0 0
  %48 = vmatpush1.bf16.msra.mxu0 %v38
  %49 = vmatprep.subr.bf16.mxu0 0
  %50 = vmatpush1.bf16.msra.mxu0 0
  %51 = vmatprep.subr.bf16.mxu0 0
  %52 = vmatpush1.bf16.msra.mxu0 0
  %53 = vmatprep.subr.bf16.mxu0 0
  %54 = vmatpush1.bf16.msra.mxu0 0
  %55 = vmatprep.subr.bf16.mxu0 0
  %56 = vmatpush1.bf16.msra.mxu0 0
  %57 = vmatprep.subr.bf16.mxu0 0
  %58 = vmatpush1.bf16.msra.mxu0 0
  %59 = vmatprep.subr.bf16.mxu0 0
  %60 = vmatpush1.bf16.msra.mxu0 0
  %61 = vmatprep.subr.bf16.mxu0 0
  %62 = vmatpush1.bf16.msra.mxu0 0
  %63 = vmatprep.subr.bf16.mxu0 0
  %64 = vmatpush1.bf16.msra.mxu0 0
  %65 = vmatprep.subr.bf16.mxu0 0
  %66 = vmatpush1.bf16.msra.mxu0 0
  %67 = vmatprep.subr.bf16.mxu0 0
  %68 = vmatpush1.bf16.msra.mxu0 0
  %69 = vmatprep.subr.bf16.mxu0 0
  %70 = vmatpush1.bf16.msra.mxu0 0
  %71 = vmatprep.subr.bf16.mxu0 0
  %72 = vmatpush1.bf16.msra.mxu0 0
  %73 = vmatprep.subr.bf16.mxu0 0
  %74 = vmatpush1.bf16.msra.mxu0 0
  %75 = vmatprep.subr.bf16.mxu0 0
  %76 = vmatpush1.bf16.msra.mxu0 0
  %77 = vmatprep.mubr.bf16.mxu0 0
  %78 = vmatmul.mubr.bf16.gmra.mrb[0].mxu0 %v43
  %v79 = vpop.f32.mrb[0].mxu0
  %v80 = vadd.f32 %v27, %v79
  %v81 = vpop.f32.mrb[0].mxu0
  %v82 = vpop.f32.mrb[0].mxu0
  %v83 = vadd.f32 %v27, %v82
  %v84 = vpop.f32.mrb[0].mxu0
  %85 = vdwg.mxu0
  %86 = vst [vmem:[%s3] sm:$0xff] %v80
  %87 = vst [vmem:[%s3 + $0x8] sm:$0xff] %v83
  // Predicated region
  $region14: #{decoder_forward.5} parent=0 // pred_check
    _
  $region15: #{decoder_forward.5} parent=0 // pred_check_branch
    %89 = sbr.rel (0) target = $region17
  $region16: #{decoder_forward.5} parent=0 // pred_region
    _
  $region17: #{decoder_forward.5} parent=0 // pred_fallthru
    _
  // Predicated region
  $region18: #{decoder_forward.5} parent=0 // pred_check
    _
  $region19: #{decoder_forward.5} parent=0 // pred_check_branch
    %91 = sbr.rel (0) target = $region21
  $region20: #{decoder_forward.5} parent=0 // pred_region
    _
  $region21: #{decoder_forward.5} parent=0 // pred_fallthru
    _

// kernel: decoder_forward.3
$region0: #{decoder_forward.3}
  #allocation0 [shape = 'u32[]', space=smem, size = 0x4, offset = 0x4, fixed_abs, tag = 'smem constant byte address 0x4 - core index']
  #allocation1 [shape = 'u32[144,128]{1,0:T(1,128)}', space=vmem, size = 0x12000, scoped, tag = 'internal scratch']
  %s0 = inlined_call_operand.vmem [shape: f32[2,8,32], index: 0, kind: input, shape index: {}]
  %s1 = inlined_call_operand.vmem [shape: f32[2,8,32], index: 1, kind: input, shape index: {}]
  %s2 = inlined_call_operand.vmem [shape: f32[2,8,8], index: 2, kind: input, shape index: {}]
  %s3 = inlined_call_operand.vmem [shape: f32[2,8,8], index: 3, kind: input, shape index: {}]
  %s4 = inlined_call_operand.vmem [shape: bf16[32,32], index: 4, kind: input, shape index: {}]
  %s5 = inlined_call_operand.vmem [shape: bf16[32,32], index: 5, kind: input, shape index: {}]
  %s6 = inlined_call_operand.vmem [shape: bf16[32,32], index: 6, kind: input, shape index: {}]
  %s7 = inlined_call_operand.vmem [shape: bf16[4,8,32], index: 7, kind: input, shape index: {}]
  %s8 = inlined_call_operand.vmem [shape: f32[1,32], index: 8, kind: input, shape index: {}]
  %s9 = inlined_call_operand.vmem [shape: f32[1,32], index: 9, kind: input, shape index: {}]
  %s10 = inlined_call_operand.vmem [shape: f32[1,32], index: 10, kind: input, shape index: {}]
  %s11 = inlined_call_operand.vmem [shape: bf16[32,32], index: 11, kind: input, shape index: {}]
  %s12 = inlined_call_operand.vmem [shape: bf16[32,32], index: 12, kind: input, shape index: {}]
  %s13 = inlined_call_operand.vmem [shape: bf16[32,32], index: 13, kind: input, shape index: {}]
  %s14 = inlined_call_operand.vmem [shape: bf16[4,8,32], index: 14, kind: input, shape index: {}]
  %s15 = inlined_call_operand.vmem [shape: f32[1,32], index: 15, kind: input, shape index: {}]
  %s16 = inlined_call_operand.vmem [shape: f32[1,32], index: 16, kind: input, shape index: {}]
  %s17 = inlined_call_operand.vmem [shape: f32[1,32], index: 17, kind: input, shape index: {}]
  %s18 = inlined_call_operand.vmem [shape: bf16[32,64], index: 18, kind: input, shape index: {}]
  %s19 = inlined_call_operand.vmem [shape: f32[1,64], index: 19, kind: input, shape index: {}]
  %s20 = inlined_call_operand.vmem [shape: bf16[64,32], index: 20, kind: input, shape index: {}]
  %s21 = inlined_call_operand.vmem [shape: f32[1,32], index: 21, kind: input, shape index: {}]
  %s22 = inlined_call_operand.vmem [shape: f32[1,32], index: 22, kind: input, shape index: {}]
  %s23 = inlined_call_operand.vmem [shape: f32[1,32], index: 23, kind: input, shape index: {}]
  %s24 = inlined_call_operand.vmem [shape: f32[2,8,32], index: 24, kind: output, shape index: {}]
  %s25 = sld [smem:[#allocation0]]
  $region129: #{decoder_forward.3} parent=0
    _
  %s27 = ssub.s32 1, %s25
  %s28 = scalar_select 0, %s27, %s25
  loop: start=0, step=1, limit=4
  $region2: #{decoder_forward.3} parent=0 // loop_pre_header
    _
  $region3: #{decoder_forward.3} parent=0 // loop_header
    %s30 = sphi 0, %s34
    %p31 = scmp.ge.s32.totalorder %s30, 4
    %s40 = sphi 0, %s42
    %s43 = sphi 0, %s40
    %s44 = sphi 0, %s43
    %s60 = sphi 0, %s44
    %s66 = sphi 0, %s68
    %s69 = sphi 0, %s66
    %s70 = sphi 0, %s69
    %s86 = sphi 0, %s70
    %s92 = sphi 0, %s94
    %s95 = sphi 0, %s92
    %s96 = sphi 0, %s95
    %s112 = sphi 0, %s96
    %s118 = sphi 0, %s120
    %s121 = sphi 0, %s118
    %s122 = sphi 0, %s121
    %s138 = sphi 0, %s122
    %s142 = sphi 0, %s142
    %s144 = sphi 0, %s142
    %s145 = sphi 0, %s144
    %s159 = sphi 0, %s145
    %s163 = sphi 0, %s163
    %s165 = sphi 0, %s163
    %s166 = sphi 0, %s165
    %s180 = sphi 0, %s166
    %s184 = sphi 0, %s184
    %s186 = sphi 0, %s184
    %s187 = sphi 0, %s186
    %s201 = sphi 0, %s187
    %s205 = sphi 0, %s205
    %s207 = sphi 0, %s205
    %s208 = sphi 0, %s207
    %s222 = sphi 0, %s208
    %s226 = sphi 0, %s226
    %s228 = sphi 0, %s226
    %s229 = sphi 0, %s228
    %s243 = sphi 0, %s229
    %s247 = sphi 0, %s247
    %s249 = sphi 0, %s247
    %s250 = sphi 0, %s249
    %s264 = sphi 0, %s250
    %s268 = sphi 0, %s268
    %s270 = sphi 0, %s268
    %s271 = sphi 0, %s270
    %s285 = sphi 0, %s271
    %s289 = sphi 0, %s289
    %s291 = sphi 0, %s289
    %s292 = sphi 0, %s291
    %s306 = sphi 0, %s292
    %s310 = sphi 0, %s310
    %s312 = sphi 0, %s310
    %s313 = sphi 0, %s312
    %s327 = sphi 0, %s313
    %s331 = sphi 0, %s331
    %s333 = sphi 0, %s331
    %s334 = sphi 0, %s333
    %s348 = sphi 0, %s334
    %s352 = sphi 0, %s352
    %s354 = sphi 0, %s352
    %s355 = sphi 0, %s354
    %s369 = sphi 0, %s355
    %s373 = sphi 0, %s373
    %s375 = sphi 0, %s373
    %s376 = sphi 0, %s375
    %s390 = sphi 0, %s376
    %s394 = sphi 0, %s394
    %s396 = sphi 0, %s394
    %s397 = sphi 0, %s396
    %s411 = sphi 0, %s397
    %s415 = sphi 0, %s415
    %s417 = sphi 0, %s415
    %s418 = sphi 0, %s417
    %s432 = sphi 0, %s418
    %s436 = sphi 0, %s436
    %s438 = sphi 0, %s436
    %s439 = sphi 0, %s438
    %s453 = sphi 0, %s439
    %s457 = sphi 0, %s457
    %s459 = sphi 0, %s457
    %s460 = sphi 0, %s459
    %s474 = sphi 0, %s460
    %s478 = sphi 0, %s478
    %s480 = sphi 0, %s478
    %s481 = sphi 0, %s480
    %s495 = sphi 0, %s481
    %s499 = sphi 0, %s499
    %s501 = sphi 0, %s499
    %s502 = sphi 0, %s501
    %s516 = sphi 0, %s502
    %s520 = sphi 0, %s520
    %s522 = sphi 0, %s520
    %s523 = sphi 0, %s522
    %s537 = sphi 0, %s523
    %s541 = sphi 0, %s541
    %s543 = sphi 0, %s541
    %s544 = sphi 0, %s543
    %s558 = sphi 0, %s544
    %s564 = sphi 0, %s566
    %s567 = sphi 0, %s564
    %s568 = sphi 0, %s567
    %s584 = sphi 0, %s568
  $region4: #{decoder_forward.3} parent=0 // loop_header_branch
    %33 = sbr.rel (%p31) target = $region8
  $region5: #{decoder_forward.3} parent=0 // loop_body
    %s35 = ssub.s32 %s30, 1
    %s36 = ssub.s32 %s30, 2
    %s37 = sadd.s32 %s30, 1
    %s38 = ssub.s32 %s30, %s37
    %p39 = scmp.eq.s32.totalorder %s38, 0
    %s41 = sadd.s32 %s40, 1
    %s42 = scalar_select %p39, %s40, %s41
    %p45 = pneg %p39
    %p46 = scmp.eq.s32.totalorder %s30, 1
    %p47 = por %p45, %p46
    %p48 = scmp.ne.s32.totalorder %s40, %s43
    %p49 = scmp.eq.s32.totalorder %s30, 0
    %p50 = por %p48, %p49
    %p51 = scmp.ne.s32.totalorder %s40, %s43
    %p52 = scmp.eq.s32.totalorder %s35, 1
    %p53 = por %p51, %p52
    %p54 = scmp.ne.s32.totalorder %s43, %s44
    %p55 = scmp.eq.s32.totalorder %s35, 0
    %p56 = por %p54, %p55
    %p57 = scmp.ne.s32.totalorder %s43, %s44
    %p58 = scmp.eq.s32.totalorder %s36, 1
    %p59 = por %p57, %p58
    %p61 = scmp.ne.s32.totalorder %s44, %s60
    %p62 = scmp.eq.s32.totalorder %s36, 0
    %p63 = por %p61, %p62
    %s64 = ssub.s32 %s30, %s37
    %p65 = scmp.eq.s32.totalorder %s64, 0
    %s67 = sadd.s32 %s66, 1
    %s68 = scalar_select %p65, %s66, %s67
    %p71 = pneg %p65
    %p72 = scmp.eq.s32.totalorder %s30, 1
    %p73 = por %p71, %p72
    %p74 = scmp.ne.s32.totalorder %s66, %s69
    %p75 = scmp.eq.s32.totalorder %s30, 0
    %p76 = por %p74, %p75
    %p77 = scmp.ne.s32.totalorder %s66, %s69
    %p78 = scmp.eq.s32.totalorder %s35, 1
    %p79 = por %p77, %p78
    %p80 = scmp.ne.s32.totalorder %s69, %s70
    %p81 = scmp.eq.s32.totalorder %s35, 0
    %p82 = por %p80, %p81
    %p83 = scmp.ne.s32.totalorder %s69, %s70
    %p84 = scmp.eq.s32.totalorder %s36, 1
    %p85 = por %p83, %p84
    %p87 = scmp.ne.s32.totalorder %s70, %s86
    %p88 = scmp.eq.s32.totalorder %s36, 0
    %p89 = por %p87, %p88
    %s90 = ssub.s32 %s30, %s37
    %p91 = scmp.eq.s32.totalorder %s90, 0
    %s93 = sadd.s32 %s92, 1
    %s94 = scalar_select %p91, %s92, %s93
    %p97 = pneg %p91
    %p98 = scmp.eq.s32.totalorder %s30, 1
    %p99 = por %p97, %p98
    %p100 = scmp.ne.s32.totalorder %s92, %s95
    %p101 = scmp.eq.s32.totalorder %s30, 0
    %p102 = por %p100, %p101
    %p103 = scmp.ne.s32.totalorder %s92, %s95
    %p104 = scmp.eq.s32.totalorder %s35, 1
    %p105 = por %p103, %p104
    %p106 = scmp.ne.s32.totalorder %s95, %s96
    %p107 = scmp.eq.s32.totalorder %s35, 0
    %p108 = por %p106, %p107
    %p109 = scmp.ne.s32.totalorder %s95, %s96
    %p110 = scmp.eq.s32.totalorder %s36, 1
    %p111 = por %p109, %p110
    %p113 = scmp.ne.s32.totalorder %s96, %s112
    %p114 = scmp.eq.s32.totalorder %s36, 0
    %p115 = por %p113, %p114
    %s116 = ssub.s32 %s30, %s37
    %p117 = scmp.eq.s32.totalorder %s116, 0
    %s119 = sadd.s32 %s118, 1
    %s120 = scalar_select %p117, %s118, %s119
    %p123 = pneg %p117
    %p124 = scmp.eq.s32.totalorder %s30, 1
    %p125 = por %p123, %p124
    %p126 = scmp.ne.s32.totalorder %s118, %s121
    %p127 = scmp.eq.s32.totalorder %s30, 0
    %p128 = por %p126, %p127
    %p129 = scmp.ne.s32.totalorder %s118, %s121
    %p130 = scmp.eq.s32.totalorder %s35, 1
    %p131 = por %p129, %p130
    %p132 = scmp.ne.s32.totalorder %s121, %s122
    %p133 = scmp.eq.s32.totalorder %s35, 0
    %p134 = por %p132, %p133
    %p135 = scmp.ne.s32.totalorder %s121, %s122
    %p136 = scmp.eq.s32.totalorder %s36, 1
    %p137 = por %p135, %p136
    %p139 = scmp.ne.s32.totalorder %s122, %s138
    %p140 = scmp.eq.s32.totalorder %s36, 0
    %p141 = por %p139, %p140
    %s143 = sadd.s32 %s142, 1
    %p146 = scmp.eq.s32.totalorder %s30, 1
    %p147 = scmp.ne.s32.totalorder %s142, %s144
    %p148 = scmp.eq.s32.totalorder %s30, 0
    %p149 = por %p147, %p148
    %p150 = scmp.ne.s32.totalorder %s142, %s144
    %p151 = scmp.eq.s32.totalorder %s35, 1
    %p152 = por %p150, %p151
    %p153 = scmp.ne.s32.totalorder %s144, %s145
    %p154 = scmp.eq.s32.totalorder %s35, 0
    %p155 = por %p153, %p154
    %p156 = scmp.ne.s32.totalorder %s144, %s145
    %p157 = scmp.eq.s32.totalorder %s36, 1
    %p158 = por %p156, %p157
    %p160 = scmp.ne.s32.totalorder %s145, %s159
    %p161 = scmp.eq.s32.totalorder %s36, 0
    %p162 = por %p160, %p161
    %s164 = sadd.s32 %s163, 1
    %p167 = scmp.eq.s32.totalorder %s30, 1
    %p168 = scmp.ne.s32.totalorder %s163, %s165
    %p169 = scmp.eq.s32.totalorder %s30, 0
    %p170 = por %p168, %p169
    %p171 = scmp.ne.s32.totalorder %s163, %s165
    %p172 = scmp.eq.s32.totalorder %s35, 1
    %p173 = por %p171, %p172
    %p174 = scmp.ne.s32.totalorder %s165, %s166
    %p175 = scmp.eq.s32.totalorder %s35, 0
    %p176 = por %p174, %p175
    %p177 = scmp.ne.s32.totalorder %s165, %s166
    %p178 = scmp.eq.s32.totalorder %s36, 1
    %p179 = por %p177, %p178
    %p181 = scmp.ne.s32.totalorder %s166, %s180
    %p182 = scmp.eq.s32.totalorder %s36, 0
    %p183 = por %p181, %p182
    %s185 = sadd.s32 %s184, 1
    %p188 = scmp.eq.s32.totalorder %s30, 1
    %p189 = scmp.ne.s32.totalorder %s184, %s186
    %p190 = scmp.eq.s32.totalorder %s30, 0
    %p191 = por %p189, %p190
    %p192 = scmp.ne.s32.totalorder %s184, %s186
    %p193 = scmp.eq.s32.totalorder %s35, 1
    %p194 = por %p192, %p193
    %p195 = scmp.ne.s32.totalorder %s186, %s187
    %p196 = scmp.eq.s32.totalorder %s35, 0
    %p197 = por %p195, %p196
    %p198 = scmp.ne.s32.totalorder %s186, %s187
    %p199 = scmp.eq.s32.totalorder %s36, 1
    %p200 = por %p198, %p199
    %p202 = scmp.ne.s32.totalorder %s187, %s201
    %p203 = scmp.eq.s32.totalorder %s36, 0
    %p204 = por %p202, %p203
    %s206 = sadd.s32 %s205, 1
    %p209 = scmp.eq.s32.totalorder %s30, 1
    %p210 = scmp.ne.s32.totalorder %s205, %s207
    %p211 = scmp.eq.s32.totalorder %s30, 0
    %p212 = por %p210, %p211
    %p213 = scmp.ne.s32.totalorder %s205, %s207
    %p214 = scmp.eq.s32.totalorder %s35, 1
    %p215 = por %p213, %p214
    %p216 = scmp.ne.s32.totalorder %s207, %s208
    %p217 = scmp.eq.s32.totalorder %s35, 0
    %p218 = por %p216, %p217
    %p219 = scmp.ne.s32.totalorder %s207, %s208
    %p220 = scmp.eq.s32.totalorder %s36, 1
    %p221 = por %p219, %p220
    %p223 = scmp.ne.s32.totalorder %s208, %s222
    %p224 = scmp.eq.s32.totalorder %s36, 0
    %p225 = por %p223, %p224
    %s227 = sadd.s32 %s226, 1
    %p230 = scmp.eq.s32.totalorder %s30, 1
    %p231 = scmp.ne.s32.totalorder %s226, %s228
    %p232 = scmp.eq.s32.totalorder %s30, 0
    %p233 = por %p231, %p232
    %p234 = scmp.ne.s32.totalorder %s226, %s228
    %p235 = scmp.eq.s32.totalorder %s35, 1
    %p236 = por %p234, %p235
    %p237 = scmp.ne.s32.totalorder %s228, %s229
    %p238 = scmp.eq.s32.totalorder %s35, 0
    %p239 = por %p237, %p238
    %p240 = scmp.ne.s32.totalorder %s228, %s229
    %p241 = scmp.eq.s32.totalorder %s36, 1
    %p242 = por %p240, %p241
    %p244 = scmp.ne.s32.totalorder %s229, %s243
    %p245 = scmp.eq.s32.totalorder %s36, 0
    %p246 = por %p244, %p245
    %s248 = sadd.s32 %s247, 1
    %p251 = scmp.eq.s32.totalorder %s30, 1
    %p252 = scmp.ne.s32.totalorder %s247, %s249
    %p253 = scmp.eq.s32.totalorder %s30, 0
    %p254 = por %p252, %p253
    %p255 = scmp.ne.s32.totalorder %s247, %s249
    %p256 = scmp.eq.s32.totalorder %s35, 1
    %p257 = por %p255, %p256
    %p258 = scmp.ne.s32.totalorder %s249, %s250
    %p259 = scmp.eq.s32.totalorder %s35, 0
    %p260 = por %p258, %p259
    %p261 = scmp.ne.s32.totalorder %s249, %s250
    %p262 = scmp.eq.s32.totalorder %s36, 1
    %p263 = por %p261, %p262
    %p265 = scmp.ne.s32.totalorder %s250, %s264
    %p266 = scmp.eq.s32.totalorder %s36, 0
    %p267 = por %p265, %p266
    %s269 = sadd.s32 %s268, 1
    %p272 = scmp.eq.s32.totalorder %s30, 1
    %p273 = scmp.ne.s32.totalorder %s268, %s270
    %p274 = scmp.eq.s32.totalorder %s30, 0
    %p275 = por %p273, %p274
    %p276 = scmp.ne.s32.totalorder %s268, %s270
    %p277 = scmp.eq.s32.totalorder %s35, 1
    %p278 = por %p276, %p277
    %p279 = scmp.ne.s32.totalorder %s270, %s271
    %p280 = scmp.eq.s32.totalorder %s35, 0
    %p281 = por %p279, %p280
    %p282 = scmp.ne.s32.totalorder %s270, %s271
    %p283 = scmp.eq.s32.totalorder %s36, 1
    %p284 = por %p282, %p283
    %p286 = scmp.ne.s32.totalorder %s271, %s285
    %p287 = scmp.eq.s32.totalorder %s36, 0
    %p288 = por %p286, %p287
    %s290 = sadd.s32 %s289, 1
    %p293 = scmp.eq.s32.totalorder %s30, 1
    %p294 = scmp.ne.s32.totalorder %s289, %s291
    %p295 = scmp.eq.s32.totalorder %s30, 0
    %p296 = por %p294, %p295
    %p297 = scmp.ne.s32.totalorder %s289, %s291
    %p298 = scmp.eq.s32.totalorder %s35, 1
    %p299 = por %p297, %p298
    %p300 = scmp.ne.s32.totalorder %s291, %s292
    %p301 = scmp.eq.s32.totalorder %s35, 0
    %p302 = por %p300, %p301
    %p303 = scmp.ne.s32.totalorder %s291, %s292
    %p304 = scmp.eq.s32.totalorder %s36, 1
    %p305 = por %p303, %p304
    %p307 = scmp.ne.s32.totalorder %s292, %s306
    %p308 = scmp.eq.s32.totalorder %s36, 0
    %p309 = por %p307, %p308
    %s311 = sadd.s32 %s310, 1
    %p314 = scmp.eq.s32.totalorder %s30, 1
    %p315 = scmp.ne.s32.totalorder %s310, %s312
    %p316 = scmp.eq.s32.totalorder %s30, 0
    %p317 = por %p315, %p316
    %p318 = scmp.ne.s32.totalorder %s310, %s312
    %p319 = scmp.eq.s32.totalorder %s35, 1
    %p320 = por %p318, %p319
    %p321 = scmp.ne.s32.totalorder %s312, %s313
    %p322 = scmp.eq.s32.totalorder %s35, 0
    %p323 = por %p321, %p322
    %p324 = scmp.ne.s32.totalorder %s312, %s313
    %p325 = scmp.eq.s32.totalorder %s36, 1
    %p326 = por %p324, %p325
    %p328 = scmp.ne.s32.totalorder %s313, %s327
    %p329 = scmp.eq.s32.totalorder %s36, 0
    %p330 = por %p328, %p329
    %s332 = sadd.s32 %s331, 1
    %p335 = scmp.eq.s32.totalorder %s30, 1
    %p336 = scmp.ne.s32.totalorder %s331, %s333
    %p337 = scmp.eq.s32.totalorder %s30, 0
    %p338 = por %p336, %p337
    %p339 = scmp.ne.s32.totalorder %s331, %s333
    %p340 = scmp.eq.s32.totalorder %s35, 1
    %p341 = por %p339, %p340
    %p342 = scmp.ne.s32.totalorder %s333, %s334
    %p343 = scmp.eq.s32.totalorder %s35, 0
    %p344 = por %p342, %p343
    %p345 = scmp.ne.s32.totalorder %s333, %s334
    %p346 = scmp.eq.s32.totalorder %s36, 1
    %p347 = por %p345, %p346
    %p349 = scmp.ne.s32.totalorder %s334, %s348
    %p350 = scmp.eq.s32.totalorder %s36, 0
    %p351 = por %p349, %p350
    %s353 = sadd.s32 %s352, 1
    %p356 = scmp.eq.s32.totalorder %s30, 1
    %p357 = scmp.ne.s32.totalorder %s352, %s354
    %p358 = scmp.eq.s32.totalorder %s30, 0
    %p359 = por %p357, %p358
    %p360 = scmp.ne.s32.totalorder %s352, %s354
    %p361 = scmp.eq.s32.totalorder %s35, 1
    %p362 = por %p360, %p361
    %p363 = scmp.ne.s32.totalorder %s354, %s355
    %p364 = scmp.eq.s32.totalorder %s35, 0
    %p365 = por %p363, %p364
    %p366 = scmp.ne.s32.totalorder %s354, %s355
    %p367 = scmp.eq.s32.totalorder %s36, 1
    %p368 = por %p366, %p367
    %p370 = scmp.ne.s32.totalorder %s355, %s369
    %p371 = scmp.eq.s32.totalorder %s36, 0
    %p372 = por %p370, %p371
    %s374 = sadd.s32 %s373, 1
    %p377 = scmp.eq.s32.totalorder %s30, 1
    %p378 = scmp.ne.s32.totalorder %s373, %s375
    %p379 = scmp.eq.s32.totalorder %s30, 0
    %p380 = por %p378, %p379
    %p381 = scmp.ne.s32.totalorder %s373, %s375
    %p382 = scmp.eq.s32.totalorder %s35, 1
    %p383 = por %p381, %p382
    %p384 = scmp.ne.s32.totalorder %s375, %s376
    %p385 = scmp.eq.s32.totalorder %s35, 0
    %p386 = por %p384, %p385
    %p387 = scmp.ne.s32.totalorder %s375, %s376
    %p388 = scmp.eq.s32.totalorder %s36, 1
    %p389 = por %p387, %p388
    %p391 = scmp.ne.s32.totalorder %s376, %s390
    %p392 = scmp.eq.s32.totalorder %s36, 0
    %p393 = por %p391, %p392
    %s395 = sadd.s32 %s394, 1
    %p398 = scmp.eq.s32.totalorder %s30, 1
    %p399 = scmp.ne.s32.totalorder %s394, %s396
    %p400 = scmp.eq.s32.totalorder %s30, 0
    %p401 = por %p399, %p400
    %p402 = scmp.ne.s32.totalorder %s394, %s396
    %p403 = scmp.eq.s32.totalorder %s35, 1
    %p404 = por %p402, %p403
    %p405 = scmp.ne.s32.totalorder %s396, %s397
    %p406 = scmp.eq.s32.totalorder %s35, 0
    %p407 = por %p405, %p406
    %p408 = scmp.ne.s32.totalorder %s396, %s397
    %p409 = scmp.eq.s32.totalorder %s36, 1
    %p410 = por %p408, %p409
    %p412 = scmp.ne.s32.totalorder %s397, %s411
    %p413 = scmp.eq.s32.totalorder %s36, 0
    %p414 = por %p412, %p413
    %s416 = sadd.s32 %s415, 1
    %p419 = scmp.eq.s32.totalorder %s30, 1
    %p420 = scmp.ne.s32.totalorder %s415, %s417
    %p421 = scmp.eq.s32.totalorder %s30, 0
    %p422 = por %p420, %p421
    %p423 = scmp.ne.s32.totalorder %s415, %s417
    %p424 = scmp.eq.s32.totalorder %s35, 1
    %p425 = por %p423, %p424
    %p426 = scmp.ne.s32.totalorder %s417, %s418
    %p427 = scmp.eq.s32.totalorder %s35, 0
    %p428 = por %p426, %p427
    %p429 = scmp.ne.s32.totalorder %s417, %s418
    %p430 = scmp.eq.s32.totalorder %s36, 1
    %p431 = por %p429, %p430
    %p433 = scmp.ne.s32.totalorder %s418, %s432
    %p434 = scmp.eq.s32.totalorder %s36, 0
    %p435 = por %p433, %p434
    %s437 = sadd.s32 %s436, 1
    %p440 = scmp.eq.s32.totalorder %s30, 1
    %p441 = scmp.ne.s32.totalorder %s436, %s438
    %p442 = scmp.eq.s32.totalorder %s30, 0
    %p443 = por %p441, %p442
    %p444 = scmp.ne.s32.totalorder %s436, %s438
    %p445 = scmp.eq.s32.totalorder %s35, 1
    %p446 = por %p444, %p445
    %p447 = scmp.ne.s32.totalorder %s438, %s439
    %p448 = scmp.eq.s32.totalorder %s35, 0
    %p449 = por %p447, %p448
    %p450 = scmp.ne.s32.totalorder %s438, %s439
    %p451 = scmp.eq.s32.totalorder %s36, 1
    %p452 = por %p450, %p451
    %p454 = scmp.ne.s32.totalorder %s439, %s453
    %p455 = scmp.eq.s32.totalorder %s36, 0
    %p456 = por %p454, %p455
    %s458 = sadd.s32 %s457, 1
    %p461 = scmp.eq.s32.totalorder %s30, 1
    %p462 = scmp.ne.s32.totalorder %s457, %s459
    %p463 = scmp.eq.s32.totalorder %s30, 0
    %p464 = por %p462, %p463
    %p465 = scmp.ne.s32.totalorder %s457, %s459
    %p466 = scmp.eq.s32.totalorder %s35, 1
    %p467 = por %p465, %p466
    %p468 = scmp.ne.s32.totalorder %s459, %s460
    %p469 = scmp.eq.s32.totalorder %s35, 0
    %p470 = por %p468, %p469
    %p471 = scmp.ne.s32.totalorder %s459, %s460
    %p472 = scmp.eq.s32.totalorder %s36, 1
    %p473 = por %p471, %p472
    %p475 = scmp.ne.s32.totalorder %s460, %s474
    %p476 = scmp.eq.s32.totalorder %s36, 0
    %p477 = por %p475, %p476
    %s479 = sadd.s32 %s478, 1
    %p482 = scmp.eq.s32.totalorder %s30, 1
    %p483 = scmp.ne.s32.totalorder %s478, %s480
    %p484 = scmp.eq.s32.totalorder %s30, 0
    %p485 = por %p483, %p484
    %p486 = scmp.ne.s32.totalorder %s478, %s480
    %p487 = scmp.eq.s32.totalorder %s35, 1
    %p488 = por %p486, %p487
    %p489 = scmp.ne.s32.totalorder %s480, %s481
    %p490 = scmp.eq.s32.totalorder %s35, 0
    %p491 = por %p489, %p490
    %p492 = scmp.ne.s32.totalorder %s480, %s481
    %p493 = scmp.eq.s32.totalorder %s36, 1
    %p494 = por %p492, %p493
    %p496 = scmp.ne.s32.totalorder %s481, %s495
    %p497 = scmp.eq.s32.totalorder %s36, 0
    %p498 = por %p496, %p497
    %s500 = sadd.s32 %s499, 1
    %p503 = scmp.eq.s32.totalorder %s30, 1
    %p504 = scmp.ne.s32.totalorder %s499, %s501
    %p505 = scmp.eq.s32.totalorder %s30, 0
    %p506 = por %p504, %p505
    %p507 = scmp.ne.s32.totalorder %s499, %s501
    %p508 = scmp.eq.s32.totalorder %s35, 1
    %p509 = por %p507, %p508
    %p510 = scmp.ne.s32.totalorder %s501, %s502
    %p511 = scmp.eq.s32.totalorder %s35, 0
    %p512 = por %p510, %p511
    %p513 = scmp.ne.s32.totalorder %s501, %s502
    %p514 = scmp.eq.s32.totalorder %s36, 1
    %p515 = por %p513, %p514
    %p517 = scmp.ne.s32.totalorder %s502, %s516
    %p518 = scmp.eq.s32.totalorder %s36, 0
    %p519 = por %p517, %p518
    %s521 = sadd.s32 %s520, 1
    %p524 = scmp.eq.s32.totalorder %s30, 1
    %p525 = scmp.ne.s32.totalorder %s520, %s522
    %p526 = scmp.eq.s32.totalorder %s30, 0
    %p527 = por %p525, %p526
    %p528 = scmp.ne.s32.totalorder %s520, %s522
    %p529 = scmp.eq.s32.totalorder %s35, 1
    %p530 = por %p528, %p529
    %p531 = scmp.ne.s32.totalorder %s522, %s523
    %p532 = scmp.eq.s32.totalorder %s35, 0
    %p533 = por %p531, %p532
    %p534 = scmp.ne.s32.totalorder %s522, %s523
    %p535 = scmp.eq.s32.totalorder %s36, 1
    %p536 = por %p534, %p535
    %p538 = scmp.ne.s32.totalorder %s523, %s537
    %p539 = scmp.eq.s32.totalorder %s36, 0
    %p540 = por %p538, %p539
    %s542 = sadd.s32 %s541, 1
    %p545 = scmp.eq.s32.totalorder %s30, 1
    %p546 = scmp.ne.s32.totalorder %s541, %s543
    %p547 = scmp.eq.s32.totalorder %s30, 0
    %p548 = por %p546, %p547
    %p549 = scmp.ne.s32.totalorder %s541, %s543
    %p550 = scmp.eq.s32.totalorder %s35, 1
    %p551 = por %p549, %p550
    %p552 = scmp.ne.s32.totalorder %s543, %s544
    %p553 = scmp.eq.s32.totalorder %s35, 0
    %p554 = por %p552, %p553
    %p555 = scmp.ne.s32.totalorder %s543, %s544
    %p556 = scmp.eq.s32.totalorder %s36, 1
    %p557 = por %p555, %p556
    %p559 = scmp.ne.s32.totalorder %s544, %s558
    %p560 = scmp.eq.s32.totalorder %s36, 0
    %p561 = por %p559, %p560
    %s562 = ssub.s32 %s30, %s37
    %p563 = scmp.eq.s32.totalorder %s562, 0
    %s565 = sadd.s32 %s564, 1
    %s566 = scalar_select %p563, %s564, %s565
    %p569 = pneg %p563
    %p570 = scmp.eq.s32.totalorder %s30, 1
    %p571 = por %p569, %p570
    %p572 = scmp.ne.s32.totalorder %s564, %s567
    %p573 = scmp.eq.s32.totalorder %s30, 0
    %p574 = por %p572, %p573
    %p575 = scmp.ne.s32.totalorder %s564, %s567
    %p576 = scmp.eq.s32.totalorder %s35, 1
    %p577 = por %p575, %p576
    %p578 = scmp.ne.s32.totalorder %s567, %s568
    %p579 = scmp.eq.s32.totalorder %s35, 0
    %p580 = por %p578, %p579
    %p581 = scmp.ne.s32.totalorder %s567, %s568
    %p582 = scmp.eq.s32.totalorder %s36, 1
    %p583 = por %p581, %p582
    %p585 = scmp.ne.s32.totalorder %s568, %s584
    %p586 = scmp.eq.s32.totalorder %s36, 0
    %p587 = por %p585, %p586
    %p588 = scmp.le.s32.totalorder 1, %s30
    %p589 = scmp.lt.s32.totalorder %s30, 3
    %p590 = pnand %p588, %p589
    %p591 = pneg %p590
    // Predicated region
    $region9: #{decoder_forward.3} parent=5 // pred_check
      _
    $region10: #{decoder_forward.3} parent=5 // pred_check_branch
      %593 = sbr.rel (%p590) target = $region12
    $region11: #{decoder_forward.3} parent=5 // pred_region
      %s594 = ssub.s32 %s30, 1
      // Predicated region
      $region13: #{decoder_forward.3} parent=11 // pred_check
        %p595 = pneg %p155
      $region14: #{decoder_forward.3} parent=11 // pred_check_branch
        %597 = sbr.rel (%p595) target = $region16
      $region15: #{decoder_forward.3} parent=11 // pred_region
        _
      $region16: #{decoder_forward.3} parent=11 // pred_fallthru
        _
      // Predicated region
      $region17: #{decoder_forward.3} parent=11 // pred_check
        %p598 = pneg %p176
      $region18: #{decoder_forward.3} parent=11 // pred_check_branch
        %600 = sbr.rel (%p598) target = $region20
      $region19: #{decoder_forward.3} parent=11 // pred_region
        _
      $region20: #{decoder_forward.3} parent=11 // pred_fallthru
        _
      // Predicated region
      $region21: #{decoder_forward.3} parent=11 // pred_check
        %p601 = pneg %p197
      $region22: #{decoder_forward.3} parent=11 // pred_check_branch
        %603 = sbr.rel (%p601) target = $region24
      $region23: #{decoder_forward.3} parent=11 // pred_region
        _
      $region24: #{decoder_forward.3} parent=11 // pred_fallthru
        _
      // Predicated region
      $region25: #{decoder_forward.3} parent=11 // pred_check
        %p604 = pneg %p218
      $region26: #{decoder_forward.3} parent=11 // pred_check_branch
        %606 = sbr.rel (%p604) target = $region28
      $region27: #{decoder_forward.3} parent=11 // pred_region
        _
      $region28: #{decoder_forward.3} parent=11 // pred_fallthru
        _
      // Predicated region
      $region29: #{decoder_forward.3} parent=11 // pred_check
        %p607 = pneg %p239
      $region30: #{decoder_forward.3} parent=11 // pred_check_branch
        %609 = sbr.rel (%p607) target = $region32
      $region31: #{decoder_forward.3} parent=11 // pred_region
        _
      $region32: #{decoder_forward.3} parent=11 // pred_fallthru
        _
      // Predicated region
      $region33: #{decoder_forward.3} parent=11 // pred_check
        %p610 = pneg %p260
      $region34: #{decoder_forward.3} parent=11 // pred_check_branch
        %612 = sbr.rel (%p610) target = $region36
      $region35: #{decoder_forward.3} parent=11 // pred_region
        _
      $region36: #{decoder_forward.3} parent=11 // pred_fallthru
        _
      // Predicated region
      $region37: #{decoder_forward.3} parent=11 // pred_check
        %p613 = pneg %p281
      $region38: #{decoder_forward.3} parent=11 // pred_check_branch
        %615 = sbr.rel (%p613) target = $region40
      $region39: #{decoder_forward.3} parent=11 // pred_region
        _
      $region40: #{decoder_forward.3} parent=11 // pred_fallthru
        _
      // Predicated region
      $region41: #{decoder_forward.3} parent=11 // pred_check
        %p616 = pneg %p302
      $region42: #{decoder_forward.3} parent=11 // pred_check_branch
        %618 = sbr.rel (%p616) target = $region44
      $region43: #{decoder_forward.3} parent=11 // pred_region
        _
      $region44: #{decoder_forward.3} parent=11 // pred_fallthru
        _
      // Predicated region
      $region45: #{decoder_forward.3} parent=11 // pred_check
        %p619 = pneg %p323
      $region46: #{decoder_forward.3} parent=11 // pred_check_branch
        %621 = sbr.rel (%p619) target = $region48
      $region47: #{decoder_forward.3} parent=11 // pred_region
        _
      $region48: #{decoder_forward.3} parent=11 // pred_fallthru
        _
      // Predicated region
      $region49: #{decoder_forward.3} parent=11 // pred_check
        %p622 = pneg %p344
      $region50: #{decoder_forward.3} parent=11 // pred_check_branch
        %624 = sbr.rel (%p622) target = $region52
      $region51: #{decoder_forward.3} parent=11 // pred_region
        _
      $region52: #{decoder_forward.3} parent=11 // pred_fallthru
        _
      // Predicated region
      $region53: #{decoder_forward.3} parent=11 // pred_check
        %p625 = pneg %p365
      $region54: #{decoder_forward.3} parent=11 // pred_check_branch
        %627 = sbr.rel (%p625) target = $region56
      $region55: #{decoder_forward.3} parent=11 // pred_region
        _
      $region56: #{decoder_forward.3} parent=11 // pred_fallthru
        _
      // Predicated region
      $region57: #{decoder_forward.3} parent=11 // pred_check
        %p628 = pneg %p386
      $region58: #{decoder_forward.3} parent=11 // pred_check_branch
        %630 = sbr.rel (%p628) target = $region60
      $region59: #{decoder_forward.3} parent=11 // pred_region
        _
      $region60: #{decoder_forward.3} parent=11 // pred_fallthru
        _
      // Predicated region
      $region61: #{decoder_forward.3} parent=11 // pred_check
        %p631 = pneg %p407
      $region62: #{decoder_forward.3} parent=11 // pred_check_branch
        %633 = sbr.rel (%p631) target = $region64
      $region63: #{decoder_forward.3} parent=11 // pred_region
        _
      $region64: #{decoder_forward.3} parent=11 // pred_fallthru
        _
      // Predicated region
      $region65: #{decoder_forward.3} parent=11 // pred_check
        %p634 = pneg %p428
      $region66: #{decoder_forward.3} parent=11 // pred_check_branch
        %636 = sbr.rel (%p634) target = $region68
      $region67: #{decoder_forward.3} parent=11 // pred_region
        _
      $region68: #{decoder_forward.3} parent=11 // pred_fallthru
        _
      // Predicated region
      $region69: #{decoder_forward.3} parent=11 // pred_check
        %p637 = pneg %p449
      $region70: #{decoder_forward.3} parent=11 // pred_check_branch
        %639 = sbr.rel (%p637) target = $region72
      $region71: #{decoder_forward.3} parent=11 // pred_region
        _
      $region72: #{decoder_forward.3} parent=11 // pred_fallthru
        _
      // Predicated region
      $region73: #{decoder_forward.3} parent=11 // pred_check
        %p640 = pneg %p470
      $region74: #{decoder_forward.3} parent=11 // pred_check_branch
        %642 = sbr.rel (%p640) target = $region76
      $region75: #{decoder_forward.3} parent=11 // pred_region
        _
      $region76: #{decoder_forward.3} parent=11 // pred_fallthru
        _
      // Predicated region
      $region77: #{decoder_forward.3} parent=11 // pred_check
        %p643 = pneg %p491
      $region78: #{decoder_forward.3} parent=11 // pred_check_branch
        %645 = sbr.rel (%p643) target = $region80
      $region79: #{decoder_forward.3} parent=11 // pred_region
        _
      $region80: #{decoder_forward.3} parent=11 // pred_fallthru
        _
      // Predicated region
      $region81: #{decoder_forward.3} parent=11 // pred_check
        %p646 = pneg %p512
      $region82: #{decoder_forward.3} parent=11 // pred_check_branch
        %648 = sbr.rel (%p646) target = $region84
      $region83: #{decoder_forward.3} parent=11 // pred_region
        _
      $region84: #{decoder_forward.3} parent=11 // pred_fallthru
        _
      // Predicated region
      $region85: #{decoder_forward.3} parent=11 // pred_check
        %p649 = pneg %p533
      $region86: #{decoder_forward.3} parent=11 // pred_check_branch
        %651 = sbr.rel (%p649) target = $region88
      $region87: #{decoder_forward.3} parent=11 // pred_region
        _
      $region88: #{decoder_forward.3} parent=11 // pred_fallthru
        _
      // Predicated region
      $region89: #{decoder_forward.3} parent=11 // pred_check
        %p652 = pneg %p554
      $region90: #{decoder_forward.3} parent=11 // pred_check_branch
        %654 = sbr.rel (%p652) target = $region92
      $region91: #{decoder_forward.3} parent=11 // pred_region
        _
      $region92: #{decoder_forward.3} parent=11 // pred_fallthru
        _
    $region12: #{decoder_forward.3} parent=5 // pred_fallthru
      _
    %p655 = scmp.lt.s32.totalorder %s30, 2
    // Predicated region
    $region93: #{decoder_forward.3} parent=5 // pred_check
      %p656 = pneg %p655
    $region94: #{decoder_forward.3} parent=5 // pred_check_branch
      %658 = sbr.rel (%p656) target = $region96
    $region95: #{decoder_forward.3} parent=5 // pred_region
      // Predicated region
      $region97: #{decoder_forward.3} parent=95 // pred_check
        %p659 = pneg %p50
      $region98: #{decoder_forward.3} parent=95 // pred_check_branch
        %661 = sbr.rel (%p659) target = $region100
      $region99: #{decoder_forward.3} parent=95 // pred_region
        %p662 = scmp.lt.s32.totalorder %s30, 1
        %s663 = scalar_select %p662, %s30, 1
        %s664 = smul.addr %s663, 8
        %s665 = scalar_lea.vmem %s0, %s664
      $region100: #{decoder_forward.3} parent=95 // pred_fallthru
        _
      // Predicated region
      $region101: #{decoder_forward.3} parent=95 // pred_check
        %p666 = pneg %p76
      $region102: #{decoder_forward.3} parent=95 // pred_check_branch
        %668 = sbr.rel (%p666) target = $region104
      $region103: #{decoder_forward.3} parent=95 // pred_region
        %p669 = scmp.lt.s32.totalorder %s30, 1
        %s670 = scalar_select %p669, %s30, 1
        %s671 = smul.addr %s670, 8
        %s672 = scalar_lea.vmem %s1, %s671
      $region104: #{decoder_forward.3} parent=95 // pred_fallthru
        _
      // Predicated region
      $region105: #{decoder_forward.3} parent=95 // pred_check
        %p673 = pneg %p102
      $region106: #{decoder_forward.3} parent=95 // pred_check_branch
        %675 = sbr.rel (%p673) target = $region108
      $region107: #{decoder_forward.3} parent=95 // pred_region
        %p676 = scmp.lt.s32.totalorder %s30, 1
        %s677 = scalar_select %p676, %s30, 1
        %s678 = smul.addr %s677, 8
        %s679 = scalar_lea.vmem %s2, %s678
      $region108: #{decoder_forward.3} parent=95 // pred_fallthru
        _
      // Predicated region
      $region109: #{decoder_forward.3} parent=95 // pred_check
        %p680 = pneg %p128
      $region110: #{decoder_forward.3} parent=95 // pred_check_branch
        %682 = sbr.rel (%p680) target = $region112
      $region111: #{decoder_forward.3} parent=95 // pred_region
        %p683 = scmp.lt.s32.totalorder %s30, 1
        %s684 = scalar_select %p683, %s30, 1
        %s685 = smul.addr %s684, 8
        %s686 = scalar_lea.vmem %s3, %s685
      $region112: #{decoder_forward.3} parent=95 // pred_fallthru
        _
    $region96: #{decoder_forward.3} parent=5 // pred_fallthru
      _
    %p687 = scmp.le.s32.totalorder 1, %s30
    %p688 = scmp.lt.s32.totalorder %s30, 3
    %p689 = pnand %p687, %p688
    %p690 = pneg %p689
    // Predicated region
    $region113: #{decoder_forward.3} parent=5 // pred_check
      _
    $region114: #{decoder_forward.3} parent=5 // pred_check_branch
      %692 = sbr.rel (%p689) target = $region116
    $region115: #{decoder_forward.3} parent=5 // pred_region
      %s693 = ssub.s32 %s30, 1
      %p694 = scmp.lt.s32.totalorder %s35, 1
      %s695 = scalar_select %p694, %s35, 1
      %s696 = smul.addr %s695, 8
      %s697 = scalar_lea.vmem %s0, %s696
      %p698 = pneg %p56
      %p699 = pneg %p53
      %p700 = scmp.lt.s32.totalorder %s35, 1
      %s701 = scalar_select %p700, %s35, 1
      %s702 = smul.addr %s701, 8
      %s703 = scalar_lea.vmem %s1, %s702
      %p704 = pneg %p82
      %p705 = pneg %p79
      %p706 = scmp.lt.s32.totalorder %s35, 1
      %s707 = scalar_select %p706, %s35, 1
      %s708 = smul.addr %s707, 8
      %s709 = scalar_lea.vmem %s2, %s708
      %p710 = pneg %p108
      %p711 = pneg %p105
      %p712 = scmp.lt.s32.totalorder %s35, 1
      %s713 = scalar_select %p712, %s35, 1
      %s714 = smul.addr %s713, 8
      %s715 = scalar_lea.vmem %s3, %s714
      %p716 = pneg %p134
      %p717 = pneg %p131
      %p718 = pneg %p155
      %p719 = pneg %p152
      %p720 = pneg %p176
      %p721 = pneg %p173
      %p722 = pneg %p197
      %p723 = pneg %p194
      %p724 = pneg %p218
      %p725 = pneg %p215
      %p726 = pneg %p239
      %p727 = pneg %p236
      %p728 = pneg %p260
      %p729 = pneg %p257
      %p730 = pneg %p281
      %p731 = pneg %p278
      %p732 = pneg %p302
      %p733 = pneg %p299
      %p734 = pneg %p323
      %p735 = pneg %p320
      %p736 = pneg %p344
      %p737 = pneg %p341
      %p738 = pneg %p365
      %p739 = pneg %p362
      %p740 = pneg %p386
      %p741 = pneg %p383
      %p742 = pneg %p407
      %p743 = pneg %p404
      %p744 = pneg %p428
      %p745 = pneg %p425
      %p746 = pneg %p449
      %p747 = pneg %p446
      %p748 = pneg %p470
      %p749 = pneg %p467
      %p750 = pneg %p491
      %p751 = pneg %p488
      %p752 = pneg %p512
      %p753 = pneg %p509
      %p754 = pneg %p533
      %p755 = pneg %p530
      %p756 = pneg %p554
      %p757 = pneg %p551
      %p758 = pneg %p580
      %p759 = pneg %p577
      %p760 = scmp.lt.s32.totalorder %s35, 1
      %s761 = scalar_select %p760, %s35, 1
      %s762 = smul.addr %s761, 8
      %s763 = scalar_lea.vmem %s24, %s762
      %p764 = scmp.lt.s32.totalorder %s35, 1
      %s765 = scalar_select %p764, %s35, 1
      %s766 = smul.addr %s765, 8
      %s767 = scalar_lea.vmem %s0, %s766
      %p768 = scmp.lt.s32.totalorder %s35, 1
      %s769 = scalar_select %p768, %s35, 1
      %s770 = smul.addr %s769, 8
      %s771 = scalar_lea.vmem %s1, %s770
      %p772 = scmp.lt.s32.totalorder %s35, 1
      %s773 = scalar_select %p772, %s35, 1
      %s774 = smul.addr %s773, 8
      %s775 = scalar_lea.vmem %s2, %s774
      %p776 = scmp.lt.s32.totalorder %s35, 1
      %s777 = scalar_select %p776, %s35, 1
      %s778 = smul.addr %s777, 8
      %s779 = scalar_lea.vmem %s3, %s778
      %p780 = scmp.lt.s32.totalorder %s35, 1
      %s781 = scalar_select %p780, %s35, 1
      %s782 = smul.addr %s781, 8
      %s783 = scalar_lea.vmem %s24, %s782
      %v785 = vld [vmem:[%s767] sm:$0xff]
      %v786 = vld [vmem:[%s771] sm:$0xff]
      %v787 = vld [vmem:[%s775] sm:$0xff]
      %v788 = vld [vmem:[%s779] sm:$0xff]
      %v789 = vld [vmem:[%s4] sm:$0xf]
      %v790 = vld [vmem:[%s4 + $0x4] sm:$0xf]
      %v791 = vld [vmem:[%s4 + $0x8] sm:$0xf]
      %v792 = vld [vmem:[%s4 + $0xc] sm:$0xf]
      %v793 = vld [vmem:[%s5] sm:$0xf]
      %v794 = vld [vmem:[%s5 + $0x4] sm:$0xf]
      %v795 = vld [vmem:[%s5 + $0x8] sm:$0xf]
      %v796 = vld [vmem:[%s5 + $0xc] sm:$0xf]
      %v797 = vld [vmem:[%s6] sm:$0xf]
      %v798 = vld [vmem:[%s6 + $0x4] sm:$0xf]
      %v799 = vld [vmem:[%s6 + $0x8] sm:$0xf]
      %v800 = vld [vmem:[%s6 + $0xc] sm:$0xf]
      %v801 = vld [vmem:[%s7] sm:$0xf]
      %v802 = vld [vmem:[%s7 + $0x4] sm:$0xf]
      %v803 = vld [vmem:[%s7 + $0x8] sm:$0xf]
      %v804 = vld [vmem:[%s7 + $0xc] sm:$0xf]
      %v805 = vld [vmem:[%s8] sm:$0x1]
      %v806 = vpack.c.bf16 %v785, %v785
      %v811 = vunpack.c.l.b16 %v789
      %v812 = vunpack.c.l.b16 %v790
      %v813 = vunpack.c.l.b16 %v791
      %v814 = vunpack.c.l.b16 %v792
      %v815 = vpack.c.b16 %v812, %v811
      %v816 = vpack.c.b16 %v814, %v813
      %vm819 = vcmask 261120
      %v821 = vsel %vm819, %v806, 0
      %823 = vmatprep.subr.bf16.mxu0 0
      %824 = vmatpush1.bf16.msra.mxu0 %v815
      %825 = vmatprep.subr.bf16.mxu0 0
      %826 = vmatpush1.bf16.msra.mxu0 %v816
      %827 = vmatprep.subr.bf16.mxu0 0
      %828 = vmatpush1.bf16.msra.mxu0 0
      %829 = vmatprep.subr.bf16.mxu0 0
      %830 = vmatpush1.bf16.msra.mxu0 0
      %831 = vmatprep.subr.bf16.mxu0 0
      %832 = vmatpush1.bf16.msra.mxu0 0
      %833 = vmatprep.subr.bf16.mxu0 0
      %834 = vmatpush1.bf16.msra.mxu0 0
      %835 = vmatprep.subr.bf16.mxu0 0
      %836 = vmatpush1.bf16.msra.mxu0 0
      %837 = vmatprep.subr.bf16.mxu0 0
      %838 = vmatpush1.bf16.msra.mxu0 0
      %839 = vmatprep.subr.bf16.mxu0 0
      %840 = vmatpush1.bf16.msra.mxu0 0
      %841 = vmatprep.subr.bf16.mxu0 0
      %842 = vmatpush1.bf16.msra.mxu0 0
      %843 = vmatprep.subr.bf16.mxu0 0
      %844 = vmatpush1.bf16.msra.mxu0 0
      %845 = vmatprep.subr.bf16.mxu0 0
      %846 = vmatpush1.bf16.msra.mxu0 0
      %847 = vmatprep.subr.bf16.mxu0 0
      %848 = vmatpush1.bf16.msra.mxu0 0
      %849 = vmatprep.subr.bf16.mxu0 0
      %850 = vmatpush1.bf16.msra.mxu0 0
      %851 = vmatprep.subr.bf16.mxu0 0
      %852 = vmatpush1.bf16.msra.mxu0 0
      %853 = vmatprep.subr.bf16.mxu0 0
      %854 = vmatpush1.bf16.msra.mxu0 0
      %855 = vmatprep.mubr.bf16.mxu0 0
      %856 = vmatmul.mubr.bf16.gmra.mrb[0].mxu0 %v821
      %v857 = vpop.f32.mrb[0].mxu0
      %v858 = vadd.f32 0.0, %v857
      %v859 = vpop.f32.mrb[0].mxu0
      %v860 = vpop.f32.mrb[0].mxu0
      %v861 = vpop.f32.mrb[0].mxu0
      %862 = vdwg.mxu0
      %v867 = vunpack.c.l.b16 %v793
      %v868 = vunpack.c.l.b16 %v794
      %v869 = vunpack.c.l.b16 %v795
      %v870 = vunpack.c.l.b16 %v796
      %v871 = vpack.c.b16 %v868, %v867
      %v872 = vpack.c.b16 %v870, %v869
      %875 = vmatprep.subr.bf16.mxu0 0
      %876 = vmatpush1.bf16.msra.mxu0 %v871
      %877 = vmatprep.subr.bf16.mxu0 0
      %878 = vmatpush1.bf16.msra.mxu0 %v872
      %879 = vmatprep.subr.bf16.mxu0 0
      %880 = vmatpush1.bf16.msra.mxu0 0
      %881 = vmatprep.subr.bf16.mxu0 0
      %882 = vmatpush1.bf16.msra.mxu0 0
      %883 = vmatprep.subr.bf16.mxu0 0
      %884 = vmatpush1.bf16.msra.mxu0 0
      %885 = vmatprep.subr.bf16.mxu0 0
      %886 = vmatpush1.bf16.msra.mxu0 0
      %887 = vmatprep.subr.bf16.mxu0 0
      %888 = vmatpush1.bf16.msra.mxu0 0
      %889 = vmatprep.subr.bf16.mxu0 0
      %890 = vmatpush1.bf16.msra.mxu0 0
      %891 = vmatprep.subr.bf16.mxu0 0
      %892 = vmatpush1.bf16.msra.mxu0 0
      %893 = vmatprep.subr.bf16.mxu0 0
      %894 = vmatpush1.bf16.msra.mxu0 0
      %895 = vmatprep.subr.bf16.mxu0 0
      %896 = vmatpush1.bf16.msra.mxu0 0
      %897 = vmatprep.subr.bf16.mxu0 0
      %898 = vmatpush1.bf16.msra.mxu0 0
      %899 = vmatprep.subr.bf16.mxu0 0
      %900 = vmatpush1.bf16.msra.mxu0 0
      %901 = vmatprep.subr.bf16.mxu0 0
      %902 = vmatpush1.bf16.msra.mxu0 0
      %903 = vmatprep.subr.bf16.mxu0 0
      %904 = vmatpush1.bf16.msra.mxu0 0
      %905 = vmatprep.subr.bf16.mxu0 0
      %906 = vmatpush1.bf16.msra.mxu0 0
      %907 = vmatprep.mubr.bf16.mxu0 0
      %908 = vmatmul.mubr.bf16.gmra.mrb[0].mxu0 %v821
      %v909 = vpop.f32.mrb[0].mxu0
      %v910 = vadd.f32 0.0, %v909
      %v911 = vpop.f32.mrb[0].mxu0
      %v912 = vpop.f32.mrb[0].mxu0
      %v913 = vpop.f32.mrb[0].mxu0
      %914 = vdwg.mxu0
      %v919 = vunpack.c.l.b16 %v797
      %v920 = vunpack.c.l.b16 %v798
      %v921 = vunpack.c.l.b16 %v799
      %v922 = vunpack.c.l.b16 %v800
      %v923 = vpack.c.b16 %v920, %v919
      %v924 = vpack.c.b16 %v922, %v921
      %927 = vmatprep.subr.bf16.mxu0 0
      %928 = vmatpush1.bf16.msra.mxu0 %v923
      %929 = vmatprep.subr.bf16.mxu0 0
      %930 = vmatpush1.bf16.msra.mxu0 %v924
      %931 = vmatprep.subr.bf16.mxu0 0
      %932 = vmatpush1.bf16.msra.mxu0 0
      %933 = vmatprep.subr.bf16.mxu0 0
      %934 = vmatpush1.bf16.msra.mxu0 0
      %935 = vmatprep.subr.bf16.mxu0 0
      %936 = vmatpush1.bf16.msra.mxu0 0
      %937 = vmatprep.subr.bf16.mxu0 0
      %938 = vmatpush1.bf16.msra.mxu0 0
      %939 = vmatprep.subr.bf16.mxu0 0
      %940 = vmatpush1.bf16.msra.mxu0 0
      %941 = vmatprep.subr.bf16.mxu0 0
      %942 = vmatpush1.bf16.msra.mxu0 0
      %943 = vmatprep.subr.bf16.mxu0 0
      %944 = vmatpush1.bf16.msra.mxu0 0
      %945 = vmatprep.subr.bf16.mxu0 0
      %946 = vmatpush1.bf16.msra.mxu0 0
      %947 = vmatprep.subr.bf16.mxu0 0
      %948 = vmatpush1.bf16.msra.mxu0 0
      %949 = vmatprep.subr.bf16.mxu0 0
      %950 = vmatpush1.bf16.msra.mxu0 0
      %951 = vmatprep.subr.bf16.mxu0 0
      %952 = vmatpush1.bf16.msra.mxu0 0
      %953 = vmatprep.subr.bf16.mxu0 0
      %954 = vmatpush1.bf16.msra.mxu0 0
      %955 = vmatprep.subr.bf16.mxu0 0
      %956 = vmatpush1.bf16.msra.mxu0 0
      %957 = vmatprep.subr.bf16.mxu0 0
      %958 = vmatpush1.bf16.msra.mxu0 0
      %959 = vmatprep.mubr.bf16.mxu0 0
      %960 = vmatmul.mubr.bf16.gmra.mrb[0].mxu0 %v821
      %v961 = vpop.f32.mrb[0].mxu0
      %v962 = vadd.f32 0.0, %v961
      %v963 = vpop.f32.mrb[0].mxu0
      %v964 = vpop.f32.mrb[0].mxu0
      %v965 = vpop.f32.mrb[0].mxu0
      %966 = vdwg.mxu0
      %v967 = vmul.f32 %v962, 0.17677669
      %969 = vrot.lane.b32.xlu0 %v967, 120
      %v970 = vpop.permute.xlu0 %969
      %972 = vrot.lane.b32.xlu0 %v967, 112
      %v973 = vpop.permute.xlu0 %972
      %975 = vrot.lane.b32.xlu0 %v967, 104
      %v976 = vpop.permute.xlu0 %975
      %v978 = vcombine.low %v967, %v973
      %v979 = vcombine.high %v967, %v973
      %v981 = vunpack.c.l.s4 1983009808
      %v982 = vunpack.c.0.s8 %v981
      %v983 = vlaneseq
      %v984 = vshrl.u32 %v983, 7
      %v985 = vsub.s32 %v982, %v984
      %v986 = vrot.slane %v978, %v985
      %v988 = vunpack.c.l.s4 1983009808
      %v989 = vunpack.c.0.s8 %v988
      %v990 = vlaneseq
      %v991 = vshrl.u32 %v990, 7
      %v992 = vsub.s32 %v989, %v991
      %v993 = vrot.slane %v979, %v992
      %v994 = vcombine.low %v970, %v976
      %v995 = vcombine.high %v970, %v976
      %v997 = vunpack.c.l.s4 1983009808
      %v998 = vunpack.c.0.s8 %v997
      %v999 = vlaneseq
      %v1000 = vshrl.u32 %v999, 7
      %v1001 = vsub.s32 %v998, %v1000
      %v1002 = vrot.slane %v994, %v1001
      %v1004 = vunpack.c.l.s4 1983009808
      %v1005 = vunpack.c.0.s8 %v1004
      %v1006 = vlaneseq
      %v1007 = vshrl.u32 %v1006, 7
      %v1008 = vsub.s32 %v1005, %v1007
      %v1009 = vrot.slane %v995, %v1008
      %v1010 = vcombine.low %v986, %v1002
      %v1011 = vcombine.high %v986, %v1002
      %v1013 = vunpack.c.l.s4 1934713408
      %v1014 = vunpack.c.0.s8 %v1013
      %v1015 = vlaneseq
      %v1016 = vshrl.u32 %v1015, 7
      %v1017 = vsub.s32 %v1014, %v1016
      %v1018 = vrot.slane %v1010, %v1017
      %v1020 = vunpack.c.l.s4 1934713408
      %v1021 = vunpack.c.0.s8 %v1020
      %v1022 = vlaneseq
      %v1023 = vshrl.u32 %v1022, 7
      %v1024 = vsub.s32 %v1021, %v1023
      %v1025 = vrot.slane %v1011, %v1024
      %v1026 = vcombine.low %v993, %v1009
      %v1027 = vcombine.high %v993, %v1009
      %v1029 = vunpack.c.l.s4 1934713408
      %v1030 = vunpack.c.0.s8 %v1029
      %v1031 = vlaneseq
      %v1032 = vshrl.u32 %v1031, 7
      %v1033 = vsub.s32 %v1030, %v1032
      %v1034 = vrot.slane %v1026, %v1033
      %v1036 = vunpack.c.l.s4 1934713408
      %v1037 = vunpack.c.0.s8 %v1036
      %v1038 = vlaneseq
      %v1039 = vshrl.u32 %v1038, 7
      %v1040 = vsub.s32 %v1037, %v1039
      %v1041 = vrot.slane %v1027, %v1040
      %v1042 = vcombine.high %v1018, 0.0
      %v1043 = vcombine.high %v1025, 0.0
      %v1044 = vcombine.high %v1034, 0.0
      %v1045 = vcombine.high %v1041, 0.0
      %v1046 = vcombine.low %v1018, %v1025
      %v1048 = vunpack.c.l.s4 1983009808
      %v1049 = vunpack.c.0.s8 %v1048
      %v1050 = vlaneseq
      %v1051 = vshrl.u32 %v1050, 7
      %v1052 = vsub.s32 %v1049, %v1051
      %v1053 = vrot.slane %v1046, %v1052
      %v1054 = vcombine.low %v1042, %v1043
      %v1056 = vunpack.c.l.s4 1983009808
      %v1057 = vunpack.c.0.s8 %v1056
      %v1058 = vlaneseq
      %v1059 = vshrl.u32 %v1058, 7
      %v1060 = vsub.s32 %v1057, %v1059
      %v1061 = vrot.slane %v1054, %v1060
      %v1062 = vcombine.low %v1034, %v1041
      %v1064 = vunpack.c.l.s4 1983009808
      %v1065 = vunpack.c.0.s8 %v1064
      %v1066 = vlaneseq
      %v1067 = vshrl.u32 %v1066, 7
      %v1068 = vsub.s32 %v1065, %v1067
      %v1069 = vrot.slane %v1062, %v1068
      %v1070 = vcombine.low %v1044, %v1045
      %v1072 = vunpack.c.l.s4 1983009808
      %v1073 = vunpack.c.0.s8 %v1072
      %v1074 = vlaneseq
      %v1075 = vshrl.u32 %v1074, 7
      %v1076 = vsub.s32 %v1073, %v1075
      %v1077 = vrot.slane %v1070, %v1076
      %v1078 = vcombine.low %v1053, %v1061
      %v1079 = vcombine.high %v1053, %v1061
      %v1081 = vunpack.c.l.s4 1934713408
      %v1082 = vunpack.c.0.s8 %v1081
      %v1083 = vlaneseq
      %v1084 = vshrl.u32 %v1083, 7
      %v1085 = vsub.s32 %v1082, %v1084
      %v1086 = vrot.slane %v1078, %v1085
      %v1088 = vunpack.c.l.s4 1934713408
      %v1089 = vunpack.c.0.s8 %v1088
      %v1090 = vlaneseq
      %v1091 = vshrl.u32 %v1090, 7
      %v1092 = vsub.s32 %v1089, %v1091
      %v1093 = vrot.slane %v1079, %v1092
      %v1094 = vcombine.low %v1069, %v1077
      %v1095 = vcombine.high %v1069, %v1077
      %v1097 = vunpack.c.l.s4 1934713408
      %v1098 = vunpack.c.0.s8 %v1097
      %v1099 = vlaneseq
      %v1100 = vshrl.u32 %v1099, 7
      %v1101 = vsub.s32 %v1098, %v1100
      %v1102 = vrot.slane %v1094, %v1101
      %v1104 = vunpack.c.l.s4 1934713408
      %v1105 = vunpack.c.0.s8 %v1104
      %v1106 = vlaneseq
      %v1107 = vshrl.u32 %v1106, 7
      %v1108 = vsub.s32 %v1105, %v1107
      %v1109 = vrot.slane %v1095, %v1108
      %v1110 = vcombine.low %v1086, %v1102
      %v1111 = vcombine.high %v1086, %v1102
      %v1112 = vcombine.low %v1093, %v1109
      %v1113 = vcombine.high %v1093, %v1109
      %v1114 = vpack.c.bf16 %v1110, %v1110
      %v1115 = vpack.c.bf16 %v1111, %v1111
      %v1116 = vpack.c.bf16 %v1112, %v1112
      %v1117 = vpack.c.bf16 %v1113, %v1113
      %1119 = vrot.lane.b32.xlu0 %v910, 120
      %v1120 = vpop.permute.xlu0 %1119
      %1122 = vrot.lane.b32.xlu0 %v910, 112
      %v1123 = vpop.permute.xlu0 %1122
      %1125 = vrot.lane.b32.xlu0 %v910, 104
      %v1126 = vpop.permute.xlu0 %1125
      %v1128 = vcombine.low %v910, %v1123
      %v1129 = vcombine.high %v910, %v1123
      %v1131 = vunpack.c.l.s4 1983009808
      %v1132 = vunpack.c.0.s8 %v1131
      %v1133 = vlaneseq
      %v1134 = vshrl.u32 %v1133, 7
      %v1135 = vsub.s32 %v1132, %v1134
      %v1136 = vrot.slane %v1128, %v1135
      %v1138 = vunpack.c.l.s4 1983009808
      %v1139 = vunpack.c.0.s8 %v1138
      %v1140 = vlaneseq
      %v1141 = vshrl.u32 %v1140, 7
      %v1142 = vsub.s32 %v1139, %v1141
      %v1143 = vrot.slane %v1129, %v1142
      %v1144 = vcombine.low %v1120, %v1126
      %v1145 = vcombine.high %v1120, %v1126
      %v1147 = vunpack.c.l.s4 1983009808
      %v1148 = vunpack.c.0.s8 %v1147
      %v1149 = vlaneseq
      %v1150 = vshrl.u32 %v1149, 7
      %v1151 = vsub.s32 %v1148, %v1150
      %v1152 = vrot.slane %v1144, %v1151
      %v1154 = vunpack.c.l.s4 1983009808
      %v1155 = vunpack.c.0.s8 %v1154
      %v1156 = vlaneseq
      %v1157 = vshrl.u32 %v1156, 7
      %v1158 = vsub.s32 %v1155, %v1157
      %v1159 = vrot.slane %v1145, %v1158
      %v1160 = vcombine.low %v1136, %v1152
      %v1161 = vcombine.high %v1136, %v1152
      %v1163 = vunpack.c.l.s4 1934713408
      %v1164 = vunpack.c.0.s8 %v1163
      %v1165 = vlaneseq
      %v1166 = vshrl.u32 %v1165, 7
      %v1167 = vsub.s32 %v1164, %v1166
      %v1168 = vrot.slane %v1160, %v1167
      %v1170 = vunpack.c.l.s4 1934713408
      %v1171 = vunpack.c.0.s8 %v1170
      %v1172 = vlaneseq
      %v1173 = vshrl.u32 %v1172, 7
      %v1174 = vsub.s32 %v1171, %v1173
      %v1175 = vrot.slane %v1161, %v1174
      %v1176 = vcombine.low %v1143, %v1159
      %v1177 = vcombine.high %v1143, %v1159
      %v1179 = vunpack.c.l.s4 1934713408
      %v1180 = vunpack.c.0.s8 %v1179
      %v1181 = vlaneseq
      %v1182 = vshrl.u32 %v1181, 7
      %v1183 = vsub.s32 %v1180, %v1182
      %v1184 = vrot.slane %v1176, %v1183
      %v1186 = vunpack.c.l.s4 1934713408
      %v1187 = vunpack.c.0.s8 %v1186
      %v1188 = vlaneseq
      %v1189 = vshrl.u32 %v1188, 7
      %v1190 = vsub.s32 %v1187, %v1189
      %v1191 = vrot.slane %v1177, %v1190
      %v1192 = vcombine.high %v1168, 0.0
      %v1193 = vcombine.high %v1175, 0.0
      %v1194 = vcombine.high %v1184, 0.0
      %v1195 = vcombine.high %v1191, 0.0
      %v1196 = vcombine.low %v1168, %v1175
      %v1198 = vunpack.c.l.s4 1983009808
      %v1199 = vunpack.c.0.s8 %v1198
      %v1200 = vlaneseq
      %v1201 = vshrl.u32 %v1200, 7
      %v1202 = vsub.s32 %v1199, %v1201
      %v1203 = vrot.slane %v1196, %v1202
      %v1204 = vcombine.low %v1192, %v1193
      %v1206 = vunpack.c.l.s4 1983009808
      %v1207 = vunpack.c.0.s8 %v1206
      %v1208 = vlaneseq
      %v1209 = vshrl.u32 %v1208, 7
      %v1210 = vsub.s32 %v1207, %v1209
      %v1211 = vrot.slane %v1204, %v1210
      %v1212 = vcombine.low %v1184, %v1191
      %v1214 = vunpack.c.l.s4 1983009808
      %v1215 = vunpack.c.0.s8 %v1214
      %v1216 = vlaneseq
      %v1217 = vshrl.u32 %v1216, 7
      %v1218 = vsub.s32 %v1215, %v1217
      %v1219 = vrot.slane %v1212, %v1218
      %v1220 = vcombine.low %v1194, %v1195
      %v1222 = vunpack.c.l.s4 1983009808
      %v1223 = vunpack.c.0.s8 %v1222
      %v1224 = vlaneseq
      %v1225 = vshrl.u32 %v1224, 7
      %v1226 = vsub.s32 %v1223, %v1225
      %v1227 = vrot.slane %v1220, %v1226
      %v1228 = vcombine.low %v1203, %v1211
      %v1229 = vcombine.high %v1203, %v1211
      %v1231 = vunpack.c.l.s4 1934713408
      %v1232 = vunpack.c.0.s8 %v1231
      %v1233 = vlaneseq
      %v1234 = vshrl.u32 %v1233, 7
      %v1235 = vsub.s32 %v1232, %v1234
      %v1236 = vrot.slane %v1228, %v1235
      %v1238 = vunpack.c.l.s4 1934713408
      %v1239 = vunpack.c.0.s8 %v1238
      %v1240 = vlaneseq
      %v1241 = vshrl.u32 %v1240, 7
      %v1242 = vsub.s32 %v1239, %v1241
      %v1243 = vrot.slane %v1229, %v1242
      %v1244 = vcombine.low %v1219, %v1227
      %v1245 = vcombine.high %v1219, %v1227
      %v1247 = vunpack.c.l.s4 1934713408
      %v1248 = vunpack.c.0.s8 %v1247
      %v1249 = vlaneseq
      %v1250 = vshrl.u32 %v1249, 7
      %v1251 = vsub.s32 %v1248, %v1250
      %v1252 = vrot.slane %v1244, %v1251
      %v1254 = vunpack.c.l.s4 1934713408
      %v1255 = vunpack.c.0.s8 %v1254
      %v1256 = vlaneseq
      %v1257 = vshrl.u32 %v1256, 7
      %v1258 = vsub.s32 %v1255, %v1257
      %v1259 = vrot.slane %v1245, %v1258
      %v1260 = vcombine.low %v1236, %v1252
      %v1261 = vcombine.high %v1236, %v1252
      %v1262 = vcombine.low %v1243, %v1259
      %v1263 = vcombine.high %v1243, %v1259
      %v1264 = vpack.c.bf16 %v1260, %v1260
      %v1265 = vpack.c.bf16 %v1261, %v1261
      %v1266 = vpack.c.bf16 %v1262, %v1262
      %v1267 = vpack.c.bf16 %v1263, %v1263
      %1269 = vrot.lane.b32.xlu0 %v858, 120
      %v1270 = vpop.permute.xlu0 %1269
      %1272 = vrot.lane.b32.xlu0 %v858, 112
      %v1273 = vpop.permute.xlu0 %1272
      %1275 = vrot.lane.b32.xlu0 %v858, 104
      %v1276 = vpop.permute.xlu0 %1275
      %v1278 = vcombine.low %v858, %v1273
      %v1279 = vcombine.high %v858, %v1273
      %v1281 = vunpack.c.l.s4 1983009808
      %v1282 = vunpack.c.0.s8 %v1281
      %v1283 = vlaneseq
      %v1284 = vshrl.u32 %v1283, 7
      %v1285 = vsub.s32 %v1282, %v1284
      %v1286 = vrot.slane %v1278, %v1285
      %v1288 = vunpack.c.l.s4 1983009808
      %v1289 = vunpack.c.0.s8 %v1288
      %v1290 = vlaneseq
      %v1291 = vshrl.u32 %v1290, 7
      %v1292 = vsub.s32 %v1289, %v1291
      %v1293 = vrot.slane %v1279, %v1292
      %v1294 = vcombine.low %v1270, %v1276
      %v1295 = vcombine.high %v1270, %v1276
      %v1297 = vunpack.c.l.s4 1983009808
      %v1298 = vunpack.c.0.s8 %v1297
      %v1299 = vlaneseq
      %v1300 = vshrl.u32 %v1299, 7
      %v1301 = vsub.s32 %v1298, %v1300
      %v1302 = vrot.slane %v1294, %v1301
      %v1304 = vunpack.c.l.s4 1983009808
      %v1305 = vunpack.c.0.s8 %v1304
      %v1306 = vlaneseq
      %v1307 = vshrl.u32 %v1306, 7
      %v1308 = vsub.s32 %v1305, %v1307
      %v1309 = vrot.slane %v1295, %v1308
      %v1310 = vcombine.low %v1286, %v1302
      %v1311 = vcombine.high %v1286, %v1302
      %v1313 = vunpack.c.l.s4 1934713408
      %v1314 = vunpack.c.0.s8 %v1313
      %v1315 = vlaneseq
      %v1316 = vshrl.u32 %v1315, 7
      %v1317 = vsub.s32 %v1314, %v1316
      %v1318 = vrot.slane %v1310, %v1317
      %v1320 = vunpack.c.l.s4 1934713408
      %v1321 = vunpack.c.0.s8 %v1320
      %v1322 = vlaneseq
      %v1323 = vshrl.u32 %v1322, 7
      %v1324 = vsub.s32 %v1321, %v1323
      %v1325 = vrot.slane %v1311, %v1324
      %v1326 = vcombine.low %v1293, %v1309
      %v1327 = vcombine.high %v1293, %v1309
      %v1329 = vunpack.c.l.s4 1934713408
      %v1330 = vunpack.c.0.s8 %v1329
      %v1331 = vlaneseq
      %v1332 = vshrl.u32 %v1331, 7
      %v1333 = vsub.s32 %v1330, %v1332
      %v1334 = vrot.slane %v1326, %v1333
      %v1336 = vunpack.c.l.s4 1934713408
      %v1337 = vunpack.c.0.s8 %v1336
      %v1338 = vlaneseq
      %v1339 = vshrl.u32 %v1338, 7
      %v1340 = vsub.s32 %v1337, %v1339
      %v1341 = vrot.slane %v1327, %v1340
      %v1342 = vcombine.high %v1318, 0.0
      %v1343 = vcombine.high %v1325, 0.0
      %v1344 = vcombine.high %v1334, 0.0
      %v1345 = vcombine.high %v1341, 0.0
      %v1346 = vcombine.low %v1318, %v1325
      %v1348 = vunpack.c.l.s4 1983009808
      %v1349 = vunpack.c.0.s8 %v1348
      %v1350 = vlaneseq
      %v1351 = vshrl.u32 %v1350, 7
      %v1352 = vsub.s32 %v1349, %v1351
      %v1353 = vrot.slane %v1346, %v1352
      %v1354 = vcombine.low %v1342, %v1343
      %v1356 = vunpack.c.l.s4 1983009808
      %v1357 = vunpack.c.0.s8 %v1356
      %v1358 = vlaneseq
      %v1359 = vshrl.u32 %v1358, 7
      %v1360 = vsub.s32 %v1357, %v1359
      %v1361 = vrot.slane %v1354, %v1360
      %v1362 = vcombine.low %v1334, %v1341
      %v1364 = vunpack.c.l.s4 1983009808
      %v1365 = vunpack.c.0.s8 %v1364
      %v1366 = vlaneseq
      %v1367 = vshrl.u32 %v1366, 7
      %v1368 = vsub.s32 %v1365, %v1367
      %v1369 = vrot.slane %v1362, %v1368
      %v1370 = vcombine.low %v1344, %v1345
      %v1372 = vunpack.c.l.s4 1983009808
      %v1373 = vunpack.c.0.s8 %v1372
      %v1374 = vlaneseq
      %v1375 = vshrl.u32 %v1374, 7
      %v1376 = vsub.s32 %v1373, %v1375
      %v1377 = vrot.slane %v1370, %v1376
      %v1378 = vcombine.low %v1353, %v1361
      %v1379 = vcombine.high %v1353, %v1361
      %v1381 = vunpack.c.l.s4 1934713408
      %v1382 = vunpack.c.0.s8 %v1381
      %v1383 = vlaneseq
      %v1384 = vshrl.u32 %v1383, 7
      %v1385 = vsub.s32 %v1382, %v1384
      %v1386 = vrot.slane %v1378, %v1385
      %v1388 = vunpack.c.l.s4 1934713408
      %v1389 = vunpack.c.0.s8 %v1388
      %v1390 = vlaneseq
      %v1391 = vshrl.u32 %v1390, 7
      %v1392 = vsub.s32 %v1389, %v1391
      %v1393 = vrot.slane %v1379, %v1392
      %v1394 = vcombine.low %v1369, %v1377
      %v1395 = vcombine.high %v1369, %v1377
      %v1397 = vunpack.c.l.s4 1934713408
      %v1398 = vunpack.c.0.s8 %v1397
      %v1399 = vlaneseq
      %v1400 = vshrl.u32 %v1399, 7
      %v1401 = vsub.s32 %v1398, %v1400
      %v1402 = vrot.slane %v1394, %v1401
      %v1404 = vunpack.c.l.s4 1934713408
      %v1405 = vunpack.c.0.s8 %v1404
      %v1406 = vlaneseq
      %v1407 = vshrl.u32 %v1406, 7
      %v1408 = vsub.s32 %v1405, %v1407
      %v1409 = vrot.slane %v1395, %v1408
      %v1410 = vcombine.low %v1386, %v1402
      %v1411 = vcombine.high %v1386, %v1402
      %v1412 = vcombine.low %v1393, %v1409
      %v1413 = vcombine.high %v1393, %v1409
      %v1414 = vpack.c.bf16 %v1410, %v1410
      %v1415 = vpack.c.bf16 %v1411, %v1411
      %v1416 = vpack.c.bf16 %v1412, %v1412
      %v1417 = vpack.c.bf16 %v1413, %v1413
      %vm1418 = vcmask 64512
      %v1420 = vsel %vm1418, %v1114, 0
      %v1423 = vsel %vm1418, %v1264, 0
      %1425 = vmatprep.subr.bf16.mxu0 0
      %1426 = vmatpush1.bf16.xpose.msra.mxu0 %v1423
      %1427 = vmatprep.subr.bf16.mxu0 0
      %1428 = vmatpush1.bf16.xpose.msra.mxu0 0
      %1429 = vmatprep.subr.bf16.mxu0 0
      %1430 = vmatpush1.bf16.xpose.msra.mxu0 0
      %1431 = vmatprep.subr.bf16.mxu0 0
      %1432 = vmatpush1.bf16.xpose.msra.mxu0 0
      %1433 = vmatprep.subr.bf16.mxu0 0
      %1434 = vmatpush1.bf16.xpose.msra.mxu0 0
      %1435 = vmatprep.subr.bf16.mxu0 0
      %1436 = vmatpush1.bf16.xpose.msra.mxu0 0
      %1437 = vmatprep.subr.bf16.mxu0 0
      %1438 = vmatpush1.bf16.xpose.msra.mxu0 0
      %1439 = vmatprep.subr.bf16.mxu0 0
      %1440 = vmatpush1.bf16.xpose.msra.mxu0 0
      %1441 = vmatprep.subr.bf16.mxu0 0
      %1442 = vmatpush1.bf16.xpose.msra.mxu0 0
      %1443 = vmatprep.subr.bf16.mxu0 0
      %1444 = vmatpush1.bf16.xpose.msra.mxu0 0
      %1445 = vmatprep.subr.bf16.mxu0 0
      %1446 = vmatpush1.bf16.xpose.msra.mxu0 0
      %1447 = vmatprep.subr.bf16.mxu0 0
      %1448 = vmatpush1.bf16.xpose.msra.mxu0 0
      %1449 = vmatprep.subr.bf16.mxu0 0
      %1450 = vmatpush1.bf16.xpose.msra.mxu0 0
      %1451 = vmatprep.subr.bf16.mxu0 0
      %1452 = vmatpush1.bf16.xpose.msra.mxu0 0
      %1453 = vmatprep.subr.bf16.mxu0 0
      %1454 = vmatpush1.bf16.xpose.msra.mxu0 0
      %1455 = vmatprep.subr.bf16.mxu0 0
      %1456 = vmatpush1.bf16.xpose.msra.mxu0 0
      %1457 = vmatprep.mubr.bf16.mxu0 0
      %1458 = vmatmul.mubr.bf16.gmra.mrb[0].mxu0 %v1420
      %v1459 = vpop.f32.mrb[0].mxu0
      %v1460 = vadd.f32 0.0, %v1459
      %v1461 = vpop.f32.mrb[0].mxu0
      %v1462 = vpop.f32.mrb[0].mxu0
      %v1463 = vpop.f32.mrb[0].mxu0
      %1464 = vdwg.mxu0
      %v1466 = vsel %vm1418, %v1115, 0
      %v1469 = vsel %vm1418, %v1265, 0
      %1471 = vmatprep.subr.bf16.mxu0 0
      %1472 = vmatpush1.bf16.xpose.msra.mxu0 %v1469
      %1473 = vmatprep.subr.bf16.mxu0 0
      %1474 = vmatpush1.bf16.xpose.msra.mxu0 0
      %1475 = vmatprep.subr.bf16.mxu0 0
      %1476 = vmatpush1.bf16.xpose.msra.mxu0 0
      %1477 = vmatprep.subr.bf16.mxu0 0
      %1478 = vmatpush1.bf16.xpose.msra.mxu0 0
      %1479 = vmatprep.subr.bf16.mxu0 0
      %1480 = vmatpush1.bf16.xpose.msra.mxu0 0
      %1481 = vmatprep.subr.bf16.mxu0 0
      %1482 = vmatpush1.bf16.xpose.msra.mxu0 0
      %1483 = vmatprep.subr.bf16.mxu0 0
      %1484 = vmatpush1.bf16.xpose.msra.mxu0 0
      %1485 = vmatprep.subr.bf16.mxu0 0
      %1486 = vmatpush1.bf16.xpose.msra.mxu0 0
      %1487 = vmatprep.subr.bf16.mxu0 0
      %1488 = vmatpush1.bf16.xpose.msra.mxu0 0
      %1489 = vmatprep.subr.bf16.mxu0 0
      %1490 = vmatpush1.bf16.xpose.msra.mxu0 0
      %1491 = vmatprep.subr.bf16.mxu0 0
      %1492 = vmatpush1.bf16.xpose.msra.mxu0 0
      %1493 = vmatprep.subr.bf16.mxu0 0
      %1494 = vmatpush1.bf16.xpose.msra.mxu0 0
      %1495 = vmatprep.subr.bf16.mxu0 0
      %1496 = vmatpush1.bf16.xpose.msra.mxu0 0
      %1497 = vmatprep.subr.bf16.mxu0 0
      %1498 = vmatpush1.bf16.xpose.msra.mxu0 0
      %1499 = vmatprep.subr.bf16.mxu0 0
      %1500 = vmatpush1.bf16.xpose.msra.mxu0 0
      %1501 = vmatprep.subr.bf16.mxu0 0
      %1502 = vmatpush1.bf16.xpose.msra.mxu0 0
      %1503 = vmatprep.mubr.bf16.mxu0 0
      %1504 = vmatmul.mubr.bf16.gmra.mrb[0].mxu0 %v1466
      %v1505 = vpop.f32.mrb[0].mxu0
      %v1506 = vadd.f32 0.0, %v1505
      %v1507 = vpop.f32.mrb[0].mxu0
      %v1508 = vpop.f32.mrb[0].mxu0
      %v1509 = vpop.f32.mrb[0].mxu0
      %1510 = vdwg.mxu0
      %v1512 = vsel %vm1418, %v1116, 0
      %v1515 = vsel %vm1418, %v1266, 0
      %1517 = vmatprep.subr.bf16.mxu0 0
      %1518 = vmatpush1.bf16.xpose.msra.mxu0 %v1515
      %1519 = vmatprep.subr.bf16.mxu0 0
      %1520 = vmatpush1.bf16.xpose.msra.mxu0 0
      %1521 = vmatprep.subr.bf16.mxu0 0
      %1522 = vmatpush1.bf16.xpose.msra.mxu0 0
      %1523 = vmatprep.subr.bf16.mxu0 0
      %1524 = vmatpush1.bf16.xpose.msra.mxu0 0
      %1525 = vmatprep.subr.bf16.mxu0 0
      %1526 = vmatpush1.bf16.xpose.msra.mxu0 0
      %1527 = vmatprep.subr.bf16.mxu0 0
      %1528 = vmatpush1.bf16.xpose.msra.mxu0 0
      %1529 = vmatprep.subr.bf16.mxu0 0
      %1530 = vmatpush1.bf16.xpose.msra.mxu0 0
      %1531 = vmatprep.subr.bf16.mxu0 0
      %1532 = vmatpush1.bf16.xpose.msra.mxu0 0
      %1533 = vmatprep.subr.bf16.mxu0 0
      %1534 = vmatpush1.bf16.xpose.msra.mxu0 0
      %1535 = vmatprep.subr.bf16.mxu0 0
      %1536 = vmatpush1.bf16.xpose.msra.mxu0 0
      %1537 = vmatprep.subr.bf16.mxu0 0
      %1538 = vmatpush1.bf16.xpose.msra.mxu0 0
      %1539 = vmatprep.subr.bf16.mxu0 0
      %1540 = vmatpush1.bf16.xpose.msra.mxu0 0
      %1541 = vmatprep.subr.bf16.mxu0 0
      %1542 = vmatpush1.bf16.xpose.msra.mxu0 0
      %1543 = vmatprep.subr.bf16.mxu0 0
      %1544 = vmatpush1.bf16.xpose.msra.mxu0 0
      %1545 = vmatprep.subr.bf16.mxu0 0
      %1546 = vmatpush1.bf16.xpose.msra.mxu0 0
      %1547 = vmatprep.subr.bf16.mxu0 0
      %1548 = vmatpush1.bf16.xpose.msra.mxu0 0
      %1549 = vmatprep.mubr.bf16.mxu0 0
      %1550 = vmatmul.mubr.bf16.gmra.mrb[0].mxu0 %v1512
      %v1551 = vpop.f32.mrb[0].mxu0
      %v1552 = vadd.f32 0.0, %v1551
      %v1553 = vpop.f32.mrb[0].mxu0
      %v1554 = vpop.f32.mrb[0].mxu0
      %v1555 = vpop.f32.mrb[0].mxu0
      %1556 = vdwg.mxu0
      %v1558 = vsel %vm1418, %v1117, 0
      %v1561 = vsel %vm1418, %v1267, 0
      %1563 = vmatprep.subr.bf16.mxu0 0
      %1564 = vmatpush1.bf16.xpose.msra.mxu0 %v1561
      %1565 = vmatprep.subr.bf16.mxu0 0
      %1566 = vmatpush1.bf16.xpose.msra.mxu0 0
      %1567 = vmatprep.subr.bf16.mxu0 0
      %1568 = vmatpush1.bf16.xpose.msra.mxu0 0
      %1569 = vmatprep.subr.bf16.mxu0 0
      %1570 = vmatpush1.bf16.xpose.msra.mxu0 0
      %1571 = vmatprep.subr.bf16.mxu0 0
      %1572 = vmatpush1.bf16.xpose.msra.mxu0 0
      %1573 = vmatprep.subr.bf16.mxu0 0
      %1574 = vmatpush1.bf16.xpose.msra.mxu0 0
      %1575 = vmatprep.subr.bf16.mxu0 0
      %1576 = vmatpush1.bf16.xpose.msra.mxu0 0
      %1577 = vmatprep.subr.bf16.mxu0 0
      %1578 = vmatpush1.bf16.xpose.msra.mxu0 0
      %1579 = vmatprep.subr.bf16.mxu0 0
      %1580 = vmatpush1.bf16.xpose.msra.mxu0 0
      %1581 = vmatprep.subr.bf16.mxu0 0
      %1582 = vmatpush1.bf16.xpose.msra.mxu0 0
      %1583 = vmatprep.subr.bf16.mxu0 0
      %1584 = vmatpush1.bf16.xpose.msra.mxu0 0
      %1585 = vmatprep.subr.bf16.mxu0 0
      %1586 = vmatpush1.bf16.xpose.msra.mxu0 0
      %1587 = vmatprep.subr.bf16.mxu0 0
      %1588 = vmatpush1.bf16.xpose.msra.mxu0 0
      %1589 = vmatprep.subr.bf16.mxu0 0
      %1590 = vmatpush1.bf16.xpose.msra.mxu0 0
      %1591 = vmatprep.subr.bf16.mxu0 0
      %1592 = vmatpush1.bf16.xpose.msra.mxu0 0
      %1593 = vmatprep.subr.bf16.mxu0 0
      %1594 = vmatpush1.bf16.xpose.msra.mxu0 0
      %1595 = vmatprep.mubr.bf16.mxu0 0
      %1596 = vmatmul.mubr.bf16.gmra.mrb[0].mxu0 %v1558
      %v1597 = vpop.f32.mrb[0].mxu0
      %v1598 = vadd.f32 0.0, %v1597
      %v1599 = vpop.f32.mrb[0].mxu0
      %v1600 = vpop.f32.mrb[0].mxu0
      %v1601 = vpop.f32.mrb[0].mxu0
      %1602 = vdwg.mxu0
      %vm1603 = vcmp.eq.f32.partialorder %v787, 0.0
      %v1604 = vsel %vm1603, 1, 0
      %vm1605 = vcmp.eq.s32.totalorder %v1604, 1
      %v1606 = vsel %vm1605, -1e+20, %v1460
      %v1607 = vsel %vm1605, -1e+20, %v1506
      %v1608 = vsel %vm1605, -1e+20, %v1552
      %v1609 = vsel %vm1605, -1e+20, %v1598
      %v1610 = vsel %vm1418, %v1606, -inf
      %1611 = vmax.xlane.f32.xlu0 %v1610
      %v1612 = vpop.xlane.xlu0 %1611
      %v1613 = vsel %vm1418, %v1607, -inf
      %1614 = vmax.xlane.f32.xlu0 %v1613
      %v1615 = vpop.xlane.xlu0 %1614
      %v1616 = vsel %vm1418, %v1608, -inf
      %1617 = vmax.xlane.f32.xlu0 %v1616
      %v1618 = vpop.xlane.xlu0 %1617
      %v1619 = vsel %vm1418, %v1609, -inf
      %1620 = vmax.xlane.f32.xlu0 %v1619
      %v1621 = vpop.xlane.xlu0 %1620
      %v1622 = vsub.f32 %v1606, %v1612
      %v1623 = vsub.f32 %v1607, %v1615
      %v1624 = vsub.f32 %v1608, %v1618
      %v1625 = vsub.f32 %v1609, %v1621
      %v1626 = vmul.f32 %v1622, 1.442695
      %v1627 = vpow.pop %v1626
      %v1628 = vmul.f32 %v1623, 1.442695
      %v1629 = vpow.pop %v1628
      %v1630 = vmul.f32 %v1624, 1.442695
      %v1631 = vpow.pop %v1630
      %v1632 = vmul.f32 %v1625, 1.442695
      %v1633 = vpow.pop %v1632
      %v1634 = vsel %vm1418, %v1627, 0.0
      %1635 = vadd.xlane.f32.xlu0 %v1634
      %v1636 = vpop.xlane.xlu0 %1635
      %v1637 = vsel %vm1418, %v1629, 0.0
      %1638 = vadd.xlane.f32.xlu0 %v1637
      %v1639 = vpop.xlane.xlu0 %1638
      %v1640 = vsel %vm1418, %v1631, 0.0
      %1641 = vadd.xlane.f32.xlu0 %v1640
      %v1642 = vpop.xlane.xlu0 %1641
      %v1643 = vsel %vm1418, %v1633, 0.0
      %1644 = vadd.xlane.f32.xlu0 %v1643
      %v1645 = vpop.xlane.xlu0 %1644
      %v1646 = vrcp.pop %v1636
      %v1647 = vrcp.pop %v1639
      %v1648 = vrcp.pop %v1642
      %v1649 = vrcp.pop %v1645
      %v1650 = vmul.f32 %v1627, %v1646
      %v1651 = vmul.f32 %v1629, %v1647
      %v1652 = vmul.f32 %v1631, %v1648
      %v1653 = vmul.f32 %v1633, %v1649
      %v1654 = vpack.c.bf16 %v1650, %v1650
      %v1655 = vpack.c.bf16 %v1651, %v1651
      %v1656 = vpack.c.bf16 %v1652, %v1652
      %v1657 = vpack.c.bf16 %v1653, %v1653
      %v1659 = vsel %vm1418, %v1654, 0
      %vm1661 = vcmask 1043456
      %v1663 = vsel %vm1661, %v1414, 0
      %1665 = vmatprep.subr.bf16.mxu0 0
      %1666 = vmatpush1.bf16.msra.mxu0 %v1663
      %1667 = vmatprep.subr.bf16.mxu0 0
      %1668 = vmatpush1.bf16.msra.mxu0 0
      %1669 = vmatprep.subr.bf16.mxu0 0
      %1670 = vmatpush1.bf16.msra.mxu0 0
      %1671 = vmatprep.subr.bf16.mxu0 0
      %1672 = vmatpush1.bf16.msra.mxu0 0
      %1673 = vmatprep.subr.bf16.mxu0 0
      %1674 = vmatpush1.bf16.msra.mxu0 0
      %1675 = vmatprep.subr.bf16.mxu0 0
      %1676 = vmatpush1.bf16.msra.mxu0 0
      %1677 = vmatprep.subr.bf16.mxu0 0
      %1678 = vmatpush1.bf16.msra.mxu0 0
      %1679 = vmatprep.subr.bf16.mxu0 0
      %1680 = vmatpush1.bf16.msra.mxu0 0
      %1681 = vmatprep.subr.bf16.mxu0 0
      %1682 = vmatpush1.bf16.msra.mxu0 0
      %1683 = vmatprep.subr.bf16.mxu0 0
      %1684 = vmatpush1.bf16.msra.mxu0 0
      %1685 = vmatprep.subr.bf16.mxu0 0
      %1686 = vmatpush1.bf16.msra.mxu0 0
      %1687 = vmatprep.subr.bf16.mxu0 0
      %1688 = vmatpush1.bf16.msra.mxu0 0
      %1689 = vmatprep.subr.bf16.mxu0 0
      %1690 = vmatpush1.bf16.msra.mxu0 0
      %1691 = vmatprep.subr.bf16.mxu0 0
      %1692 = vmatpush1.bf16.msra.mxu0 0
      %1693 = vmatprep.subr.bf16.mxu0 0
      %1694 = vmatpush1.bf16.msra.mxu0 0
      %1695 = vmatprep.subr.bf16.mxu0 0
      %1696 = vmatpush1.bf16.msra.mxu0 0
      %1697 = vmatprep.mubr.bf16.mxu0 0
      %1698 = vmatmul.mubr.bf16.gmra.mrb[0].mxu0 %v1659
      %v1699 = vpop.f32.mrb[0].mxu0
      %v1700 = vadd.f32 0.0, %v1699
      %v1701 = vpop.f32.mrb[0].mxu0
      %v1702 = vpop.f32.mrb[0].mxu0
      %v1703 = vpop.f32.mrb[0].mxu0
      %1704 = vdwg.mxu0
      %v1706 = vsel %vm1418, %v1655, 0
      %v1709 = vsel %vm1661, %v1415, 0
      %1711 = vmatprep.subr.bf16.mxu0 0
      %1712 = vmatpush1.bf16.msra.mxu0 %v1709
      %1713 = vmatprep.subr.bf16.mxu0 0
      %1714 = vmatpush1.bf16.msra.mxu0 0
      %1715 = vmatprep.subr.bf16.mxu0 0
      %1716 = vmatpush1.bf16.msra.mxu0 0
      %1717 = vmatprep.subr.bf16.mxu0 0
      %1718 = vmatpush1.bf16.msra.mxu0 0
      %1719 = vmatprep.subr.bf16.mxu0 0
      %1720 = vmatpush1.bf16.msra.mxu0 0
      %1721 = vmatprep.subr.bf16.mxu0 0
      %1722 = vmatpush1.bf16.msra.mxu0 0
      %1723 = vmatprep.subr.bf16.mxu0 0
      %1724 = vmatpush1.bf16.msra.mxu0 0
      %1725 = vmatprep.subr.bf16.mxu0 0
      %1726 = vmatpush1.bf16.msra.mxu0 0
      %1727 = vmatprep.subr.bf16.mxu0 0
      %1728 = vmatpush1.bf16.msra.mxu0 0
      %1729 = vmatprep.subr.bf16.mxu0 0
      %1730 = vmatpush1.bf16.msra.mxu0 0
      %1731 = vmatprep.subr.bf16.mxu0 0
      %1732 = vmatpush1.bf16.msra.mxu0 0
      %1733 = vmatprep.subr.bf16.mxu0 0
      %1734 = vmatpush1.bf16.msra.mxu0 0
      %1735 = vmatprep.subr.bf16.mxu0 0
      %1736 = vmatpush1.bf16.msra.mxu0 0
      %1737 = vmatprep.subr.bf16.mxu0 0
      %1738 = vmatpush1.bf16.msra.mxu0 0
      %1739 = vmatprep.subr.bf16.mxu0 0
      %1740 = vmatpush1.bf16.msra.mxu0 0
      %1741 = vmatprep.subr.bf16.mxu0 0
      %1742 = vmatpush1.bf16.msra.mxu0 0
      %1743 = vmatprep.mubr.bf16.mxu0 0
      %1744 = vmatmul.mubr.bf16.gmra.mrb[0].mxu0 %v1706
      %v1745 = vpop.f32.mrb[0].mxu0
      %v1746 = vadd.f32 0.0, %v1745
      %v1747 = vpop.f32.mrb[0].mxu0
      %v1748 = vpop.f32.mrb[0].mxu0
      %v1749 = vpop.f32.mrb[0].mxu0
      %1750 = vdwg.mxu0
      %v1752 = vsel %vm1418, %v1656, 0
      %v1755 = vsel %vm1661, %v1416, 0
      %1757 = vmatprep.subr.bf16.mxu0 0
      %1758 = vmatpush1.bf16.msra.mxu0 %v1755
      %1759 = vmatprep.subr.bf16.mxu0 0
      %1760 = vmatpush1.bf16.msra.mxu0 0
      %1761 = vmatprep.subr.bf16.mxu0 0
      %1762 = vmatpush1.bf16.msra.mxu0 0
      %1763 = vmatprep.subr.bf16.mxu0 0
      %1764 = vmatpush1.bf16.msra.mxu0 0
      %1765 = vmatprep.subr.bf16.mxu0 0
      %1766 = vmatpush1.bf16.msra.mxu0 0
      %1767 = vmatprep.subr.bf16.mxu0 0
      %1768 = vmatpush1.bf16.msra.mxu0 0
      %1769 = vmatprep.subr.bf16.mxu0 0
      %1770 = vmatpush1.bf16.msra.mxu0 0
      %1771 = vmatprep.subr.bf16.mxu0 0
      %1772 = vmatpush1.bf16.msra.mxu0 0
      %1773 = vmatprep.subr.bf16.mxu0 0
      %1774 = vmatpush1.bf16.msra.mxu0 0
      %1775 = vmatprep.subr.bf16.mxu0 0
      %1776 = vmatpush1.bf16.msra.mxu0 0
      %1777 = vmatprep.subr.bf16.mxu0 0
      %1778 = vmatpush1.bf16.msra.mxu0 0
      %1779 = vmatprep.subr.bf16.mxu0 0
      %1780 = vmatpush1.bf16.msra.mxu0 0
      %1781 = vmatprep.subr.bf16.mxu0 0
      %1782 = vmatpush1.bf16.msra.mxu0 0
      %1783 = vmatprep.subr.bf16.mxu0 0
      %1784 = vmatpush1.bf16.msra.mxu0 0
      %1785 = vmatprep.subr.bf16.mxu0 0
      %1786 = vmatpush1.bf16.msra.mxu0 0
      %1787 = vmatprep.subr.bf16.mxu0 0
      %1788 = vmatpush1.bf16.msra.mxu0 0
      %1789 = vmatprep.mubr.bf16.mxu0 0
      %1790 = vmatmul.mubr.bf16.gmra.mrb[0].mxu0 %v1752
      %v1791 = vpop.f32.mrb[0].mxu0
      %v1792 = vadd.f32 0.0, %v1791
      %v1793 = vpop.f32.mrb[0].mxu0
      %v1794 = vpop.f32.mrb[0].mxu0
      %v1795 = vpop.f32.mrb[0].mxu0
      %1796 = vdwg.mxu0
      %v1798 = vsel %vm1418, %v1657, 0
      %v1801 = vsel %vm1661, %v1417, 0
      %1803 = vmatprep.subr.bf16.mxu0 0
      %1804 = vmatpush1.bf16.msra.mxu0 %v1801
      %1805 = vmatprep.subr.bf16.mxu0 0
      %1806 = vmatpush1.bf16.msra.mxu0 0
      %1807 = vmatprep.subr.bf16.mxu0 0
      %1808 = vmatpush1.bf16.msra.mxu0 0
      %1809 = vmatprep.subr.bf16.mxu0 0
      %1810 = vmatpush1.bf16.msra.mxu0 0
      %1811 = vmatprep.subr.bf16.mxu0 0
      %1812 = vmatpush1.bf16.msra.mxu0 0
      %1813 = vmatprep.subr.bf16.mxu0 0
      %1814 = vmatpush1.bf16.msra.mxu0 0
      %1815 = vmatprep.subr.bf16.mxu0 0
      %1816 = vmatpush1.bf16.msra.mxu0 0
      %1817 = vmatprep.subr.bf16.mxu0 0
      %1818 = vmatpush1.bf16.msra.mxu0 0
      %1819 = vmatprep.subr.bf16.mxu0 0
      %1820 = vmatpush1.bf16.msra.mxu0 0
      %1821 = vmatprep.subr.bf16.mxu0 0
      %1822 = vmatpush1.bf16.msra.mxu0 0
      %1823 = vmatprep.subr.bf16.mxu0 0
      %1824 = vmatpush1.bf16.msra.mxu0 0
      %1825 = vmatprep.subr.bf16.mxu0 0
      %1826 = vmatpush1.bf16.msra.mxu0 0
      %1827 = vmatprep.subr.bf16.mxu0 0
      %1828 = vmatpush1.bf16.msra.mxu0 0
      %1829 = vmatprep.subr.bf16.mxu0 0
      %1830 = vmatpush1.bf16.msra.mxu0 0
      %1831 = vmatprep.subr.bf16.mxu0 0
      %1832 = vmatpush1.bf16.msra.mxu0 0
      %1833 = vmatprep.subr.bf16.mxu0 0
      %1834 = vmatpush1.bf16.msra.mxu0 0
      %1835 = vmatprep.mubr.bf16.mxu0 0
      %1836 = vmatmul.mubr.bf16.gmra.mrb[0].mxu0 %v1798
      %v1837 = vpop.f32.mrb[0].mxu0
      %v1838 = vadd.f32 0.0, %v1837
      %v1839 = vpop.f32.mrb[0].mxu0
      %v1840 = vpop.f32.mrb[0].mxu0
      %v1841 = vpop.f32.mrb[0].mxu0
      %1842 = vdwg.mxu0
      %v1843 = vpack.c.bf16 %v1700, %v1700
      %v1844 = vpack.c.bf16 %v1746, %v1746
      %v1845 = vpack.c.bf16 %v1792, %v1792
      %v1846 = vpack.c.bf16 %v1838, %v1838
      %v1848 = vsel %vm1418, %v1843, 0
      %v1851 = vsel %vm1661, %v801, 0
      %1853 = vmatprep.subr.bf16.mxu0 0
      %1854 = vmatpush1.bf16.msra.mxu0 %v1851
      %1855 = vmatprep.subr.bf16.mxu0 0
      %1856 = vmatpush1.bf16.msra.mxu0 0
      %1857 = vmatprep.subr.bf16.mxu0 0
      %1858 = vmatpush1.bf16.msra.mxu0 0
      %1859 = vmatprep.subr.bf16.mxu0 0
      %1860 = vmatpush1.bf16.msra.mxu0 0
      %1861 = vmatprep.subr.bf16.mxu0 0
      %1862 = vmatpush1.bf16.msra.mxu0 0
      %1863 = vmatprep.subr.bf16.mxu0 0
      %1864 = vmatpush1.bf16.msra.mxu0 0
      %1865 = vmatprep.subr.bf16.mxu0 0
      %1866 = vmatpush1.bf16.msra.mxu0 0
      %1867 = vmatprep.subr.bf16.mxu0 0
      %1868 = vmatpush1.bf16.msra.mxu0 0
      %1869 = vmatprep.subr.bf16.mxu0 0
      %1870 = vmatpush1.bf16.msra.mxu0 0
      %1871 = vmatprep.subr.bf16.mxu0 0
      %1872 = vmatpush1.bf16.msra.mxu0 0
      %1873 = vmatprep.subr.bf16.mxu0 0
      %1874 = vmatpush1.bf16.msra.mxu0 0
      %1875 = vmatprep.subr.bf16.mxu0 0
      %1876 = vmatpush1.bf16.msra.mxu0 0
      %1877 = vmatprep.subr.bf16.mxu0 0
      %1878 = vmatpush1.bf16.msra.mxu0 0
      %1879 = vmatprep.subr.bf16.mxu0 0
      %1880 = vmatpush1.bf16.msra.mxu0 0
      %1881 = vmatprep.subr.bf16.mxu0 0
      %1882 = vmatpush1.bf16.msra.mxu0 0
      %1883 = vmatprep.subr.bf16.mxu0 0
      %1884 = vmatpush1.bf16.msra.mxu0 0
      %1885 = vmatprep.mubr.bf16.mxu0 0
      %1886 = vmatmul.mubr.bf16.gmra.mrb[0].mxu0 %v1848
      %v1887 = vpop.f32.mrb[0].mxu0
      %v1888 = vadd.f32 0.0, %v1887
      %v1889 = vpop.f32.mrb[0].mxu0
      %v1890 = vpop.f32.mrb[0].mxu0
      %v1891 = vpop.f32.mrb[0].mxu0
      %1892 = vdwg.mxu0
      %v1894 = vsel %vm1418, %v1844, 0
      %v1897 = vsel %vm1661, %v802, 0
      %1899 = vmatprep.subr.bf16.mxu0 0
      %1900 = vmatpush1.bf16.msra.mxu0 %v1897
      %1901 = vmatprep.subr.bf16.mxu0 0
      %1902 = vmatpush1.bf16.msra.mxu0 0
      %1903 = vmatprep.subr.bf16.mxu0 0
      %1904 = vmatpush1.bf16.msra.mxu0 0
      %1905 = vmatprep.subr.bf16.mxu0 0
      %1906 = vmatpush1.bf16.msra.mxu0 0
      %1907 = vmatprep.subr.bf16.mxu0 0
      %1908 = vmatpush1.bf16.msra.mxu0 0
      %1909 = vmatprep.subr.bf16.mxu0 0
      %1910 = vmatpush1.bf16.msra.mxu0 0
      %1911 = vmatprep.subr.bf16.mxu0 0
      %1912 = vmatpush1.bf16.msra.mxu0 0
      %1913 = vmatprep.subr.bf16.mxu0 0
      %1914 = vmatpush1.bf16.msra.mxu0 0
      %1915 = vmatprep.subr.bf16.mxu0 0
      %1916 = vmatpush1.bf16.msra.mxu0 0
      %1917 = vmatprep.subr.bf16.mxu0 0
      %1918 = vmatpush1.bf16.msra.mxu0 0
      %1919 = vmatprep.subr.bf16.mxu0 0
      %1920 = vmatpush1.bf16.msra.mxu0 0
      %1921 = vmatprep.subr.bf16.mxu0 0
      %1922 = vmatpush1.bf16.msra.mxu0 0
      %1923 = vmatprep.subr.bf16.mxu0 0
      %1924 = vmatpush1.bf16.msra.mxu0 0
      %1925 = vmatprep.subr.bf16.mxu0 0
      %1926 = vmatpush1.bf16.msra.mxu0 0
      %1927 = vmatprep.subr.bf16.mxu0 0
      %1928 = vmatpush1.bf16.msra.mxu0 0
      %1929 = vmatprep.subr.bf16.mxu0 0
      %1930 = vmatpush1.bf16.msra.mxu0 0
      %1931 = vmatprep.mubr.bf16.mxu0 0
      %1932 = vmatmul.mubr.bf16.gmra.mrb[0].mxu0 %v1894
      %v1933 = vpop.f32.mrb[0].mxu0
      %v1934 = vadd.f32 0.0, %v1933
      %v1935 = vpop.f32.mrb[0].mxu0
      %v1936 = vpop.f32.mrb[0].mxu0
      %v1937 = vpop.f32.mrb[0].mxu0
      %1938 = vdwg.mxu0
      %v1940 = vsel %vm1418, %v1845, 0
      %v1943 = vsel %vm1661, %v803, 0
      %1945 = vmatprep.subr.bf16.mxu0 0
      %1946 = vmatpush1.bf16.msra.mxu0 %v1943
      %1947 = vmatprep.subr.bf16.mxu0 0
      %1948 = vmatpush1.bf16.msra.mxu0 0
      %1949 = vmatprep.subr.bf16.mxu0 0
      %1950 = vmatpush1.bf16.msra.mxu0 0
      %1951 = vmatprep.subr.bf16.mxu0 0
      %1952 = vmatpush1.bf16.msra.mxu0 0
      %1953 = vmatprep.subr.bf16.mxu0 0
      %1954 = vmatpush1.bf16.msra.mxu0 0
      %1955 = vmatprep.subr.bf16.mxu0 0
      %1956 = vmatpush1.bf16.msra.mxu0 0
      %1957 = vmatprep.subr.bf16.mxu0 0
      %1958 = vmatpush1.bf16.msra.mxu0 0
      %1959 = vmatprep.subr.bf16.mxu0 0
      %1960 = vmatpush1.bf16.msra.mxu0 0
      %1961 = vmatprep.subr.bf16.mxu0 0
      %1962 = vmatpush1.bf16.msra.mxu0 0
      %1963 = vmatprep.subr.bf16.mxu0 0
      %1964 = vmatpush1.bf16.msra.mxu0 0
      %1965 = vmatprep.subr.bf16.mxu0 0
      %1966 = vmatpush1.bf16.msra.mxu0 0
      %1967 = vmatprep.subr.bf16.mxu0 0
      %1968 = vmatpush1.bf16.msra.mxu0 0
      %1969 = vmatprep.subr.bf16.mxu0 0
      %1970 = vmatpush1.bf16.msra.mxu0 0
      %1971 = vmatprep.subr.bf16.mxu0 0
      %1972 = vmatpush1.bf16.msra.mxu0 0
      %1973 = vmatprep.subr.bf16.mxu0 0
      %1974 = vmatpush1.bf16.msra.mxu0 0
      %1975 = vmatprep.subr.bf16.mxu0 0
      %1976 = vmatpush1.bf16.msra.mxu0 0
      %1977 = vmatprep.mubr.bf16.mxu0 0
      %1978 = vmatmul.mubr.bf16.gmra.mrb[0].mxu0 %v1940
      %v1979 = vpop.f32.mrb[0].mxu0
      %v1980 = vadd.f32 0.0, %v1979
      %v1981 = vpop.f32.mrb[0].mxu0
      %v1982 = vpop.f32.mrb[0].mxu0
      %v1983 = vpop.f32.mrb[0].mxu0
      %1984 = vdwg.mxu0
      %v1986 = vsel %vm1418, %v1846, 0
      %v1989 = vsel %vm1661, %v804, 0
      %1991 = vmatprep.subr.bf16.mxu0 0
      %1992 = vmatpush1.bf16.msra.mxu0 %v1989
      %1993 = vmatprep.subr.bf16.mxu0 0
      %1994 = vmatpush1.bf16.msra.mxu0 0
      %1995 = vmatprep.subr.bf16.mxu0 0
      %1996 = vmatpush1.bf16.msra.mxu0 0
      %1997 = vmatprep.subr.bf16.mxu0 0
      %1998 = vmatpush1.bf16.msra.mxu0 0
      %1999 = vmatprep.subr.bf16.mxu0 0
      %2000 = vmatpush1.bf16.msra.mxu0 0
      %2001 = vmatprep.subr.bf16.mxu0 0
      %2002 = vmatpush1.bf16.msra.mxu0 0
      %2003 = vmatprep.subr.bf16.mxu0 0
      %2004 = vmatpush1.bf16.msra.mxu0 0
      %2005 = vmatprep.subr.bf16.mxu0 0
      %2006 = vmatpush1.bf16.msra.mxu0 0
      %2007 = vmatprep.subr.bf16.mxu0 0
      %2008 = vmatpush1.bf16.msra.mxu0 0
      %2009 = vmatprep.subr.bf16.mxu0 0
      %2010 = vmatpush1.bf16.msra.mxu0 0
      %2011 = vmatprep.subr.bf16.mxu0 0
      %2012 = vmatpush1.bf16.msra.mxu0 0
      %2013 = vmatprep.subr.bf16.mxu0 0
      %2014 = vmatpush1.bf16.msra.mxu0 0
      %2015 = vmatprep.subr.bf16.mxu0 0
      %2016 = vmatpush1.bf16.msra.mxu0 0
      %2017 = vmatprep.subr.bf16.mxu0 0
      %2018 = vmatpush1.bf16.msra.mxu0 0
      %2019 = vmatprep.subr.bf16.mxu0 0
      %2020 = vmatpush1.bf16.msra.mxu0 0
      %2021 = vmatprep.subr.bf16.mxu0 0
      %2022 = vmatpush1.bf16.msra.mxu0 0
      %2023 = vmatprep.mubr.bf16.mxu0 0
      %2024 = vmatmul.mubr.bf16.gmra.mrb[0].mxu0 %v1986
      %v2025 = vpop.f32.mrb[0].mxu0
      %v2026 = vadd.f32 0.0, %v2025
      %v2027 = vpop.f32.mrb[0].mxu0
      %v2028 = vpop.f32.mrb[0].mxu0
      %v2029 = vpop.f32.mrb[0].mxu0
      %2030 = vdwg.mxu0
      %v2031 = vsel %vm819, %v1888, 0.0
      %v2032 = vsel %vm819, %v1934, 0.0
      %v2033 = vadd.f32 %v2031, %v2032
      %v2034 = vsel %vm819, %v1980, 0.0
      %v2035 = vadd.f32 %v2033, %v2034
      %v2036 = vsel %vm819, %v2026, 0.0
      %v2037 = vadd.f32 %v2035, %v2036
      %v2039 = vlaneseq
      %v2040 = vshrl.u32 %v2039, 7
      %v2041 = vsub.s32 0, %v2040
      %v2042 = vrot.slane %v805, %v2041
      %v2044 = vadd.f32 %v2037, %v2042
      %v2045 = vld [vmem:[%s9] sm:$0x1]
      %v2046 = vld [vmem:[%s10] sm:$0x1]
      %v2047 = vadd.f32 %v2044, %v785
      %v2048 = vsel %vm819, %v2047, 0.0
      %2049 = vadd.xlane.f32.xlu0 %v2048
      %v2050 = vpop.xlane.xlu0 %2049
      %v2051 = vrcp.pop 32.0
      %v2052 = vmul.f32 %v2050, %v2051
      %v2053 = vsub.f32 %v2047, %v2052
      %v2054 = vmul.f32 %v2053, %v2053
      %v2055 = vsel %vm819, %v2054, 0.0
      %2056 = vadd.xlane.f32.xlu0 %v2055
      %v2057 = vpop.xlane.xlu0 %2056
      %v2058 = vmul.f32 %v2057, %v2051
      %v2059 = vadd.f32 %v2058, 1e-05
      %v2060 = vrsqrt.pop %v2059
      %v2061 = vmul.f32 %v2053, %v2060
      %v2063 = vlaneseq
      %v2064 = vshrl.u32 %v2063, 7
      %v2065 = vsub.s32 0, %v2064
      %v2066 = vrot.slane %v2045, %v2065
      %v2068 = vmul.f32 %v2061, %v2066
      %v2070 = vlaneseq
      %v2071 = vshrl.u32 %v2070, 7
      %v2072 = vsub.s32 0, %v2071
      %v2073 = vrot.slane %v2046, %v2072
      %v2075 = vadd.f32 %v2068, %v2073
      %v2076 = vld [vmem:[%s11] sm:$0xf]
      %v2077 = vld [vmem:[%s11 + $0x4] sm:$0xf]
      %v2078 = vld [vmem:[%s11 + $0x8] sm:$0xf]
      %v2079 = vld [vmem:[%s11 + $0xc] sm:$0xf]
      %v2080 = vld [vmem:[%s12] sm:$0xf]
      %v2081 = vld [vmem:[%s12 + $0x4] sm:$0xf]
      %v2082 = vld [vmem:[%s12 + $0x8] sm:$0xf]
      %v2083 = vld [vmem:[%s12 + $0xc] sm:$0xf]
      %v2084 = vld [vmem:[%s13] sm:$0xf]
      %v2085 = vld [vmem:[%s13 + $0x4] sm:$0xf]
      %v2086 = vld [vmem:[%s13 + $0x8] sm:$0xf]
      %v2087 = vld [vmem:[%s13 + $0xc] sm:$0xf]
      %v2088 = vld [vmem:[%s14] sm:$0xf]
      %v2089 = vld [vmem:[%s14 + $0x4] sm:$0xf]
      %v2090 = vld [vmem:[%s14 + $0x8] sm:$0xf]
      %v2091 = vld [vmem:[%s14 + $0xc] sm:$0xf]
      %v2092 = vld [vmem:[%s15] sm:$0x1]
      %v2093 = vpack.c.bf16 %v2075, %v2075
      %v2094 = vpack.c.bf16 %v786, %v786
      %v2099 = vunpack.c.l.b16 %v2076
      %v2100 = vunpack.c.l.b16 %v2077
      %v2101 = vunpack.c.l.b16 %v2078
      %v2102 = vunpack.c.l.b16 %v2079
      %v2103 = vpack.c.b16 %v2100, %v2099
      %v2104 = vpack.c.b16 %v2102, %v2101
      %v2108 = vsel %vm819, %v2094, 0
      %2110 = vmatprep.subr.bf16.mxu0 0
      %2111 = vmatpush1.bf16.msra.mxu0 %v2103
      %2112 = vmatprep.subr.bf16.mxu0 0
      %2113 = vmatpush1.bf16.msra.mxu0 %v2104
      %2114 = vmatprep.subr.bf16.mxu0 0
      %2115 = vmatpush1.bf16.msra.mxu0 0
      %2116 = vmatprep.subr.bf16.mxu0 0
      %2117 = vmatpush1.bf16.msra.mxu0 0
      %2118 = vmatprep.subr.bf16.mxu0 0
      %2119 = vmatpush1.bf16.msra.mxu0 0
      %2120 = vmatprep.subr.bf16.mxu0 0
      %2121 = vmatpush1.bf16.msra.mxu0 0
      %2122 = vmatprep.subr.bf16.mxu0 0
      %2123 = vmatpush1.bf16.msra.mxu0 0
      %2124 = vmatprep.subr.bf16.mxu0 0
      %2125 = vmatpush1.bf16.msra.mxu0 0
      %2126 = vmatprep.subr.bf16.mxu0 0
      %2127 = vmatpush1.bf16.msra.mxu0 0
      %2128 = vmatprep.subr.bf16.mxu0 0
      %2129 = vmatpush1.bf16.msra.mxu0 0
      %2130 = vmatprep.subr.bf16.mxu0 0
      %2131 = vmatpush1.bf16.msra.mxu0 0
      %2132 = vmatprep.subr.bf16.mxu0 0
      %2133 = vmatpush1.bf16.msra.mxu0 0
      %2134 = vmatprep.subr.bf16.mxu0 0
      %2135 = vmatpush1.bf16.msra.mxu0 0
      %2136 = vmatprep.subr.bf16.mxu0 0
      %2137 = vmatpush1.bf16.msra.mxu0 0
      %2138 = vmatprep.subr.bf16.mxu0 0
      %2139 = vmatpush1.bf16.msra.mxu0 0
      %2140 = vmatprep.subr.bf16.mxu0 0
      %2141 = vmatpush1.bf16.msra.mxu0 0
      %2142 = vmatprep.mubr.bf16.mxu0 0
      %2143 = vmatmul.mubr.bf16.gmra.mrb[0].mxu0 %v2108
      %v2144 = vpop.f32.mrb[0].mxu0
      %v2145 = vadd.f32 0.0, %v2144
      %v2146 = vpop.f32.mrb[0].mxu0
      %v2147 = vpop.f32.mrb[0].mxu0
      %v2148 = vpop.f32.mrb[0].mxu0
      %2149 = vdwg.mxu0
      %v2154 = vunpack.c.l.b16 %v2080
      %v2155 = vunpack.c.l.b16 %v2081
      %v2156 = vunpack.c.l.b16 %v2082
      %v2157 = vunpack.c.l.b16 %v2083
      %v2158 = vpack.c.b16 %v2155, %v2154
      %v2159 = vpack.c.b16 %v2157, %v2156
      %2162 = vmatprep.subr.bf16.mxu0 0
      %2163 = vmatpush1.bf16.msra.mxu0 %v2158
      %2164 = vmatprep.subr.bf16.mxu0 0
      %2165 = vmatpush1.bf16.msra.mxu0 %v2159
      %2166 = vmatprep.subr.bf16.mxu0 0
      %2167 = vmatpush1.bf16.msra.mxu0 0
      %2168 = vmatprep.subr.bf16.mxu0 0
      %2169 = vmatpush1.bf16.msra.mxu0 0
      %2170 = vmatprep.subr.bf16.mxu0 0
      %2171 = vmatpush1.bf16.msra.mxu0 0
      %2172 = vmatprep.subr.bf16.mxu0 0
      %2173 = vmatpush1.bf16.msra.mxu0 0
      %2174 = vmatprep.subr.bf16.mxu0 0
      %2175 = vmatpush1.bf16.msra.mxu0 0
      %2176 = vmatprep.subr.bf16.mxu0 0
      %2177 = vmatpush1.bf16.msra.mxu0 0
      %2178 = vmatprep.subr.bf16.mxu0 0
      %2179 = vmatpush1.bf16.msra.mxu0 0
      %2180 = vmatprep.subr.bf16.mxu0 0
      %2181 = vmatpush1.bf16.msra.mxu0 0
      %2182 = vmatprep.subr.bf16.mxu0 0
      %2183 = vmatpush1.bf16.msra.mxu0 0
      %2184 = vmatprep.subr.bf16.mxu0 0
      %2185 = vmatpush1.bf16.msra.mxu0 0
      %2186 = vmatprep.subr.bf16.mxu0 0
      %2187 = vmatpush1.bf16.msra.mxu0 0
      %2188 = vmatprep.subr.bf16.mxu0 0
      %2189 = vmatpush1.bf16.msra.mxu0 0
      %2190 = vmatprep.subr.bf16.mxu0 0
      %2191 = vmatpush1.bf16.msra.mxu0 0
      %2192 = vmatprep.subr.bf16.mxu0 0
      %2193 = vmatpush1.bf16.msra.mxu0 0
      %2194 = vmatprep.mubr.bf16.mxu0 0
      %2195 = vmatmul.mubr.bf16.gmra.mrb[0].mxu0 %v2108
      %v2196 = vpop.f32.mrb[0].mxu0
      %v2197 = vadd.f32 0.0, %v2196
      %v2198 = vpop.f32.mrb[0].mxu0
      %v2199 = vpop.f32.mrb[0].mxu0
      %v2200 = vpop.f32.mrb[0].mxu0
      %2201 = vdwg.mxu0
      %v2206 = vunpack.c.l.b16 %v2084
      %v2207 = vunpack.c.l.b16 %v2085
      %v2208 = vunpack.c.l.b16 %v2086
      %v2209 = vunpack.c.l.b16 %v2087
      %v2210 = vpack.c.b16 %v2207, %v2206
      %v2211 = vpack.c.b16 %v2209, %v2208
      %v2215 = vsel %vm819, %v2093, 0
      %2217 = vmatprep.subr.bf16.mxu0 0
      %2218 = vmatpush1.bf16.msra.mxu0 %v2210
      %2219 = vmatprep.subr.bf16.mxu0 0
      %2220 = vmatpush1.bf16.msra.mxu0 %v2211
      %2221 = vmatprep.subr.bf16.mxu0 0
      %2222 = vmatpush1.bf16.msra.mxu0 0
      %2223 = vmatprep.subr.bf16.mxu0 0
      %2224 = vmatpush1.bf16.msra.mxu0 0
      %2225 = vmatprep.subr.bf16.mxu0 0
      %2226 = vmatpush1.bf16.msra.mxu0 0
      %2227 = vmatprep.subr.bf16.mxu0 0
      %2228 = vmatpush1.bf16.msra.mxu0 0
      %2229 = vmatprep.subr.bf16.mxu0 0
      %2230 = vmatpush1.bf16.msra.mxu0 0
      %2231 = vmatprep.subr.bf16.mxu0 0
      %2232 = vmatpush1.bf16.msra.mxu0 0
      %2233 = vmatprep.subr.bf16.mxu0 0
      %2234 = vmatpush1.bf16.msra.mxu0 0
      %2235 = vmatprep.subr.bf16.mxu0 0
      %2236 = vmatpush1.bf16.msra.mxu0 0
      %2237 = vmatprep.subr.bf16.mxu0 0
      %2238 = vmatpush1.bf16.msra.mxu0 0
      %2239 = vmatprep.subr.bf16.mxu0 0
      %2240 = vmatpush1.bf16.msra.mxu0 0
      %2241 = vmatprep.subr.bf16.mxu0 0
      %2242 = vmatpush1.bf16.msra.mxu0 0
      %2243 = vmatprep.subr.bf16.mxu0 0
      %2244 = vmatpush1.bf16.msra.mxu0 0
      %2245 = vmatprep.subr.bf16.mxu0 0
      %2246 = vmatpush1.bf16.msra.mxu0 0
      %2247 = vmatprep.subr.bf16.mxu0 0
      %2248 = vmatpush1.bf16.msra.mxu0 0
      %2249 = vmatprep.mubr.bf16.mxu0 0
      %2250 = vmatmul.mubr.bf16.gmra.mrb[0].mxu0 %v2215
      %v2251 = vpop.f32.mrb[0].mxu0
      %v2252 = vadd.f32 0.0, %v2251
      %v2253 = vpop.f32.mrb[0].mxu0
      %v2254 = vpop.f32.mrb[0].mxu0
      %v2255 = vpop.f32.mrb[0].mxu0
      %2256 = vdwg.mxu0
      %v2257 = vmul.f32 %v2252, 0.17677669
      %2259 = vrot.lane.b32.xlu0 %v2257, 120
      %v2260 = vpop.permute.xlu0 %2259
      %2262 = vrot.lane.b32.xlu0 %v2257, 112
      %v2263 = vpop.permute.xlu0 %2262
      %2265 = vrot.lane.b32.xlu0 %v2257, 104
      %v2266 = vpop.permute.xlu0 %2265
      %v2268 = vcombine.low %v2257, %v2263
      %v2269 = vcombine.high %v2257, %v2263
      %v2271 = vunpack.c.l.s4 1983009808
      %v2272 = vunpack.c.0.s8 %v2271
      %v2273 = vlaneseq
      %v2274 = vshrl.u32 %v2273, 7
      %v2275 = vsub.s32 %v2272, %v2274
      %v2276 = vrot.slane %v2268, %v2275
      %v2278 = vunpack.c.l.s4 1983009808
      %v2279 = vunpack.c.0.s8 %v2278
      %v2280 = vlaneseq
      %v2281 = vshrl.u32 %v2280, 7
      %v2282 = vsub.s32 %v2279, %v2281
      %v2283 = vrot.slane %v2269, %v2282
      %v2284 = vcombine.low %v2260, %v2266
      %v2285 = vcombine.high %v2260, %v2266
      %v2287 = vunpack.c.l.s4 1983009808
      %v2288 = vunpack.c.0.s8 %v2287
      %v2289 = vlaneseq
      %v2290 = vshrl.u32 %v2289, 7
      %v2291 = vsub.s32 %v2288, %v2290
      %v2292 = vrot.slane %v2284, %v2291
      %v2294 = vunpack.c.l.s4 1983009808
      %v2295 = vunpack.c.0.s8 %v2294
      %v2296 = vlaneseq
      %v2297 = vshrl.u32 %v2296, 7
      %v2298 = vsub.s32 %v2295, %v2297
      %v2299 = vrot.slane %v2285, %v2298
      %v2300 = vcombine.low %v2276, %v2292
      %v2301 = vcombine.high %v2276, %v2292
      %v2303 = vunpack.c.l.s4 1934713408
      %v2304 = vunpack.c.0.s8 %v2303
      %v2305 = vlaneseq
      %v2306 = vshrl.u32 %v2305, 7
      %v2307 = vsub.s32 %v2304, %v2306
      %v2308 = vrot.slane %v2300, %v2307
      %v2310 = vunpack.c.l.s4 1934713408
      %v2311 = vunpack.c.0.s8 %v2310
      %v2312 = vlaneseq
      %v2313 = vshrl.u32 %v2312, 7
      %v2314 = vsub.s32 %v2311, %v2313
      %v2315 = vrot.slane %v2301, %v2314
      %v2316 = vcombine.low %v2283, %v2299
      %v2317 = vcombine.high %v2283, %v2299
      %v2319 = vunpack.c.l.s4 1934713408
      %v2320 = vunpack.c.0.s8 %v2319
      %v2321 = vlaneseq
      %v2322 = vshrl.u32 %v2321, 7
      %v2323 = vsub.s32 %v2320, %v2322
      %v2324 = vrot.slane %v2316, %v2323
      %v2326 = vunpack.c.l.s4 1934713408
      %v2327 = vunpack.c.0.s8 %v2326
      %v2328 = vlaneseq
      %v2329 = vshrl.u32 %v2328, 7
      %v2330 = vsub.s32 %v2327, %v2329
      %v2331 = vrot.slane %v2317, %v2330
      %v2332 = vcombine.high %v2308, 0.0
      %v2333 = vcombine.high %v2315, 0.0
      %v2334 = vcombine.high %v2324, 0.0
      %v2335 = vcombine.high %v2331, 0.0
      %v2336 = vcombine.low %v2308, %v2315
      %v2338 = vunpack.c.l.s4 1983009808
      %v2339 = vunpack.c.0.s8 %v2338
      %v2340 = vlaneseq
      %v2341 = vshrl.u32 %v2340, 7
      %v2342 = vsub.s32 %v2339, %v2341
      %v2343 = vrot.slane %v2336, %v2342
      %v2344 = vcombine.low %v2332, %v2333
      %v2346 = vunpack.c.l.s4 1983009808
      %v2347 = vunpack.c.0.s8 %v2346
      %v2348 = vlaneseq
      %v2349 = vshrl.u32 %v2348, 7
      %v2350 = vsub.s32 %v2347, %v2349
      %v2351 = vrot.slane %v2344, %v2350
      %v2352 = vcombine.low %v2324, %v2331
      %v2354 = vunpack.c.l.s4 1983009808
      %v2355 = vunpack.c.0.s8 %v2354
      %v2356 = vlaneseq
      %v2357 = vshrl.u32 %v2356, 7
      %v2358 = vsub.s32 %v2355, %v2357
      %v2359 = vrot.slane %v2352, %v2358
      %v2360 = vcombine.low %v2334, %v2335
      %v2362 = vunpack.c.l.s4 1983009808
      %v2363 = vunpack.c.0.s8 %v2362
      %v2364 = vlaneseq
      %v2365 = vshrl.u32 %v2364, 7
      %v2366 = vsub.s32 %v2363, %v2365
      %v2367 = vrot.slane %v2360, %v2366
      %v2368 = vcombine.low %v2343, %v2351
      %v2369 = vcombine.high %v2343, %v2351
      %v2371 = vunpack.c.l.s4 1934713408
      %v2372 = vunpack.c.0.s8 %v2371
      %v2373 = vlaneseq
      %v2374 = vshrl.u32 %v2373, 7
      %v2375 = vsub.s32 %v2372, %v2374
      %v2376 = vrot.slane %v2368, %v2375
      %v2378 = vunpack.c.l.s4 1934713408
      %v2379 = vunpack.c.0.s8 %v2378
      %v2380 = vlaneseq
      %v2381 = vshrl.u32 %v2380, 7
      %v2382 = vsub.s32 %v2379, %v2381
      %v2383 = vrot.slane %v2369, %v2382
      %v2384 = vcombine.low %v2359, %v2367
      %v2385 = vcombine.high %v2359, %v2367
      %v2387 = vunpack.c.l.s4 1934713408
      %v2388 = vunpack.c.0.s8 %v2387
      %v2389 = vlaneseq
      %v2390 = vshrl.u32 %v2389, 7
      %v2391 = vsub.s32 %v2388, %v2390
      %v2392 = vrot.slane %v2384, %v2391
      %v2394 = vunpack.c.l.s4 1934713408
      %v2395 = vunpack.c.0.s8 %v2394
      %v2396 = vlaneseq
      %v2397 = vshrl.u32 %v2396, 7
      %v2398 = vsub.s32 %v2395, %v2397
      %v2399 = vrot.slane %v2385, %v2398
      %v2400 = vcombine.low %v2376, %v2392
      %v2401 = vcombine.high %v2376, %v2392
      %v2402 = vcombine.low %v2383, %v2399
      %v2403 = vcombine.high %v2383, %v2399
      %v2404 = vpack.c.bf16 %v2400, %v2400
      %v2405 = vpack.c.bf16 %v2401, %v2401
      %v2406 = vpack.c.bf16 %v2402, %v2402
      %v2407 = vpack.c.bf16 %v2403, %v2403
      %2409 = vrot.lane.b32.xlu0 %v2197, 120
      %v2410 = vpop.permute.xlu0 %2409
      %2412 = vrot.lane.b32.xlu0 %v2197, 112
      %v2413 = vpop.permute.xlu0 %2412
      %2415 = vrot.lane.b32.xlu0 %v2197, 104
      %v2416 = vpop.permute.xlu0 %2415
      %v2418 = vcombine.low %v2197, %v2413
      %v2419 = vcombine.high %v2197, %v2413
      %v2421 = vunpack.c.l.s4 1983009808
      %v2422 = vunpack.c.0.s8 %v2421
      %v2423 = vlaneseq
      %v2424 = vshrl.u32 %v2423, 7
      %v2425 = vsub.s32 %v2422, %v2424
      %v2426 = vrot.slane %v2418, %v2425
      %v2428 = vunpack.c.l.s4 1983009808
      %v2429 = vunpack.c.0.s8 %v2428
      %v2430 = vlaneseq
      %v2431 = vshrl.u32 %v2430, 7
      %v2432 = vsub.s32 %v2429, %v2431
      %v2433 = vrot.slane %v2419, %v2432
      %v2434 = vcombine.low %v2410, %v2416
      %v2435 = vcombine.high %v2410, %v2416
      %v2437 = vunpack.c.l.s4 1983009808
      %v2438 = vunpack.c.0.s8 %v2437
      %v2439 = vlaneseq
      %v2440 = vshrl.u32 %v2439, 7
      %v2441 = vsub.s32 %v2438, %v2440
      %v2442 = vrot.slane %v2434, %v2441
      %v2444 = vunpack.c.l.s4 1983009808
      %v2445 = vunpack.c.0.s8 %v2444
      %v2446 = vlaneseq
      %v2447 = vshrl.u32 %v2446, 7
      %v2448 = vsub.s32 %v2445, %v2447
      %v2449 = vrot.slane %v2435, %v2448
      %v2450 = vcombine.low %v2426, %v2442
      %v2451 = vcombine.high %v2426, %v2442
      %v2453 = vunpack.c.l.s4 1934713408
      %v2454 = vunpack.c.0.s8 %v2453
      %v2455 = vlaneseq
      %v2456 = vshrl.u32 %v2455, 7
      %v2457 = vsub.s32 %v2454, %v2456
      %v2458 = vrot.slane %v2450, %v2457
      %v2460 = vunpack.c.l.s4 1934713408
      %v2461 = vunpack.c.0.s8 %v2460
      %v2462 = vlaneseq
      %v2463 = vshrl.u32 %v2462, 7
      %v2464 = vsub.s32 %v2461, %v2463
      %v2465 = vrot.slane %v2451, %v2464
      %v2466 = vcombine.low %v2433, %v2449
      %v2467 = vcombine.high %v2433, %v2449
      %v2469 = vunpack.c.l.s4 1934713408
      %v2470 = vunpack.c.0.s8 %v2469
      %v2471 = vlaneseq
      %v2472 = vshrl.u32 %v2471, 7
      %v2473 = vsub.s32 %v2470, %v2472
      %v2474 = vrot.slane %v2466, %v2473
      %v2476 = vunpack.c.l.s4 1934713408
      %v2477 = vunpack.c.0.s8 %v2476
      %v2478 = vlaneseq
      %v2479 = vshrl.u32 %v2478, 7
      %v2480 = vsub.s32 %v2477, %v2479
      %v2481 = vrot.slane %v2467, %v2480
      %v2482 = vcombine.high %v2458, 0.0
      %v2483 = vcombine.high %v2465, 0.0
      %v2484 = vcombine.high %v2474, 0.0
      %v2485 = vcombine.high %v2481, 0.0
      %v2486 = vcombine.low %v2458, %v2465
      %v2488 = vunpack.c.l.s4 1983009808
      %v2489 = vunpack.c.0.s8 %v2488
      %v2490 = vlaneseq
      %v2491 = vshrl.u32 %v2490, 7
      %v2492 = vsub.s32 %v2489, %v2491
      %v2493 = vrot.slane %v2486, %v2492
      %v2494 = vcombine.low %v2482, %v2483
      %v2496 = vunpack.c.l.s4 1983009808
      %v2497 = vunpack.c.0.s8 %v2496
      %v2498 = vlaneseq
      %v2499 = vshrl.u32 %v2498, 7
      %v2500 = vsub.s32 %v2497, %v2499
      %v2501 = vrot.slane %v2494, %v2500
      %v2502 = vcombine.low %v2474, %v2481
      %v2504 = vunpack.c.l.s4 1983009808
      %v2505 = vunpack.c.0.s8 %v2504
      %v2506 = vlaneseq
      %v2507 = vshrl.u32 %v2506, 7
      %v2508 = vsub.s32 %v2505, %v2507
      %v2509 = vrot.slane %v2502, %v2508
      %v2510 = vcombine.low %v2484, %v2485
      %v2512 = vunpack.c.l.s4 1983009808
      %v2513 = vunpack.c.0.s8 %v2512
      %v2514 = vlaneseq
      %v2515 = vshrl.u32 %v2514, 7
      %v2516 = vsub.s32 %v2513, %v2515
      %v2517 = vrot.slane %v2510, %v2516
      %v2518 = vcombine.low %v2493, %v2501
      %v2519 = vcombine.high %v2493, %v2501
      %v2521 = vunpack.c.l.s4 1934713408
      %v2522 = vunpack.c.0.s8 %v2521
      %v2523 = vlaneseq
      %v2524 = vshrl.u32 %v2523, 7
      %v2525 = vsub.s32 %v2522, %v2524
      %v2526 = vrot.slane %v2518, %v2525
      %v2528 = vunpack.c.l.s4 1934713408
      %v2529 = vunpack.c.0.s8 %v2528
      %v2530 = vlaneseq
      %v2531 = vshrl.u32 %v2530, 7
      %v2532 = vsub.s32 %v2529, %v2531
      %v2533 = vrot.slane %v2519, %v2532
      %v2534 = vcombine.low %v2509, %v2517
      %v2535 = vcombine.high %v2509, %v2517
      %v2537 = vunpack.c.l.s4 1934713408
      %v2538 = vunpack.c.0.s8 %v2537
      %v2539 = vlaneseq
      %v2540 = vshrl.u32 %v2539, 7
      %v2541 = vsub.s32 %v2538, %v2540
      %v2542 = vrot.slane %v2534, %v2541
      %v2544 = vunpack.c.l.s4 1934713408
      %v2545 = vunpack.c.0.s8 %v2544
      %v2546 = vlaneseq
      %v2547 = vshrl.u32 %v2546, 7
      %v2548 = vsub.s32 %v2545, %v2547
      %v2549 = vrot.slane %v2535, %v2548
      %v2550 = vcombine.low %v2526, %v2542
      %v2551 = vcombine.high %v2526, %v2542
      %v2552 = vcombine.low %v2533, %v2549
      %v2553 = vcombine.high %v2533, %v2549
      %v2554 = vpack.c.bf16 %v2550, %v2550
      %v2555 = vpack.c.bf16 %v2551, %v2551
      %v2556 = vpack.c.bf16 %v2552, %v2552
      %v2557 = vpack.c.bf16 %v2553, %v2553
      %2559 = vrot.lane.b32.xlu0 %v2145, 120
      %v2560 = vpop.permute.xlu0 %2559
      %2562 = vrot.lane.b32.xlu0 %v2145, 112
      %v2563 = vpop.permute.xlu0 %2562
      %2565 = vrot.lane.b32.xlu0 %v2145, 104
      %v2566 = vpop.permute.xlu0 %2565
      %v2568 = vcombine.low %v2145, %v2563
      %v2569 = vcombine.high %v2145, %v2563
      %v2571 = vunpack.c.l.s4 1983009808
      %v2572 = vunpack.c.0.s8 %v2571
      %v2573 = vlaneseq
      %v2574 = vshrl.u32 %v2573, 7
      %v2575 = vsub.s32 %v2572, %v2574
      %v2576 = vrot.slane %v2568, %v2575
      %v2578 = vunpack.c.l.s4 1983009808
      %v2579 = vunpack.c.0.s8 %v2578
      %v2580 = vlaneseq
      %v2581 = vshrl.u32 %v2580, 7
      %v2582 = vsub.s32 %v2579, %v2581
      %v2583 = vrot.slane %v2569, %v2582
      %v2584 = vcombine.low %v2560, %v2566
      %v2585 = vcombine.high %v2560, %v2566
      %v2587 = vunpack.c.l.s4 1983009808
      %v2588 = vunpack.c.0.s8 %v2587
      %v2589 = vlaneseq
      %v2590 = vshrl.u32 %v2589, 7
      %v2591 = vsub.s32 %v2588, %v2590
      %v2592 = vrot.slane %v2584, %v2591
      %v2594 = vunpack.c.l.s4 1983009808
      %v2595 = vunpack.c.0.s8 %v2594
      %v2596 = vlaneseq
      %v2597 = vshrl.u32 %v2596, 7
      %v2598 = vsub.s32 %v2595, %v2597
      %v2599 = vrot.slane %v2585, %v2598
      %v2600 = vcombine.low %v2576, %v2592
      %v2601 = vcombine.high %v2576, %v2592
      %v2603 = vunpack.c.l.s4 1934713408
      %v2604 = vunpack.c.0.s8 %v2603
      %v2605 = vlaneseq
      %v2606 = vshrl.u32 %v2605, 7
      %v2607 = vsub.s32 %v2604, %v2606
      %v2608 = vrot.slane %v2600, %v2607
      %v2610 = vunpack.c.l.s4 1934713408
      %v2611 = vunpack.c.0.s8 %v2610
      %v2612 = vlaneseq
      %v2613 = vshrl.u32 %v2612, 7
      %v2614 = vsub.s32 %v2611, %v2613
      %v2615 = vrot.slane %v2601, %v2614
      %v2616 = vcombine.low %v2583, %v2599
      %v2617 = vcombine.high %v2583, %v2599
      %v2619 = vunpack.c.l.s4 1934713408
      %v2620 = vunpack.c.0.s8 %v2619
      %v2621 = vlaneseq
      %v2622 = vshrl.u32 %v2621, 7
      %v2623 = vsub.s32 %v2620, %v2622
      %v2624 = vrot.slane %v2616, %v2623
      %v2626 = vunpack.c.l.s4 1934713408
      %v2627 = vunpack.c.0.s8 %v2626
      %v2628 = vlaneseq
      %v2629 = vshrl.u32 %v2628, 7
      %v2630 = vsub.s32 %v2627, %v2629
      %v2631 = vrot.slane %v2617, %v2630
      %v2632 = vcombine.high %v2608, 0.0
      %v2633 = vcombine.high %v2615, 0.0
      %v2634 = vcombine.high %v2624, 0.0
      %v2635 = vcombine.high %v2631, 0.0
      %v2636 = vcombine.low %v2608, %v2615
      %v2638 = vunpack.c.l.s4 1983009808
      %v2639 = vunpack.c.0.s8 %v2638
      %v2640 = vlaneseq
      %v2641 = vshrl.u32 %v2640, 7
      %v2642 = vsub.s32 %v2639, %v2641
      %v2643 = vrot.slane %v2636, %v2642
      %v2644 = vcombine.low %v2632, %v2633
      %v2646 = vunpack.c.l.s4 1983009808
      %v2647 = vunpack.c.0.s8 %v2646
      %v2648 = vlaneseq
      %v2649 = vshrl.u32 %v2648, 7
      %v2650 = vsub.s32 %v2647, %v2649
      %v2651 = vrot.slane %v2644, %v2650
      %v2652 = vcombine.low %v2624, %v2631
      %v2654 = vunpack.c.l.s4 1983009808
      %v2655 = vunpack.c.0.s8 %v2654
      %v2656 = vlaneseq
      %v2657 = vshrl.u32 %v2656, 7
      %v2658 = vsub.s32 %v2655, %v2657
      %v2659 = vrot.slane %v2652, %v2658
      %v2660 = vcombine.low %v2634, %v2635
      %v2662 = vunpack.c.l.s4 1983009808
      %v2663 = vunpack.c.0.s8 %v2662
      %v2664 = vlaneseq
      %v2665 = vshrl.u32 %v2664, 7
      %v2666 = vsub.s32 %v2663, %v2665
      %v2667 = vrot.slane %v2660, %v2666
      %v2668 = vcombine.low %v2643, %v2651
      %v2669 = vcombine.high %v2643, %v2651
      %v2671 = vunpack.c.l.s4 1934713408
      %v2672 = vunpack.c.0.s8 %v2671
      %v2673 = vlaneseq
      %v2674 = vshrl.u32 %v2673, 7
      %v2675 = vsub.s32 %v2672, %v2674
      %v2676 = vrot.slane %v2668, %v2675
      %v2678 = vunpack.c.l.s4 1934713408
      %v2679 = vunpack.c.0.s8 %v2678
      %v2680 = vlaneseq
      %v2681 = vshrl.u32 %v2680, 7
      %v2682 = vsub.s32 %v2679, %v2681
      %v2683 = vrot.slane %v2669, %v2682
      %v2684 = vcombine.low %v2659, %v2667
      %v2685 = vcombine.high %v2659, %v2667
      %v2687 = vunpack.c.l.s4 1934713408
      %v2688 = vunpack.c.0.s8 %v2687
      %v2689 = vlaneseq
      %v2690 = vshrl.u32 %v2689, 7
      %v2691 = vsub.s32 %v2688, %v2690
      %v2692 = vrot.slane %v2684, %v2691
      %v2694 = vunpack.c.l.s4 1934713408
      %v2695 = vunpack.c.0.s8 %v2694
      %v2696 = vlaneseq
      %v2697 = vshrl.u32 %v2696, 7
      %v2698 = vsub.s32 %v2695, %v2697
      %v2699 = vrot.slane %v2685, %v2698
      %v2700 = vcombine.low %v2676, %v2692
      %v2701 = vcombine.high %v2676, %v2692
      %v2702 = vcombine.low %v2683, %v2699
      %v2703 = vcombine.high %v2683, %v2699
      %v2704 = vpack.c.bf16 %v2700, %v2700
      %v2705 = vpack.c.bf16 %v2701, %v2701
      %v2706 = vpack.c.bf16 %v2702, %v2702
      %v2707 = vpack.c.bf16 %v2703, %v2703
      %v2709 = vsel %vm1418, %v2404, 0
      %v2712 = vsel %vm1418, %v2554, 0
      %2714 = vmatprep.subr.bf16.mxu0 0
      %2715 = vmatpush1.bf16.xpose.msra.mxu0 %v2712
      %2716 = vmatprep.subr.bf16.mxu0 0
      %2717 = vmatpush1.bf16.xpose.msra.mxu0 0
      %2718 = vmatprep.subr.bf16.mxu0 0
      %2719 = vmatpush1.bf16.xpose.msra.mxu0 0
      %2720 = vmatprep.subr.bf16.mxu0 0
      %2721 = vmatpush1.bf16.xpose.msra.mxu0 0
      %2722 = vmatprep.subr.bf16.mxu0 0
      %2723 = vmatpush1.bf16.xpose.msra.mxu0 0
      %2724 = vmatprep.subr.bf16.mxu0 0
      %2725 = vmatpush1.bf16.xpose.msra.mxu0 0
      %2726 = vmatprep.subr.bf16.mxu0 0
      %2727 = vmatpush1.bf16.xpose.msra.mxu0 0
      %2728 = vmatprep.subr.bf16.mxu0 0
      %2729 = vmatpush1.bf16.xpose.msra.mxu0 0
      %2730 = vmatprep.subr.bf16.mxu0 0
      %2731 = vmatpush1.bf16.xpose.msra.mxu0 0
      %2732 = vmatprep.subr.bf16.mxu0 0
      %2733 = vmatpush1.bf16.xpose.msra.mxu0 0
      %2734 = vmatprep.subr.bf16.mxu0 0
      %2735 = vmatpush1.bf16.xpose.msra.mxu0 0
      %2736 = vmatprep.subr.bf16.mxu0 0
      %2737 = vmatpush1.bf16.xpose.msra.mxu0 0
      %2738 = vmatprep.subr.bf16.mxu0 0
      %2739 = vmatpush1.bf16.xpose.msra.mxu0 0
      %2740 = vmatprep.subr.bf16.mxu0 0
      %2741 = vmatpush1.bf16.xpose.msra.mxu0 0
      %2742 = vmatprep.subr.bf16.mxu0 0
      %2743 = vmatpush1.bf16.xpose.msra.mxu0 0
      %2744 = vmatprep.subr.bf16.mxu0 0
      %2745 = vmatpush1.bf16.xpose.msra.mxu0 0
      %2746 = vmatprep.mubr.bf16.mxu0 0
      %2747 = vmatmul.mubr.bf16.gmra.mrb[0].mxu0 %v2709
      %v2748 = vpop.f32.mrb[0].mxu0
      %v2749 = vadd.f32 0.0, %v2748
      %v2750 = vpop.f32.mrb[0].mxu0
      %v2751 = vpop.f32.mrb[0].mxu0
      %v2752 = vpop.f32.mrb[0].mxu0
      %2753 = vdwg.mxu0
      %v2755 = vsel %vm1418, %v2405, 0
      %v2758 = vsel %vm1418, %v2555, 0
      %2760 = vmatprep.subr.bf16.mxu0 0
      %2761 = vmatpush1.bf16.xpose.msra.mxu0 %v2758
      %2762 = vmatprep.subr.bf16.mxu0 0
      %2763 = vmatpush1.bf16.xpose.msra.mxu0 0
      %2764 = vmatprep.subr.bf16.mxu0 0
      %2765 = vmatpush1.bf16.xpose.msra.mxu0 0
      %2766 = vmatprep.subr.bf16.mxu0 0
      %2767 = vmatpush1.bf16.xpose.msra.mxu0 0
      %2768 = vmatprep.subr.bf16.mxu0 0
      %2769 = vmatpush1.bf16.xpose.msra.mxu0 0
      %2770 = vmatprep.subr.bf16.mxu0 0
      %2771 = vmatpush1.bf16.xpose.msra.mxu0 0
      %2772 = vmatprep.subr.bf16.mxu0 0
      %2773 = vmatpush1.bf16.xpose.msra.mxu0 0
      %2774 = vmatprep.subr.bf16.mxu0 0
      %2775 = vmatpush1.bf16.xpose.msra.mxu0 0
      %2776 = vmatprep.subr.bf16.mxu0 0
      %2777 = vmatpush1.bf16.xpose.msra.mxu0 0
      %2778 = vmatprep.subr.bf16.mxu0 0
      %2779 = vmatpush1.bf16.xpose.msra.mxu0 0
      %2780 = vmatprep.subr.bf16.mxu0 0
      %2781 = vmatpush1.bf16.xpose.msra.mxu0 0
      %2782 = vmatprep.subr.bf16.mxu0 0
      %2783 = vmatpush1.bf16.xpose.msra.mxu0 0
      %2784 = vmatprep.subr.bf16.mxu0 0
      %2785 = vmatpush1.bf16.xpose.msra.mxu0 0
      %2786 = vmatprep.subr.bf16.mxu0 0
      %2787 = vmatpush1.bf16.xpose.msra.mxu0 0
      %2788 = vmatprep.subr.bf16.mxu0 0
      %2789 = vmatpush1.bf16.xpose.msra.mxu0 0
      %2790 = vmatprep.subr.bf16.mxu0 0
      %2791 = vmatpush1.bf16.xpose.msra.mxu0 0
      %2792 = vmatprep.mubr.bf16.mxu0 0
      %2793 = vmatmul.mubr.bf16.gmra.mrb[0].mxu0 %v2755
      %v2794 = vpop.f32.mrb[0].mxu0
      %v2795 = vadd.f32 0.0, %v2794
      %v2796 = vpop.f32.mrb[0].mxu0
      %v2797 = vpop.f32.mrb[0].mxu0
      %v2798 = vpop.f32.mrb[0].mxu0
      %2799 = vdwg.mxu0
      %v2801 = vsel %vm1418, %v2406, 0
      %v2804 = vsel %vm1418, %v2556, 0
      %2806 = vmatprep.subr.bf16.mxu0 0
      %2807 = vmatpush1.bf16.xpose.msra.mxu0 %v2804
      %2808 = vmatprep.subr.bf16.mxu0 0
      %2809 = vmatpush1.bf16.xpose.msra.mxu0 0
      %2810 = vmatprep.subr.bf16.mxu0 0
      %2811 = vmatpush1.bf16.xpose.msra.mxu0 0
      %2812 = vmatprep.subr.bf16.mxu0 0
      %2813 = vmatpush1.bf16.xpose.msra.mxu0 0
      %2814 = vmatprep.subr.bf16.mxu0 0
      %2815 = vmatpush1.bf16.xpose.msra.mxu0 0
      %2816 = vmatprep.subr.bf16.mxu0 0
      %2817 = vmatpush1.bf16.xpose.msra.mxu0 0
      %2818 = vmatprep.subr.bf16.mxu0 0
      %2819 = vmatpush1.bf16.xpose.msra.mxu0 0
      %2820 = vmatprep.subr.bf16.mxu0 0
      %2821 = vmatpush1.bf16.xpose.msra.mxu0 0
      %2822 = vmatprep.subr.bf16.mxu0 0
      %2823 = vmatpush1.bf16.xpose.msra.mxu0 0
      %2824 = vmatprep.subr.bf16.mxu0 0
      %2825 = vmatpush1.bf16.xpose.msra.mxu0 0
      %2826 = vmatprep.subr.bf16.mxu0 0
      %2827 = vmatpush1.bf16.xpose.msra.mxu0 0
      %2828 = vmatprep.subr.bf16.mxu0 0
      %2829 = vmatpush1.bf16.xpose.msra.mxu0 0
      %2830 = vmatprep.subr.bf16.mxu0 0
      %2831 = vmatpush1.bf16.xpose.msra.mxu0 0
      %2832 = vmatprep.subr.bf16.mxu0 0
      %2833 = vmatpush1.bf16.xpose.msra.mxu0 0
      %2834 = vmatprep.subr.bf16.mxu0 0
      %2835 = vmatpush1.bf16.xpose.msra.mxu0 0
      %2836 = vmatprep.subr.bf16.mxu0 0
      %2837 = vmatpush1.bf16.xpose.msra.mxu0 0
      %2838 = vmatprep.mubr.bf16.mxu0 0
      %2839 = vmatmul.mubr.bf16.gmra.mrb[0].mxu0 %v2801
      %v2840 = vpop.f32.mrb[0].mxu0
      %v2841 = vadd.f32 0.0, %v2840
      %v2842 = vpop.f32.mrb[0].mxu0
      %v2843 = vpop.f32.mrb[0].mxu0
      %v2844 = vpop.f32.mrb[0].mxu0
      %2845 = vdwg.mxu0
      %v2847 = vsel %vm1418, %v2407, 0
      %v2850 = vsel %vm1418, %v2557, 0
      %2852 = vmatprep.subr.bf16.mxu0 0
      %2853 = vmatpush1.bf16.xpose.msra.mxu0 %v2850
      %2854 = vmatprep.subr.bf16.mxu0 0
      %2855 = vmatpush1.bf16.xpose.msra.mxu0 0
      %2856 = vmatprep.subr.bf16.mxu0 0
      %2857 = vmatpush1.bf16.xpose.msra.mxu0 0
      %2858 = vmatprep.subr.bf16.mxu0 0
      %2859 = vmatpush1.bf16.xpose.msra.mxu0 0
      %2860 = vmatprep.subr.bf16.mxu0 0
      %2861 = vmatpush1.bf16.xpose.msra.mxu0 0
      %2862 = vmatprep.subr.bf16.mxu0 0
      %2863 = vmatpush1.bf16.xpose.msra.mxu0 0
      %2864 = vmatprep.subr.bf16.mxu0 0
      %2865 = vmatpush1.bf16.xpose.msra.mxu0 0
      %2866 = vmatprep.subr.bf16.mxu0 0
      %2867 = vmatpush1.bf16.xpose.msra.mxu0 0
      %2868 = vmatprep.subr.bf16.mxu0 0
      %2869 = vmatpush1.bf16.xpose.msra.mxu0 0
      %2870 = vmatprep.subr.bf16.mxu0 0
      %2871 = vmatpush1.bf16.xpose.msra.mxu0 0
      %2872 = vmatprep.subr.bf16.mxu0 0
      %2873 = vmatpush1.bf16.xpose.msra.mxu0 0
      %2874 = vmatprep.subr.bf16.mxu0 0
      %2875 = vmatpush1.bf16.xpose.msra.mxu0 0
      %2876 = vmatprep.subr.bf16.mxu0 0
      %2877 = vmatpush1.bf16.xpose.msra.mxu0 0
      %2878 = vmatprep.subr.bf16.mxu0 0
      %2879 = vmatpush1.bf16.xpose.msra.mxu0 0
      %2880 = vmatprep.subr.bf16.mxu0 0
      %2881 = vmatpush1.bf16.xpose.msra.mxu0 0
      %2882 = vmatprep.subr.bf16.mxu0 0
      %2883 = vmatpush1.bf16.xpose.msra.mxu0 0
      %2884 = vmatprep.mubr.bf16.mxu0 0
      %2885 = vmatmul.mubr.bf16.gmra.mrb[0].mxu0 %v2847
      %v2886 = vpop.f32.mrb[0].mxu0
      %v2887 = vadd.f32 0.0, %v2886
      %v2888 = vpop.f32.mrb[0].mxu0
      %v2889 = vpop.f32.mrb[0].mxu0
      %v2890 = vpop.f32.mrb[0].mxu0
      %2891 = vdwg.mxu0
      %vm2892 = vcmp.eq.f32.partialorder %v788, 0.0
      %v2893 = vsel %vm2892, 1, 0
      %vm2894 = vcmp.eq.s32.totalorder %v2893, 1
      %v2895 = vsel %vm2894, -1e+20, %v2749
      %v2896 = vsel %vm2894, -1e+20, %v2795
      %v2897 = vsel %vm2894, -1e+20, %v2841
      %v2898 = vsel %vm2894, -1e+20, %v2887
      %v2899 = vsel %vm1418, %v2895, -inf
      %2900 = vmax.xlane.f32.xlu0 %v2899
      %v2901 = vpop.xlane.xlu0 %2900
      %v2902 = vsel %vm1418, %v2896, -inf
      %2903 = vmax.xlane.f32.xlu0 %v2902
      %v2904 = vpop.xlane.xlu0 %2903
      %v2905 = vsel %vm1418, %v2897, -inf
      %2906 = vmax.xlane.f32.xlu0 %v2905
      %v2907 = vpop.xlane.xlu0 %2906
      %v2908 = vsel %vm1418, %v2898, -inf
      %2909 = vmax.xlane.f32.xlu0 %v2908
      %v2910 = vpop.xlane.xlu0 %2909
      %v2911 = vsub.f32 %v2895, %v2901
      %v2912 = vsub.f32 %v2896, %v2904
      %v2913 = vsub.f32 %v2897, %v2907
      %v2914 = vsub.f32 %v2898, %v2910
      %v2915 = vmul.f32 %v2911, 1.442695
      %v2916 = vpow.pop %v2915
      %v2917 = vmul.f32 %v2912, 1.442695
      %v2918 = vpow.pop %v2917
      %v2919 = vmul.f32 %v2913, 1.442695
      %v2920 = vpow.pop %v2919
      %v2921 = vmul.f32 %v2914, 1.442695
      %v2922 = vpow.pop %v2921
      %v2923 = vsel %vm1418, %v2916, 0.0
      %2924 = vadd.xlane.f32.xlu0 %v2923
      %v2925 = vpop.xlane.xlu0 %2924
      %v2926 = vsel %vm1418, %v2918, 0.0
      %2927 = vadd.xlane.f32.xlu0 %v2926
      %v2928 = vpop.xlane.xlu0 %2927
      %v2929 = vsel %vm1418, %v2920, 0.0
      %2930 = vadd.xlane.f32.xlu0 %v2929
      %v2931 = vpop.xlane.xlu0 %2930
      %v2932 = vsel %vm1418, %v2922, 0.0
      %2933 = vadd.xlane.f32.xlu0 %v2932
      %v2934 = vpop.xlane.xlu0 %2933
      %v2935 = vrcp.pop %v2925
      %v2936 = vrcp.pop %v2928
      %v2937 = vrcp.pop %v2931
      %v2938 = vrcp.pop %v2934
      %v2939 = vmul.f32 %v2916, %v2935
      %v2940 = vmul.f32 %v2918, %v2936
      %v2941 = vmul.f32 %v2920, %v2937
      %v2942 = vmul.f32 %v2922, %v2938
      %v2943 = vpack.c.bf16 %v2939, %v2939
      %v2944 = vpack.c.bf16 %v2940, %v2940
      %v2945 = vpack.c.bf16 %v2941, %v2941
      %v2946 = vpack.c.bf16 %v2942, %v2942
      %v2948 = vsel %vm1418, %v2943, 0
      %v2951 = vsel %vm1661, %v2704, 0
      %2953 = vmatprep.subr.bf16.mxu0 0
      %2954 = vmatpush1.bf16.msra.mxu0 %v2951
      %2955 = vmatprep.subr.bf16.mxu0 0
      %2956 = vmatpush1.bf16.msra.mxu0 0
      %2957 = vmatprep.subr.bf16.mxu0 0
      %2958 = vmatpush1.bf16.msra.mxu0 0
      %2959 = vmatprep.subr.bf16.mxu0 0
      %2960 = vmatpush1.bf16.msra.mxu0 0
      %2961 = vmatprep.subr.bf16.mxu0 0
      %2962 = vmatpush1.bf16.msra.mxu0 0
      %2963 = vmatprep.subr.bf16.mxu0 0
      %2964 = vmatpush1.bf16.msra.mxu0 0
      %2965 = vmatprep.subr.bf16.mxu0 0
      %2966 = vmatpush1.bf16.msra.mxu0 0
      %2967 = vmatprep.subr.bf16.mxu0 0
      %2968 = vmatpush1.bf16.msra.mxu0 0
      %2969 = vmatprep.subr.bf16.mxu0 0
      %2970 = vmatpush1.bf16.msra.mxu0 0
      %2971 = vmatprep.subr.bf16.mxu0 0
      %2972 = vmatpush1.bf16.msra.mxu0 0
      %2973 = vmatprep.subr.bf16.mxu0 0
      %2974 = vmatpush1.bf16.msra.mxu0 0
      %2975 = vmatprep.subr.bf16.mxu0 0
      %2976 = vmatpush1.bf16.msra.mxu0 0
      %2977 = vmatprep.subr.bf16.mxu0 0
      %2978 = vmatpush1.bf16.msra.mxu0 0
      %2979 = vmatprep.subr.bf16.mxu0 0
      %2980 = vmatpush1.bf16.msra.mxu0 0
      %2981 = vmatprep.subr.bf16.mxu0 0
      %2982 = vmatpush1.bf16.msra.mxu0 0
      %2983 = vmatprep.subr.bf16.mxu0 0
      %2984 = vmatpush1.bf16.msra.mxu0 0
      %2985 = vmatprep.mubr.bf16.mxu0 0
      %2986 = vmatmul.mubr.bf16.gmra.mrb[0].mxu0 %v2948
      %v2987 = vpop.f32.mrb[0].mxu0
      %v2988 = vadd.f32 0.0, %v2987
      %v2989 = vpop.f32.mrb[0].mxu0
      %v2990 = vpop.f32.mrb[0].mxu0
      %v2991 = vpop.f32.mrb[0].mxu0
      %2992 = vdwg.mxu0
      %v2994 = vsel %vm1418, %v2944, 0
      %v2997 = vsel %vm1661, %v2705, 0
      %2999 = vmatprep.subr.bf16.mxu0 0
      %3000 = vmatpush1.bf16.msra.mxu0 %v2997
      %3001 = vmatprep.subr.bf16.mxu0 0
      %3002 = vmatpush1.bf16.msra.mxu0 0
      %3003 = vmatprep.subr.bf16.mxu0 0
      %3004 = vmatpush1.bf16.msra.mxu0 0
      %3005 = vmatprep.subr.bf16.mxu0 0
      %3006 = vmatpush1.bf16.msra.mxu0 0
      %3007 = vmatprep.subr.bf16.mxu0 0
      %3008 = vmatpush1.bf16.msra.mxu0 0
      %3009 = vmatprep.subr.bf16.mxu0 0
      %3010 = vmatpush1.bf16.msra.mxu0 0
      %3011 = vmatprep.subr.bf16.mxu0 0
      %3012 = vmatpush1.bf16.msra.mxu0 0
      %3013 = vmatprep.subr.bf16.mxu0 0
      %3014 = vmatpush1.bf16.msra.mxu0 0
      %3015 = vmatprep.subr.bf16.mxu0 0
      %3016 = vmatpush1.bf16.msra.mxu0 0
      %3017 = vmatprep.subr.bf16.mxu0 0
      %3018 = vmatpush1.bf16.msra.mxu0 0
      %3019 = vmatprep.subr.bf16.mxu0 0
      %3020 = vmatpush1.bf16.msra.mxu0 0
      %3021 = vmatprep.subr.bf16.mxu0 0
      %3022 = vmatpush1.bf16.msra.mxu0 0
      %3023 = vmatprep.subr.bf16.mxu0 0
      %3024 = vmatpush1.bf16.msra.mxu0 0
      %3025 = vmatprep.subr.bf16.mxu0 0
      %3026 = vmatpush1.bf16.msra.mxu0 0
      %3027 = vmatprep.subr.bf16.mxu0 0
      %3028 = vmatpush1.bf16.msra.mxu0 0
      %3029 = vmatprep.subr.bf16.mxu0 0
      %3030 = vmatpush1.bf16.msra.mxu0 0
      %3031 = vmatprep.mubr.bf16.mxu0 0
      %3032 = vmatmul.mubr.bf16.gmra.mrb[0].mxu0 %v2994
      %v3033 = vpop.f32.mrb[0].mxu0
      %v3034 = vadd.f32 0.0, %v3033
      %v3035 = vpop.f32.mrb[0].mxu0
      %v3036 = vpop.f32.mrb[0].mxu0
      %v3037 = vpop.f32.mrb[0].mxu0
      %3038 = vdwg.mxu0
      %v3040 = vsel %vm1418, %v2945, 0
      %v3043 = vsel %vm1661, %v2706, 0
      %3045 = vmatprep.subr.bf16.mxu0 0
      %3046 = vmatpush1.bf16.msra.mxu0 %v3043
      %3047 = vmatprep.subr.bf16.mxu0 0
      %3048 = vmatpush1.bf16.msra.mxu0 0
      %3049 = vmatprep.subr.bf16.mxu0 0
      %3050 = vmatpush1.bf16.msra.mxu0 0
      %3051 = vmatprep.subr.bf16.mxu0 0
      %3052 = vmatpush1.bf16.msra.mxu0 0
      %3053 = vmatprep.subr.bf16.mxu0 0
      %3054 = vmatpush1.bf16.msra.mxu0 0
      %3055 = vmatprep.subr.bf16.mxu0 0
      %3056 = vmatpush1.bf16.msra.mxu0 0
      %3057 = vmatprep.subr.bf16.mxu0 0
      %3058 = vmatpush1.bf16.msra.mxu0 0
      %3059 = vmatprep.subr.bf16.mxu0 0
      %3060 = vmatpush1.bf16.msra.mxu0 0
      %3061 = vmatprep.subr.bf16.mxu0 0
      %3062 = vmatpush1.bf16.msra.mxu0 0
      %3063 = vmatprep.subr.bf16.mxu0 0
      %3064 = vmatpush1.bf16.msra.mxu0 0
      %3065 = vmatprep.subr.bf16.mxu0 0
      %3066 = vmatpush1.bf16.msra.mxu0 0
      %3067 = vmatprep.subr.bf16.mxu0 0
      %3068 = vmatpush1.bf16.msra.mxu0 0
      %3069 = vmatprep.subr.bf16.mxu0 0
      %3070 = vmatpush1.bf16.msra.mxu0 0
      %3071 = vmatprep.subr.bf16.mxu0 0
      %3072 = vmatpush1.bf16.msra.mxu0 0
      %3073 = vmatprep.subr.bf16.mxu0 0
      %3074 = vmatpush1.bf16.msra.mxu0 0
      %3075 = vmatprep.subr.bf16.mxu0 0
      %3076 = vmatpush1.bf16.msra.mxu0 0
      %3077 = vmatprep.mubr.bf16.mxu0 0
      %3078 = vmatmul.mubr.bf16.gmra.mrb[0].mxu0 %v3040
      %v3079 = vpop.f32.mrb[0].mxu0
      %v3080 = vadd.f32 0.0, %v3079
      %v3081 = vpop.f32.mrb[0].mxu0
      %v3082 = vpop.f32.mrb[0].mxu0
      %v3083 = vpop.f32.mrb[0].mxu0
      %3084 = vdwg.mxu0
      %v3086 = vsel %vm1418, %v2946, 0
      %v3089 = vsel %vm1661, %v2707, 0
      %3091 = vmatprep.subr.bf16.mxu0 0
      %3092 = vmatpush1.bf16.msra.mxu0 %v3089
      %3093 = vmatprep.subr.bf16.mxu0 0
      %3094 = vmatpush1.bf16.msra.mxu0 0
      %3095 = vmatprep.subr.bf16.mxu0 0
      %3096 = vmatpush1.bf16.msra.mxu0 0
      %3097 = vmatprep.subr.bf16.mxu0 0
      %3098 = vmatpush1.bf16.msra.mxu0 0
      %3099 = vmatprep.subr.bf16.mxu0 0
      %3100 = vmatpush1.bf16.msra.mxu0 0
      %3101 = vmatprep.subr.bf16.mxu0 0
      %3102 = vmatpush1.bf16.msra.mxu0 0
      %3103 = vmatprep.subr.bf16.mxu0 0
      %3104 = vmatpush1.bf16.msra.mxu0 0
      %3105 = vmatprep.subr.bf16.mxu0 0
      %3106 = vmatpush1.bf16.msra.mxu0 0
      %3107 = vmatprep.subr.bf16.mxu0 0
      %3108 = vmatpush1.bf16.msra.mxu0 0
      %3109 = vmatprep.subr.bf16.mxu0 0
      %3110 = vmatpush1.bf16.msra.mxu0 0
      %3111 = vmatprep.subr.bf16.mxu0 0
      %3112 = vmatpush1.bf16.msra.mxu0 0
      %3113 = vmatprep.subr.bf16.mxu0 0
      %3114 = vmatpush1.bf16.msra.mxu0 0
      %3115 = vmatprep.subr.bf16.mxu0 0
      %3116 = vmatpush1.bf16.msra.mxu0 0
      %3117 = vmatprep.subr.bf16.mxu0 0
      %3118 = vmatpush1.bf16.msra.mxu0 0
      %3119 = vmatprep.subr.bf16.mxu0 0
      %3120 = vmatpush1.bf16.msra.mxu0 0
      %3121 = vmatprep.subr.bf16.mxu0 0
      %3122 = vmatpush1.bf16.msra.mxu0 0
      %3123 = vmatprep.mubr.bf16.mxu0 0
      %3124 = vmatmul.mubr.bf16.gmra.mrb[0].mxu0 %v3086
      %v3125 = vpop.f32.mrb[0].mxu0
      %v3126 = vadd.f32 0.0, %v3125
      %v3127 = vpop.f32.mrb[0].mxu0
      %v3128 = vpop.f32.mrb[0].mxu0
      %v3129 = vpop.f32.mrb[0].mxu0
      %3130 = vdwg.mxu0
      %v3131 = vpack.c.bf16 %v2988, %v2988
      %v3132 = vpack.c.bf16 %v3034, %v3034
      %v3133 = vpack.c.bf16 %v3080, %v3080
      %v3134 = vpack.c.bf16 %v3126, %v3126
      %v3136 = vsel %vm1418, %v3131, 0
      %v3139 = vsel %vm1661, %v2088, 0
      %3141 = vmatprep.subr.bf16.mxu0 0
      %3142 = vmatpush1.bf16.msra.mxu0 %v3139
      %3143 = vmatprep.subr.bf16.mxu0 0
      %3144 = vmatpush1.bf16.msra.mxu0 0
      %3145 = vmatprep.subr.bf16.mxu0 0
      %3146 = vmatpush1.bf16.msra.mxu0 0
      %3147 = vmatprep.subr.bf16.mxu0 0
      %3148 = vmatpush1.bf16.msra.mxu0 0
      %3149 = vmatprep.subr.bf16.mxu0 0
      %3150 = vmatpush1.bf16.msra.mxu0 0
      %3151 = vmatprep.subr.bf16.mxu0 0
      %3152 = vmatpush1.bf16.msra.mxu0 0
      %3153 = vmatprep.subr.bf16.mxu0 0
      %3154 = vmatpush1.bf16.msra.mxu0 0
      %3155 = vmatprep.subr.bf16.mxu0 0
      %3156 = vmatpush1.bf16.msra.mxu0 0
      %3157 = vmatprep.subr.bf16.mxu0 0
      %3158 = vmatpush1.bf16.msra.mxu0 0
      %3159 = vmatprep.subr.bf16.mxu0 0
      %3160 = vmatpush1.bf16.msra.mxu0 0
      %3161 = vmatprep.subr.bf16.mxu0 0
      %3162 = vmatpush1.bf16.msra.mxu0 0
      %3163 = vmatprep.subr.bf16.mxu0 0
      %3164 = vmatpush1.bf16.msra.mxu0 0
      %3165 = vmatprep.subr.bf16.mxu0 0
      %3166 = vmatpush1.bf16.msra.mxu0 0
      %3167 = vmatprep.subr.bf16.mxu0 0
      %3168 = vmatpush1.bf16.msra.mxu0 0
      %3169 = vmatprep.subr.bf16.mxu0 0
      %3170 = vmatpush1.bf16.msra.mxu0 0
      %3171 = vmatprep.subr.bf16.mxu0 0
      %3172 = vmatpush1.bf16.msra.mxu0 0
      %3173 = vmatprep.mubr.bf16.mxu0 0
      %3174 = vmatmul.mubr.bf16.gmra.mrb[0].mxu0 %v3136
      %v3175 = vpop.f32.mrb[0].mxu0
      %v3176 = vadd.f32 0.0, %v3175
      %v3177 = vpop.f32.mrb[0].mxu0
      %v3178 = vpop.f32.mrb[0].mxu0
      %v3179 = vpop.f32.mrb[0].mxu0
      %3180 = vdwg.mxu0
      %v3182 = vsel %vm1418, %v3132, 0
      %v3185 = vsel %vm1661, %v2089, 0
      %3187 = vmatprep.subr.bf16.mxu0 0
      %3188 = vmatpush1.bf16.msra.mxu0 %v3185
      %3189 = vmatprep.subr.bf16.mxu0 0
      %3190 = vmatpush1.bf16.msra.mxu0 0
      %3191 = vmatprep.subr.bf16.mxu0 0
      %3192 = vmatpush1.bf16.msra.mxu0 0
      %3193 = vmatprep.subr.bf16.mxu0 0
      %3194 = vmatpush1.bf16.msra.mxu0 0
      %3195 = vmatprep.subr.bf16.mxu0 0
      %3196 = vmatpush1.bf16.msra.mxu0 0
      %3197 = vmatprep.subr.bf16.mxu0 0
      %3198 = vmatpush1.bf16.msra.mxu0 0
      %3199 = vmatprep.subr.bf16.mxu0 0
      %3200 = vmatpush1.bf16.msra.mxu0 0
      %3201 = vmatprep.subr.bf16.mxu0 0
      %3202 = vmatpush1.bf16.msra.mxu0 0
      %3203 = vmatprep.subr.bf16.mxu0 0
      %3204 = vmatpush1.bf16.msra.mxu0 0
      %3205 = vmatprep.subr.bf16.mxu0 0
      %3206 = vmatpush1.bf16.msra.mxu0 0
      %3207 = vmatprep.subr.bf16.mxu0 0
      %3208 = vmatpush1.bf16.msra.mxu0 0
      %3209 = vmatprep.subr.bf16.mxu0 0
      %3210 = vmatpush1.bf16.msra.mxu0 0
      %3211 = vmatprep.subr.bf16.mxu0 0
      %3212 = vmatpush1.bf16.msra.mxu0 0
      %3213 = vmatprep.subr.bf16.mxu0 0
      %3214 = vmatpush1.bf16.msra.mxu0 0
      %3215 = vmatprep.subr.bf16.mxu0 0
      %3216 = vmatpush1.bf16.msra.mxu0 0
      %3217 = vmatprep.subr.bf16.mxu0 0
      %3218 = vmatpush1.bf16.msra.mxu0 0
      %3219 = vmatprep.mubr.bf16.mxu0 0
      %3220 = vmatmul.mubr.bf16.gmra.mrb[0].mxu0 %v3182
      %v3221 = vpop.f32.mrb[0].mxu0
      %v3222 = vadd.f32 0.0, %v3221
      %v3223 = vpop.f32.mrb[0].mxu0
      %v3224 = vpop.f32.mrb[0].mxu0
      %v3225 = vpop.f32.mrb[0].mxu0
      %3226 = vdwg.mxu0
      %v3228 = vsel %vm1418, %v3133, 0
      %v3231 = vsel %vm1661, %v2090, 0
      %3233 = vmatprep.subr.bf16.mxu0 0
      %3234 = vmatpush1.bf16.msra.mxu0 %v3231
      %3235 = vmatprep.subr.bf16.mxu0 0
      %3236 = vmatpush1.bf16.msra.mxu0 0
      %3237 = vmatprep.subr.bf16.mxu0 0
      %3238 = vmatpush1.bf16.msra.mxu0 0
      %3239 = vmatprep.subr.bf16.mxu0 0
      %3240 = vmatpush1.bf16.msra.mxu0 0
      %3241 = vmatprep.subr.bf16.mxu0 0
      %3242 = vmatpush1.bf16.msra.mxu0 0
      %3243 = vmatprep.subr.bf16.mxu0 0
      %3244 = vmatpush1.bf16.msra.mxu0 0
      %3245 = vmatprep.subr.bf16.mxu0 0
      %3246 = vmatpush1.bf16.msra.mxu0 0
      %3247 = vmatprep.subr.bf16.mxu0 0
      %3248 = vmatpush1.bf16.msra.mxu0 0
      %3249 = vmatprep.subr.bf16.mxu0 0
      %3250 = vmatpush1.bf16.msra.mxu0 0
      %3251 = vmatprep.subr.bf16.mxu0 0
      %3252 = vmatpush1.bf16.msra.mxu0 0
      %3253 = vmatprep.subr.bf16.mxu0 0
      %3254 = vmatpush1.bf16.msra.mxu0 0
      %3255 = vmatprep.subr.bf16.mxu0 0
      %3256 = vmatpush1.bf16.msra.mxu0 0
      %3257 = vmatprep.subr.bf16.mxu0 0
      %3258 = vmatpush1.bf16.msra.mxu0 0
      %3259 = vmatprep.subr.bf16.mxu0 0
      %3260 = vmatpush1.bf16.msra.mxu0 0
      %3261 = vmatprep.subr.bf16.mxu0 0
      %3262 = vmatpush1.bf16.msra.mxu0 0
      %3263 = vmatprep.subr.bf16.mxu0 0
      %3264 = vmatpush1.bf16.msra.mxu0 0
      %3265 = vmatprep.mubr.bf16.mxu0 0
      %3266 = vmatmul.mubr.bf16.gmra.mrb[0].mxu0 %v3228
      %v3267 = vpop.f32.mrb[0].mxu0
      %v3268 = vadd.f32 0.0, %v3267
      %v3269 = vpop.f32.mrb[0].mxu0
      %v3270 = vpop.f32.mrb[0].mxu0
      %v3271 = vpop.f32.mrb[0].mxu0
      %3272 = vdwg.mxu0
      %v3274 = vsel %vm1418, %v3134, 0
      %v3277 = vsel %vm1661, %v2091, 0
      %3279 = vmatprep.subr.bf16.mxu0 0
      %3280 = vmatpush1.bf16.msra.mxu0 %v3277
      %3281 = vmatprep.subr.bf16.mxu0 0
      %3282 = vmatpush1.bf16.msra.mxu0 0
      %3283 = vmatprep.subr.bf16.mxu0 0
      %3284 = vmatpush1.bf16.msra.mxu0 0
      %3285 = vmatprep.subr.bf16.mxu0 0
      %3286 = vmatpush1.bf16.msra.mxu0 0
      %3287 = vmatprep.subr.bf16.mxu0 0
      %3288 = vmatpush1.bf16.msra.mxu0 0
      %3289 = vmatprep.subr.bf16.mxu0 0
      %3290 = vmatpush1.bf16.msra.mxu0 0
      %3291 = vmatprep.subr.bf16.mxu0 0
      %3292 = vmatpush1.bf16.msra.mxu0 0
      %3293 = vmatprep.subr.bf16.mxu0 0
      %3294 = vmatpush1.bf16.msra.mxu0 0
      %3295 = vmatprep.subr.bf16.mxu0 0
      %3296 = vmatpush1.bf16.msra.mxu0 0
      %3297 = vmatprep.subr.bf16.mxu0 0
      %3298 = vmatpush1.bf16.msra.mxu0 0
      %3299 = vmatprep.subr.bf16.mxu0 0
      %3300 = vmatpush1.bf16.msra.mxu0 0
      %3301 = vmatprep.subr.bf16.mxu0 0
      %3302 = vmatpush1.bf16.msra.mxu0 0
      %3303 = vmatprep.subr.bf16.mxu0 0
      %3304 = vmatpush1.bf16.msra.mxu0 0
      %3305 = vmatprep.subr.bf16.mxu0 0
      %3306 = vmatpush1.bf16.msra.mxu0 0
      %3307 = vmatprep.subr.bf16.mxu0 0
      %3308 = vmatpush1.bf16.msra.mxu0 0
      %3309 = vmatprep.subr.bf16.mxu0 0
      %3310 = vmatpush1.bf16.msra.mxu0 0
      %3311 = vmatprep.mubr.bf16.mxu0 0
      %3312 = vmatmul.mubr.bf16.gmra.mrb[0].mxu0 %v3274
      %v3313 = vpop.f32.mrb[0].mxu0
      %v3314 = vadd.f32 0.0, %v3313
      %v3315 = vpop.f32.mrb[0].mxu0
      %v3316 = vpop.f32.mrb[0].mxu0
      %v3317 = vpop.f32.mrb[0].mxu0
      %3318 = vdwg.mxu0
      %v3319 = vsel %vm819, %v3176, 0.0
      %v3320 = vsel %vm819, %v3222, 0.0
      %v3321 = vadd.f32 %v3319, %v3320
      %v3322 = vsel %vm819, %v3268, 0.0
      %v3323 = vadd.f32 %v3321, %v3322
      %v3324 = vsel %vm819, %v3314, 0.0
      %v3325 = vadd.f32 %v3323, %v3324
      %v3327 = vlaneseq
      %v3328 = vshrl.u32 %v3327, 7
      %v3329 = vsub.s32 0, %v3328
      %v3330 = vrot.slane %v2092, %v3329
      %v3332 = vadd.f32 %v3325, %v3330
      %v3333 = vld [vmem:[%s16] sm:$0x1]
      %v3334 = vld [vmem:[%s17] sm:$0x1]
      %v3335 = vadd.f32 %v3332, %v2075
      %v3336 = vsel %vm819, %v3335, 0.0
      %3337 = vadd.xlane.f32.xlu0 %v3336
      %v3338 = vpop.xlane.xlu0 %3337
      %v3339 = vmul.f32 %v3338, %v2051
      %v3340 = vsub.f32 %v3335, %v3339
      %v3341 = vmul.f32 %v3340, %v3340
      %v3342 = vsel %vm819, %v3341, 0.0
      %3343 = vadd.xlane.f32.xlu0 %v3342
      %v3344 = vpop.xlane.xlu0 %3343
      %v3345 = vmul.f32 %v3344, %v2051
      %v3346 = vadd.f32 %v3345, 1e-05
      %v3347 = vrsqrt.pop %v3346
      %v3348 = vmul.f32 %v3340, %v3347
      %v3350 = vlaneseq
      %v3351 = vshrl.u32 %v3350, 7
      %v3352 = vsub.s32 0, %v3351
      %v3353 = vrot.slane %v3333, %v3352
      %v3355 = vmul.f32 %v3348, %v3353
      %v3357 = vlaneseq
      %v3358 = vshrl.u32 %v3357, 7
      %v3359 = vsub.s32 0, %v3358
      %v3360 = vrot.slane %v3334, %v3359
      %v3362 = vadd.f32 %v3355, %v3360
      %v3363 = vpack.c.bf16 %v3362, %v3362
      %v3364 = vld [vmem:[%s18] sm:$0xf]
      %v3365 = vld [vmem:[%s18 + $0x4] sm:$0xf]
      %v3366 = vld [vmem:[%s18 + $0x8] sm:$0xf]
      %v3367 = vld [vmem:[%s18 + $0xc] sm:$0xf]
      %v3368 = vld [vmem:[%s19] sm:$0x1]
      %v3370 = vlaneseq
      %v3371 = vshrl.u32 %v3370, 7
      %v3372 = vsub.s32 0, %v3371
      %v3373 = vrot.slane %v3368, %v3372
      %v3379 = vunpack.c.l.b16 %v3364
      %v3380 = vunpack.c.l.b16 %v3365
      %v3381 = vunpack.c.l.b16 %v3366
      %v3382 = vunpack.c.l.b16 %v3367
      %v3383 = vpack.c.b16 %v3380, %v3379
      %v3384 = vpack.c.b16 %v3382, %v3381
      %v3388 = vsel %vm819, %v3363, 0
      %3390 = vmatprep.subr.bf16.mxu0 0
      %3391 = vmatpush1.bf16.msra.mxu0 %v3383
      %3392 = vmatprep.subr.bf16.mxu0 0
      %3393 = vmatpush1.bf16.msra.mxu0 %v3384
      %3394 = vmatprep.subr.bf16.mxu0 0
      %3395 = vmatpush1.bf16.msra.mxu0 0
      %3396 = vmatprep.subr.bf16.mxu0 0
      %3397 = vmatpush1.bf16.msra.mxu0 0
      %3398 = vmatprep.subr.bf16.mxu0 0
      %3399 = vmatpush1.bf16.msra.mxu0 0
      %3400 = vmatprep.subr.bf16.mxu0 0
      %3401 = vmatpush1.bf16.msra.mxu0 0
      %3402 = vmatprep.subr.bf16.mxu0 0
      %3403 = vmatpush1.bf16.msra.mxu0 0
      %3404 = vmatprep.subr.bf16.mxu0 0
      %3405 = vmatpush1.bf16.msra.mxu0 0
      %3406 = vmatprep.subr.bf16.mxu0 0
      %3407 = vmatpush1.bf16.msra.mxu0 0
      %3408 = vmatprep.subr.bf16.mxu0 0
      %3409 = vmatpush1.bf16.msra.mxu0 0
      %3410 = vmatprep.subr.bf16.mxu0 0
      %3411 = vmatpush1.bf16.msra.mxu0 0
      %3412 = vmatprep.subr.bf16.mxu0 0
      %3413 = vmatpush1.bf16.msra.mxu0 0
      %3414 = vmatprep.subr.bf16.mxu0 0
      %3415 = vmatpush1.bf16.msra.mxu0 0
      %3416 = vmatprep.subr.bf16.mxu0 0
      %3417 = vmatpush1.bf16.msra.mxu0 0
      %3418 = vmatprep.subr.bf16.mxu0 0
      %3419 = vmatpush1.bf16.msra.mxu0 0
      %3420 = vmatprep.subr.bf16.mxu0 0
      %3421 = vmatpush1.bf16.msra.mxu0 0
      %3422 = vmatprep.mubr.bf16.mxu0 0
      %3423 = vmatmul.mubr.bf16.gmra.mrb[0].mxu0 %v3388
      %v3424 = vpop.f32.mrb[0].mxu0
      %v3425 = vadd.f32 %v3373, %v3424
      %v3426 = vpop.f32.mrb[0].mxu0
      %v3427 = vpop.f32.mrb[0].mxu0
      %v3428 = vpop.f32.mrb[0].mxu0
      %3429 = vdwg.mxu0
      %v3430 = vmax.f32 %v3425, 0.0
      %v3431 = vpack.c.bf16 %v3430, %v3430
      %v3432 = vld [vmem:[%s20] sm:$0xf]
      %v3433 = vld [vmem:[%s20 + $0x4] sm:$0xf]
      %v3434 = vld [vmem:[%s20 + $0x8] sm:$0xf]
      %v3435 = vld [vmem:[%s20 + $0xc] sm:$0xf]
      %v3436 = vld [vmem:[%s20 + $0x10] sm:$0xf]
      %v3437 = vld [vmem:[%s20 + $0x14] sm:$0xf]
      %v3438 = vld [vmem:[%s20 + $0x18] sm:$0xf]
      %v3439 = vld [vmem:[%s20 + $0x1c] sm:$0xf]
      %v3440 = vld [vmem:[%s21] sm:$0x1]
      %v3442 = vlaneseq
      %v3443 = vshrl.u32 %v3442, 7
      %v3444 = vsub.s32 0, %v3443
      %v3445 = vrot.slane %v3440, %v3444
      %v3455 = vunpack.c.l.b16 %v3432
      %v3456 = vunpack.c.l.b16 %v3433
      %v3457 = vunpack.c.l.b16 %v3434
      %v3458 = vunpack.c.l.b16 %v3435
      %v3459 = vunpack.c.l.b16 %v3436
      %v3460 = vunpack.c.l.b16 %v3437
      %v3461 = vunpack.c.l.b16 %v3438
      %v3462 = vunpack.c.l.b16 %v3439
      %v3463 = vpack.c.b16 %v3456, %v3455
      %v3464 = vpack.c.b16 %v3458, %v3457
      %v3465 = vpack.c.b16 %v3460, %v3459
      %v3466 = vpack.c.b16 %v3462, %v3461
      %vm3471 = vcmask 523264
      %v3473 = vsel %vm3471, %v3431, 0
      %3475 = vmatprep.subr.bf16.mxu0 0
      %3476 = vmatpush1.bf16.msra.mxu0 %v3463
      %3477 = vmatprep.subr.bf16.mxu0 0
      %3478 = vmatpush1.bf16.msra.mxu0 %v3464
      %3479 = vmatprep.subr.bf16.mxu0 0
      %3480 = vmatpush1.bf16.msra.mxu0 %v3465
      %3481 = vmatprep.subr.bf16.mxu0 0
      %3482 = vmatpush1.bf16.msra.mxu0 %v3466
      %3483 = vmatprep.subr.bf16.mxu0 0
      %3484 = vmatpush1.bf16.msra.mxu0 0
      %3485 = vmatprep.subr.bf16.mxu0 0
      %3486 = vmatpush1.bf16.msra.mxu0 0
      %3487 = vmatprep.subr.bf16.mxu0 0
      %3488 = vmatpush1.bf16.msra.mxu0 0
      %3489 = vmatprep.subr.bf16.mxu0 0
      %3490 = vmatpush1.bf16.msra.mxu0 0
      %3491 = vmatprep.subr.bf16.mxu0 0
      %3492 = vmatpush1.bf16.msra.mxu0 0
      %3493 = vmatprep.subr.bf16.mxu0 0
      %3494 = vmatpush1.bf16.msra.mxu0 0
      %3495 = vmatprep.subr.bf16.mxu0 0
      %3496 = vmatpush1.bf16.msra.mxu0 0
      %3497 = vmatprep.subr.bf16.mxu0 0
      %3498 = vmatpush1.bf16.msra.mxu0 0
      %3499 = vmatprep.subr.bf16.mxu0 0
      %3500 = vmatpush1.bf16.msra.mxu0 0
      %3501 = vmatprep.subr.bf16.mxu0 0
      %3502 = vmatpush1.bf16.msra.mxu0 0
      %3503 = vmatprep.subr.bf16.mxu0 0
      %3504 = vmatpush1.bf16.msra.mxu0 0
      %3505 = vmatprep.subr.bf16.mxu0 0
      %3506 = vmatpush1.bf16.msra.mxu0 0
      %3507 = vmatprep.mubr.bf16.mxu0 0
      %3508 = vmatmul.mubr.bf16.gmra.mrb[0].mxu0 %v3473
      %v3509 = vpop.f32.mrb[0].mxu0
      %v3510 = vadd.f32 %v3445, %v3509
      %v3511 = vpop.f32.mrb[0].mxu0
      %v3512 = vpop.f32.mrb[0].mxu0
      %v3513 = vpop.f32.mrb[0].mxu0
      %3514 = vdwg.mxu0
      %v3515 = vld [vmem:[%s22] sm:$0x1]
      %v3516 = vld [vmem:[%s23] sm:$0x1]
      %v3517 = vadd.f32 %v3510, %v3362
      %v3518 = vsel %vm819, %v3517, 0.0
      %3519 = vadd.xlane.f32.xlu0 %v3518
      %v3520 = vpop.xlane.xlu0 %3519
      %v3521 = vmul.f32 %v3520, %v2051
      %v3522 = vsub.f32 %v3517, %v3521
      %v3523 = vmul.f32 %v3522, %v3522
      %v3524 = vsel %vm819, %v3523, 0.0
      %3525 = vadd.xlane.f32.xlu0 %v3524
      %v3526 = vpop.xlane.xlu0 %3525
      %v3527 = vmul.f32 %v3526, %v2051
      %v3528 = vadd.f32 %v3527, 1e-05
      %v3529 = vrsqrt.pop %v3528
      %v3530 = vmul.f32 %v3522, %v3529
      %v3532 = vlaneseq
      %v3533 = vshrl.u32 %v3532, 7
      %v3534 = vsub.s32 0, %v3533
      %v3535 = vrot.slane %v3515, %v3534
      %v3537 = vmul.f32 %v3530, %v3535
      %v3539 = vlaneseq
      %v3540 = vshrl.u32 %v3539, 7
      %v3541 = vsub.s32 0, %v3540
      %v3542 = vrot.slane %v3516, %v3541
      %v3544 = vadd.f32 %v3537, %v3542
      %3545 = vst.msk [vmem:[%s783] sm:$0xff] %vm819, %v3544
      %p3546 = scmp.lt.s32.totalorder %s35, 1
      %s3547 = scalar_select %p3546, %s35, 1
      %s3548 = smul.addr %s3547, 8
      %s3549 = scalar_lea.vmem %s24, %s3548
      // Predicated region
      $region117: #{decoder_forward.3} parent=115 // pred_check
        %p3550 = pneg %p577
      $region118: #{decoder_forward.3} parent=115 // pred_check_branch
        %3552 = sbr.rel (%p3550) target = $region120
      $region119: #{decoder_forward.3} parent=115 // pred_region
        _
      $region120: #{decoder_forward.3} parent=115 // pred_fallthru
        _
    $region116: #{decoder_forward.3} parent=5 // pred_fallthru
      _
    %p3553 = scmp.le.s32.totalorder 2, %s30
    // Predicated region
    $region121: #{decoder_forward.3} parent=5 // pred_check
      %p3554 = pneg %p3553
    $region122: #{decoder_forward.3} parent=5 // pred_check_branch
      %3556 = sbr.rel (%p3554) target = $region124
    $region123: #{decoder_forward.3} parent=5 // pred_region
      %s3557 = ssub.s32 %s30, 2
      // Predicated region
      $region125: #{decoder_forward.3} parent=123 // pred_check
        %p3558 = pneg %p583
      $region126: #{decoder_forward.3} parent=123 // pred_check_branch
        %3560 = sbr.rel (%p3558) target = $region128
      $region127: #{decoder_forward.3} parent=123 // pred_region
        %p3561 = scmp.lt.s32.totalorder %s36, 1
        %s3562 = scalar_select %p3561, %s36, 1
        %s3563 = smul.addr %s3562, 8
        %s3564 = scalar_lea.vmem %s24, %s3563
      $region128: #{decoder_forward.3} parent=123 // pred_fallthru
        _
    $region124: #{decoder_forward.3} parent=5 // pred_fallthru
      _
  $region6: #{decoder_forward.3} parent=0 // loop_footer
    %s34 = sadd.s32 1, %s30
  $region7: #{decoder_forward.3} parent=0 // loop_footer_branch
    %29 = sbr.rel target = $region3
  $region8: #{decoder_forward.3} parent=0 // loop_exit
    _

// kernel: decoder_forward.4
$region0: #{decoder_forward.4}
  #allocation0 [shape = 'u32[]', space=smem, size = 0x4, offset = 0x4, fixed_abs, tag = 'smem constant byte address 0x4 - core index']
  #allocation1 [shape = 'u32[144,128]{1,0:T(1,128)}', space=vmem, size = 0x12000, scoped, tag = 'internal scratch']
  %s0 = inlined_call_operand.vmem [shape: f32[2,8,32], index: 0, kind: input, shape index: {}]
  %s1 = inlined_call_operand.vmem [shape: f32[2,8,32], index: 1, kind: input, shape index: {}]
  %s2 = inlined_call_operand.vmem [shape: f32[2,8,8], index: 2, kind: input, shape index: {}]
  %s3 = inlined_call_operand.vmem [shape: f32[2,8,8], index: 3, kind: input, shape index: {}]
  %s4 = inlined_call_operand.vmem [shape: bf16[32,32], index: 4, kind: input, shape index: {}]
  %s5 = inlined_call_operand.vmem [shape: bf16[32,32], index: 5, kind: input, shape index: {}]
  %s6 = inlined_call_operand.vmem [shape: bf16[32,32], index: 6, kind: input, shape index: {}]
  %s7 = inlined_call_operand.vmem [shape: bf16[4,8,32], index: 7, kind: input, shape index: {}]
  %s8 = inlined_call_operand.vmem [shape: f32[1,32], index: 8, kind: input, shape index: {}]
  %s9 = inlined_call_operand.vmem [shape: f32[1,32], index: 9, kind: input, shape index: {}]
  %s10 = inlined_call_operand.vmem [shape: f32[1,32], index: 10, kind: input, shape index: {}]
  %s11 = inlined_call_operand.vmem [shape: bf16[32,32], index: 11, kind: input, shape index: {}]
  %s12 = inlined_call_operand.vmem [shape: bf16[32,32], index: 12, kind: input, shape index: {}]
  %s13 = inlined_call_operand.vmem [shape: bf16[32,32], index: 13, kind: input, shape index: {}]
  %s14 = inlined_call_operand.vmem [shape: bf16[4,8,32], index: 14, kind: input, shape index: {}]
  %s15 = inlined_call_operand.vmem [shape: f32[1,32], index: 15, kind: input, shape index: {}]
  %s16 = inlined_call_operand.vmem [shape: f32[1,32], index: 16, kind: input, shape index: {}]
  %s17 = inlined_call_operand.vmem [shape: f32[1,32], index: 17, kind: input, shape index: {}]
  %s18 = inlined_call_operand.vmem [shape: bf16[32,64], index: 18, kind: input, shape index: {}]
  %s19 = inlined_call_operand.hbm [shape: f32[1,64], index: 19, kind: input, shape index: {}]
  %s20 = inlined_call_operand.vmem [shape: bf16[64,32], index: 20, kind: input, shape index: {}]
  %s21 = inlined_call_operand.hbm [shape: f32[1,32], index: 21, kind: input, shape index: {}]
  %s22 = inlined_call_operand.hbm [shape: f32[1,32], index: 22, kind: input, shape index: {}]
  %s23 = inlined_call_operand.hbm [shape: f32[1,32], index: 23, kind: input, shape index: {}]
  %s24 = inlined_call_operand.vmem [shape: f32[2,8,32], index: 24, kind: output, shape index: {}]
  %s25 = sld [smem:[#allocation0]]
  $region145: #{decoder_forward.4} parent=0
    _
  %s27 = ssub.s32 1, %s25
  %s28 = scalar_select 0, %s27, %s25
  $region1: #{decoder_forward.4} parent=0
    #allocation2 [shape = 'u8[512]{0}', space=vmem, size = 0x400, scoped, tag = 'input window, operand 19, single buffered']
    #allocation3 [shape = 's32[2]{0}', space=sflag, size = 0x8, scoped, tag = 'scoped memory for decoder_forward.4']
    #allocation4 [shape = 'u8[512]{0}', space=vmem, size = 0x400, scoped, tag = 'input window, operand 21, single buffered']
    #allocation5 [shape = 's32[1]{0}', space=sflag, size = 0x4, scoped, tag = 'scoped memory for decoder_forward.4']
    #allocation6 [shape = 'u8[512]{0}', space=vmem, size = 0x400, scoped, tag = 'input window, operand 22, single buffered']
    #allocation7 [shape = 'u8[512]{0}', space=vmem, size = 0x400, scoped, tag = 'input window, operand 23, single buffered']
    #allocation8 [shape = 's32[1]{0}', space=sflag, size = 0x4, scoped, tag = 'scoped memory for decoder_forward.4']
    %29 = vsyncpa [#allocation3], 0
    %30 = vsyncpa [#allocation5], 0
    %31 = vsyncpa [#allocation8], 0
    loop: start=0, step=1, limit=4
    $region2: #{decoder_forward.4} parent=1 // loop_pre_header
      _
    $region3: #{decoder_forward.4} parent=1 // loop_header
      %s33 = sphi 0, %s37
      %p34 = scmp.ge.s32.totalorder %s33, 4
      %s43 = sphi 0, %s45
      %s46 = sphi 0, %s43
      %s47 = sphi 0, %s46
      %s63 = sphi 0, %s47
      %s69 = sphi 0, %s71
      %s72 = sphi 0, %s69
      %s73 = sphi 0, %s72
      %s89 = sphi 0, %s73
      %s95 = sphi 0, %s97
      %s98 = sphi 0, %s95
      %s99 = sphi 0, %s98
      %s115 = sphi 0, %s99
      %s121 = sphi 0, %s123
      %s124 = sphi 0, %s121
      %s125 = sphi 0, %s124
      %s141 = sphi 0, %s125
      %s145 = sphi 0, %s145
      %s147 = sphi 0, %s145
      %s148 = sphi 0, %s147
      %s162 = sphi 0, %s148
      %s166 = sphi 0, %s166
      %s168 = sphi 0, %s166
      %s169 = sphi 0, %s168
      %s183 = sphi 0, %s169
      %s187 = sphi 0, %s187
      %s189 = sphi 0, %s187
      %s190 = sphi 0, %s189
      %s204 = sphi 0, %s190
      %s208 = sphi 0, %s208
      %s210 = sphi 0, %s208
      %s211 = sphi 0, %s210
      %s225 = sphi 0, %s211
      %s229 = sphi 0, %s229
      %s231 = sphi 0, %s229
      %s232 = sphi 0, %s231
      %s246 = sphi 0, %s232
      %s250 = sphi 0, %s250
      %s252 = sphi 0, %s250
      %s253 = sphi 0, %s252
      %s267 = sphi 0, %s253
      %s271 = sphi 0, %s271
      %s273 = sphi 0, %s271
      %s274 = sphi 0, %s273
      %s288 = sphi 0, %s274
      %s292 = sphi 0, %s292
      %s294 = sphi 0, %s292
      %s295 = sphi 0, %s294
      %s309 = sphi 0, %s295
      %s313 = sphi 0, %s313
      %s315 = sphi 0, %s313
      %s316 = sphi 0, %s315
      %s330 = sphi 0, %s316
      %s334 = sphi 0, %s334
      %s336 = sphi 0, %s334
      %s337 = sphi 0, %s336
      %s351 = sphi 0, %s337
      %s355 = sphi 0, %s355
      %s357 = sphi 0, %s355
      %s358 = sphi 0, %s357
      %s372 = sphi 0, %s358
      %s376 = sphi 0, %s376
      %s378 = sphi 0, %s376
      %s379 = sphi 0, %s378
      %s393 = sphi 0, %s379
      %s397 = sphi 0, %s397
      %s399 = sphi 0, %s397
      %s400 = sphi 0, %s399
      %s414 = sphi 0, %s400
      %s418 = sphi 0, %s418
      %s420 = sphi 0, %s418
      %s421 = sphi 0, %s420
      %s435 = sphi 0, %s421
      %s439 = sphi 0, %s439
      %s441 = sphi 0, %s439
      %s442 = sphi 0, %s441
      %s456 = sphi 0, %s442
      %s460 = sphi 0, %s460
      %s462 = sphi 0, %s460
      %s463 = sphi 0, %s462
      %s477 = sphi 0, %s463
      %s481 = sphi 0, %s481
      %s483 = sphi 0, %s481
      %s484 = sphi 0, %s483
      %s498 = sphi 0, %s484
      %s502 = sphi 0, %s502
      %s504 = sphi 0, %s502
      %s505 = sphi 0, %s504
      %s519 = sphi 0, %s505
      %s523 = sphi 0, %s523
      %s525 = sphi 0, %s523
      %s526 = sphi 0, %s525
      %s540 = sphi 0, %s526
      %s544 = sphi 0, %s544
      %s546 = sphi 0, %s544
      %s547 = sphi 0, %s546
      %s561 = sphi 0, %s547
      %s567 = sphi 0, %s569
      %s570 = sphi 0, %s567
      %s571 = sphi 0, %s570
      %s587 = sphi 0, %s571
    $region4: #{decoder_forward.4} parent=1 // loop_header_branch
      %36 = sbr.rel (%p34) target = $region8
    $region5: #{decoder_forward.4} parent=1 // loop_body
      %s38 = ssub.s32 %s33, 1
      %s39 = ssub.s32 %s33, 2
      %s40 = sadd.s32 %s33, 1
      %s41 = ssub.s32 %s33, %s40
      %p42 = scmp.eq.s32.totalorder %s41, 0
      %s44 = sadd.s32 %s43, 1
      %s45 = scalar_select %p42, %s43, %s44
      %p48 = pneg %p42
      %p49 = scmp.eq.s32.totalorder %s33, 1
      %p50 = por %p48, %p49
      %p51 = scmp.ne.s32.totalorder %s43, %s46
      %p52 = scmp.eq.s32.totalorder %s33, 0
      %p53 = por %p51, %p52
      %p54 = scmp.ne.s32.totalorder %s43, %s46
      %p55 = scmp.eq.s32.totalorder %s38, 1
      %p56 = por %p54, %p55
      %p57 = scmp.ne.s32.totalorder %s46, %s47
      %p58 = scmp.eq.s32.totalorder %s38, 0
      %p59 = por %p57, %p58
      %p60 = scmp.ne.s32.totalorder %s46, %s47
      %p61 = scmp.eq.s32.totalorder %s39, 1
      %p62 = por %p60, %p61
      %p64 = scmp.ne.s32.totalorder %s47, %s63
      %p65 = scmp.eq.s32.totalorder %s39, 0
      %p66 = por %p64, %p65
      %s67 = ssub.s32 %s33, %s40
      %p68 = scmp.eq.s32.totalorder %s67, 0
      %s70 = sadd.s32 %s69, 1
      %s71 = scalar_select %p68, %s69, %s70
      %p74 = pneg %p68
      %p75 = scmp.eq.s32.totalorder %s33, 1
      %p76 = por %p74, %p75
      %p77 = scmp.ne.s32.totalorder %s69, %s72
      %p78 = scmp.eq.s32.totalorder %s33, 0
      %p79 = por %p77, %p78
      %p80 = scmp.ne.s32.totalorder %s69, %s72
      %p81 = scmp.eq.s32.totalorder %s38, 1
      %p82 = por %p80, %p81
      %p83 = scmp.ne.s32.totalorder %s72, %s73
      %p84 = scmp.eq.s32.totalorder %s38, 0
      %p85 = por %p83, %p84
      %p86 = scmp.ne.s32.totalorder %s72, %s73
      %p87 = scmp.eq.s32.totalorder %s39, 1
      %p88 = por %p86, %p87
      %p90 = scmp.ne.s32.totalorder %s73, %s89
      %p91 = scmp.eq.s32.totalorder %s39, 0
      %p92 = por %p90, %p91
      %s93 = ssub.s32 %s33, %s40
      %p94 = scmp.eq.s32.totalorder %s93, 0
      %s96 = sadd.s32 %s95, 1
      %s97 = scalar_select %p94, %s95, %s96
      %p100 = pneg %p94
      %p101 = scmp.eq.s32.totalorder %s33, 1
      %p102 = por %p100, %p101
      %p103 = scmp.ne.s32.totalorder %s95, %s98
      %p104 = scmp.eq.s32.totalorder %s33, 0
      %p105 = por %p103, %p104
      %p106 = scmp.ne.s32.totalorder %s95, %s98
      %p107 = scmp.eq.s32.totalorder %s38, 1
      %p108 = por %p106, %p107
      %p109 = scmp.ne.s32.totalorder %s98, %s99
      %p110 = scmp.eq.s32.totalorder %s38, 0
      %p111 = por %p109, %p110
      %p112 = scmp.ne.s32.totalorder %s98, %s99
      %p113 = scmp.eq.s32.totalorder %s39, 1
      %p114 = por %p112, %p113
      %p116 = scmp.ne.s32.totalorder %s99, %s115
      %p117 = scmp.eq.s32.totalorder %s39, 0
      %p118 = por %p116, %p117
      %s119 = ssub.s32 %s33, %s40
      %p120 = scmp.eq.s32.totalorder %s119, 0
      %s122 = sadd.s32 %s121, 1
      %s123 = scalar_select %p120, %s121, %s122
      %p126 = pneg %p120
      %p127 = scmp.eq.s32.totalorder %s33, 1
      %p128 = por %p126, %p127
      %p129 = scmp.ne.s32.totalorder %s121, %s124
      %p130 = scmp.eq.s32.totalorder %s33, 0
      %p131 = por %p129, %p130
      %p132 = scmp.ne.s32.totalorder %s121, %s124
      %p133 = scmp.eq.s32.totalorder %s38, 1
      %p134 = por %p132, %p133
      %p135 = scmp.ne.s32.totalorder %s124, %s125
      %p136 = scmp.eq.s32.totalorder %s38, 0
      %p137 = por %p135, %p136
      %p138 = scmp.ne.s32.totalorder %s124, %s125
      %p139 = scmp.eq.s32.totalorder %s39, 1
      %p140 = por %p138, %p139
      %p142 = scmp.ne.s32.totalorder %s125, %s141
      %p143 = scmp.eq.s32.totalorder %s39, 0
      %p144 = por %p142, %p143
      %s146 = sadd.s32 %s145, 1
      %p149 = scmp.eq.s32.totalorder %s33, 1
      %p150 = scmp.ne.s32.totalorder %s145, %s147
      %p151 = scmp.eq.s32.totalorder %s33, 0
      %p152 = por %p150, %p151
      %p153 = scmp.ne.s32.totalorder %s145, %s147
      %p154 = scmp.eq.s32.totalorder %s38, 1
      %p155 = por %p153, %p154
      %p156 = scmp.ne.s32.totalorder %s147, %s148
      %p157 = scmp.eq.s32.totalorder %s38, 0
      %p158 = por %p156, %p157
      %p159 = scmp.ne.s32.totalorder %s147, %s148
      %p160 = scmp.eq.s32.totalorder %s39, 1
      %p161 = por %p159, %p160
      %p163 = scmp.ne.s32.totalorder %s148, %s162
      %p164 = scmp.eq.s32.totalorder %s39, 0
      %p165 = por %p163, %p164
      %s167 = sadd.s32 %s166, 1
      %p170 = scmp.eq.s32.totalorder %s33, 1
      %p171 = scmp.ne.s32.totalorder %s166, %s168
      %p172 = scmp.eq.s32.totalorder %s33, 0
      %p173 = por %p171, %p172
      %p174 = scmp.ne.s32.totalorder %s166, %s168
      %p175 = scmp.eq.s32.totalorder %s38, 1
      %p176 = por %p174, %p175
      %p177 = scmp.ne.s32.totalorder %s168, %s169
      %p178 = scmp.eq.s32.totalorder %s38, 0
      %p179 = por %p177, %p178
      %p180 = scmp.ne.s32.totalorder %s168, %s169
      %p181 = scmp.eq.s32.totalorder %s39, 1
      %p182 = por %p180, %p181
      %p184 = scmp.ne.s32.totalorder %s169, %s183
      %p185 = scmp.eq.s32.totalorder %s39, 0
      %p186 = por %p184, %p185
      %s188 = sadd.s32 %s187, 1
      %p191 = scmp.eq.s32.totalorder %s33, 1
      %p192 = scmp.ne.s32.totalorder %s187, %s189
      %p193 = scmp.eq.s32.totalorder %s33, 0
      %p194 = por %p192, %p193
      %p195 = scmp.ne.s32.totalorder %s187, %s189
      %p196 = scmp.eq.s32.totalorder %s38, 1
      %p197 = por %p195, %p196
      %p198 = scmp.ne.s32.totalorder %s189, %s190
      %p199 = scmp.eq.s32.totalorder %s38, 0
      %p200 = por %p198, %p199
      %p201 = scmp.ne.s32.totalorder %s189, %s190
      %p202 = scmp.eq.s32.totalorder %s39, 1
      %p203 = por %p201, %p202
      %p205 = scmp.ne.s32.totalorder %s190, %s204
      %p206 = scmp.eq.s32.totalorder %s39, 0
      %p207 = por %p205, %p206
      %s209 = sadd.s32 %s208, 1
      %p212 = scmp.eq.s32.totalorder %s33, 1
      %p213 = scmp.ne.s32.totalorder %s208, %s210
      %p214 = scmp.eq.s32.totalorder %s33, 0
      %p215 = por %p213, %p214
      %p216 = scmp.ne.s32.totalorder %s208, %s210
      %p217 = scmp.eq.s32.totalorder %s38, 1
      %p218 = por %p216, %p217
      %p219 = scmp.ne.s32.totalorder %s210, %s211
      %p220 = scmp.eq.s32.totalorder %s38, 0
      %p221 = por %p219, %p220
      %p222 = scmp.ne.s32.totalorder %s210, %s211
      %p223 = scmp.eq.s32.totalorder %s39, 1
      %p224 = por %p222, %p223
      %p226 = scmp.ne.s32.totalorder %s211, %s225
      %p227 = scmp.eq.s32.totalorder %s39, 0
      %p228 = por %p226, %p227
      %s230 = sadd.s32 %s229, 1
      %p233 = scmp.eq.s32.totalorder %s33, 1
      %p234 = scmp.ne.s32.totalorder %s229, %s231
      %p235 = scmp.eq.s32.totalorder %s33, 0
      %p236 = por %p234, %p235
      %p237 = scmp.ne.s32.totalorder %s229, %s231
      %p238 = scmp.eq.s32.totalorder %s38, 1
      %p239 = por %p237, %p238
      %p240 = scmp.ne.s32.totalorder %s231, %s232
      %p241 = scmp.eq.s32.totalorder %s38, 0
      %p242 = por %p240, %p241
      %p243 = scmp.ne.s32.totalorder %s231, %s232
      %p244 = scmp.eq.s32.totalorder %s39, 1
      %p245 = por %p243, %p244
      %p247 = scmp.ne.s32.totalorder %s232, %s246
      %p248 = scmp.eq.s32.totalorder %s39, 0
      %p249 = por %p247, %p248
      %s251 = sadd.s32 %s250, 1
      %p254 = scmp.eq.s32.totalorder %s33, 1
      %p255 = scmp.ne.s32.totalorder %s250, %s252
      %p256 = scmp.eq.s32.totalorder %s33, 0
      %p257 = por %p255, %p256
      %p258 = scmp.ne.s32.totalorder %s250, %s252
      %p259 = scmp.eq.s32.totalorder %s38, 1
      %p260 = por %p258, %p259
      %p261 = scmp.ne.s32.totalorder %s252, %s253
      %p262 = scmp.eq.s32.totalorder %s38, 0
      %p263 = por %p261, %p262
      %p264 = scmp.ne.s32.totalorder %s252, %s253
      %p265 = scmp.eq.s32.totalorder %s39, 1
      %p266 = por %p264, %p265
      %p268 = scmp.ne.s32.totalorder %s253, %s267
      %p269 = scmp.eq.s32.totalorder %s39, 0
      %p270 = por %p268, %p269
      %s272 = sadd.s32 %s271, 1
      %p275 = scmp.eq.s32.totalorder %s33, 1
      %p276 = scmp.ne.s32.totalorder %s271, %s273
      %p277 = scmp.eq.s32.totalorder %s33, 0
      %p278 = por %p276, %p277
      %p279 = scmp.ne.s32.totalorder %s271, %s273
      %p280 = scmp.eq.s32.totalorder %s38, 1
      %p281 = por %p279, %p280
      %p282 = scmp.ne.s32.totalorder %s273, %s274
      %p283 = scmp.eq.s32.totalorder %s38, 0
      %p284 = por %p282, %p283
      %p285 = scmp.ne.s32.totalorder %s273, %s274
      %p286 = scmp.eq.s32.totalorder %s39, 1
      %p287 = por %p285, %p286
      %p289 = scmp.ne.s32.totalorder %s274, %s288
      %p290 = scmp.eq.s32.totalorder %s39, 0
      %p291 = por %p289, %p290
      %s293 = sadd.s32 %s292, 1
      %p296 = scmp.eq.s32.totalorder %s33, 1
      %p297 = scmp.ne.s32.totalorder %s292, %s294
      %p298 = scmp.eq.s32.totalorder %s33, 0
      %p299 = por %p297, %p298
      %p300 = scmp.ne.s32.totalorder %s292, %s294
      %p301 = scmp.eq.s32.totalorder %s38, 1
      %p302 = por %p300, %p301
      %p303 = scmp.ne.s32.totalorder %s294, %s295
      %p304 = scmp.eq.s32.totalorder %s38, 0
      %p305 = por %p303, %p304
      %p306 = scmp.ne.s32.totalorder %s294, %s295
      %p307 = scmp.eq.s32.totalorder %s39, 1
      %p308 = por %p306, %p307
      %p310 = scmp.ne.s32.totalorder %s295, %s309
      %p311 = scmp.eq.s32.totalorder %s39, 0
      %p312 = por %p310, %p311
      %s314 = sadd.s32 %s313, 1
      %p317 = scmp.eq.s32.totalorder %s33, 1
      %p318 = scmp.ne.s32.totalorder %s313, %s315
      %p319 = scmp.eq.s32.totalorder %s33, 0
      %p320 = por %p318, %p319
      %p321 = scmp.ne.s32.totalorder %s313, %s315
      %p322 = scmp.eq.s32.totalorder %s38, 1
      %p323 = por %p321, %p322
      %p324 = scmp.ne.s32.totalorder %s315, %s316
      %p325 = scmp.eq.s32.totalorder %s38, 0
      %p326 = por %p324, %p325
      %p327 = scmp.ne.s32.totalorder %s315, %s316
      %p328 = scmp.eq.s32.totalorder %s39, 1
      %p329 = por %p327, %p328
      %p331 = scmp.ne.s32.totalorder %s316, %s330
      %p332 = scmp.eq.s32.totalorder %s39, 0
      %p333 = por %p331, %p332
      %s335 = sadd.s32 %s334, 1
      %p338 = scmp.eq.s32.totalorder %s33, 1
      %p339 = scmp.ne.s32.totalorder %s334, %s336
      %p340 = scmp.eq.s32.totalorder %s33, 0
      %p341 = por %p339, %p340
      %p342 = scmp.ne.s32.totalorder %s334, %s336
      %p343 = scmp.eq.s32.totalorder %s38, 1
      %p344 = por %p342, %p343
      %p345 = scmp.ne.s32.totalorder %s336, %s337
      %p346 = scmp.eq.s32.totalorder %s38, 0
      %p347 = por %p345, %p346
      %p348 = scmp.ne.s32.totalorder %s336, %s337
      %p349 = scmp.eq.s32.totalorder %s39, 1
      %p350 = por %p348, %p349
      %p352 = scmp.ne.s32.totalorder %s337, %s351
      %p353 = scmp.eq.s32.totalorder %s39, 0
      %p354 = por %p352, %p353
      %s356 = sadd.s32 %s355, 1
      %p359 = scmp.eq.s32.totalorder %s33, 1
      %p360 = scmp.ne.s32.totalorder %s355, %s357
      %p361 = scmp.eq.s32.totalorder %s33, 0
      %p362 = por %p360, %p361
      %p363 = scmp.ne.s32.totalorder %s355, %s357
      %p364 = scmp.eq.s32.totalorder %s38, 1
      %p365 = por %p363, %p364
      %p366 = scmp.ne.s32.totalorder %s357, %s358
      %p367 = scmp.eq.s32.totalorder %s38, 0
      %p368 = por %p366, %p367
      %p369 = scmp.ne.s32.totalorder %s357, %s358
      %p370 = scmp.eq.s32.totalorder %s39, 1
      %p371 = por %p369, %p370
      %p373 = scmp.ne.s32.totalorder %s358, %s372
      %p374 = scmp.eq.s32.totalorder %s39, 0
      %p375 = por %p373, %p374
      %s377 = sadd.s32 %s376, 1
      %p380 = scmp.eq.s32.totalorder %s33, 1
      %p381 = scmp.ne.s32.totalorder %s376, %s378
      %p382 = scmp.eq.s32.totalorder %s33, 0
      %p383 = por %p381, %p382
      %p384 = scmp.ne.s32.totalorder %s376, %s378
      %p385 = scmp.eq.s32.totalorder %s38, 1
      %p386 = por %p384, %p385
      %p387 = scmp.ne.s32.totalorder %s378, %s379
      %p388 = scmp.eq.s32.totalorder %s38, 0
      %p389 = por %p387, %p388
      %p390 = scmp.ne.s32.totalorder %s378, %s379
      %p391 = scmp.eq.s32.totalorder %s39, 1
      %p392 = por %p390, %p391
      %p394 = scmp.ne.s32.totalorder %s379, %s393
      %p395 = scmp.eq.s32.totalorder %s39, 0
      %p396 = por %p394, %p395
      %s398 = sadd.s32 %s397, 1
      %p401 = scmp.eq.s32.totalorder %s33, 1
      %p402 = scmp.ne.s32.totalorder %s397, %s399
      %p403 = scmp.eq.s32.totalorder %s33, 0
      %p404 = por %p402, %p403
      %p405 = scmp.ne.s32.totalorder %s397, %s399
      %p406 = scmp.eq.s32.totalorder %s38, 1
      %p407 = por %p405, %p406
      %p408 = scmp.ne.s32.totalorder %s399, %s400
      %p409 = scmp.eq.s32.totalorder %s38, 0
      %p410 = por %p408, %p409
      %p411 = scmp.ne.s32.totalorder %s399, %s400
      %p412 = scmp.eq.s32.totalorder %s39, 1
      %p413 = por %p411, %p412
      %p415 = scmp.ne.s32.totalorder %s400, %s414
      %p416 = scmp.eq.s32.totalorder %s39, 0
      %p417 = por %p415, %p416
      %s419 = sadd.s32 %s418, 1
      %p422 = scmp.eq.s32.totalorder %s33, 1
      %p423 = scmp.ne.s32.totalorder %s418, %s420
      %p424 = scmp.eq.s32.totalorder %s33, 0
      %p425 = por %p423, %p424
      %p426 = scmp.ne.s32.totalorder %s418, %s420
      %p427 = scmp.eq.s32.totalorder %s38, 1
      %p428 = por %p426, %p427
      %p429 = scmp.ne.s32.totalorder %s420, %s421
      %p430 = scmp.eq.s32.totalorder %s38, 0
      %p431 = por %p429, %p430
      %p432 = scmp.ne.s32.totalorder %s420, %s421
      %p433 = scmp.eq.s32.totalorder %s39, 1
      %p434 = por %p432, %p433
      %p436 = scmp.ne.s32.totalorder %s421, %s435
      %p437 = scmp.eq.s32.totalorder %s39, 0
      %p438 = por %p436, %p437
      %s440 = sadd.s32 %s439, 1
      %p443 = scmp.eq.s32.totalorder %s33, 1
      %p444 = scmp.ne.s32.totalorder %s439, %s441
      %p445 = scmp.eq.s32.totalorder %s33, 0
      %p446 = por %p444, %p445
      %p447 = scmp.ne.s32.totalorder %s439, %s441
      %p448 = scmp.eq.s32.totalorder %s38, 1
      %p449 = por %p447, %p448
      %p450 = scmp.ne.s32.totalorder %s441, %s442
      %p451 = scmp.eq.s32.totalorder %s38, 0
      %p452 = por %p450, %p451
      %p453 = scmp.ne.s32.totalorder %s441, %s442
      %p454 = scmp.eq.s32.totalorder %s39, 1
      %p455 = por %p453, %p454
      %p457 = scmp.ne.s32.totalorder %s442, %s456
      %p458 = scmp.eq.s32.totalorder %s39, 0
      %p459 = por %p457, %p458
      %s461 = sadd.s32 %s460, 1
      %p464 = scmp.eq.s32.totalorder %s33, 1
      %p465 = scmp.ne.s32.totalorder %s460, %s462
      %p466 = scmp.eq.s32.totalorder %s33, 0
      %p467 = por %p465, %p466
      %p468 = scmp.ne.s32.totalorder %s460, %s462
      %p469 = scmp.eq.s32.totalorder %s38, 1
      %p470 = por %p468, %p469
      %p471 = scmp.ne.s32.totalorder %s462, %s463
      %p472 = scmp.eq.s32.totalorder %s38, 0
      %p473 = por %p471, %p472
      %p474 = scmp.ne.s32.totalorder %s462, %s463
      %p475 = scmp.eq.s32.totalorder %s39, 1
      %p476 = por %p474, %p475
      %p478 = scmp.ne.s32.totalorder %s463, %s477
      %p479 = scmp.eq.s32.totalorder %s39, 0
      %p480 = por %p478, %p479
      %s482 = sadd.s32 %s481, 1
      %p485 = scmp.eq.s32.totalorder %s33, 1
      %p486 = scmp.ne.s32.totalorder %s481, %s483
      %p487 = scmp.eq.s32.totalorder %s33, 0
      %p488 = por %p486, %p487
      %p489 = scmp.ne.s32.totalorder %s481, %s483
      %p490 = scmp.eq.s32.totalorder %s38, 1
      %p491 = por %p489, %p490
      %p492 = scmp.ne.s32.totalorder %s483, %s484
      %p493 = scmp.eq.s32.totalorder %s38, 0
      %p494 = por %p492, %p493
      %p495 = scmp.ne.s32.totalorder %s483, %s484
      %p496 = scmp.eq.s32.totalorder %s39, 1
      %p497 = por %p495, %p496
      %p499 = scmp.ne.s32.totalorder %s484, %s498
      %p500 = scmp.eq.s32.totalorder %s39, 0
      %p501 = por %p499, %p500
      %s503 = sadd.s32 %s502, 1
      %p506 = scmp.eq.s32.totalorder %s33, 1
      %p507 = scmp.ne.s32.totalorder %s502, %s504
      %p508 = scmp.eq.s32.totalorder %s33, 0
      %p509 = por %p507, %p508
      %p510 = scmp.ne.s32.totalorder %s502, %s504
      %p511 = scmp.eq.s32.totalorder %s38, 1
      %p512 = por %p510, %p511
      %p513 = scmp.ne.s32.totalorder %s504, %s505
      %p514 = scmp.eq.s32.totalorder %s38, 0
      %p515 = por %p513, %p514
      %p516 = scmp.ne.s32.totalorder %s504, %s505
      %p517 = scmp.eq.s32.totalorder %s39, 1
      %p518 = por %p516, %p517
      %p520 = scmp.ne.s32.totalorder %s505, %s519
      %p521 = scmp.eq.s32.totalorder %s39, 0
      %p522 = por %p520, %p521
      %s524 = sadd.s32 %s523, 1
      %p527 = scmp.eq.s32.totalorder %s33, 1
      %p528 = scmp.ne.s32.totalorder %s523, %s525
      %p529 = scmp.eq.s32.totalorder %s33, 0
      %p530 = por %p528, %p529
      %p531 = scmp.ne.s32.totalorder %s523, %s525
      %p532 = scmp.eq.s32.totalorder %s38, 1
      %p533 = por %p531, %p532
      %p534 = scmp.ne.s32.totalorder %s525, %s526
      %p535 = scmp.eq.s32.totalorder %s38, 0
      %p536 = por %p534, %p535
      %p537 = scmp.ne.s32.totalorder %s525, %s526
      %p538 = scmp.eq.s32.totalorder %s39, 1
      %p539 = por %p537, %p538
      %p541 = scmp.ne.s32.totalorder %s526, %s540
      %p542 = scmp.eq.s32.totalorder %s39, 0
      %p543 = por %p541, %p542
      %s545 = sadd.s32 %s544, 1
      %p548 = scmp.eq.s32.totalorder %s33, 1
      %p549 = scmp.ne.s32.totalorder %s544, %s546
      %p550 = scmp.eq.s32.totalorder %s33, 0
      %p551 = por %p549, %p550
      %p552 = scmp.ne.s32.totalorder %s544, %s546
      %p553 = scmp.eq.s32.totalorder %s38, 1
      %p554 = por %p552, %p553
      %p555 = scmp.ne.s32.totalorder %s546, %s547
      %p556 = scmp.eq.s32.totalorder %s38, 0
      %p557 = por %p555, %p556
      %p558 = scmp.ne.s32.totalorder %s546, %s547
      %p559 = scmp.eq.s32.totalorder %s39, 1
      %p560 = por %p558, %p559
      %p562 = scmp.ne.s32.totalorder %s547, %s561
      %p563 = scmp.eq.s32.totalorder %s39, 0
      %p564 = por %p562, %p563
      %s565 = ssub.s32 %s33, %s40
      %p566 = scmp.eq.s32.totalorder %s565, 0
      %s568 = sadd.s32 %s567, 1
      %s569 = scalar_select %p566, %s567, %s568
      %p572 = pneg %p566
      %p573 = scmp.eq.s32.totalorder %s33, 1
      %p574 = por %p572, %p573
      %p575 = scmp.ne.s32.totalorder %s567, %s570
      %p576 = scmp.eq.s32.totalorder %s33, 0
      %p577 = por %p575, %p576
      %p578 = scmp.ne.s32.totalorder %s567, %s570
      %p579 = scmp.eq.s32.totalorder %s38, 1
      %p580 = por %p578, %p579
      %p581 = scmp.ne.s32.totalorder %s570, %s571
      %p582 = scmp.eq.s32.totalorder %s38, 0
      %p583 = por %p581, %p582
      %p584 = scmp.ne.s32.totalorder %s570, %s571
      %p585 = scmp.eq.s32.totalorder %s39, 1
      %p586 = por %p584, %p585
      %p588 = scmp.ne.s32.totalorder %s571, %s587
      %p589 = scmp.eq.s32.totalorder %s39, 0
      %p590 = por %p588, %p589
      %p591 = scmp.le.s32.totalorder 1, %s33
      %p592 = scmp.lt.s32.totalorder %s33, 3
      %p593 = pnand %p591, %p592
      %p594 = pneg %p593
      // Predicated region
      $region9: #{decoder_forward.4} parent=5 // pred_check
        _
      $region10: #{decoder_forward.4} parent=5 // pred_check_branch
        %596 = sbr.rel (%p593) target = $region12
      $region11: #{decoder_forward.4} parent=5 // pred_region
        %s597 = ssub.s32 %s33, 1
        // Predicated region
        $region13: #{decoder_forward.4} parent=11 // pred_check
          %p598 = pneg %p158
        $region14: #{decoder_forward.4} parent=11 // pred_check_branch
          %600 = sbr.rel (%p598) target = $region16
        $region15: #{decoder_forward.4} parent=11 // pred_region
          _
        $region16: #{decoder_forward.4} parent=11 // pred_fallthru
          _
        // Predicated region
        $region17: #{decoder_forward.4} parent=11 // pred_check
          %p601 = pneg %p179
        $region18: #{decoder_forward.4} parent=11 // pred_check_branch
          %603 = sbr.rel (%p601) target = $region20
        $region19: #{decoder_forward.4} parent=11 // pred_region
          _
        $region20: #{decoder_forward.4} parent=11 // pred_fallthru
          _
        // Predicated region
        $region21: #{decoder_forward.4} parent=11 // pred_check
          %p604 = pneg %p200
        $region22: #{decoder_forward.4} parent=11 // pred_check_branch
          %606 = sbr.rel (%p604) target = $region24
        $region23: #{decoder_forward.4} parent=11 // pred_region
          _
        $region24: #{decoder_forward.4} parent=11 // pred_fallthru
          _
        // Predicated region
        $region25: #{decoder_forward.4} parent=11 // pred_check
          %p607 = pneg %p221
        $region26: #{decoder_forward.4} parent=11 // pred_check_branch
          %609 = sbr.rel (%p607) target = $region28
        $region27: #{decoder_forward.4} parent=11 // pred_region
          _
        $region28: #{decoder_forward.4} parent=11 // pred_fallthru
          _
        // Predicated region
        $region29: #{decoder_forward.4} parent=11 // pred_check
          %p610 = pneg %p242
        $region30: #{decoder_forward.4} parent=11 // pred_check_branch
          %612 = sbr.rel (%p610) target = $region32
        $region31: #{decoder_forward.4} parent=11 // pred_region
          _
        $region32: #{decoder_forward.4} parent=11 // pred_fallthru
          _
        // Predicated region
        $region33: #{decoder_forward.4} parent=11 // pred_check
          %p613 = pneg %p263
        $region34: #{decoder_forward.4} parent=11 // pred_check_branch
          %615 = sbr.rel (%p613) target = $region36
        $region35: #{decoder_forward.4} parent=11 // pred_region
          _
        $region36: #{decoder_forward.4} parent=11 // pred_fallthru
          _
        // Predicated region
        $region37: #{decoder_forward.4} parent=11 // pred_check
          %p616 = pneg %p284
        $region38: #{decoder_forward.4} parent=11 // pred_check_branch
          %618 = sbr.rel (%p616) target = $region40
        $region39: #{decoder_forward.4} parent=11 // pred_region
          _
        $region40: #{decoder_forward.4} parent=11 // pred_fallthru
          _
        // Predicated region
        $region41: #{decoder_forward.4} parent=11 // pred_check
          %p619 = pneg %p305
        $region42: #{decoder_forward.4} parent=11 // pred_check_branch
          %621 = sbr.rel (%p619) target = $region44
        $region43: #{decoder_forward.4} parent=11 // pred_region
          _
        $region44: #{decoder_forward.4} parent=11 // pred_fallthru
          _
        // Predicated region
        $region45: #{decoder_forward.4} parent=11 // pred_check
          %p622 = pneg %p326
        $region46: #{decoder_forward.4} parent=11 // pred_check_branch
          %624 = sbr.rel (%p622) target = $region48
        $region47: #{decoder_forward.4} parent=11 // pred_region
          _
        $region48: #{decoder_forward.4} parent=11 // pred_fallthru
          _
        // Predicated region
        $region49: #{decoder_forward.4} parent=11 // pred_check
          %p625 = pneg %p347
        $region50: #{decoder_forward.4} parent=11 // pred_check_branch
          %627 = sbr.rel (%p625) target = $region52
        $region51: #{decoder_forward.4} parent=11 // pred_region
          _
        $region52: #{decoder_forward.4} parent=11 // pred_fallthru
          _
        // Predicated region
        $region53: #{decoder_forward.4} parent=11 // pred_check
          %p628 = pneg %p368
        $region54: #{decoder_forward.4} parent=11 // pred_check_branch
          %630 = sbr.rel (%p628) target = $region56
        $region55: #{decoder_forward.4} parent=11 // pred_region
          _
        $region56: #{decoder_forward.4} parent=11 // pred_fallthru
          _
        // Predicated region
        $region57: #{decoder_forward.4} parent=11 // pred_check
          %p631 = pneg %p389
        $region58: #{decoder_forward.4} parent=11 // pred_check_branch
          %633 = sbr.rel (%p631) target = $region60
        $region59: #{decoder_forward.4} parent=11 // pred_region
          _
        $region60: #{decoder_forward.4} parent=11 // pred_fallthru
          _
        // Predicated region
        $region61: #{decoder_forward.4} parent=11 // pred_check
          %p634 = pneg %p410
        $region62: #{decoder_forward.4} parent=11 // pred_check_branch
          %636 = sbr.rel (%p634) target = $region64
        $region63: #{decoder_forward.4} parent=11 // pred_region
          _
        $region64: #{decoder_forward.4} parent=11 // pred_fallthru
          _
        // Predicated region
        $region65: #{decoder_forward.4} parent=11 // pred_check
          %p637 = pneg %p431
        $region66: #{decoder_forward.4} parent=11 // pred_check_branch
          %639 = sbr.rel (%p637) target = $region68
        $region67: #{decoder_forward.4} parent=11 // pred_region
          _
        $region68: #{decoder_forward.4} parent=11 // pred_fallthru
          _
        // Predicated region
        $region69: #{decoder_forward.4} parent=11 // pred_check
          %p640 = pneg %p452
        $region70: #{decoder_forward.4} parent=11 // pred_check_branch
          %642 = sbr.rel (%p640) target = $region72
        $region71: #{decoder_forward.4} parent=11 // pred_region
          _
        $region72: #{decoder_forward.4} parent=11 // pred_fallthru
          _
        // Predicated region
        $region73: #{decoder_forward.4} parent=11 // pred_check
          %p643 = pneg %p473
        $region74: #{decoder_forward.4} parent=11 // pred_check_branch
          %645 = sbr.rel (%p643) target = $region76
        $region75: #{decoder_forward.4} parent=11 // pred_region
          %s647 = ssub.s32 16, 16
          %648 = vsyncadd [#allocation3], %s647
          %s650 = sshll.u32 [#allocation2], 4
          %s651 = int_to_ptr.vmem [resolvable:$true] %s650
          %653 = dma.hbm_to_vmem [thread:$0]  %s19, 16, %s651, [#allocation3]
        $region76: #{decoder_forward.4} parent=11 // pred_fallthru
          _
        // Predicated region
        $region77: #{decoder_forward.4} parent=11 // pred_check
          %p654 = pneg %p494
        $region78: #{decoder_forward.4} parent=11 // pred_check_branch
          %656 = sbr.rel (%p654) target = $region80
        $region79: #{decoder_forward.4} parent=11 // pred_region
          _
        $region80: #{decoder_forward.4} parent=11 // pred_fallthru
          _
        // Predicated region
        $region81: #{decoder_forward.4} parent=11 // pred_check
          %p657 = pneg %p515
        $region82: #{decoder_forward.4} parent=11 // pred_check_branch
          %659 = sbr.rel (%p657) target = $region84
        $region83: #{decoder_forward.4} parent=11 // pred_region
          %s661 = ssub.s32 16, 16
          %662 = vsyncadd [#allocation5], %s661
          %s664 = sshll.u32 [#allocation4], 4
          %s665 = int_to_ptr.vmem [resolvable:$true] %s664
          %667 = dma.hbm_to_vmem [thread:$0]  %s21, 16, %s665, [#allocation5]
        $region84: #{decoder_forward.4} parent=11 // pred_fallthru
          _
        // Predicated region
        $region85: #{decoder_forward.4} parent=11 // pred_check
          %p668 = pneg %p536
        $region86: #{decoder_forward.4} parent=11 // pred_check_branch
          %670 = sbr.rel (%p668) target = $region88
        $region87: #{decoder_forward.4} parent=11 // pred_region
          %s672 = ssub.s32 16, 16
          %673 = vsyncadd [#allocation5], %s672
          %s675 = sshll.u32 [#allocation6], 4
          %s676 = int_to_ptr.vmem [resolvable:$true] %s675
          %678 = dma.hbm_to_vmem [thread:$0]  %s22, 16, %s676, [#allocation5]
        $region88: #{decoder_forward.4} parent=11 // pred_fallthru
          _
        // Predicated region
        $region89: #{decoder_forward.4} parent=11 // pred_check
          %p679 = pneg %p557
        $region90: #{decoder_forward.4} parent=11 // pred_check_branch
          %681 = sbr.rel (%p679) target = $region92
        $region91: #{decoder_forward.4} parent=11 // pred_region
          %s683 = ssub.s32 16, 16
          %684 = vsyncadd [#allocation8], %s683
          %s686 = sshll.u32 [#allocation7], 4
          %s687 = int_to_ptr.vmem [resolvable:$true] %s686
          %689 = dma.hbm_to_vmem [thread:$0]  %s23, 16, %s687, [#allocation8]
        $region92: #{decoder_forward.4} parent=11 // pred_fallthru
          _
      $region12: #{decoder_forward.4} parent=5 // pred_fallthru
        _
      %p690 = scmp.lt.s32.totalorder %s33, 2
      // Predicated region
      $region93: #{decoder_forward.4} parent=5 // pred_check
        %p691 = pneg %p690
      $region94: #{decoder_forward.4} parent=5 // pred_check_branch
        %693 = sbr.rel (%p691) target = $region96
      $region95: #{decoder_forward.4} parent=5 // pred_region
        // Predicated region
        $region97: #{decoder_forward.4} parent=95 // pred_check
          %p694 = pneg %p53
        $region98: #{decoder_forward.4} parent=95 // pred_check_branch
          %696 = sbr.rel (%p694) target = $region100
        $region99: #{decoder_forward.4} parent=95 // pred_region
          %p697 = scmp.lt.s32.totalorder %s33, 1
          %s698 = scalar_select %p697, %s33, 1
          %s699 = smul.addr %s698, 8
          %s700 = scalar_lea.vmem %s0, %s699
        $region100: #{decoder_forward.4} parent=95 // pred_fallthru
          _
        // Predicated region
        $region101: #{decoder_forward.4} parent=95 // pred_check
          %p701 = pneg %p79
        $region102: #{decoder_forward.4} parent=95 // pred_check_branch
          %703 = sbr.rel (%p701) target = $region104
        $region103: #{decoder_forward.4} parent=95 // pred_region
          %p704 = scmp.lt.s32.totalorder %s33, 1
          %s705 = scalar_select %p704, %s33, 1
          %s706 = smul.addr %s705, 8
          %s707 = scalar_lea.vmem %s1, %s706
        $region104: #{decoder_forward.4} parent=95 // pred_fallthru
          _
        // Predicated region
        $region105: #{decoder_forward.4} parent=95 // pred_check
          %p708 = pneg %p105
        $region106: #{decoder_forward.4} parent=95 // pred_check_branch
          %710 = sbr.rel (%p708) target = $region108
        $region107: #{decoder_forward.4} parent=95 // pred_region
          %p711 = scmp.lt.s32.totalorder %s33, 1
          %s712 = scalar_select %p711, %s33, 1
          %s713 = smul.addr %s712, 8
          %s714 = scalar_lea.vmem %s2, %s713
        $region108: #{decoder_forward.4} parent=95 // pred_fallthru
          _
        // Predicated region
        $region109: #{decoder_forward.4} parent=95 // pred_check
          %p715 = pneg %p131
        $region110: #{decoder_forward.4} parent=95 // pred_check_branch
          %717 = sbr.rel (%p715) target = $region112
        $region111: #{decoder_forward.4} parent=95 // pred_region
          %p718 = scmp.lt.s32.totalorder %s33, 1
          %s719 = scalar_select %p718, %s33, 1
          %s720 = smul.addr %s719, 8
          %s721 = scalar_lea.vmem %s3, %s720
        $region112: #{decoder_forward.4} parent=95 // pred_fallthru
          _
      $region96: #{decoder_forward.4} parent=5 // pred_fallthru
        _
      %p722 = scmp.le.s32.totalorder 1, %s33
      %p723 = scmp.lt.s32.totalorder %s33, 3
      %p724 = pnand %p722, %p723
      %p725 = pneg %p724
      // Predicated region
      $region113: #{decoder_forward.4} parent=5 // pred_check
        _
      $region114: #{decoder_forward.4} parent=5 // pred_check_branch
        %727 = sbr.rel (%p724) target = $region116
      $region115: #{decoder_forward.4} parent=5 // pred_region
        %s728 = ssub.s32 %s33, 1
        // Predicated region
        $region117: #{decoder_forward.4} parent=115 // pred_check
          %p729 = pneg %p473
        $region118: #{decoder_forward.4} parent=115 // pred_check_branch
          %731 = sbr.rel (%p729) target = $region120
        $region119: #{decoder_forward.4} parent=115 // pred_region
          %732 = dma.done [#allocation3], 16
        $region120: #{decoder_forward.4} parent=115 // pred_fallthru
          _
        // Predicated region
        $region121: #{decoder_forward.4} parent=115 // pred_check
          %p733 = pneg %p515
        $region122: #{decoder_forward.4} parent=115 // pred_check_branch
          %735 = sbr.rel (%p733) target = $region124
        $region123: #{decoder_forward.4} parent=115 // pred_region
          %736 = dma.done [#allocation5], 16
        $region124: #{decoder_forward.4} parent=115 // pred_fallthru
          _
        // Predicated region
        $region125: #{decoder_forward.4} parent=115 // pred_check
          %p737 = pneg %p536
        $region126: #{decoder_forward.4} parent=115 // pred_check_branch
          %739 = sbr.rel (%p737) target = $region128
        $region127: #{decoder_forward.4} parent=115 // pred_region
          %740 = dma.done [#allocation5], 16
        $region128: #{decoder_forward.4} parent=115 // pred_fallthru
          _
        // Predicated region
        $region129: #{decoder_forward.4} parent=115 // pred_check
          %p741 = pneg %p557
        $region130: #{decoder_forward.4} parent=115 // pred_check_branch
          %743 = sbr.rel (%p741) target = $region132
        $region131: #{decoder_forward.4} parent=115 // pred_region
          %744 = dma.done [#allocation8], 16
        $region132: #{decoder_forward.4} parent=115 // pred_fallthru
          _
        %p745 = scmp.lt.s32.totalorder %s38, 1
        %s746 = scalar_select %p745, %s38, 1
        %s747 = smul.addr %s746, 8
        %s748 = scalar_lea.vmem %s0, %s747
        %p749 = pneg %p59
        %p750 = pneg %p56
        %p751 = scmp.lt.s32.totalorder %s38, 1
        %s752 = scalar_select %p751, %s38, 1
        %s753 = smul.addr %s752, 8
        %s754 = scalar_lea.vmem %s1, %s753
        %p755 = pneg %p85
        %p756 = pneg %p82
        %p757 = scmp.lt.s32.totalorder %s38, 1
        %s758 = scalar_select %p757, %s38, 1
        %s759 = smul.addr %s758, 8
        %s760 = scalar_lea.vmem %s2, %s759
        %p761 = pneg %p111
        %p762 = pneg %p108
        %p763 = scmp.lt.s32.totalorder %s38, 1
        %s764 = scalar_select %p763, %s38, 1
        %s765 = smul.addr %s764, 8
        %s766 = scalar_lea.vmem %s3, %s765
        %p767 = pneg %p137
        %p768 = pneg %p134
        %p769 = pneg %p158
        %p770 = pneg %p155
        %p771 = pneg %p179
        %p772 = pneg %p176
        %p773 = pneg %p200
        %p774 = pneg %p197
        %p775 = pneg %p221
        %p776 = pneg %p218
        %p777 = pneg %p242
        %p778 = pneg %p239
        %p779 = pneg %p263
        %p780 = pneg %p260
        %p781 = pneg %p284
        %p782 = pneg %p281
        %p783 = pneg %p305
        %p784 = pneg %p302
        %p785 = pneg %p326
        %p786 = pneg %p323
        %p787 = pneg %p347
        %p788 = pneg %p344
        %p789 = pneg %p368
        %p790 = pneg %p365
        %p791 = pneg %p389
        %p792 = pneg %p386
        %p793 = pneg %p410
        %p794 = pneg %p407
        %p795 = pneg %p431
        %p796 = pneg %p428
        %p797 = pneg %p452
        %p798 = pneg %p449
        %p799 = pneg %p473
        %p800 = pneg %p470
        %p801 = pneg %p494
        %p802 = pneg %p491
        %p803 = pneg %p515
        %p804 = pneg %p512
        %p805 = pneg %p536
        %p806 = pneg %p533
        %p807 = pneg %p557
        %p808 = pneg %p554
        %p809 = pneg %p583
        %p810 = pneg %p580
        %p811 = scmp.lt.s32.totalorder %s38, 1
        %s812 = scalar_select %p811, %s38, 1
        %s813 = smul.addr %s812, 8
        %s814 = scalar_lea.vmem %s24, %s813
        %p815 = scmp.lt.s32.totalorder %s38, 1
        %s816 = scalar_select %p815, %s38, 1
        %s817 = smul.addr %s816, 8
        %s818 = scalar_lea.vmem %s0, %s817
        %p819 = scmp.lt.s32.totalorder %s38, 1
        %s820 = scalar_select %p819, %s38, 1
        %s821 = smul.addr %s820, 8
        %s822 = scalar_lea.vmem %s1, %s821
        %p823 = scmp.lt.s32.totalorder %s38, 1
        %s824 = scalar_select %p823, %s38, 1
        %s825 = smul.addr %s824, 8
        %s826 = scalar_lea.vmem %s2, %s825
        %p827 = scmp.lt.s32.totalorder %s38, 1
        %s828 = scalar_select %p827, %s38, 1
        %s829 = smul.addr %s828, 8
        %s830 = scalar_lea.vmem %s3, %s829
        %p831 = scmp.lt.s32.totalorder %s38, 1
        %s832 = scalar_select %p831, %s38, 1
        %s833 = smul.addr %s832, 8
        %s834 = scalar_lea.vmem %s24, %s833
        %v836 = vld [vmem:[%s818] sm:$0xff]
        %v837 = vld [vmem:[%s822] sm:$0xff]
        %v838 = vld [vmem:[%s826] sm:$0xff]
        %v839 = vld [vmem:[%s830] sm:$0xff]
        %v840 = vld [vmem:[%s4] sm:$0xf]
        %v841 = vld [vmem:[%s4 + $0x4] sm:$0xf]
        %v842 = vld [vmem:[%s4 + $0x8] sm:$0xf]
        %v843 = vld [vmem:[%s4 + $0xc] sm:$0xf]
        %v844 = vld [vmem:[%s5] sm:$0xf]
        %v845 = vld [vmem:[%s5 + $0x4] sm:$0xf]
        %v846 = vld [vmem:[%s5 + $0x8] sm:$0xf]
        %v847 = vld [vmem:[%s5 + $0xc] sm:$0xf]
        %v848 = vld [vmem:[%s6] sm:$0xf]
        %v849 = vld [vmem:[%s6 + $0x4] sm:$0xf]
        %v850 = vld [vmem:[%s6 + $0x8] sm:$0xf]
        %v851 = vld [vmem:[%s6 + $0xc] sm:$0xf]
        %v852 = vld [vmem:[%s7] sm:$0xf]
        %v853 = vld [vmem:[%s7 + $0x4] sm:$0xf]
        %v854 = vld [vmem:[%s7 + $0x8] sm:$0xf]
        %v855 = vld [vmem:[%s7 + $0xc] sm:$0xf]
        %v856 = vld [vmem:[%s8] sm:$0x1]
        %v857 = vpack.c.bf16 %v836, %v836
        %v862 = vunpack.c.l.b16 %v840
        %v863 = vunpack.c.l.b16 %v841
        %v864 = vunpack.c.l.b16 %v842
        %v865 = vunpack.c.l.b16 %v843
        %v866 = vpack.c.b16 %v863, %v862
        %v867 = vpack.c.b16 %v865, %v864
        %vm870 = vcmask 261120
        %v872 = vsel %vm870, %v857, 0
        %874 = vmatprep.subr.bf16.mxu0 0
        %875 = vmatpush1.bf16.msra.mxu0 %v866
        %876 = vmatprep.subr.bf16.mxu0 0
        %877 = vmatpush1.bf16.msra.mxu0 %v867
        %878 = vmatprep.subr.bf16.mxu0 0
        %879 = vmatpush1.bf16.msra.mxu0 0
        %880 = vmatprep.subr.bf16.mxu0 0
        %881 = vmatpush1.bf16.msra.mxu0 0
        %882 = vmatprep.subr.bf16.mxu0 0
        %883 = vmatpush1.bf16.msra.mxu0 0
        %884 = vmatprep.subr.bf16.mxu0 0
        %885 = vmatpush1.bf16.msra.mxu0 0
        %886 = vmatprep.subr.bf16.mxu0 0
        %887 = vmatpush1.bf16.msra.mxu0 0
        %888 = vmatprep.subr.bf16.mxu0 0
        %889 = vmatpush1.bf16.msra.mxu0 0
        %890 = vmatprep.subr.bf16.mxu0 0
        %891 = vmatpush1.bf16.msra.mxu0 0
        %892 = vmatprep.subr.bf16.mxu0 0
        %893 = vmatpush1.bf16.msra.mxu0 0
        %894 = vmatprep.subr.bf16.mxu0 0
        %895 = vmatpush1.bf16.msra.mxu0 0
        %896 = vmatprep.subr.bf16.mxu0 0
        %897 = vmatpush1.bf16.msra.mxu0 0
        %898 = vmatprep.subr.bf16.mxu0 0
        %899 = vmatpush1.bf16.msra.mxu0 0
        %900 = vmatprep.subr.bf16.mxu0 0
        %901 = vmatpush1.bf16.msra.mxu0 0
        %902 = vmatprep.subr.bf16.mxu0 0
        %903 = vmatpush1.bf16.msra.mxu0 0
        %904 = vmatprep.subr.bf16.mxu0 0
        %905 = vmatpush1.bf16.msra.mxu0 0
        %906 = vmatprep.mubr.bf16.mxu0 0
        %907 = vmatmul.mubr.bf16.gmra.mrb[0].mxu0 %v872
        %v908 = vpop.f32.mrb[0].mxu0
        %v909 = vadd.f32 0.0, %v908
        %v910 = vpop.f32.mrb[0].mxu0
        %v911 = vpop.f32.mrb[0].mxu0
        %v912 = vpop.f32.mrb[0].mxu0
        %913 = vdwg.mxu0
        %v918 = vunpack.c.l.b16 %v844
        %v919 = vunpack.c.l.b16 %v845
        %v920 = vunpack.c.l.b16 %v846
        %v921 = vunpack.c.l.b16 %v847
        %v922 = vpack.c.b16 %v919, %v918
        %v923 = vpack.c.b16 %v921, %v920
        %926 = vmatprep.subr.bf16.mxu0 0
        %927 = vmatpush1.bf16.msra.mxu0 %v922
        %928 = vmatprep.subr.bf16.mxu0 0
        %929 = vmatpush1.bf16.msra.mxu0 %v923
        %930 = vmatprep.subr.bf16.mxu0 0
        %931 = vmatpush1.bf16.msra.mxu0 0
        %932 = vmatprep.subr.bf16.mxu0 0
        %933 = vmatpush1.bf16.msra.mxu0 0
        %934 = vmatprep.subr.bf16.mxu0 0
        %935 = vmatpush1.bf16.msra.mxu0 0
        %936 = vmatprep.subr.bf16.mxu0 0
        %937 = vmatpush1.bf16.msra.mxu0 0
        %938 = vmatprep.subr.bf16.mxu0 0
        %939 = vmatpush1.bf16.msra.mxu0 0
        %940 = vmatprep.subr.bf16.mxu0 0
        %941 = vmatpush1.bf16.msra.mxu0 0
        %942 = vmatprep.subr.bf16.mxu0 0
        %943 = vmatpush1.bf16.msra.mxu0 0
        %944 = vmatprep.subr.bf16.mxu0 0
        %945 = vmatpush1.bf16.msra.mxu0 0
        %946 = vmatprep.subr.bf16.mxu0 0
        %947 = vmatpush1.bf16.msra.mxu0 0
        %948 = vmatprep.subr.bf16.mxu0 0
        %949 = vmatpush1.bf16.msra.mxu0 0
        %950 = vmatprep.subr.bf16.mxu0 0
        %951 = vmatpush1.bf16.msra.mxu0 0
        %952 = vmatprep.subr.bf16.mxu0 0
        %953 = vmatpush1.bf16.msra.mxu0 0
        %954 = vmatprep.subr.bf16.mxu0 0
        %955 = vmatpush1.bf16.msra.mxu0 0
        %956 = vmatprep.subr.bf16.mxu0 0
        %957 = vmatpush1.bf16.msra.mxu0 0
        %958 = vmatprep.mubr.bf16.mxu0 0
        %959 = vmatmul.mubr.bf16.gmra.mrb[0].mxu0 %v872
        %v960 = vpop.f32.mrb[0].mxu0
        %v961 = vadd.f32 0.0, %v960
        %v962 = vpop.f32.mrb[0].mxu0
        %v963 = vpop.f32.mrb[0].mxu0
        %v964 = vpop.f32.mrb[0].mxu0
        %965 = vdwg.mxu0
        %v970 = vunpack.c.l.b16 %v848
        %v971 = vunpack.c.l.b16 %v849
        %v972 = vunpack.c.l.b16 %v850
        %v973 = vunpack.c.l.b16 %v851
        %v974 = vpack.c.b16 %v971, %v970
        %v975 = vpack.c.b16 %v973, %v972
        %978 = vmatprep.subr.bf16.mxu0 0
        %979 = vmatpush1.bf16.msra.mxu0 %v974
        %980 = vmatprep.subr.bf16.mxu0 0
        %981 = vmatpush1.bf16.msra.mxu0 %v975
        %982 = vmatprep.subr.bf16.mxu0 0
        %983 = vmatpush1.bf16.msra.mxu0 0
        %984 = vmatprep.subr.bf16.mxu0 0
        %985 = vmatpush1.bf16.msra.mxu0 0
        %986 = vmatprep.subr.bf16.mxu0 0
        %987 = vmatpush1.bf16.msra.mxu0 0
        %988 = vmatprep.subr.bf16.mxu0 0
        %989 = vmatpush1.bf16.msra.mxu0 0
        %990 = vmatprep.subr.bf16.mxu0 0
        %991 = vmatpush1.bf16.msra.mxu0 0
        %992 = vmatprep.subr.bf16.mxu0 0
        %993 = vmatpush1.bf16.msra.mxu0 0
        %994 = vmatprep.subr.bf16.mxu0 0
        %995 = vmatpush1.bf16.msra.mxu0 0
        %996 = vmatprep.subr.bf16.mxu0 0
        %997 = vmatpush1.bf16.msra.mxu0 0
        %998 = vmatprep.subr.bf16.mxu0 0
        %999 = vmatpush1.bf16.msra.mxu0 0
        %1000 = vmatprep.subr.bf16.mxu0 0
        %1001 = vmatpush1.bf16.msra.mxu0 0
        %1002 = vmatprep.subr.bf16.mxu0 0
        %1003 = vmatpush1.bf16.msra.mxu0 0
        %1004 = vmatprep.subr.bf16.mxu0 0
        %1005 = vmatpush1.bf16.msra.mxu0 0
        %1006 = vmatprep.subr.bf16.mxu0 0
        %1007 = vmatpush1.bf16.msra.mxu0 0
        %1008 = vmatprep.subr.bf16.mxu0 0
        %1009 = vmatpush1.bf16.msra.mxu0 0
        %1010 = vmatprep.mubr.bf16.mxu0 0
        %1011 = vmatmul.mubr.bf16.gmra.mrb[0].mxu0 %v872
        %v1012 = vpop.f32.mrb[0].mxu0
        %v1013 = vadd.f32 0.0, %v1012
        %v1014 = vpop.f32.mrb[0].mxu0
        %v1015 = vpop.f32.mrb[0].mxu0
        %v1016 = vpop.f32.mrb[0].mxu0
        %1017 = vdwg.mxu0
        %v1018 = vmul.f32 %v1013, 0.17677669
        %1020 = vrot.lane.b32.xlu0 %v1018, 120
        %v1021 = vpop.permute.xlu0 %1020
        %1023 = vrot.lane.b32.xlu0 %v1018, 112
        %v1024 = vpop.permute.xlu0 %1023
        %1026 = vrot.lane.b32.xlu0 %v1018, 104
        %v1027 = vpop.permute.xlu0 %1026
        %v1029 = vcombine.low %v1018, %v1024
        %v1030 = vcombine.high %v1018, %v1024
        %v1032 = vunpack.c.l.s4 1983009808
        %v1033 = vunpack.c.0.s8 %v1032
        %v1034 = vlaneseq
        %v1035 = vshrl.u32 %v1034, 7
        %v1036 = vsub.s32 %v1033, %v1035
        %v1037 = vrot.slane %v1029, %v1036
        %v1039 = vunpack.c.l.s4 1983009808
        %v1040 = vunpack.c.0.s8 %v1039
        %v1041 = vlaneseq
        %v1042 = vshrl.u32 %v1041, 7
        %v1043 = vsub.s32 %v1040, %v1042
        %v1044 = vrot.slane %v1030, %v1043
        %v1045 = vcombine.low %v1021, %v1027
        %v1046 = vcombine.high %v1021, %v1027
        %v1048 = vunpack.c.l.s4 1983009808
        %v1049 = vunpack.c.0.s8 %v1048
        %v1050 = vlaneseq
        %v1051 = vshrl.u32 %v1050, 7
        %v1052 = vsub.s32 %v1049, %v1051
        %v1053 = vrot.slane %v1045, %v1052
        %v1055 = vunpack.c.l.s4 1983009808
        %v1056 = vunpack.c.0.s8 %v1055
        %v1057 = vlaneseq
        %v1058 = vshrl.u32 %v1057, 7
        %v1059 = vsub.s32 %v1056, %v1058
        %v1060 = vrot.slane %v1046, %v1059
        %v1061 = vcombine.low %v1037, %v1053
        %v1062 = vcombine.high %v1037, %v1053
        %v1064 = vunpack.c.l.s4 1934713408
        %v1065 = vunpack.c.0.s8 %v1064
        %v1066 = vlaneseq
        %v1067 = vshrl.u32 %v1066, 7
        %v1068 = vsub.s32 %v1065, %v1067
        %v1069 = vrot.slane %v1061, %v1068
        %v1071 = vunpack.c.l.s4 1934713408
        %v1072 = vunpack.c.0.s8 %v1071
        %v1073 = vlaneseq
        %v1074 = vshrl.u32 %v1073, 7
        %v1075 = vsub.s32 %v1072, %v1074
        %v1076 = vrot.slane %v1062, %v1075
        %v1077 = vcombine.low %v1044, %v1060
        %v1078 = vcombine.high %v1044, %v1060
        %v1080 = vunpack.c.l.s4 1934713408
        %v1081 = vunpack.c.0.s8 %v1080
        %v1082 = vlaneseq
        %v1083 = vshrl.u32 %v1082, 7
        %v1084 = vsub.s32 %v1081, %v1083
        %v1085 = vrot.slane %v1077, %v1084
        %v1087 = vunpack.c.l.s4 1934713408
        %v1088 = vunpack.c.0.s8 %v1087
        %v1089 = vlaneseq
        %v1090 = vshrl.u32 %v1089, 7
        %v1091 = vsub.s32 %v1088, %v1090
        %v1092 = vrot.slane %v1078, %v1091
        %v1093 = vcombine.high %v1069, 0.0
        %v1094 = vcombine.high %v1076, 0.0
        %v1095 = vcombine.high %v1085, 0.0
        %v1096 = vcombine.high %v1092, 0.0
        %v1097 = vcombine.low %v1069, %v1076
        %v1099 = vunpack.c.l.s4 1983009808
        %v1100 = vunpack.c.0.s8 %v1099
        %v1101 = vlaneseq
        %v1102 = vshrl.u32 %v1101, 7
        %v1103 = vsub.s32 %v1100, %v1102
        %v1104 = vrot.slane %v1097, %v1103
        %v1105 = vcombine.low %v1093, %v1094
        %v1107 = vunpack.c.l.s4 1983009808
        %v1108 = vunpack.c.0.s8 %v1107
        %v1109 = vlaneseq
        %v1110 = vshrl.u32 %v1109, 7
        %v1111 = vsub.s32 %v1108, %v1110
        %v1112 = vrot.slane %v1105, %v1111
        %v1113 = vcombine.low %v1085, %v1092
        %v1115 = vunpack.c.l.s4 1983009808
        %v1116 = vunpack.c.0.s8 %v1115
        %v1117 = vlaneseq
        %v1118 = vshrl.u32 %v1117, 7
        %v1119 = vsub.s32 %v1116, %v1118
        %v1120 = vrot.slane %v1113, %v1119
        %v1121 = vcombine.low %v1095, %v1096
        %v1123 = vunpack.c.l.s4 1983009808
        %v1124 = vunpack.c.0.s8 %v1123
        %v1125 = vlaneseq
        %v1126 = vshrl.u32 %v1125, 7
        %v1127 = vsub.s32 %v1124, %v1126
        %v1128 = vrot.slane %v1121, %v1127
        %v1129 = vcombine.low %v1104, %v1112
        %v1130 = vcombine.high %v1104, %v1112
        %v1132 = vunpack.c.l.s4 1934713408
        %v1133 = vunpack.c.0.s8 %v1132
        %v1134 = vlaneseq
        %v1135 = vshrl.u32 %v1134, 7
        %v1136 = vsub.s32 %v1133, %v1135
        %v1137 = vrot.slane %v1129, %v1136
        %v1139 = vunpack.c.l.s4 1934713408
        %v1140 = vunpack.c.0.s8 %v1139
        %v1141 = vlaneseq
        %v1142 = vshrl.u32 %v1141, 7
        %v1143 = vsub.s32 %v1140, %v1142
        %v1144 = vrot.slane %v1130, %v1143
        %v1145 = vcombine.low %v1120, %v1128
        %v1146 = vcombine.high %v1120, %v1128
        %v1148 = vunpack.c.l.s4 1934713408
        %v1149 = vunpack.c.0.s8 %v1148
        %v1150 = vlaneseq
        %v1151 = vshrl.u32 %v1150, 7
        %v1152 = vsub.s32 %v1149, %v1151
        %v1153 = vrot.slane %v1145, %v1152
        %v1155 = vunpack.c.l.s4 1934713408
        %v1156 = vunpack.c.0.s8 %v1155
        %v1157 = vlaneseq
        %v1158 = vshrl.u32 %v1157, 7
        %v1159 = vsub.s32 %v1156, %v1158
        %v1160 = vrot.slane %v1146, %v1159
        %v1161 = vcombine.low %v1137, %v1153
        %v1162 = vcombine.high %v1137, %v1153
        %v1163 = vcombine.low %v1144, %v1160
        %v1164 = vcombine.high %v1144, %v1160
        %v1165 = vpack.c.bf16 %v1161, %v1161
        %v1166 = vpack.c.bf16 %v1162, %v1162
        %v1167 = vpack.c.bf16 %v1163, %v1163
        %v1168 = vpack.c.bf16 %v1164, %v1164
        %1170 = vrot.lane.b32.xlu0 %v961, 120
        %v1171 = vpop.permute.xlu0 %1170
        %1173 = vrot.lane.b32.xlu0 %v961, 112
        %v1174 = vpop.permute.xlu0 %1173
        %1176 = vrot.lane.b32.xlu0 %v961, 104
        %v1177 = vpop.permute.xlu0 %1176
        %v1179 = vcombine.low %v961, %v1174
        %v1180 = vcombine.high %v961, %v1174
        %v1182 = vunpack.c.l.s4 1983009808
        %v1183 = vunpack.c.0.s8 %v1182
        %v1184 = vlaneseq
        %v1185 = vshrl.u32 %v1184, 7
        %v1186 = vsub.s32 %v1183, %v1185
        %v1187 = vrot.slane %v1179, %v1186
        %v1189 = vunpack.c.l.s4 1983009808
        %v1190 = vunpack.c.0.s8 %v1189
        %v1191 = vlaneseq
        %v1192 = vshrl.u32 %v1191, 7
        %v1193 = vsub.s32 %v1190, %v1192
        %v1194 = vrot.slane %v1180, %v1193
        %v1195 = vcombine.low %v1171, %v1177
        %v1196 = vcombine.high %v1171, %v1177
        %v1198 = vunpack.c.l.s4 1983009808
        %v1199 = vunpack.c.0.s8 %v1198
        %v1200 = vlaneseq
        %v1201 = vshrl.u32 %v1200, 7
        %v1202 = vsub.s32 %v1199, %v1201
        %v1203 = vrot.slane %v1195, %v1202
        %v1205 = vunpack.c.l.s4 1983009808
        %v1206 = vunpack.c.0.s8 %v1205
        %v1207 = vlaneseq
        %v1208 = vshrl.u32 %v1207, 7
        %v1209 = vsub.s32 %v1206, %v1208
        %v1210 = vrot.slane %v1196, %v1209
        %v1211 = vcombine.low %v1187, %v1203
        %v1212 = vcombine.high %v1187, %v1203
        %v1214 = vunpack.c.l.s4 1934713408
        %v1215 = vunpack.c.0.s8 %v1214
        %v1216 = vlaneseq
        %v1217 = vshrl.u32 %v1216, 7
        %v1218 = vsub.s32 %v1215, %v1217
        %v1219 = vrot.slane %v1211, %v1218
        %v1221 = vunpack.c.l.s4 1934713408
        %v1222 = vunpack.c.0.s8 %v1221
        %v1223 = vlaneseq
        %v1224 = vshrl.u32 %v1223, 7
        %v1225 = vsub.s32 %v1222, %v1224
        %v1226 = vrot.slane %v1212, %v1225
        %v1227 = vcombine.low %v1194, %v1210
        %v1228 = vcombine.high %v1194, %v1210
        %v1230 = vunpack.c.l.s4 1934713408
        %v1231 = vunpack.c.0.s8 %v1230
        %v1232 = vlaneseq
        %v1233 = vshrl.u32 %v1232, 7
        %v1234 = vsub.s32 %v1231, %v1233
        %v1235 = vrot.slane %v1227, %v1234
        %v1237 = vunpack.c.l.s4 1934713408
        %v1238 = vunpack.c.0.s8 %v1237
        %v1239 = vlaneseq
        %v1240 = vshrl.u32 %v1239, 7
        %v1241 = vsub.s32 %v1238, %v1240
        %v1242 = vrot.slane %v1228, %v1241
        %v1243 = vcombine.high %v1219, 0.0
        %v1244 = vcombine.high %v1226, 0.0
        %v1245 = vcombine.high %v1235, 0.0
        %v1246 = vcombine.high %v1242, 0.0
        %v1247 = vcombine.low %v1219, %v1226
        %v1249 = vunpack.c.l.s4 1983009808
        %v1250 = vunpack.c.0.s8 %v1249
        %v1251 = vlaneseq
        %v1252 = vshrl.u32 %v1251, 7
        %v1253 = vsub.s32 %v1250, %v1252
        %v1254 = vrot.slane %v1247, %v1253
        %v1255 = vcombine.low %v1243, %v1244
        %v1257 = vunpack.c.l.s4 1983009808
        %v1258 = vunpack.c.0.s8 %v1257
        %v1259 = vlaneseq
        %v1260 = vshrl.u32 %v1259, 7
        %v1261 = vsub.s32 %v1258, %v1260
        %v1262 = vrot.slane %v1255, %v1261
        %v1263 = vcombine.low %v1235, %v1242
        %v1265 = vunpack.c.l.s4 1983009808
        %v1266 = vunpack.c.0.s8 %v1265
        %v1267 = vlaneseq
        %v1268 = vshrl.u32 %v1267, 7
        %v1269 = vsub.s32 %v1266, %v1268
        %v1270 = vrot.slane %v1263, %v1269
        %v1271 = vcombine.low %v1245, %v1246
        %v1273 = vunpack.c.l.s4 1983009808
        %v1274 = vunpack.c.0.s8 %v1273
        %v1275 = vlaneseq
        %v1276 = vshrl.u32 %v1275, 7
        %v1277 = vsub.s32 %v1274, %v1276
        %v1278 = vrot.slane %v1271, %v1277
        %v1279 = vcombine.low %v1254, %v1262
        %v1280 = vcombine.high %v1254, %v1262
        %v1282 = vunpack.c.l.s4 1934713408
        %v1283 = vunpack.c.0.s8 %v1282
        %v1284 = vlaneseq
        %v1285 = vshrl.u32 %v1284, 7
        %v1286 = vsub.s32 %v1283, %v1285
        %v1287 = vrot.slane %v1279, %v1286
        %v1289 = vunpack.c.l.s4 1934713408
        %v1290 = vunpack.c.0.s8 %v1289
        %v1291 = vlaneseq
        %v1292 = vshrl.u32 %v1291, 7
        %v1293 = vsub.s32 %v1290, %v1292
        %v1294 = vrot.slane %v1280, %v1293
        %v1295 = vcombine.low %v1270, %v1278
        %v1296 = vcombine.high %v1270, %v1278
        %v1298 = vunpack.c.l.s4 1934713408
        %v1299 = vunpack.c.0.s8 %v1298
        %v1300 = vlaneseq
        %v1301 = vshrl.u32 %v1300, 7
        %v1302 = vsub.s32 %v1299, %v1301
        %v1303 = vrot.slane %v1295, %v1302
        %v1305 = vunpack.c.l.s4 1934713408
        %v1306 = vunpack.c.0.s8 %v1305
        %v1307 = vlaneseq
        %v1308 = vshrl.u32 %v1307, 7
        %v1309 = vsub.s32 %v1306, %v1308
        %v1310 = vrot.slane %v1296, %v1309
        %v1311 = vcombine.low %v1287, %v1303
        %v1312 = vcombine.high %v1287, %v1303
        %v1313 = vcombine.low %v1294, %v1310
        %v1314 = vcombine.high %v1294, %v1310
        %v1315 = vpack.c.bf16 %v1311, %v1311
        %v1316 = vpack.c.bf16 %v1312, %v1312
        %v1317 = vpack.c.bf16 %v1313, %v1313
        %v1318 = vpack.c.bf16 %v1314, %v1314
        %1320 = vrot.lane.b32.xlu0 %v909, 120
        %v1321 = vpop.permute.xlu0 %1320
        %1323 = vrot.lane.b32.xlu0 %v909, 112
        %v1324 = vpop.permute.xlu0 %1323
        %1326 = vrot.lane.b32.xlu0 %v909, 104
        %v1327 = vpop.permute.xlu0 %1326
        %v1329 = vcombine.low %v909, %v1324
        %v1330 = vcombine.high %v909, %v1324
        %v1332 = vunpack.c.l.s4 1983009808
        %v1333 = vunpack.c.0.s8 %v1332
        %v1334 = vlaneseq
        %v1335 = vshrl.u32 %v1334, 7
        %v1336 = vsub.s32 %v1333, %v1335
        %v1337 = vrot.slane %v1329, %v1336
        %v1339 = vunpack.c.l.s4 1983009808
        %v1340 = vunpack.c.0.s8 %v1339
        %v1341 = vlaneseq
        %v1342 = vshrl.u32 %v1341, 7
        %v1343 = vsub.s32 %v1340, %v1342
        %v1344 = vrot.slane %v1330, %v1343
        %v1345 = vcombine.low %v1321, %v1327
        %v1346 = vcombine.high %v1321, %v1327
        %v1348 = vunpack.c.l.s4 1983009808
        %v1349 = vunpack.c.0.s8 %v1348
        %v1350 = vlaneseq
        %v1351 = vshrl.u32 %v1350, 7
        %v1352 = vsub.s32 %v1349, %v1351
        %v1353 = vrot.slane %v1345, %v1352
        %v1355 = vunpack.c.l.s4 1983009808
        %v1356 = vunpack.c.0.s8 %v1355
        %v1357 = vlaneseq
        %v1358 = vshrl.u32 %v1357, 7
        %v1359 = vsub.s32 %v1356, %v1358
        %v1360 = vrot.slane %v1346, %v1359
        %v1361 = vcombine.low %v1337, %v1353
        %v1362 = vcombine.high %v1337, %v1353
        %v1364 = vunpack.c.l.s4 1934713408
        %v1365 = vunpack.c.0.s8 %v1364
        %v1366 = vlaneseq
        %v1367 = vshrl.u32 %v1366, 7
        %v1368 = vsub.s32 %v1365, %v1367
        %v1369 = vrot.slane %v1361, %v1368
        %v1371 = vunpack.c.l.s4 1934713408
        %v1372 = vunpack.c.0.s8 %v1371
        %v1373 = vlaneseq
        %v1374 = vshrl.u32 %v1373, 7
        %v1375 = vsub.s32 %v1372, %v1374
        %v1376 = vrot.slane %v1362, %v1375
        %v1377 = vcombine.low %v1344, %v1360
        %v1378 = vcombine.high %v1344, %v1360
        %v1380 = vunpack.c.l.s4 1934713408
        %v1381 = vunpack.c.0.s8 %v1380
        %v1382 = vlaneseq
        %v1383 = vshrl.u32 %v1382, 7
        %v1384 = vsub.s32 %v1381, %v1383
        %v1385 = vrot.slane %v1377, %v1384
        %v1387 = vunpack.c.l.s4 1934713408
        %v1388 = vunpack.c.0.s8 %v1387
        %v1389 = vlaneseq
        %v1390 = vshrl.u32 %v1389, 7
        %v1391 = vsub.s32 %v1388, %v1390
        %v1392 = vrot.slane %v1378, %v1391
        %v1393 = vcombine.high %v1369, 0.0
        %v1394 = vcombine.high %v1376, 0.0
        %v1395 = vcombine.high %v1385, 0.0
        %v1396 = vcombine.high %v1392, 0.0
        %v1397 = vcombine.low %v1369, %v1376
        %v1399 = vunpack.c.l.s4 1983009808
        %v1400 = vunpack.c.0.s8 %v1399
        %v1401 = vlaneseq
        %v1402 = vshrl.u32 %v1401, 7
        %v1403 = vsub.s32 %v1400, %v1402
        %v1404 = vrot.slane %v1397, %v1403
        %v1405 = vcombine.low %v1393, %v1394
        %v1407 = vunpack.c.l.s4 1983009808
        %v1408 = vunpack.c.0.s8 %v1407
        %v1409 = vlaneseq
        %v1410 = vshrl.u32 %v1409, 7
        %v1411 = vsub.s32 %v1408, %v1410
        %v1412 = vrot.slane %v1405, %v1411
        %v1413 = vcombine.low %v1385, %v1392
        %v1415 = vunpack.c.l.s4 1983009808
        %v1416 = vunpack.c.0.s8 %v1415
        %v1417 = vlaneseq
        %v1418 = vshrl.u32 %v1417, 7
        %v1419 = vsub.s32 %v1416, %v1418
        %v1420 = vrot.slane %v1413, %v1419
        %v1421 = vcombine.low %v1395, %v1396
        %v1423 = vunpack.c.l.s4 1983009808
        %v1424 = vunpack.c.0.s8 %v1423
        %v1425 = vlaneseq
        %v1426 = vshrl.u32 %v1425, 7
        %v1427 = vsub.s32 %v1424, %v1426
        %v1428 = vrot.slane %v1421, %v1427
        %v1429 = vcombine.low %v1404, %v1412
        %v1430 = vcombine.high %v1404, %v1412
        %v1432 = vunpack.c.l.s4 1934713408
        %v1433 = vunpack.c.0.s8 %v1432
        %v1434 = vlaneseq
        %v1435 = vshrl.u32 %v1434, 7
        %v1436 = vsub.s32 %v1433, %v1435
        %v1437 = vrot.slane %v1429, %v1436
        %v1439 = vunpack.c.l.s4 1934713408
        %v1440 = vunpack.c.0.s8 %v1439
        %v1441 = vlaneseq
        %v1442 = vshrl.u32 %v1441, 7
        %v1443 = vsub.s32 %v1440, %v1442
        %v1444 = vrot.slane %v1430, %v1443
        %v1445 = vcombine.low %v1420, %v1428
        %v1446 = vcombine.high %v1420, %v1428
        %v1448 = vunpack.c.l.s4 1934713408
        %v1449 = vunpack.c.0.s8 %v1448
        %v1450 = vlaneseq
        %v1451 = vshrl.u32 %v1450, 7
        %v1452 = vsub.s32 %v1449, %v1451
        %v1453 = vrot.slane %v1445, %v1452
        %v1455 = vunpack.c.l.s4 1934713408
        %v1456 = vunpack.c.0.s8 %v1455
        %v1457 = vlaneseq
        %v1458 = vshrl.u32 %v1457, 7
        %v1459 = vsub.s32 %v1456, %v1458
        %v1460 = vrot.slane %v1446, %v1459
        %v1461 = vcombine.low %v1437, %v1453
        %v1462 = vcombine.high %v1437, %v1453
        %v1463 = vcombine.low %v1444, %v1460
        %v1464 = vcombine.high %v1444, %v1460
        %v1465 = vpack.c.bf16 %v1461, %v1461
        %v1466 = vpack.c.bf16 %v1462, %v1462
        %v1467 = vpack.c.bf16 %v1463, %v1463
        %v1468 = vpack.c.bf16 %v1464, %v1464
        %vm1469 = vcmask 64512
        %v1471 = vsel %vm1469, %v1165, 0
        %v1474 = vsel %vm1469, %v1315, 0
        %1476 = vmatprep.subr.bf16.mxu0 0
        %1477 = vmatpush1.bf16.xpose.msra.mxu0 %v1474
        %1478 = vmatprep.subr.bf16.mxu0 0
        %1479 = vmatpush1.bf16.xpose.msra.mxu0 0
        %1480 = vmatprep.subr.bf16.mxu0 0
        %1481 = vmatpush1.bf16.xpose.msra.mxu0 0
        %1482 = vmatprep.subr.bf16.mxu0 0
        %1483 = vmatpush1.bf16.xpose.msra.mxu0 0
        %1484 = vmatprep.subr.bf16.mxu0 0
        %1485 = vmatpush1.bf16.xpose.msra.mxu0 0
        %1486 = vmatprep.subr.bf16.mxu0 0
        %1487 = vmatpush1.bf16.xpose.msra.mxu0 0
        %1488 = vmatprep.subr.bf16.mxu0 0
        %1489 = vmatpush1.bf16.xpose.msra.mxu0 0
        %1490 = vmatprep.subr.bf16.mxu0 0
        %1491 = vmatpush1.bf16.xpose.msra.mxu0 0
        %1492 = vmatprep.subr.bf16.mxu0 0
        %1493 = vmatpush1.bf16.xpose.msra.mxu0 0
        %1494 = vmatprep.subr.bf16.mxu0 0
        %1495 = vmatpush1.bf16.xpose.msra.mxu0 0
        %1496 = vmatprep.subr.bf16.mxu0 0
        %1497 = vmatpush1.bf16.xpose.msra.mxu0 0
        %1498 = vmatprep.subr.bf16.mxu0 0
        %1499 = vmatpush1.bf16.xpose.msra.mxu0 0
        %1500 = vmatprep.subr.bf16.mxu0 0
        %1501 = vmatpush1.bf16.xpose.msra.mxu0 0
        %1502 = vmatprep.subr.bf16.mxu0 0
        %1503 = vmatpush1.bf16.xpose.msra.mxu0 0
        %1504 = vmatprep.subr.bf16.mxu0 0
        %1505 = vmatpush1.bf16.xpose.msra.mxu0 0
        %1506 = vmatprep.subr.bf16.mxu0 0
        %1507 = vmatpush1.bf16.xpose.msra.mxu0 0
        %1508 = vmatprep.mubr.bf16.mxu0 0
        %1509 = vmatmul.mubr.bf16.gmra.mrb[0].mxu0 %v1471
        %v1510 = vpop.f32.mrb[0].mxu0
        %v1511 = vadd.f32 0.0, %v1510
        %v1512 = vpop.f32.mrb[0].mxu0
        %v1513 = vpop.f32.mrb[0].mxu0
        %v1514 = vpop.f32.mrb[0].mxu0
        %1515 = vdwg.mxu0
        %v1517 = vsel %vm1469, %v1166, 0
        %v1520 = vsel %vm1469, %v1316, 0
        %1522 = vmatprep.subr.bf16.mxu0 0
        %1523 = vmatpush1.bf16.xpose.msra.mxu0 %v1520
        %1524 = vmatprep.subr.bf16.mxu0 0
        %1525 = vmatpush1.bf16.xpose.msra.mxu0 0
        %1526 = vmatprep.subr.bf16.mxu0 0
        %1527 = vmatpush1.bf16.xpose.msra.mxu0 0
        %1528 = vmatprep.subr.bf16.mxu0 0
        %1529 = vmatpush1.bf16.xpose.msra.mxu0 0
        %1530 = vmatprep.subr.bf16.mxu0 0
        %1531 = vmatpush1.bf16.xpose.msra.mxu0 0
        %1532 = vmatprep.subr.bf16.mxu0 0
        %1533 = vmatpush1.bf16.xpose.msra.mxu0 0
        %1534 = vmatprep.subr.bf16.mxu0 0
        %1535 = vmatpush1.bf16.xpose.msra.mxu0 0
        %1536 = vmatprep.subr.bf16.mxu0 0
        %1537 = vmatpush1.bf16.xpose.msra.mxu0 0
        %1538 = vmatprep.subr.bf16.mxu0 0
        %1539 = vmatpush1.bf16.xpose.msra.mxu0 0
        %1540 = vmatprep.subr.bf16.mxu0 0
        %1541 = vmatpush1.bf16.xpose.msra.mxu0 0
        %1542 = vmatprep.subr.bf16.mxu0 0
        %1543 = vmatpush1.bf16.xpose.msra.mxu0 0
        %1544 = vmatprep.subr.bf16.mxu0 0
        %1545 = vmatpush1.bf16.xpose.msra.mxu0 0
        %1546 = vmatprep.subr.bf16.mxu0 0
        %1547 = vmatpush1.bf16.xpose.msra.mxu0 0
        %1548 = vmatprep.subr.bf16.mxu0 0
        %1549 = vmatpush1.bf16.xpose.msra.mxu0 0
        %1550 = vmatprep.subr.bf16.mxu0 0
        %1551 = vmatpush1.bf16.xpose.msra.mxu0 0
        %1552 = vmatprep.subr.bf16.mxu0 0
        %1553 = vmatpush1.bf16.xpose.msra.mxu0 0
        %1554 = vmatprep.mubr.bf16.mxu0 0
        %1555 = vmatmul.mubr.bf16.gmra.mrb[0].mxu0 %v1517
        %v1556 = vpop.f32.mrb[0].mxu0
        %v1557 = vadd.f32 0.0, %v1556
        %v1558 = vpop.f32.mrb[0].mxu0
        %v1559 = vpop.f32.mrb[0].mxu0
        %v1560 = vpop.f32.mrb[0].mxu0
        %1561 = vdwg.mxu0
        %v1563 = vsel %vm1469, %v1167, 0
        %v1566 = vsel %vm1469, %v1317, 0
        %1568 = vmatprep.subr.bf16.mxu0 0
        %1569 = vmatpush1.bf16.xpose.msra.mxu0 %v1566
        %1570 = vmatprep.subr.bf16.mxu0 0
        %1571 = vmatpush1.bf16.xpose.msra.mxu0 0
        %1572 = vmatprep.subr.bf16.mxu0 0
        %1573 = vmatpush1.bf16.xpose.msra.mxu0 0
        %1574 = vmatprep.subr.bf16.mxu0 0
        %1575 = vmatpush1.bf16.xpose.msra.mxu0 0
        %1576 = vmatprep.subr.bf16.mxu0 0
        %1577 = vmatpush1.bf16.xpose.msra.mxu0 0
        %1578 = vmatprep.subr.bf16.mxu0 0
        %1579 = vmatpush1.bf16.xpose.msra.mxu0 0
        %1580 = vmatprep.subr.bf16.mxu0 0
        %1581 = vmatpush1.bf16.xpose.msra.mxu0 0
        %1582 = vmatprep.subr.bf16.mxu0 0
        %1583 = vmatpush1.bf16.xpose.msra.mxu0 0
        %1584 = vmatprep.subr.bf16.mxu0 0
        %1585 = vmatpush1.bf16.xpose.msra.mxu0 0
        %1586 = vmatprep.subr.bf16.mxu0 0
        %1587 = vmatpush1.bf16.xpose.msra.mxu0 0
        %1588 = vmatprep.subr.bf16.mxu0 0
        %1589 = vmatpush1.bf16.xpose.msra.mxu0 0
        %1590 = vmatprep.subr.bf16.mxu0 0
        %1591 = vmatpush1.bf16.xpose.msra.mxu0 0
        %1592 = vmatprep.subr.bf16.mxu0 0
        %1593 = vmatpush1.bf16.xpose.msra.mxu0 0
        %1594 = vmatprep.subr.bf16.mxu0 0
        %1595 = vmatpush1.bf16.xpose.msra.mxu0 0
        %1596 = vmatprep.subr.bf16.mxu0 0
        %1597 = vmatpush1.bf16.xpose.msra.mxu0 0
        %1598 = vmatprep.subr.bf16.mxu0 0
        %1599 = vmatpush1.bf16.xpose.msra.mxu0 0
        %1600 = vmatprep.mubr.bf16.mxu0 0
        %1601 = vmatmul.mubr.bf16.gmra.mrb[0].mxu0 %v1563
        %v1602 = vpop.f32.mrb[0].mxu0
        %v1603 = vadd.f32 0.0, %v1602
        %v1604 = vpop.f32.mrb[0].mxu0
        %v1605 = vpop.f32.mrb[0].mxu0
        %v1606 = vpop.f32.mrb[0].mxu0
        %1607 = vdwg.mxu0
        %v1609 = vsel %vm1469, %v1168, 0
        %v1612 = vsel %vm1469, %v1318, 0
        %1614 = vmatprep.subr.bf16.mxu0 0
        %1615 = vmatpush1.bf16.xpose.msra.mxu0 %v1612
        %1616 = vmatprep.subr.bf16.mxu0 0
        %1617 = vmatpush1.bf16.xpose.msra.mxu0 0
        %1618 = vmatprep.subr.bf16.mxu0 0
        %1619 = vmatpush1.bf16.xpose.msra.mxu0 0
        %1620 = vmatprep.subr.bf16.mxu0 0
        %1621 = vmatpush1.bf16.xpose.msra.mxu0 0
        %1622 = vmatprep.subr.bf16.mxu0 0
        %1623 = vmatpush1.bf16.xpose.msra.mxu0 0
        %1624 = vmatprep.subr.bf16.mxu0 0
        %1625 = vmatpush1.bf16.xpose.msra.mxu0 0
        %1626 = vmatprep.subr.bf16.mxu0 0
        %1627 = vmatpush1.bf16.xpose.msra.mxu0 0
        %1628 = vmatprep.subr.bf16.mxu0 0
        %1629 = vmatpush1.bf16.xpose.msra.mxu0 0
        %1630 = vmatprep.subr.bf16.mxu0 0
        %1631 = vmatpush1.bf16.xpose.msra.mxu0 0
        %1632 = vmatprep.subr.bf16.mxu0 0
        %1633 = vmatpush1.bf16.xpose.msra.mxu0 0
        %1634 = vmatprep.subr.bf16.mxu0 0
        %1635 = vmatpush1.bf16.xpose.msra.mxu0 0
        %1636 = vmatprep.subr.bf16.mxu0 0
        %1637 = vmatpush1.bf16.xpose.msra.mxu0 0
        %1638 = vmatprep.subr.bf16.mxu0 0
        %1639 = vmatpush1.bf16.xpose.msra.mxu0 0
        %1640 = vmatprep.subr.bf16.mxu0 0
        %1641 = vmatpush1.bf16.xpose.msra.mxu0 0
        %1642 = vmatprep.subr.bf16.mxu0 0
        %1643 = vmatpush1.bf16.xpose.msra.mxu0 0
        %1644 = vmatprep.subr.bf16.mxu0 0
        %1645 = vmatpush1.bf16.xpose.msra.mxu0 0
        %1646 = vmatprep.mubr.bf16.mxu0 0
        %1647 = vmatmul.mubr.bf16.gmra.mrb[0].mxu0 %v1609
        %v1648 = vpop.f32.mrb[0].mxu0
        %v1649 = vadd.f32 0.0, %v1648
        %v1650 = vpop.f32.mrb[0].mxu0
        %v1651 = vpop.f32.mrb[0].mxu0
        %v1652 = vpop.f32.mrb[0].mxu0
        %1653 = vdwg.mxu0
        %vm1654 = vcmp.eq.f32.partialorder %v838, 0.0
        %v1655 = vsel %vm1654, 1, 0
        %vm1656 = vcmp.eq.s32.totalorder %v1655, 1
        %v1657 = vsel %vm1656, -1e+20, %v1511
        %v1658 = vsel %vm1656, -1e+20, %v1557
        %v1659 = vsel %vm1656, -1e+20, %v1603
        %v1660 = vsel %vm1656, -1e+20, %v1649
        %v1661 = vsel %vm1469, %v1657, -inf
        %1662 = vmax.xlane.f32.xlu0 %v1661
        %v1663 = vpop.xlane.xlu0 %1662
        %v1664 = vsel %vm1469, %v1658, -inf
        %1665 = vmax.xlane.f32.xlu0 %v1664
        %v1666 = vpop.xlane.xlu0 %1665
        %v1667 = vsel %vm1469, %v1659, -inf
        %1668 = vmax.xlane.f32.xlu0 %v1667
        %v1669 = vpop.xlane.xlu0 %1668
        %v1670 = vsel %vm1469, %v1660, -inf
        %1671 = vmax.xlane.f32.xlu0 %v1670
        %v1672 = vpop.xlane.xlu0 %1671
        %v1673 = vsub.f32 %v1657, %v1663
        %v1674 = vsub.f32 %v1658, %v1666
        %v1675 = vsub.f32 %v1659, %v1669
        %v1676 = vsub.f32 %v1660, %v1672
        %v1677 = vmul.f32 %v1673, 1.442695
        %v1678 = vpow.pop %v1677
        %v1679 = vmul.f32 %v1674, 1.442695
        %v1680 = vpow.pop %v1679
        %v1681 = vmul.f32 %v1675, 1.442695
        %v1682 = vpow.pop %v1681
        %v1683 = vmul.f32 %v1676, 1.442695
        %v1684 = vpow.pop %v1683
        %v1685 = vsel %vm1469, %v1678, 0.0
        %1686 = vadd.xlane.f32.xlu0 %v1685
        %v1687 = vpop.xlane.xlu0 %1686
        %v1688 = vsel %vm1469, %v1680, 0.0
        %1689 = vadd.xlane.f32.xlu0 %v1688
        %v1690 = vpop.xlane.xlu0 %1689
        %v1691 = vsel %vm1469, %v1682, 0.0
        %1692 = vadd.xlane.f32.xlu0 %v1691
        %v1693 = vpop.xlane.xlu0 %1692
        %v1694 = vsel %vm1469, %v1684, 0.0
        %1695 = vadd.xlane.f32.xlu0 %v1694
        %v1696 = vpop.xlane.xlu0 %1695
        %v1697 = vrcp.pop %v1687
        %v1698 = vrcp.pop %v1690
        %v1699 = vrcp.pop %v1693
        %v1700 = vrcp.pop %v1696
        %v1701 = vmul.f32 %v1678, %v1697
        %v1702 = vmul.f32 %v1680, %v1698
        %v1703 = vmul.f32 %v1682, %v1699
        %v1704 = vmul.f32 %v1684, %v1700
        %v1705 = vpack.c.bf16 %v1701, %v1701
        %v1706 = vpack.c.bf16 %v1702, %v1702
        %v1707 = vpack.c.bf16 %v1703, %v1703
        %v1708 = vpack.c.bf16 %v1704, %v1704
        %v1710 = vsel %vm1469, %v1705, 0
        %vm1712 = vcmask 1043456
        %v1714 = vsel %vm1712, %v1465, 0
        %1716 = vmatprep.subr.bf16.mxu0 0
        %1717 = vmatpush1.bf16.msra.mxu0 %v1714
        %1718 = vmatprep.subr.bf16.mxu0 0
        %1719 = vmatpush1.bf16.msra.mxu0 0
        %1720 = vmatprep.subr.bf16.mxu0 0
        %1721 = vmatpush1.bf16.msra.mxu0 0
        %1722 = vmatprep.subr.bf16.mxu0 0
        %1723 = vmatpush1.bf16.msra.mxu0 0
        %1724 = vmatprep.subr.bf16.mxu0 0
        %1725 = vmatpush1.bf16.msra.mxu0 0
        %1726 = vmatprep.subr.bf16.mxu0 0
        %1727 = vmatpush1.bf16.msra.mxu0 0
        %1728 = vmatprep.subr.bf16.mxu0 0
        %1729 = vmatpush1.bf16.msra.mxu0 0
        %1730 = vmatprep.subr.bf16.mxu0 0
        %1731 = vmatpush1.bf16.msra.mxu0 0
        %1732 = vmatprep.subr.bf16.mxu0 0
        %1733 = vmatpush1.bf16.msra.mxu0 0
        %1734 = vmatprep.subr.bf16.mxu0 0
        %1735 = vmatpush1.bf16.msra.mxu0 0
        %1736 = vmatprep.subr.bf16.mxu0 0
        %1737 = vmatpush1.bf16.msra.mxu0 0
        %1738 = vmatprep.subr.bf16.mxu0 0
        %1739 = vmatpush1.bf16.msra.mxu0 0
        %1740 = vmatprep.subr.bf16.mxu0 0
        %1741 = vmatpush1.bf16.msra.mxu0 0
        %1742 = vmatprep.subr.bf16.mxu0 0
        %1743 = vmatpush1.bf16.msra.mxu0 0
        %1744 = vmatprep.subr.bf16.mxu0 0
        %1745 = vmatpush1.bf16.msra.mxu0 0
        %1746 = vmatprep.subr.bf16.mxu0 0
        %1747 = vmatpush1.bf16.msra.mxu0 0
        %1748 = vmatprep.mubr.bf16.mxu0 0
        %1749 = vmatmul.mubr.bf16.gmra.mrb[0].mxu0 %v1710
        %v1750 = vpop.f32.mrb[0].mxu0
        %v1751 = vadd.f32 0.0, %v1750
        %v1752 = vpop.f32.mrb[0].mxu0
        %v1753 = vpop.f32.mrb[0].mxu0
        %v1754 = vpop.f32.mrb[0].mxu0
        %1755 = vdwg.mxu0
        %v1757 = vsel %vm1469, %v1706, 0
        %v1760 = vsel %vm1712, %v1466, 0
        %1762 = vmatprep.subr.bf16.mxu0 0
        %1763 = vmatpush1.bf16.msra.mxu0 %v1760
        %1764 = vmatprep.subr.bf16.mxu0 0
        %1765 = vmatpush1.bf16.msra.mxu0 0
        %1766 = vmatprep.subr.bf16.mxu0 0
        %1767 = vmatpush1.bf16.msra.mxu0 0
        %1768 = vmatprep.subr.bf16.mxu0 0
        %1769 = vmatpush1.bf16.msra.mxu0 0
        %1770 = vmatprep.subr.bf16.mxu0 0
        %1771 = vmatpush1.bf16.msra.mxu0 0
        %1772 = vmatprep.subr.bf16.mxu0 0
        %1773 = vmatpush1.bf16.msra.mxu0 0
        %1774 = vmatprep.subr.bf16.mxu0 0
        %1775 = vmatpush1.bf16.msra.mxu0 0
        %1776 = vmatprep.subr.bf16.mxu0 0
        %1777 = vmatpush1.bf16.msra.mxu0 0
        %1778 = vmatprep.subr.bf16.mxu0 0
        %1779 = vmatpush1.bf16.msra.mxu0 0
        %1780 = vmatprep.subr.bf16.mxu0 0
        %1781 = vmatpush1.bf16.msra.mxu0 0
        %1782 = vmatprep.subr.bf16.mxu0 0
        %1783 = vmatpush1.bf16.msra.mxu0 0
        %1784 = vmatprep.subr.bf16.mxu0 0
        %1785 = vmatpush1.bf16.msra.mxu0 0
        %1786 = vmatprep.subr.bf16.mxu0 0
        %1787 = vmatpush1.bf16.msra.mxu0 0
        %1788 = vmatprep.subr.bf16.mxu0 0
        %1789 = vmatpush1.bf16.msra.mxu0 0
        %1790 = vmatprep.subr.bf16.mxu0 0
        %1791 = vmatpush1.bf16.msra.mxu0 0
        %1792 = vmatprep.subr.bf16.mxu0 0
        %1793 = vmatpush1.bf16.msra.mxu0 0
        %1794 = vmatprep.mubr.bf16.mxu0 0
        %1795 = vmatmul.mubr.bf16.gmra.mrb[0].mxu0 %v1757
        %v1796 = vpop.f32.mrb[0].mxu0
        %v1797 = vadd.f32 0.0, %v1796
        %v1798 = vpop.f32.mrb[0].mxu0
        %v1799 = vpop.f32.mrb[0].mxu0
        %v1800 = vpop.f32.mrb[0].mxu0
        %1801 = vdwg.mxu0
        %v1803 = vsel %vm1469, %v1707, 0
        %v1806 = vsel %vm1712, %v1467, 0
        %1808 = vmatprep.subr.bf16.mxu0 0
        %1809 = vmatpush1.bf16.msra.mxu0 %v1806
        %1810 = vmatprep.subr.bf16.mxu0 0
        %1811 = vmatpush1.bf16.msra.mxu0 0
        %1812 = vmatprep.subr.bf16.mxu0 0
        %1813 = vmatpush1.bf16.msra.mxu0 0
        %1814 = vmatprep.subr.bf16.mxu0 0
        %1815 = vmatpush1.bf16.msra.mxu0 0
        %1816 = vmatprep.subr.bf16.mxu0 0
        %1817 = vmatpush1.bf16.msra.mxu0 0
        %1818 = vmatprep.subr.bf16.mxu0 0
        %1819 = vmatpush1.bf16.msra.mxu0 0
        %1820 = vmatprep.subr.bf16.mxu0 0
        %1821 = vmatpush1.bf16.msra.mxu0 0
        %1822 = vmatprep.subr.bf16.mxu0 0
        %1823 = vmatpush1.bf16.msra.mxu0 0
        %1824 = vmatprep.subr.bf16.mxu0 0
        %1825 = vmatpush1.bf16.msra.mxu0 0
        %1826 = vmatprep.subr.bf16.mxu0 0
        %1827 = vmatpush1.bf16.msra.mxu0 0
        %1828 = vmatprep.subr.bf16.mxu0 0
        %1829 = vmatpush1.bf16.msra.mxu0 0
        %1830 = vmatprep.subr.bf16.mxu0 0
        %1831 = vmatpush1.bf16.msra.mxu0 0
        %1832 = vmatprep.subr.bf16.mxu0 0
        %1833 = vmatpush1.bf16.msra.mxu0 0
        %1834 = vmatprep.subr.bf16.mxu0 0
        %1835 = vmatpush1.bf16.msra.mxu0 0
        %1836 = vmatprep.subr.bf16.mxu0 0
        %1837 = vmatpush1.bf16.msra.mxu0 0
        %1838 = vmatprep.subr.bf16.mxu0 0
        %1839 = vmatpush1.bf16.msra.mxu0 0
        %1840 = vmatprep.mubr.bf16.mxu0 0
        %1841 = vmatmul.mubr.bf16.gmra.mrb[0].mxu0 %v1803
        %v1842 = vpop.f32.mrb[0].mxu0
        %v1843 = vadd.f32 0.0, %v1842
        %v1844 = vpop.f32.mrb[0].mxu0
        %v1845 = vpop.f32.mrb[0].mxu0
        %v1846 = vpop.f32.mrb[0].mxu0
        %1847 = vdwg.mxu0
        %v1849 = vsel %vm1469, %v1708, 0
        %v1852 = vsel %vm1712, %v1468, 0
        %1854 = vmatprep.subr.bf16.mxu0 0
        %1855 = vmatpush1.bf16.msra.mxu0 %v1852
        %1856 = vmatprep.subr.bf16.mxu0 0
        %1857 = vmatpush1.bf16.msra.mxu0 0
        %1858 = vmatprep.subr.bf16.mxu0 0
        %1859 = vmatpush1.bf16.msra.mxu0 0
        %1860 = vmatprep.subr.bf16.mxu0 0
        %1861 = vmatpush1.bf16.msra.mxu0 0
        %1862 = vmatprep.subr.bf16.mxu0 0
        %1863 = vmatpush1.bf16.msra.mxu0 0
        %1864 = vmatprep.subr.bf16.mxu0 0
        %1865 = vmatpush1.bf16.msra.mxu0 0
        %1866 = vmatprep.subr.bf16.mxu0 0
        %1867 = vmatpush1.bf16.msra.mxu0 0
        %1868 = vmatprep.subr.bf16.mxu0 0
        %1869 = vmatpush1.bf16.msra.mxu0 0
        %1870 = vmatprep.subr.bf16.mxu0 0
        %1871 = vmatpush1.bf16.msra.mxu0 0
        %1872 = vmatprep.subr.bf16.mxu0 0
        %1873 = vmatpush1.bf16.msra.mxu0 0
        %1874 = vmatprep.subr.bf16.mxu0 0
        %1875 = vmatpush1.bf16.msra.mxu0 0
        %1876 = vmatprep.subr.bf16.mxu0 0
        %1877 = vmatpush1.bf16.msra.mxu0 0
        %1878 = vmatprep.subr.bf16.mxu0 0
        %1879 = vmatpush1.bf16.msra.mxu0 0
        %1880 = vmatprep.subr.bf16.mxu0 0
        %1881 = vmatpush1.bf16.msra.mxu0 0
        %1882 = vmatprep.subr.bf16.mxu0 0
        %1883 = vmatpush1.bf16.msra.mxu0 0
        %1884 = vmatprep.subr.bf16.mxu0 0
        %1885 = vmatpush1.bf16.msra.mxu0 0
        %1886 = vmatprep.mubr.bf16.mxu0 0
        %1887 = vmatmul.mubr.bf16.gmra.mrb[0].mxu0 %v1849
        %v1888 = vpop.f32.mrb[0].mxu0
        %v1889 = vadd.f32 0.0, %v1888
        %v1890 = vpop.f32.mrb[0].mxu0
        %v1891 = vpop.f32.mrb[0].mxu0
        %v1892 = vpop.f32.mrb[0].mxu0
        %1893 = vdwg.mxu0
        %v1894 = vpack.c.bf16 %v1751, %v1751
        %v1895 = vpack.c.bf16 %v1797, %v1797
        %v1896 = vpack.c.bf16 %v1843, %v1843
        %v1897 = vpack.c.bf16 %v1889, %v1889
        %v1899 = vsel %vm1469, %v1894, 0
        %v1902 = vsel %vm1712, %v852, 0
        %1904 = vmatprep.subr.bf16.mxu0 0
        %1905 = vmatpush1.bf16.msra.mxu0 %v1902
        %1906 = vmatprep.subr.bf16.mxu0 0
        %1907 = vmatpush1.bf16.msra.mxu0 0
        %1908 = vmatprep.subr.bf16.mxu0 0
        %1909 = vmatpush1.bf16.msra.mxu0 0
        %1910 = vmatprep.subr.bf16.mxu0 0
        %1911 = vmatpush1.bf16.msra.mxu0 0
        %1912 = vmatprep.subr.bf16.mxu0 0
        %1913 = vmatpush1.bf16.msra.mxu0 0
        %1914 = vmatprep.subr.bf16.mxu0 0
        %1915 = vmatpush1.bf16.msra.mxu0 0
        %1916 = vmatprep.subr.bf16.mxu0 0
        %1917 = vmatpush1.bf16.msra.mxu0 0
        %1918 = vmatprep.subr.bf16.mxu0 0
        %1919 = vmatpush1.bf16.msra.mxu0 0
        %1920 = vmatprep.subr.bf16.mxu0 0
        %1921 = vmatpush1.bf16.msra.mxu0 0
        %1922 = vmatprep.subr.bf16.mxu0 0
        %1923 = vmatpush1.bf16.msra.mxu0 0
        %1924 = vmatprep.subr.bf16.mxu0 0
        %1925 = vmatpush1.bf16.msra.mxu0 0
        %1926 = vmatprep.subr.bf16.mxu0 0
        %1927 = vmatpush1.bf16.msra.mxu0 0
        %1928 = vmatprep.subr.bf16.mxu0 0
        %1929 = vmatpush1.bf16.msra.mxu0 0
        %1930 = vmatprep.subr.bf16.mxu0 0
        %1931 = vmatpush1.bf16.msra.mxu0 0
        %1932 = vmatprep.subr.bf16.mxu0 0
        %1933 = vmatpush1.bf16.msra.mxu0 0
        %1934 = vmatprep.subr.bf16.mxu0 0
        %1935 = vmatpush1.bf16.msra.mxu0 0
        %1936 = vmatprep.mubr.bf16.mxu0 0
        %1937 = vmatmul.mubr.bf16.gmra.mrb[0].mxu0 %v1899
        %v1938 = vpop.f32.mrb[0].mxu0
        %v1939 = vadd.f32 0.0, %v1938
        %v1940 = vpop.f32.mrb[0].mxu0
        %v1941 = vpop.f32.mrb[0].mxu0
        %v1942 = vpop.f32.mrb[0].mxu0
        %1943 = vdwg.mxu0
        %v1945 = vsel %vm1469, %v1895, 0
        %v1948 = vsel %vm1712, %v853, 0
        %1950 = vmatprep.subr.bf16.mxu0 0
        %1951 = vmatpush1.bf16.msra.mxu0 %v1948
        %1952 = vmatprep.subr.bf16.mxu0 0
        %1953 = vmatpush1.bf16.msra.mxu0 0
        %1954 = vmatprep.subr.bf16.mxu0 0
        %1955 = vmatpush1.bf16.msra.mxu0 0
        %1956 = vmatprep.subr.bf16.mxu0 0
        %1957 = vmatpush1.bf16.msra.mxu0 0
        %1958 = vmatprep.subr.bf16.mxu0 0
        %1959 = vmatpush1.bf16.msra.mxu0 0
        %1960 = vmatprep.subr.bf16.mxu0 0
        %1961 = vmatpush1.bf16.msra.mxu0 0
        %1962 = vmatprep.subr.bf16.mxu0 0
        %1963 = vmatpush1.bf16.msra.mxu0 0
        %1964 = vmatprep.subr.bf16.mxu0 0
        %1965 = vmatpush1.bf16.msra.mxu0 0
        %1966 = vmatprep.subr.bf16.mxu0 0
        %1967 = vmatpush1.bf16.msra.mxu0 0
        %1968 = vmatprep.subr.bf16.mxu0 0
        %1969 = vmatpush1.bf16.msra.mxu0 0
        %1970 = vmatprep.subr.bf16.mxu0 0
        %1971 = vmatpush1.bf16.msra.mxu0 0
        %1972 = vmatprep.subr.bf16.mxu0 0
        %1973 = vmatpush1.bf16.msra.mxu0 0
        %1974 = vmatprep.subr.bf16.mxu0 0
        %1975 = vmatpush1.bf16.msra.mxu0 0
        %1976 = vmatprep.subr.bf16.mxu0 0
        %1977 = vmatpush1.bf16.msra.mxu0 0
        %1978 = vmatprep.subr.bf16.mxu0 0
        %1979 = vmatpush1.bf16.msra.mxu0 0
        %1980 = vmatprep.subr.bf16.mxu0 0
        %1981 = vmatpush1.bf16.msra.mxu0 0
        %1982 = vmatprep.mubr.bf16.mxu0 0
        %1983 = vmatmul.mubr.bf16.gmra.mrb[0].mxu0 %v1945
        %v1984 = vpop.f32.mrb[0].mxu0
        %v1985 = vadd.f32 0.0, %v1984
        %v1986 = vpop.f32.mrb[0].mxu0
        %v1987 = vpop.f32.mrb[0].mxu0
        %v1988 = vpop.f32.mrb[0].mxu0
        %1989 = vdwg.mxu0
        %v1991 = vsel %vm1469, %v1896, 0
        %v1994 = vsel %vm1712, %v854, 0
        %1996 = vmatprep.subr.bf16.mxu0 0
        %1997 = vmatpush1.bf16.msra.mxu0 %v1994
        %1998 = vmatprep.subr.bf16.mxu0 0
        %1999 = vmatpush1.bf16.msra.mxu0 0
        %2000 = vmatprep.subr.bf16.mxu0 0
        %2001 = vmatpush1.bf16.msra.mxu0 0
        %2002 = vmatprep.subr.bf16.mxu0 0
        %2003 = vmatpush1.bf16.msra.mxu0 0
        %2004 = vmatprep.subr.bf16.mxu0 0
        %2005 = vmatpush1.bf16.msra.mxu0 0
        %2006 = vmatprep.subr.bf16.mxu0 0
        %2007 = vmatpush1.bf16.msra.mxu0 0
        %2008 = vmatprep.subr.bf16.mxu0 0
        %2009 = vmatpush1.bf16.msra.mxu0 0
        %2010 = vmatprep.subr.bf16.mxu0 0
        %2011 = vmatpush1.bf16.msra.mxu0 0
        %2012 = vmatprep.subr.bf16.mxu0 0
        %2013 = vmatpush1.bf16.msra.mxu0 0
        %2014 = vmatprep.subr.bf16.mxu0 0
        %2015 = vmatpush1.bf16.msra.mxu0 0
        %2016 = vmatprep.subr.bf16.mxu0 0
        %2017 = vmatpush1.bf16.msra.mxu0 0
        %2018 = vmatprep.subr.bf16.mxu0 0
        %2019 = vmatpush1.bf16.msra.mxu0 0
        %2020 = vmatprep.subr.bf16.mxu0 0
        %2021 = vmatpush1.bf16.msra.mxu0 0
        %2022 = vmatprep.subr.bf16.mxu0 0
        %2023 = vmatpush1.bf16.msra.mxu0 0
        %2024 = vmatprep.subr.bf16.mxu0 0
        %2025 = vmatpush1.bf16.msra.mxu0 0
        %2026 = vmatprep.subr.bf16.mxu0 0
        %2027 = vmatpush1.bf16.msra.mxu0 0
        %2028 = vmatprep.mubr.bf16.mxu0 0
        %2029 = vmatmul.mubr.bf16.gmra.mrb[0].mxu0 %v1991
        %v2030 = vpop.f32.mrb[0].mxu0
        %v2031 = vadd.f32 0.0, %v2030
        %v2032 = vpop.f32.mrb[0].mxu0
        %v2033 = vpop.f32.mrb[0].mxu0
        %v2034 = vpop.f32.mrb[0].mxu0
        %2035 = vdwg.mxu0
        %v2037 = vsel %vm1469, %v1897, 0
        %v2040 = vsel %vm1712, %v855, 0
        %2042 = vmatprep.subr.bf16.mxu0 0
        %2043 = vmatpush1.bf16.msra.mxu0 %v2040
        %2044 = vmatprep.subr.bf16.mxu0 0
        %2045 = vmatpush1.bf16.msra.mxu0 0
        %2046 = vmatprep.subr.bf16.mxu0 0
        %2047 = vmatpush1.bf16.msra.mxu0 0
        %2048 = vmatprep.subr.bf16.mxu0 0
        %2049 = vmatpush1.bf16.msra.mxu0 0
        %2050 = vmatprep.subr.bf16.mxu0 0
        %2051 = vmatpush1.bf16.msra.mxu0 0
        %2052 = vmatprep.subr.bf16.mxu0 0
        %2053 = vmatpush1.bf16.msra.mxu0 0
        %2054 = vmatprep.subr.bf16.mxu0 0
        %2055 = vmatpush1.bf16.msra.mxu0 0
        %2056 = vmatprep.subr.bf16.mxu0 0
        %2057 = vmatpush1.bf16.msra.mxu0 0
        %2058 = vmatprep.subr.bf16.mxu0 0
        %2059 = vmatpush1.bf16.msra.mxu0 0
        %2060 = vmatprep.subr.bf16.mxu0 0
        %2061 = vmatpush1.bf16.msra.mxu0 0
        %2062 = vmatprep.subr.bf16.mxu0 0
        %2063 = vmatpush1.bf16.msra.mxu0 0
        %2064 = vmatprep.subr.bf16.mxu0 0
        %2065 = vmatpush1.bf16.msra.mxu0 0
        %2066 = vmatprep.subr.bf16.mxu0 0
        %2067 = vmatpush1.bf16.msra.mxu0 0
        %2068 = vmatprep.subr.bf16.mxu0 0
        %2069 = vmatpush1.bf16.msra.mxu0 0
        %2070 = vmatprep.subr.bf16.mxu0 0
        %2071 = vmatpush1.bf16.msra.mxu0 0
        %2072 = vmatprep.subr.bf16.mxu0 0
        %2073 = vmatpush1.bf16.msra.mxu0 0
        %2074 = vmatprep.mubr.bf16.mxu0 0
        %2075 = vmatmul.mubr.bf16.gmra.mrb[0].mxu0 %v2037
        %v2076 = vpop.f32.mrb[0].mxu0
        %v2077 = vadd.f32 0.0, %v2076
        %v2078 = vpop.f32.mrb[0].mxu0
        %v2079 = vpop.f32.mrb[0].mxu0
        %v2080 = vpop.f32.mrb[0].mxu0
        %2081 = vdwg.mxu0
        %v2082 = vsel %vm870, %v1939, 0.0
        %v2083 = vsel %vm870, %v1985, 0.0
        %v2084 = vadd.f32 %v2082, %v2083
        %v2085 = vsel %vm870, %v2031, 0.0
        %v2086 = vadd.f32 %v2084, %v2085
        %v2087 = vsel %vm870, %v2077, 0.0
        %v2088 = vadd.f32 %v2086, %v2087
        %v2090 = vlaneseq
        %v2091 = vshrl.u32 %v2090, 7
        %v2092 = vsub.s32 0, %v2091
        %v2093 = vrot.slane %v856, %v2092
        %v2095 = vadd.f32 %v2088, %v2093
        %v2096 = vld [vmem:[%s9] sm:$0x1]
        %v2097 = vld [vmem:[%s10] sm:$0x1]
        %v2098 = vadd.f32 %v2095, %v836
        %v2099 = vsel %vm870, %v2098, 0.0
        %2100 = vadd.xlane.f32.xlu0 %v2099
        %v2101 = vpop.xlane.xlu0 %2100
        %v2102 = vrcp.pop 32.0
        %v2103 = vmul.f32 %v2101, %v2102
        %v2104 = vsub.f32 %v2098, %v2103
        %v2105 = vmul.f32 %v2104, %v2104
        %v2106 = vsel %vm870, %v2105, 0.0
        %2107 = vadd.xlane.f32.xlu0 %v2106
        %v2108 = vpop.xlane.xlu0 %2107
        %v2109 = vmul.f32 %v2108, %v2102
        %v2110 = vadd.f32 %v2109, 1e-05
        %v2111 = vrsqrt.pop %v2110
        %v2112 = vmul.f32 %v2104, %v2111
        %v2114 = vlaneseq
        %v2115 = vshrl.u32 %v2114, 7
        %v2116 = vsub.s32 0, %v2115
        %v2117 = vrot.slane %v2096, %v2116
        %v2119 = vmul.f32 %v2112, %v2117
        %v2121 = vlaneseq
        %v2122 = vshrl.u32 %v2121, 7
        %v2123 = vsub.s32 0, %v2122
        %v2124 = vrot.slane %v2097, %v2123
        %v2126 = vadd.f32 %v2119, %v2124
        %v2127 = vld [vmem:[%s11] sm:$0xf]
        %v2128 = vld [vmem:[%s11 + $0x4] sm:$0xf]
        %v2129 = vld [vmem:[%s11 + $0x8] sm:$0xf]
        %v2130 = vld [vmem:[%s11 + $0xc] sm:$0xf]
        %v2131 = vld [vmem:[%s12] sm:$0xf]
        %v2132 = vld [vmem:[%s12 + $0x4] sm:$0xf]
        %v2133 = vld [vmem:[%s12 + $0x8] sm:$0xf]
        %v2134 = vld [vmem:[%s12 + $0xc] sm:$0xf]
        %v2135 = vld [vmem:[%s13] sm:$0xf]
        %v2136 = vld [vmem:[%s13 + $0x4] sm:$0xf]
        %v2137 = vld [vmem:[%s13 + $0x8] sm:$0xf]
        %v2138 = vld [vmem:[%s13 + $0xc] sm:$0xf]
        %v2139 = vld [vmem:[%s14] sm:$0xf]
        %v2140 = vld [vmem:[%s14 + $0x4] sm:$0xf]
        %v2141 = vld [vmem:[%s14 + $0x8] sm:$0xf]
        %v2142 = vld [vmem:[%s14 + $0xc] sm:$0xf]
        %v2143 = vld [vmem:[%s15] sm:$0x1]
        %v2144 = vpack.c.bf16 %v2126, %v2126
        %v2145 = vpack.c.bf16 %v837, %v837
        %v2150 = vunpack.c.l.b16 %v2127
        %v2151 = vunpack.c.l.b16 %v2128
        %v2152 = vunpack.c.l.b16 %v2129
        %v2153 = vunpack.c.l.b16 %v2130
        %v2154 = vpack.c.b16 %v2151, %v2150
        %v2155 = vpack.c.b16 %v2153, %v2152
        %v2159 = vsel %vm870, %v2145, 0
        %2161 = vmatprep.subr.bf16.mxu0 0
        %2162 = vmatpush1.bf16.msra.mxu0 %v2154
        %2163 = vmatprep.subr.bf16.mxu0 0
        %2164 = vmatpush1.bf16.msra.mxu0 %v2155
        %2165 = vmatprep.subr.bf16.mxu0 0
        %2166 = vmatpush1.bf16.msra.mxu0 0
        %2167 = vmatprep.subr.bf16.mxu0 0
        %2168 = vmatpush1.bf16.msra.mxu0 0
        %2169 = vmatprep.subr.bf16.mxu0 0
        %2170 = vmatpush1.bf16.msra.mxu0 0
        %2171 = vmatprep.subr.bf16.mxu0 0
        %2172 = vmatpush1.bf16.msra.mxu0 0
        %2173 = vmatprep.subr.bf16.mxu0 0
        %2174 = vmatpush1.bf16.msra.mxu0 0
        %2175 = vmatprep.subr.bf16.mxu0 0
        %2176 = vmatpush1.bf16.msra.mxu0 0
        %2177 = vmatprep.subr.bf16.mxu0 0
        %2178 = vmatpush1.bf16.msra.mxu0 0
        %2179 = vmatprep.subr.bf16.mxu0 0
        %2180 = vmatpush1.bf16.msra.mxu0 0
        %2181 = vmatprep.subr.bf16.mxu0 0
        %2182 = vmatpush1.bf16.msra.mxu0 0
        %2183 = vmatprep.subr.bf16.mxu0 0
        %2184 = vmatpush1.bf16.msra.mxu0 0
        %2185 = vmatprep.subr.bf16.mxu0 0
        %2186 = vmatpush1.bf16.msra.mxu0 0
        %2187 = vmatprep.subr.bf16.mxu0 0
        %2188 = vmatpush1.bf16.msra.mxu0 0
        %2189 = vmatprep.subr.bf16.mxu0 0
        %2190 = vmatpush1.bf16.msra.mxu0 0
        %2191 = vmatprep.subr.bf16.mxu0 0
        %2192 = vmatpush1.bf16.msra.mxu0 0
        %2193 = vmatprep.mubr.bf16.mxu0 0
        %2194 = vmatmul.mubr.bf16.gmra.mrb[0].mxu0 %v2159
        %v2195 = vpop.f32.mrb[0].mxu0
        %v2196 = vadd.f32 0.0, %v2195
        %v2197 = vpop.f32.mrb[0].mxu0
        %v2198 = vpop.f32.mrb[0].mxu0
        %v2199 = vpop.f32.mrb[0].mxu0
        %2200 = vdwg.mxu0
        %v2205 = vunpack.c.l.b16 %v2131
        %v2206 = vunpack.c.l.b16 %v2132
        %v2207 = vunpack.c.l.b16 %v2133
        %v2208 = vunpack.c.l.b16 %v2134
        %v2209 = vpack.c.b16 %v2206, %v2205
        %v2210 = vpack.c.b16 %v2208, %v2207
        %2213 = vmatprep.subr.bf16.mxu0 0
        %2214 = vmatpush1.bf16.msra.mxu0 %v2209
        %2215 = vmatprep.subr.bf16.mxu0 0
        %2216 = vmatpush1.bf16.msra.mxu0 %v2210
        %2217 = vmatprep.subr.bf16.mxu0 0
        %2218 = vmatpush1.bf16.msra.mxu0 0
        %2219 = vmatprep.subr.bf16.mxu0 0
        %2220 = vmatpush1.bf16.msra.mxu0 0
        %2221 = vmatprep.subr.bf16.mxu0 0
        %2222 = vmatpush1.bf16.msra.mxu0 0
        %2223 = vmatprep.subr.bf16.mxu0 0
        %2224 = vmatpush1.bf16.msra.mxu0 0
        %2225 = vmatprep.subr.bf16.mxu0 0
        %2226 = vmatpush1.bf16.msra.mxu0 0
        %2227 = vmatprep.subr.bf16.mxu0 0
        %2228 = vmatpush1.bf16.msra.mxu0 0
        %2229 = vmatprep.subr.bf16.mxu0 0
        %2230 = vmatpush1.bf16.msra.mxu0 0
        %2231 = vmatprep.subr.bf16.mxu0 0
        %2232 = vmatpush1.bf16.msra.mxu0 0
        %2233 = vmatprep.subr.bf16.mxu0 0
        %2234 = vmatpush1.bf16.msra.mxu0 0
        %2235 = vmatprep.subr.bf16.mxu0 0
        %2236 = vmatpush1.bf16.msra.mxu0 0
        %2237 = vmatprep.subr.bf16.mxu0 0
        %2238 = vmatpush1.bf16.msra.mxu0 0
        %2239 = vmatprep.subr.bf16.mxu0 0
        %2240 = vmatpush1.bf16.msra.mxu0 0
        %2241 = vmatprep.subr.bf16.mxu0 0
        %2242 = vmatpush1.bf16.msra.mxu0 0
        %2243 = vmatprep.subr.bf16.mxu0 0
        %2244 = vmatpush1.bf16.msra.mxu0 0
        %2245 = vmatprep.mubr.bf16.mxu0 0
        %2246 = vmatmul.mubr.bf16.gmra.mrb[0].mxu0 %v2159
        %v2247 = vpop.f32.mrb[0].mxu0
        %v2248 = vadd.f32 0.0, %v2247
        %v2249 = vpop.f32.mrb[0].mxu0
        %v2250 = vpop.f32.mrb[0].mxu0
        %v2251 = vpop.f32.mrb[0].mxu0
        %2252 = vdwg.mxu0
        %v2257 = vunpack.c.l.b16 %v2135
        %v2258 = vunpack.c.l.b16 %v2136
        %v2259 = vunpack.c.l.b16 %v2137
        %v2260 = vunpack.c.l.b16 %v2138
        %v2261 = vpack.c.b16 %v2258, %v2257
        %v2262 = vpack.c.b16 %v2260, %v2259
        %v2266 = vsel %vm870, %v2144, 0
        %2268 = vmatprep.subr.bf16.mxu0 0
        %2269 = vmatpush1.bf16.msra.mxu0 %v2261
        %2270 = vmatprep.subr.bf16.mxu0 0
        %2271 = vmatpush1.bf16.msra.mxu0 %v2262
        %2272 = vmatprep.subr.bf16.mxu0 0
        %2273 = vmatpush1.bf16.msra.mxu0 0
        %2274 = vmatprep.subr.bf16.mxu0 0
        %2275 = vmatpush1.bf16.msra.mxu0 0
        %2276 = vmatprep.subr.bf16.mxu0 0
        %2277 = vmatpush1.bf16.msra.mxu0 0
        %2278 = vmatprep.subr.bf16.mxu0 0
        %2279 = vmatpush1.bf16.msra.mxu0 0
        %2280 = vmatprep.subr.bf16.mxu0 0
        %2281 = vmatpush1.bf16.msra.mxu0 0
        %2282 = vmatprep.subr.bf16.mxu0 0
        %2283 = vmatpush1.bf16.msra.mxu0 0
        %2284 = vmatprep.subr.bf16.mxu0 0
        %2285 = vmatpush1.bf16.msra.mxu0 0
        %2286 = vmatprep.subr.bf16.mxu0 0
        %2287 = vmatpush1.bf16.msra.mxu0 0
        %2288 = vmatprep.subr.bf16.mxu0 0
        %2289 = vmatpush1.bf16.msra.mxu0 0
        %2290 = vmatprep.subr.bf16.mxu0 0
        %2291 = vmatpush1.bf16.msra.mxu0 0
        %2292 = vmatprep.subr.bf16.mxu0 0
        %2293 = vmatpush1.bf16.msra.mxu0 0
        %2294 = vmatprep.subr.bf16.mxu0 0
        %2295 = vmatpush1.bf16.msra.mxu0 0
        %2296 = vmatprep.subr.bf16.mxu0 0
        %2297 = vmatpush1.bf16.msra.mxu0 0
        %2298 = vmatprep.subr.bf16.mxu0 0
        %2299 = vmatpush1.bf16.msra.mxu0 0
        %2300 = vmatprep.mubr.bf16.mxu0 0
        %2301 = vmatmul.mubr.bf16.gmra.mrb[0].mxu0 %v2266
        %v2302 = vpop.f32.mrb[0].mxu0
        %v2303 = vadd.f32 0.0, %v2302
        %v2304 = vpop.f32.mrb[0].mxu0
        %v2305 = vpop.f32.mrb[0].mxu0
        %v2306 = vpop.f32.mrb[0].mxu0
        %2307 = vdwg.mxu0
        %v2308 = vmul.f32 %v2303, 0.17677669
        %2310 = vrot.lane.b32.xlu0 %v2308, 120
        %v2311 = vpop.permute.xlu0 %2310
        %2313 = vrot.lane.b32.xlu0 %v2308, 112
        %v2314 = vpop.permute.xlu0 %2313
        %2316 = vrot.lane.b32.xlu0 %v2308, 104
        %v2317 = vpop.permute.xlu0 %2316
        %v2319 = vcombine.low %v2308, %v2314
        %v2320 = vcombine.high %v2308, %v2314
        %v2322 = vunpack.c.l.s4 1983009808
        %v2323 = vunpack.c.0.s8 %v2322
        %v2324 = vlaneseq
        %v2325 = vshrl.u32 %v2324, 7
        %v2326 = vsub.s32 %v2323, %v2325
        %v2327 = vrot.slane %v2319, %v2326
        %v2329 = vunpack.c.l.s4 1983009808
        %v2330 = vunpack.c.0.s8 %v2329
        %v2331 = vlaneseq
        %v2332 = vshrl.u32 %v2331, 7
        %v2333 = vsub.s32 %v2330, %v2332
        %v2334 = vrot.slane %v2320, %v2333
        %v2335 = vcombine.low %v2311, %v2317
        %v2336 = vcombine.high %v2311, %v2317
        %v2338 = vunpack.c.l.s4 1983009808
        %v2339 = vunpack.c.0.s8 %v2338
        %v2340 = vlaneseq
        %v2341 = vshrl.u32 %v2340, 7
        %v2342 = vsub.s32 %v2339, %v2341
        %v2343 = vrot.slane %v2335, %v2342
        %v2345 = vunpack.c.l.s4 1983009808
        %v2346 = vunpack.c.0.s8 %v2345
        %v2347 = vlaneseq
        %v2348 = vshrl.u32 %v2347, 7
        %v2349 = vsub.s32 %v2346, %v2348
        %v2350 = vrot.slane %v2336, %v2349
        %v2351 = vcombine.low %v2327, %v2343
        %v2352 = vcombine.high %v2327, %v2343
        %v2354 = vunpack.c.l.s4 1934713408
        %v2355 = vunpack.c.0.s8 %v2354
        %v2356 = vlaneseq
        %v2357 = vshrl.u32 %v2356, 7
        %v2358 = vsub.s32 %v2355, %v2357
        %v2359 = vrot.slane %v2351, %v2358
        %v2361 = vunpack.c.l.s4 1934713408
        %v2362 = vunpack.c.0.s8 %v2361
        %v2363 = vlaneseq
        %v2364 = vshrl.u32 %v2363, 7
        %v2365 = vsub.s32 %v2362, %v2364
        %v2366 = vrot.slane %v2352, %v2365
        %v2367 = vcombine.low %v2334, %v2350
        %v2368 = vcombine.high %v2334, %v2350
        %v2370 = vunpack.c.l.s4 1934713408
        %v2371 = vunpack.c.0.s8 %v2370
        %v2372 = vlaneseq
        %v2373 = vshrl.u32 %v2372, 7
        %v2374 = vsub.s32 %v2371, %v2373
        %v2375 = vrot.slane %v2367, %v2374
        %v2377 = vunpack.c.l.s4 1934713408
        %v2378 = vunpack.c.0.s8 %v2377
        %v2379 = vlaneseq
        %v2380 = vshrl.u32 %v2379, 7
        %v2381 = vsub.s32 %v2378, %v2380
        %v2382 = vrot.slane %v2368, %v2381
        %v2383 = vcombine.high %v2359, 0.0
        %v2384 = vcombine.high %v2366, 0.0
        %v2385 = vcombine.high %v2375, 0.0
        %v2386 = vcombine.high %v2382, 0.0
        %v2387 = vcombine.low %v2359, %v2366
        %v2389 = vunpack.c.l.s4 1983009808
        %v2390 = vunpack.c.0.s8 %v2389
        %v2391 = vlaneseq
        %v2392 = vshrl.u32 %v2391, 7
        %v2393 = vsub.s32 %v2390, %v2392
        %v2394 = vrot.slane %v2387, %v2393
        %v2395 = vcombine.low %v2383, %v2384
        %v2397 = vunpack.c.l.s4 1983009808
        %v2398 = vunpack.c.0.s8 %v2397
        %v2399 = vlaneseq
        %v2400 = vshrl.u32 %v2399, 7
        %v2401 = vsub.s32 %v2398, %v2400
        %v2402 = vrot.slane %v2395, %v2401
        %v2403 = vcombine.low %v2375, %v2382
        %v2405 = vunpack.c.l.s4 1983009808
        %v2406 = vunpack.c.0.s8 %v2405
        %v2407 = vlaneseq
        %v2408 = vshrl.u32 %v2407, 7
        %v2409 = vsub.s32 %v2406, %v2408
        %v2410 = vrot.slane %v2403, %v2409
        %v2411 = vcombine.low %v2385, %v2386
        %v2413 = vunpack.c.l.s4 1983009808
        %v2414 = vunpack.c.0.s8 %v2413
        %v2415 = vlaneseq
        %v2416 = vshrl.u32 %v2415, 7
        %v2417 = vsub.s32 %v2414, %v2416
        %v2418 = vrot.slane %v2411, %v2417
        %v2419 = vcombine.low %v2394, %v2402
        %v2420 = vcombine.high %v2394, %v2402
        %v2422 = vunpack.c.l.s4 1934713408
        %v2423 = vunpack.c.0.s8 %v2422
        %v2424 = vlaneseq
        %v2425 = vshrl.u32 %v2424, 7
        %v2426 = vsub.s32 %v2423, %v2425
        %v2427 = vrot.slane %v2419, %v2426
        %v2429 = vunpack.c.l.s4 1934713408
        %v2430 = vunpack.c.0.s8 %v2429
        %v2431 = vlaneseq
        %v2432 = vshrl.u32 %v2431, 7
        %v2433 = vsub.s32 %v2430, %v2432
        %v2434 = vrot.slane %v2420, %v2433
        %v2435 = vcombine.low %v2410, %v2418
        %v2436 = vcombine.high %v2410, %v2418
        %v2438 = vunpack.c.l.s4 1934713408
        %v2439 = vunpack.c.0.s8 %v2438
        %v2440 = vlaneseq
        %v2441 = vshrl.u32 %v2440, 7
        %v2442 = vsub.s32 %v2439, %v2441
        %v2443 = vrot.slane %v2435, %v2442
        %v2445 = vunpack.c.l.s4 1934713408
        %v2446 = vunpack.c.0.s8 %v2445
        %v2447 = vlaneseq
        %v2448 = vshrl.u32 %v2447, 7
        %v2449 = vsub.s32 %v2446, %v2448
        %v2450 = vrot.slane %v2436, %v2449
        %v2451 = vcombine.low %v2427, %v2443
        %v2452 = vcombine.high %v2427, %v2443
        %v2453 = vcombine.low %v2434, %v2450
        %v2454 = vcombine.high %v2434, %v2450
        %v2455 = vpack.c.bf16 %v2451, %v2451
        %v2456 = vpack.c.bf16 %v2452, %v2452
        %v2457 = vpack.c.bf16 %v2453, %v2453
        %v2458 = vpack.c.bf16 %v2454, %v2454
        %2460 = vrot.lane.b32.xlu0 %v2248, 120
        %v2461 = vpop.permute.xlu0 %2460
        %2463 = vrot.lane.b32.xlu0 %v2248, 112
        %v2464 = vpop.permute.xlu0 %2463
        %2466 = vrot.lane.b32.xlu0 %v2248, 104
        %v2467 = vpop.permute.xlu0 %2466
        %v2469 = vcombine.low %v2248, %v2464
        %v2470 = vcombine.high %v2248, %v2464
        %v2472 = vunpack.c.l.s4 1983009808
        %v2473 = vunpack.c.0.s8 %v2472
        %v2474 = vlaneseq
        %v2475 = vshrl.u32 %v2474, 7
        %v2476 = vsub.s32 %v2473, %v2475
        %v2477 = vrot.slane %v2469, %v2476
        %v2479 = vunpack.c.l.s4 1983009808
        %v2480 = vunpack.c.0.s8 %v2479
        %v2481 = vlaneseq
        %v2482 = vshrl.u32 %v2481, 7
        %v2483 = vsub.s32 %v2480, %v2482
        %v2484 = vrot.slane %v2470, %v2483
        %v2485 = vcombine.low %v2461, %v2467
        %v2486 = vcombine.high %v2461, %v2467
        %v2488 = vunpack.c.l.s4 1983009808
        %v2489 = vunpack.c.0.s8 %v2488
        %v2490 = vlaneseq
        %v2491 = vshrl.u32 %v2490, 7
        %v2492 = vsub.s32 %v2489, %v2491
        %v2493 = vrot.slane %v2485, %v2492
        %v2495 = vunpack.c.l.s4 1983009808
        %v2496 = vunpack.c.0.s8 %v2495
        %v2497 = vlaneseq
        %v2498 = vshrl.u32 %v2497, 7
        %v2499 = vsub.s32 %v2496, %v2498
        %v2500 = vrot.slane %v2486, %v2499
        %v2501 = vcombine.low %v2477, %v2493
        %v2502 = vcombine.high %v2477, %v2493
        %v2504 = vunpack.c.l.s4 1934713408
        %v2505 = vunpack.c.0.s8 %v2504
        %v2506 = vlaneseq
        %v2507 = vshrl.u32 %v2506, 7
        %v2508 = vsub.s32 %v2505, %v2507
        %v2509 = vrot.slane %v2501, %v2508
        %v2511 = vunpack.c.l.s4 1934713408
        %v2512 = vunpack.c.0.s8 %v2511
        %v2513 = vlaneseq
        %v2514 = vshrl.u32 %v2513, 7
        %v2515 = vsub.s32 %v2512, %v2514
        %v2516 = vrot.slane %v2502, %v2515
        %v2517 = vcombine.low %v2484, %v2500
        %v2518 = vcombine.high %v2484, %v2500
        %v2520 = vunpack.c.l.s4 1934713408
        %v2521 = vunpack.c.0.s8 %v2520
        %v2522 = vlaneseq
        %v2523 = vshrl.u32 %v2522, 7
        %v2524 = vsub.s32 %v2521, %v2523
        %v2525 = vrot.slane %v2517, %v2524
        %v2527 = vunpack.c.l.s4 1934713408
        %v2528 = vunpack.c.0.s8 %v2527
        %v2529 = vlaneseq
        %v2530 = vshrl.u32 %v2529, 7
        %v2531 = vsub.s32 %v2528, %v2530
        %v2532 = vrot.slane %v2518, %v2531
        %v2533 = vcombine.high %v2509, 0.0
        %v2534 = vcombine.high %v2516, 0.0
        %v2535 = vcombine.high %v2525, 0.0
        %v2536 = vcombine.high %v2532, 0.0
        %v2537 = vcombine.low %v2509, %v2516
        %v2539 = vunpack.c.l.s4 1983009808
        %v2540 = vunpack.c.0.s8 %v2539
        %v2541 = vlaneseq
        %v2542 = vshrl.u32 %v2541, 7
        %v2543 = vsub.s32 %v2540, %v2542
        %v2544 = vrot.slane %v2537, %v2543
        %v2545 = vcombine.low %v2533, %v2534
        %v2547 = vunpack.c.l.s4 1983009808
        %v2548 = vunpack.c.0.s8 %v2547
        %v2549 = vlaneseq
        %v2550 = vshrl.u32 %v2549, 7
        %v2551 = vsub.s32 %v2548, %v2550
        %v2552 = vrot.slane %v2545, %v2551
        %v2553 = vcombine.low %v2525, %v2532
        %v2555 = vunpack.c.l.s4 1983009808
        %v2556 = vunpack.c.0.s8 %v2555
        %v2557 = vlaneseq
        %v2558 = vshrl.u32 %v2557, 7
        %v2559 = vsub.s32 %v2556, %v2558
        %v2560 = vrot.slane %v2553, %v2559
        %v2561 = vcombine.low %v2535, %v2536
        %v2563 = vunpack.c.l.s4 1983009808
        %v2564 = vunpack.c.0.s8 %v2563
        %v2565 = vlaneseq
        %v2566 = vshrl.u32 %v2565, 7
        %v2567 = vsub.s32 %v2564, %v2566
        %v2568 = vrot.slane %v2561, %v2567
        %v2569 = vcombine.low %v2544, %v2552
        %v2570 = vcombine.high %v2544, %v2552
        %v2572 = vunpack.c.l.s4 1934713408
        %v2573 = vunpack.c.0.s8 %v2572
        %v2574 = vlaneseq
        %v2575 = vshrl.u32 %v2574, 7
        %v2576 = vsub.s32 %v2573, %v2575
        %v2577 = vrot.slane %v2569, %v2576
        %v2579 = vunpack.c.l.s4 1934713408
        %v2580 = vunpack.c.0.s8 %v2579
        %v2581 = vlaneseq
        %v2582 = vshrl.u32 %v2581, 7
        %v2583 = vsub.s32 %v2580, %v2582
        %v2584 = vrot.slane %v2570, %v2583
        %v2585 = vcombine.low %v2560, %v2568
        %v2586 = vcombine.high %v2560, %v2568
        %v2588 = vunpack.c.l.s4 1934713408
        %v2589 = vunpack.c.0.s8 %v2588
        %v2590 = vlaneseq
        %v2591 = vshrl.u32 %v2590, 7
        %v2592 = vsub.s32 %v2589, %v2591
        %v2593 = vrot.slane %v2585, %v2592
        %v2595 = vunpack.c.l.s4 1934713408
        %v2596 = vunpack.c.0.s8 %v2595
        %v2597 = vlaneseq
        %v2598 = vshrl.u32 %v2597, 7
        %v2599 = vsub.s32 %v2596, %v2598
        %v2600 = vrot.slane %v2586, %v2599
        %v2601 = vcombine.low %v2577, %v2593
        %v2602 = vcombine.high %v2577, %v2593
        %v2603 = vcombine.low %v2584, %v2600
        %v2604 = vcombine.high %v2584, %v2600
        %v2605 = vpack.c.bf16 %v2601, %v2601
        %v2606 = vpack.c.bf16 %v2602, %v2602
        %v2607 = vpack.c.bf16 %v2603, %v2603
        %v2608 = vpack.c.bf16 %v2604, %v2604
        %2610 = vrot.lane.b32.xlu0 %v2196, 120
        %v2611 = vpop.permute.xlu0 %2610
        %2613 = vrot.lane.b32.xlu0 %v2196, 112
        %v2614 = vpop.permute.xlu0 %2613
        %2616 = vrot.lane.b32.xlu0 %v2196, 104
        %v2617 = vpop.permute.xlu0 %2616
        %v2619 = vcombine.low %v2196, %v2614
        %v2620 = vcombine.high %v2196, %v2614
        %v2622 = vunpack.c.l.s4 1983009808
        %v2623 = vunpack.c.0.s8 %v2622
        %v2624 = vlaneseq
        %v2625 = vshrl.u32 %v2624, 7
        %v2626 = vsub.s32 %v2623, %v2625
        %v2627 = vrot.slane %v2619, %v2626
        %v2629 = vunpack.c.l.s4 1983009808
        %v2630 = vunpack.c.0.s8 %v2629
        %v2631 = vlaneseq
        %v2632 = vshrl.u32 %v2631, 7
        %v2633 = vsub.s32 %v2630, %v2632
        %v2634 = vrot.slane %v2620, %v2633
        %v2635 = vcombine.low %v2611, %v2617
        %v2636 = vcombine.high %v2611, %v2617
        %v2638 = vunpack.c.l.s4 1983009808
        %v2639 = vunpack.c.0.s8 %v2638
        %v2640 = vlaneseq
        %v2641 = vshrl.u32 %v2640, 7
        %v2642 = vsub.s32 %v2639, %v2641
        %v2643 = vrot.slane %v2635, %v2642
        %v2645 = vunpack.c.l.s4 1983009808
        %v2646 = vunpack.c.0.s8 %v2645
        %v2647 = vlaneseq
        %v2648 = vshrl.u32 %v2647, 7
        %v2649 = vsub.s32 %v2646, %v2648
        %v2650 = vrot.slane %v2636, %v2649
        %v2651 = vcombine.low %v2627, %v2643
        %v2652 = vcombine.high %v2627, %v2643
        %v2654 = vunpack.c.l.s4 1934713408
        %v2655 = vunpack.c.0.s8 %v2654
        %v2656 = vlaneseq
        %v2657 = vshrl.u32 %v2656, 7
        %v2658 = vsub.s32 %v2655, %v2657
        %v2659 = vrot.slane %v2651, %v2658
        %v2661 = vunpack.c.l.s4 1934713408
        %v2662 = vunpack.c.0.s8 %v2661
        %v2663 = vlaneseq
        %v2664 = vshrl.u32 %v2663, 7
        %v2665 = vsub.s32 %v2662, %v2664
        %v2666 = vrot.slane %v2652, %v2665
        %v2667 = vcombine.low %v2634, %v2650
        %v2668 = vcombine.high %v2634, %v2650
        %v2670 = vunpack.c.l.s4 1934713408
        %v2671 = vunpack.c.0.s8 %v2670
        %v2672 = vlaneseq
        %v2673 = vshrl.u32 %v2672, 7
        %v2674 = vsub.s32 %v2671, %v2673
        %v2675 = vrot.slane %v2667, %v2674
        %v2677 = vunpack.c.l.s4 1934713408
        %v2678 = vunpack.c.0.s8 %v2677
        %v2679 = vlaneseq
        %v2680 = vshrl.u32 %v2679, 7
        %v2681 = vsub.s32 %v2678, %v2680
        %v2682 = vrot.slane %v2668, %v2681
        %v2683 = vcombine.high %v2659, 0.0
        %v2684 = vcombine.high %v2666, 0.0
        %v2685 = vcombine.high %v2675, 0.0
        %v2686 = vcombine.high %v2682, 0.0
        %v2687 = vcombine.low %v2659, %v2666
        %v2689 = vunpack.c.l.s4 1983009808
        %v2690 = vunpack.c.0.s8 %v2689
        %v2691 = vlaneseq
        %v2692 = vshrl.u32 %v2691, 7
        %v2693 = vsub.s32 %v2690, %v2692
        %v2694 = vrot.slane %v2687, %v2693
        %v2695 = vcombine.low %v2683, %v2684
        %v2697 = vunpack.c.l.s4 1983009808
        %v2698 = vunpack.c.0.s8 %v2697
        %v2699 = vlaneseq
        %v2700 = vshrl.u32 %v2699, 7
        %v2701 = vsub.s32 %v2698, %v2700
        %v2702 = vrot.slane %v2695, %v2701
        %v2703 = vcombine.low %v2675, %v2682
        %v2705 = vunpack.c.l.s4 1983009808
        %v2706 = vunpack.c.0.s8 %v2705
        %v2707 = vlaneseq
        %v2708 = vshrl.u32 %v2707, 7
        %v2709 = vsub.s32 %v2706, %v2708
        %v2710 = vrot.slane %v2703, %v2709
        %v2711 = vcombine.low %v2685, %v2686
        %v2713 = vunpack.c.l.s4 1983009808
        %v2714 = vunpack.c.0.s8 %v2713
        %v2715 = vlaneseq
        %v2716 = vshrl.u32 %v2715, 7
        %v2717 = vsub.s32 %v2714, %v2716
        %v2718 = vrot.slane %v2711, %v2717
        %v2719 = vcombine.low %v2694, %v2702
        %v2720 = vcombine.high %v2694, %v2702
        %v2722 = vunpack.c.l.s4 1934713408
        %v2723 = vunpack.c.0.s8 %v2722
        %v2724 = vlaneseq
        %v2725 = vshrl.u32 %v2724, 7
        %v2726 = vsub.s32 %v2723, %v2725
        %v2727 = vrot.slane %v2719, %v2726
        %v2729 = vunpack.c.l.s4 1934713408
        %v2730 = vunpack.c.0.s8 %v2729
        %v2731 = vlaneseq
        %v2732 = vshrl.u32 %v2731, 7
        %v2733 = vsub.s32 %v2730, %v2732
        %v2734 = vrot.slane %v2720, %v2733
        %v2735 = vcombine.low %v2710, %v2718
        %v2736 = vcombine.high %v2710, %v2718
        %v2738 = vunpack.c.l.s4 1934713408
        %v2739 = vunpack.c.0.s8 %v2738
        %v2740 = vlaneseq
        %v2741 = vshrl.u32 %v2740, 7
        %v2742 = vsub.s32 %v2739, %v2741
        %v2743 = vrot.slane %v2735, %v2742
        %v2745 = vunpack.c.l.s4 1934713408
        %v2746 = vunpack.c.0.s8 %v2745
        %v2747 = vlaneseq
        %v2748 = vshrl.u32 %v2747, 7
        %v2749 = vsub.s32 %v2746, %v2748
        %v2750 = vrot.slane %v2736, %v2749
        %v2751 = vcombine.low %v2727, %v2743
        %v2752 = vcombine.high %v2727, %v2743
        %v2753 = vcombine.low %v2734, %v2750
        %v2754 = vcombine.high %v2734, %v2750
        %v2755 = vpack.c.bf16 %v2751, %v2751
        %v2756 = vpack.c.bf16 %v2752, %v2752
        %v2757 = vpack.c.bf16 %v2753, %v2753
        %v2758 = vpack.c.bf16 %v2754, %v2754
        %v2760 = vsel %vm1469, %v2455, 0
        %v2763 = vsel %vm1469, %v2605, 0
        %2765 = vmatprep.subr.bf16.mxu0 0
        %2766 = vmatpush1.bf16.xpose.msra.mxu0 %v2763
        %2767 = vmatprep.subr.bf16.mxu0 0
        %2768 = vmatpush1.bf16.xpose.msra.mxu0 0
        %2769 = vmatprep.subr.bf16.mxu0 0
        %2770 = vmatpush1.bf16.xpose.msra.mxu0 0
        %2771 = vmatprep.subr.bf16.mxu0 0
        %2772 = vmatpush1.bf16.xpose.msra.mxu0 0
        %2773 = vmatprep.subr.bf16.mxu0 0
        %2774 = vmatpush1.bf16.xpose.msra.mxu0 0
        %2775 = vmatprep.subr.bf16.mxu0 0
        %2776 = vmatpush1.bf16.xpose.msra.mxu0 0
        %2777 = vmatprep.subr.bf16.mxu0 0
        %2778 = vmatpush1.bf16.xpose.msra.mxu0 0
        %2779 = vmatprep.subr.bf16.mxu0 0
        %2780 = vmatpush1.bf16.xpose.msra.mxu0 0
        %2781 = vmatprep.subr.bf16.mxu0 0
        %2782 = vmatpush1.bf16.xpose.msra.mxu0 0
        %2783 = vmatprep.subr.bf16.mxu0 0
        %2784 = vmatpush1.bf16.xpose.msra.mxu0 0
        %2785 = vmatprep.subr.bf16.mxu0 0
        %2786 = vmatpush1.bf16.xpose.msra.mxu0 0
        %2787 = vmatprep.subr.bf16.mxu0 0
        %2788 = vmatpush1.bf16.xpose.msra.mxu0 0
        %2789 = vmatprep.subr.bf16.mxu0 0
        %2790 = vmatpush1.bf16.xpose.msra.mxu0 0
        %2791 = vmatprep.subr.bf16.mxu0 0
        %2792 = vmatpush1.bf16.xpose.msra.mxu0 0
        %2793 = vmatprep.subr.bf16.mxu0 0
        %2794 = vmatpush1.bf16.xpose.msra.mxu0 0
        %2795 = vmatprep.subr.bf16.mxu0 0
        %2796 = vmatpush1.bf16.xpose.msra.mxu0 0
        %2797 = vmatprep.mubr.bf16.mxu0 0
        %2798 = vmatmul.mubr.bf16.gmra.mrb[0].mxu0 %v2760
        %v2799 = vpop.f32.mrb[0].mxu0
        %v2800 = vadd.f32 0.0, %v2799
        %v2801 = vpop.f32.mrb[0].mxu0
        %v2802 = vpop.f32.mrb[0].mxu0
        %v2803 = vpop.f32.mrb[0].mxu0
        %2804 = vdwg.mxu0
        %v2806 = vsel %vm1469, %v2456, 0
        %v2809 = vsel %vm1469, %v2606, 0
        %2811 = vmatprep.subr.bf16.mxu0 0
        %2812 = vmatpush1.bf16.xpose.msra.mxu0 %v2809
        %2813 = vmatprep.subr.bf16.mxu0 0
        %2814 = vmatpush1.bf16.xpose.msra.mxu0 0
        %2815 = vmatprep.subr.bf16.mxu0 0
        %2816 = vmatpush1.bf16.xpose.msra.mxu0 0
        %2817 = vmatprep.subr.bf16.mxu0 0
        %2818 = vmatpush1.bf16.xpose.msra.mxu0 0
        %2819 = vmatprep.subr.bf16.mxu0 0
        %2820 = vmatpush1.bf16.xpose.msra.mxu0 0
        %2821 = vmatprep.subr.bf16.mxu0 0
        %2822 = vmatpush1.bf16.xpose.msra.mxu0 0
        %2823 = vmatprep.subr.bf16.mxu0 0
        %2824 = vmatpush1.bf16.xpose.msra.mxu0 0
        %2825 = vmatprep.subr.bf16.mxu0 0
        %2826 = vmatpush1.bf16.xpose.msra.mxu0 0
        %2827 = vmatprep.subr.bf16.mxu0 0
        %2828 = vmatpush1.bf16.xpose.msra.mxu0 0
        %2829 = vmatprep.subr.bf16.mxu0 0
        %2830 = vmatpush1.bf16.xpose.msra.mxu0 0
        %2831 = vmatprep.subr.bf16.mxu0 0
        %2832 = vmatpush1.bf16.xpose.msra.mxu0 0
        %2833 = vmatprep.subr.bf16.mxu0 0
        %2834 = vmatpush1.bf16.xpose.msra.mxu0 0
        %2835 = vmatprep.subr.bf16.mxu0 0
        %2836 = vmatpush1.bf16.xpose.msra.mxu0 0
        %2837 = vmatprep.subr.bf16.mxu0 0
        %2838 = vmatpush1.bf16.xpose.msra.mxu0 0
        %2839 = vmatprep.subr.bf16.mxu0 0
        %2840 = vmatpush1.bf16.xpose.msra.mxu0 0
        %2841 = vmatprep.subr.bf16.mxu0 0
        %2842 = vmatpush1.bf16.xpose.msra.mxu0 0
        %2843 = vmatprep.mubr.bf16.mxu0 0
        %2844 = vmatmul.mubr.bf16.gmra.mrb[0].mxu0 %v2806
        %v2845 = vpop.f32.mrb[0].mxu0
        %v2846 = vadd.f32 0.0, %v2845
        %v2847 = vpop.f32.mrb[0].mxu0
        %v2848 = vpop.f32.mrb[0].mxu0
        %v2849 = vpop.f32.mrb[0].mxu0
        %2850 = vdwg.mxu0
        %v2852 = vsel %vm1469, %v2457, 0
        %v2855 = vsel %vm1469, %v2607, 0
        %2857 = vmatprep.subr.bf16.mxu0 0
        %2858 = vmatpush1.bf16.xpose.msra.mxu0 %v2855
        %2859 = vmatprep.subr.bf16.mxu0 0
        %2860 = vmatpush1.bf16.xpose.msra.mxu0 0
        %2861 = vmatprep.subr.bf16.mxu0 0
        %2862 = vmatpush1.bf16.xpose.msra.mxu0 0
        %2863 = vmatprep.subr.bf16.mxu0 0
        %2864 = vmatpush1.bf16.xpose.msra.mxu0 0
        %2865 = vmatprep.subr.bf16.mxu0 0
        %2866 = vmatpush1.bf16.xpose.msra.mxu0 0
        %2867 = vmatprep.subr.bf16.mxu0 0
        %2868 = vmatpush1.bf16.xpose.msra.mxu0 0
        %2869 = vmatprep.subr.bf16.mxu0 0
        %2870 = vmatpush1.bf16.xpose.msra.mxu0 0
        %2871 = vmatprep.subr.bf16.mxu0 0
        %2872 = vmatpush1.bf16.xpose.msra.mxu0 0
        %2873 = vmatprep.subr.bf16.mxu0 0
        %2874 = vmatpush1.bf16.xpose.msra.mxu0 0
        %2875 = vmatprep.subr.bf16.mxu0 0
        %2876 = vmatpush1.bf16.xpose.msra.mxu0 0
        %2877 = vmatprep.subr.bf16.mxu0 0
        %2878 = vmatpush1.bf16.xpose.msra.mxu0 0
        %2879 = vmatprep.subr.bf16.mxu0 0
        %2880 = vmatpush1.bf16.xpose.msra.mxu0 0
        %2881 = vmatprep.subr.bf16.mxu0 0
        %2882 = vmatpush1.bf16.xpose.msra.mxu0 0
        %2883 = vmatprep.subr.bf16.mxu0 0
        %2884 = vmatpush1.bf16.xpose.msra.mxu0 0
        %2885 = vmatprep.subr.bf16.mxu0 0
        %2886 = vmatpush1.bf16.xpose.msra.mxu0 0
        %2887 = vmatprep.subr.bf16.mxu0 0
        %2888 = vmatpush1.bf16.xpose.msra.mxu0 0
        %2889 = vmatprep.mubr.bf16.mxu0 0
        %2890 = vmatmul.mubr.bf16.gmra.mrb[0].mxu0 %v2852
        %v2891 = vpop.f32.mrb[0].mxu0
        %v2892 = vadd.f32 0.0, %v2891
        %v2893 = vpop.f32.mrb[0].mxu0
        %v2894 = vpop.f32.mrb[0].mxu0
        %v2895 = vpop.f32.mrb[0].mxu0
        %2896 = vdwg.mxu0
        %v2898 = vsel %vm1469, %v2458, 0
        %v2901 = vsel %vm1469, %v2608, 0
        %2903 = vmatprep.subr.bf16.mxu0 0
        %2904 = vmatpush1.bf16.xpose.msra.mxu0 %v2901
        %2905 = vmatprep.subr.bf16.mxu0 0
        %2906 = vmatpush1.bf16.xpose.msra.mxu0 0
        %2907 = vmatprep.subr.bf16.mxu0 0
        %2908 = vmatpush1.bf16.xpose.msra.mxu0 0
        %2909 = vmatprep.subr.bf16.mxu0 0
        %2910 = vmatpush1.bf16.xpose.msra.mxu0 0
        %2911 = vmatprep.subr.bf16.mxu0 0
        %2912 = vmatpush1.bf16.xpose.msra.mxu0 0
        %2913 = vmatprep.subr.bf16.mxu0 0
        %2914 = vmatpush1.bf16.xpose.msra.mxu0 0
        %2915 = vmatprep.subr.bf16.mxu0 0
        %2916 = vmatpush1.bf16.xpose.msra.mxu0 0
        %2917 = vmatprep.subr.bf16.mxu0 0
        %2918 = vmatpush1.bf16.xpose.msra.mxu0 0
        %2919 = vmatprep.subr.bf16.mxu0 0
        %2920 = vmatpush1.bf16.xpose.msra.mxu0 0
        %2921 = vmatprep.subr.bf16.mxu0 0
        %2922 = vmatpush1.bf16.xpose.msra.mxu0 0
        %2923 = vmatprep.subr.bf16.mxu0 0
        %2924 = vmatpush1.bf16.xpose.msra.mxu0 0
        %2925 = vmatprep.subr.bf16.mxu0 0
        %2926 = vmatpush1.bf16.xpose.msra.mxu0 0
        %2927 = vmatprep.subr.bf16.mxu0 0
        %2928 = vmatpush1.bf16.xpose.msra.mxu0 0
        %2929 = vmatprep.subr.bf16.mxu0 0
        %2930 = vmatpush1.bf16.xpose.msra.mxu0 0
        %2931 = vmatprep.subr.bf16.mxu0 0
        %2932 = vmatpush1.bf16.xpose.msra.mxu0 0
        %2933 = vmatprep.subr.bf16.mxu0 0
        %2934 = vmatpush1.bf16.xpose.msra.mxu0 0
        %2935 = vmatprep.mubr.bf16.mxu0 0
        %2936 = vmatmul.mubr.bf16.gmra.mrb[0].mxu0 %v2898
        %v2937 = vpop.f32.mrb[0].mxu0
        %v2938 = vadd.f32 0.0, %v2937
        %v2939 = vpop.f32.mrb[0].mxu0
        %v2940 = vpop.f32.mrb[0].mxu0
        %v2941 = vpop.f32.mrb[0].mxu0
        %2942 = vdwg.mxu0
        %vm2943 = vcmp.eq.f32.partialorder %v839, 0.0
        %v2944 = vsel %vm2943, 1, 0
        %vm2945 = vcmp.eq.s32.totalorder %v2944, 1
        %v2946 = vsel %vm2945, -1e+20, %v2800
        %v2947 = vsel %vm2945, -1e+20, %v2846
        %v2948 = vsel %vm2945, -1e+20, %v2892
        %v2949 = vsel %vm2945, -1e+20, %v2938
        %v2950 = vsel %vm1469, %v2946, -inf
        %2951 = vmax.xlane.f32.xlu0 %v2950
        %v2952 = vpop.xlane.xlu0 %2951
        %v2953 = vsel %vm1469, %v2947, -inf
        %2954 = vmax.xlane.f32.xlu0 %v2953
        %v2955 = vpop.xlane.xlu0 %2954
        %v2956 = vsel %vm1469, %v2948, -inf
        %2957 = vmax.xlane.f32.xlu0 %v2956
        %v2958 = vpop.xlane.xlu0 %2957
        %v2959 = vsel %vm1469, %v2949, -inf
        %2960 = vmax.xlane.f32.xlu0 %v2959
        %v2961 = vpop.xlane.xlu0 %2960
        %v2962 = vsub.f32 %v2946, %v2952
        %v2963 = vsub.f32 %v2947, %v2955
        %v2964 = vsub.f32 %v2948, %v2958
        %v2965 = vsub.f32 %v2949, %v2961
        %v2966 = vmul.f32 %v2962, 1.442695
        %v2967 = vpow.pop %v2966
        %v2968 = vmul.f32 %v2963, 1.442695
        %v2969 = vpow.pop %v2968
        %v2970 = vmul.f32 %v2964, 1.442695
        %v2971 = vpow.pop %v2970
        %v2972 = vmul.f32 %v2965, 1.442695
        %v2973 = vpow.pop %v2972
        %v2974 = vsel %vm1469, %v2967, 0.0
        %2975 = vadd.xlane.f32.xlu0 %v2974
        %v2976 = vpop.xlane.xlu0 %2975
        %v2977 = vsel %vm1469, %v2969, 0.0
        %2978 = vadd.xlane.f32.xlu0 %v2977
        %v2979 = vpop.xlane.xlu0 %2978
        %v2980 = vsel %vm1469, %v2971, 0.0
        %2981 = vadd.xlane.f32.xlu0 %v2980
        %v2982 = vpop.xlane.xlu0 %2981
        %v2983 = vsel %vm1469, %v2973, 0.0
        %2984 = vadd.xlane.f32.xlu0 %v2983
        %v2985 = vpop.xlane.xlu0 %2984
        %v2986 = vrcp.pop %v2976
        %v2987 = vrcp.pop %v2979
        %v2988 = vrcp.pop %v2982
        %v2989 = vrcp.pop %v2985
        %v2990 = vmul.f32 %v2967, %v2986
        %v2991 = vmul.f32 %v2969, %v2987
        %v2992 = vmul.f32 %v2971, %v2988
        %v2993 = vmul.f32 %v2973, %v2989
        %v2994 = vpack.c.bf16 %v2990, %v2990
        %v2995 = vpack.c.bf16 %v2991, %v2991
        %v2996 = vpack.c.bf16 %v2992, %v2992
        %v2997 = vpack.c.bf16 %v2993, %v2993
        %v2999 = vsel %vm1469, %v2994, 0
        %v3002 = vsel %vm1712, %v2755, 0
        %3004 = vmatprep.subr.bf16.mxu0 0
        %3005 = vmatpush1.bf16.msra.mxu0 %v3002
        %3006 = vmatprep.subr.bf16.mxu0 0
        %3007 = vmatpush1.bf16.msra.mxu0 0
        %3008 = vmatprep.subr.bf16.mxu0 0
        %3009 = vmatpush1.bf16.msra.mxu0 0
        %3010 = vmatprep.subr.bf16.mxu0 0
        %3011 = vmatpush1.bf16.msra.mxu0 0
        %3012 = vmatprep.subr.bf16.mxu0 0
        %3013 = vmatpush1.bf16.msra.mxu0 0
        %3014 = vmatprep.subr.bf16.mxu0 0
        %3015 = vmatpush1.bf16.msra.mxu0 0
        %3016 = vmatprep.subr.bf16.mxu0 0
        %3017 = vmatpush1.bf16.msra.mxu0 0
        %3018 = vmatprep.subr.bf16.mxu0 0
        %3019 = vmatpush1.bf16.msra.mxu0 0
        %3020 = vmatprep.subr.bf16.mxu0 0
        %3021 = vmatpush1.bf16.msra.mxu0 0
        %3022 = vmatprep.subr.bf16.mxu0 0
        %3023 = vmatpush1.bf16.msra.mxu0 0
        %3024 = vmatprep.subr.bf16.mxu0 0
        %3025 = vmatpush1.bf16.msra.mxu0 0
        %3026 = vmatprep.subr.bf16.mxu0 0
        %3027 = vmatpush1.bf16.msra.mxu0 0
        %3028 = vmatprep.subr.bf16.mxu0 0
        %3029 = vmatpush1.bf16.msra.mxu0 0
        %3030 = vmatprep.subr.bf16.mxu0 0
        %3031 = vmatpush1.bf16.msra.mxu0 0
        %3032 = vmatprep.subr.bf16.mxu0 0
        %3033 = vmatpush1.bf16.msra.mxu0 0
        %3034 = vmatprep.subr.bf16.mxu0 0
        %3035 = vmatpush1.bf16.msra.mxu0 0
        %3036 = vmatprep.mubr.bf16.mxu0 0
        %3037 = vmatmul.mubr.bf16.gmra.mrb[0].mxu0 %v2999
        %v3038 = vpop.f32.mrb[0].mxu0
        %v3039 = vadd.f32 0.0, %v3038
        %v3040 = vpop.f32.mrb[0].mxu0
        %v3041 = vpop.f32.mrb[0].mxu0
        %v3042 = vpop.f32.mrb[0].mxu0
        %3043 = vdwg.mxu0
        %v3045 = vsel %vm1469, %v2995, 0
        %v3048 = vsel %vm1712, %v2756, 0
        %3050 = vmatprep.subr.bf16.mxu0 0
        %3051 = vmatpush1.bf16.msra.mxu0 %v3048
        %3052 = vmatprep.subr.bf16.mxu0 0
        %3053 = vmatpush1.bf16.msra.mxu0 0
        %3054 = vmatprep.subr.bf16.mxu0 0
        %3055 = vmatpush1.bf16.msra.mxu0 0
        %3056 = vmatprep.subr.bf16.mxu0 0
        %3057 = vmatpush1.bf16.msra.mxu0 0
        %3058 = vmatprep.subr.bf16.mxu0 0
        %3059 = vmatpush1.bf16.msra.mxu0 0
        %3060 = vmatprep.subr.bf16.mxu0 0
        %3061 = vmatpush1.bf16.msra.mxu0 0
        %3062 = vmatprep.subr.bf16.mxu0 0
        %3063 = vmatpush1.bf16.msra.mxu0 0
        %3064 = vmatprep.subr.bf16.mxu0 0
        %3065 = vmatpush1.bf16.msra.mxu0 0
        %3066 = vmatprep.subr.bf16.mxu0 0
        %3067 = vmatpush1.bf16.msra.mxu0 0
        %3068 = vmatprep.subr.bf16.mxu0 0
        %3069 = vmatpush1.bf16.msra.mxu0 0
        %3070 = vmatprep.subr.bf16.mxu0 0
        %3071 = vmatpush1.bf16.msra.mxu0 0
        %3072 = vmatprep.subr.bf16.mxu0 0
        %3073 = vmatpush1.bf16.msra.mxu0 0
        %3074 = vmatprep.subr.bf16.mxu0 0
        %3075 = vmatpush1.bf16.msra.mxu0 0
        %3076 = vmatprep.subr.bf16.mxu0 0
        %3077 = vmatpush1.bf16.msra.mxu0 0
        %3078 = vmatprep.subr.bf16.mxu0 0
        %3079 = vmatpush1.bf16.msra.mxu0 0
        %3080 = vmatprep.subr.bf16.mxu0 0
        %3081 = vmatpush1.bf16.msra.mxu0 0
        %3082 = vmatprep.mubr.bf16.mxu0 0
        %3083 = vmatmul.mubr.bf16.gmra.mrb[0].mxu0 %v3045
        %v3084 = vpop.f32.mrb[0].mxu0
        %v3085 = vadd.f32 0.0, %v3084
        %v3086 = vpop.f32.mrb[0].mxu0
        %v3087 = vpop.f32.mrb[0].mxu0
        %v3088 = vpop.f32.mrb[0].mxu0
        %3089 = vdwg.mxu0
        %v3091 = vsel %vm1469, %v2996, 0
        %v3094 = vsel %vm1712, %v2757, 0
        %3096 = vmatprep.subr.bf16.mxu0 0
        %3097 = vmatpush1.bf16.msra.mxu0 %v3094
        %3098 = vmatprep.subr.bf16.mxu0 0
        %3099 = vmatpush1.bf16.msra.mxu0 0
        %3100 = vmatprep.subr.bf16.mxu0 0
        %3101 = vmatpush1.bf16.msra.mxu0 0
        %3102 = vmatprep.subr.bf16.mxu0 0
        %3103 = vmatpush1.bf16.msra.mxu0 0
        %3104 = vmatprep.subr.bf16.mxu0 0
        %3105 = vmatpush1.bf16.msra.mxu0 0
        %3106 = vmatprep.subr.bf16.mxu0 0
        %3107 = vmatpush1.bf16.msra.mxu0 0
        %3108 = vmatprep.subr.bf16.mxu0 0
        %3109 = vmatpush1.bf16.msra.mxu0 0
        %3110 = vmatprep.subr.bf16.mxu0 0
        %3111 = vmatpush1.bf16.msra.mxu0 0
        %3112 = vmatprep.subr.bf16.mxu0 0
        %3113 = vmatpush1.bf16.msra.mxu0 0
        %3114 = vmatprep.subr.bf16.mxu0 0
        %3115 = vmatpush1.bf16.msra.mxu0 0
        %3116 = vmatprep.subr.bf16.mxu0 0
        %3117 = vmatpush1.bf16.msra.mxu0 0
        %3118 = vmatprep.subr.bf16.mxu0 0
        %3119 = vmatpush1.bf16.msra.mxu0 0
        %3120 = vmatprep.subr.bf16.mxu0 0
        %3121 = vmatpush1.bf16.msra.mxu0 0
        %3122 = vmatprep.subr.bf16.mxu0 0
        %3123 = vmatpush1.bf16.msra.mxu0 0
        %3124 = vmatprep.subr.bf16.mxu0 0
        %3125 = vmatpush1.bf16.msra.mxu0 0
        %3126 = vmatprep.subr.bf16.mxu0 0
        %3127 = vmatpush1.bf16.msra.mxu0 0
        %3128 = vmatprep.mubr.bf16.mxu0 0
        %3129 = vmatmul.mubr.bf16.gmra.mrb[0].mxu0 %v3091
        %v3130 = vpop.f32.mrb[0].mxu0
        %v3131 = vadd.f32 0.0, %v3130
        %v3132 = vpop.f32.mrb[0].mxu0
        %v3133 = vpop.f32.mrb[0].mxu0
        %v3134 = vpop.f32.mrb[0].mxu0
        %3135 = vdwg.mxu0
        %v3137 = vsel %vm1469, %v2997, 0
        %v3140 = vsel %vm1712, %v2758, 0
        %3142 = vmatprep.subr.bf16.mxu0 0
        %3143 = vmatpush1.bf16.msra.mxu0 %v3140
        %3144 = vmatprep.subr.bf16.mxu0 0
        %3145 = vmatpush1.bf16.msra.mxu0 0
        %3146 = vmatprep.subr.bf16.mxu0 0
        %3147 = vmatpush1.bf16.msra.mxu0 0
        %3148 = vmatprep.subr.bf16.mxu0 0
        %3149 = vmatpush1.bf16.msra.mxu0 0
        %3150 = vmatprep.subr.bf16.mxu0 0
        %3151 = vmatpush1.bf16.msra.mxu0 0
        %3152 = vmatprep.subr.bf16.mxu0 0
        %3153 = vmatpush1.bf16.msra.mxu0 0
        %3154 = vmatprep.subr.bf16.mxu0 0
        %3155 = vmatpush1.bf16.msra.mxu0 0
        %3156 = vmatprep.subr.bf16.mxu0 0
        %3157 = vmatpush1.bf16.msra.mxu0 0
        %3158 = vmatprep.subr.bf16.mxu0 0
        %3159 = vmatpush1.bf16.msra.mxu0 0
        %3160 = vmatprep.subr.bf16.mxu0 0
        %3161 = vmatpush1.bf16.msra.mxu0 0
        %3162 = vmatprep.subr.bf16.mxu0 0
        %3163 = vmatpush1.bf16.msra.mxu0 0
        %3164 = vmatprep.subr.bf16.mxu0 0
        %3165 = vmatpush1.bf16.msra.mxu0 0
        %3166 = vmatprep.subr.bf16.mxu0 0
        %3167 = vmatpush1.bf16.msra.mxu0 0
        %3168 = vmatprep.subr.bf16.mxu0 0
        %3169 = vmatpush1.bf16.msra.mxu0 0
        %3170 = vmatprep.subr.bf16.mxu0 0
        %3171 = vmatpush1.bf16.msra.mxu0 0
        %3172 = vmatprep.subr.bf16.mxu0 0
        %3173 = vmatpush1.bf16.msra.mxu0 0
        %3174 = vmatprep.mubr.bf16.mxu0 0
        %3175 = vmatmul.mubr.bf16.gmra.mrb[0].mxu0 %v3137
        %v3176 = vpop.f32.mrb[0].mxu0
        %v3177 = vadd.f32 0.0, %v3176
        %v3178 = vpop.f32.mrb[0].mxu0
        %v3179 = vpop.f32.mrb[0].mxu0
        %v3180 = vpop.f32.mrb[0].mxu0
        %3181 = vdwg.mxu0
        %v3182 = vpack.c.bf16 %v3039, %v3039
        %v3183 = vpack.c.bf16 %v3085, %v3085
        %v3184 = vpack.c.bf16 %v3131, %v3131
        %v3185 = vpack.c.bf16 %v3177, %v3177
        %v3187 = vsel %vm1469, %v3182, 0
        %v3190 = vsel %vm1712, %v2139, 0
        %3192 = vmatprep.subr.bf16.mxu0 0
        %3193 = vmatpush1.bf16.msra.mxu0 %v3190
        %3194 = vmatprep.subr.bf16.mxu0 0
        %3195 = vmatpush1.bf16.msra.mxu0 0
        %3196 = vmatprep.subr.bf16.mxu0 0
        %3197 = vmatpush1.bf16.msra.mxu0 0
        %3198 = vmatprep.subr.bf16.mxu0 0
        %3199 = vmatpush1.bf16.msra.mxu0 0
        %3200 = vmatprep.subr.bf16.mxu0 0
        %3201 = vmatpush1.bf16.msra.mxu0 0
        %3202 = vmatprep.subr.bf16.mxu0 0
        %3203 = vmatpush1.bf16.msra.mxu0 0
        %3204 = vmatprep.subr.bf16.mxu0 0
        %3205 = vmatpush1.bf16.msra.mxu0 0
        %3206 = vmatprep.subr.bf16.mxu0 0
        %3207 = vmatpush1.bf16.msra.mxu0 0
        %3208 = vmatprep.subr.bf16.mxu0 0
        %3209 = vmatpush1.bf16.msra.mxu0 0
        %3210 = vmatprep.subr.bf16.mxu0 0
        %3211 = vmatpush1.bf16.msra.mxu0 0
        %3212 = vmatprep.subr.bf16.mxu0 0
        %3213 = vmatpush1.bf16.msra.mxu0 0
        %3214 = vmatprep.subr.bf16.mxu0 0
        %3215 = vmatpush1.bf16.msra.mxu0 0
        %3216 = vmatprep.subr.bf16.mxu0 0
        %3217 = vmatpush1.bf16.msra.mxu0 0
        %3218 = vmatprep.subr.bf16.mxu0 0
        %3219 = vmatpush1.bf16.msra.mxu0 0
        %3220 = vmatprep.subr.bf16.mxu0 0
        %3221 = vmatpush1.bf16.msra.mxu0 0
        %3222 = vmatprep.subr.bf16.mxu0 0
        %3223 = vmatpush1.bf16.msra.mxu0 0
        %3224 = vmatprep.mubr.bf16.mxu0 0
        %3225 = vmatmul.mubr.bf16.gmra.mrb[0].mxu0 %v3187
        %v3226 = vpop.f32.mrb[0].mxu0
        %v3227 = vadd.f32 0.0, %v3226
        %v3228 = vpop.f32.mrb[0].mxu0
        %v3229 = vpop.f32.mrb[0].mxu0
        %v3230 = vpop.f32.mrb[0].mxu0
        %3231 = vdwg.mxu0
        %v3233 = vsel %vm1469, %v3183, 0
        %v3236 = vsel %vm1712, %v2140, 0
        %3238 = vmatprep.subr.bf16.mxu0 0
        %3239 = vmatpush1.bf16.msra.mxu0 %v3236
        %3240 = vmatprep.subr.bf16.mxu0 0
        %3241 = vmatpush1.bf16.msra.mxu0 0
        %3242 = vmatprep.subr.bf16.mxu0 0
        %3243 = vmatpush1.bf16.msra.mxu0 0
        %3244 = vmatprep.subr.bf16.mxu0 0
        %3245 = vmatpush1.bf16.msra.mxu0 0
        %3246 = vmatprep.subr.bf16.mxu0 0
        %3247 = vmatpush1.bf16.msra.mxu0 0
        %3248 = vmatprep.subr.bf16.mxu0 0
        %3249 = vmatpush1.bf16.msra.mxu0 0
        %3250 = vmatprep.subr.bf16.mxu0 0
        %3251 = vmatpush1.bf16.msra.mxu0 0
        %3252 = vmatprep.subr.bf16.mxu0 0
        %3253 = vmatpush1.bf16.msra.mxu0 0
        %3254 = vmatprep.subr.bf16.mxu0 0
        %3255 = vmatpush1.bf16.msra.mxu0 0
        %3256 = vmatprep.subr.bf16.mxu0 0
        %3257 = vmatpush1.bf16.msra.mxu0 0
        %3258 = vmatprep.subr.bf16.mxu0 0
        %3259 = vmatpush1.bf16.msra.mxu0 0
        %3260 = vmatprep.subr.bf16.mxu0 0
        %3261 = vmatpush1.bf16.msra.mxu0 0
        %3262 = vmatprep.subr.bf16.mxu0 0
        %3263 = vmatpush1.bf16.msra.mxu0 0
        %3264 = vmatprep.subr.bf16.mxu0 0
        %3265 = vmatpush1.bf16.msra.mxu0 0
        %3266 = vmatprep.subr.bf16.mxu0 0
        %3267 = vmatpush1.bf16.msra.mxu0 0
        %3268 = vmatprep.subr.bf16.mxu0 0
        %3269 = vmatpush1.bf16.msra.mxu0 0
        %3270 = vmatprep.mubr.bf16.mxu0 0
        %3271 = vmatmul.mubr.bf16.gmra.mrb[0].mxu0 %v3233
        %v3272 = vpop.f32.mrb[0].mxu0
        %v3273 = vadd.f32 0.0, %v3272
        %v3274 = vpop.f32.mrb[0].mxu0
        %v3275 = vpop.f32.mrb[0].mxu0
        %v3276 = vpop.f32.mrb[0].mxu0
        %3277 = vdwg.mxu0
        %v3279 = vsel %vm1469, %v3184, 0
        %v3282 = vsel %vm1712, %v2141, 0
        %3284 = vmatprep.subr.bf16.mxu0 0
        %3285 = vmatpush1.bf16.msra.mxu0 %v3282
        %3286 = vmatprep.subr.bf16.mxu0 0
        %3287 = vmatpush1.bf16.msra.mxu0 0
        %3288 = vmatprep.subr.bf16.mxu0 0
        %3289 = vmatpush1.bf16.msra.mxu0 0
        %3290 = vmatprep.subr.bf16.mxu0 0
        %3291 = vmatpush1.bf16.msra.mxu0 0
        %3292 = vmatprep.subr.bf16.mxu0 0
        %3293 = vmatpush1.bf16.msra.mxu0 0
        %3294 = vmatprep.subr.bf16.mxu0 0
        %3295 = vmatpush1.bf16.msra.mxu0 0
        %3296 = vmatprep.subr.bf16.mxu0 0
        %3297 = vmatpush1.bf16.msra.mxu0 0
        %3298 = vmatprep.subr.bf16.mxu0 0
        %3299 = vmatpush1.bf16.msra.mxu0 0
        %3300 = vmatprep.subr.bf16.mxu0 0
        %3301 = vmatpush1.bf16.msra.mxu0 0
        %3302 = vmatprep.subr.bf16.mxu0 0
        %3303 = vmatpush1.bf16.msra.mxu0 0
        %3304 = vmatprep.subr.bf16.mxu0 0
        %3305 = vmatpush1.bf16.msra.mxu0 0
        %3306 = vmatprep.subr.bf16.mxu0 0
        %3307 = vmatpush1.bf16.msra.mxu0 0
        %3308 = vmatprep.subr.bf16.mxu0 0
        %3309 = vmatpush1.bf16.msra.mxu0 0
        %3310 = vmatprep.subr.bf16.mxu0 0
        %3311 = vmatpush1.bf16.msra.mxu0 0
        %3312 = vmatprep.subr.bf16.mxu0 0
        %3313 = vmatpush1.bf16.msra.mxu0 0
        %3314 = vmatprep.subr.bf16.mxu0 0
        %3315 = vmatpush1.bf16.msra.mxu0 0
        %3316 = vmatprep.mubr.bf16.mxu0 0
        %3317 = vmatmul.mubr.bf16.gmra.mrb[0].mxu0 %v3279
        %v3318 = vpop.f32.mrb[0].mxu0
        %v3319 = vadd.f32 0.0, %v3318
        %v3320 = vpop.f32.mrb[0].mxu0
        %v3321 = vpop.f32.mrb[0].mxu0
        %v3322 = vpop.f32.mrb[0].mxu0
        %3323 = vdwg.mxu0
        %v3325 = vsel %vm1469, %v3185, 0
        %v3328 = vsel %vm1712, %v2142, 0
        %3330 = vmatprep.subr.bf16.mxu0 0
        %3331 = vmatpush1.bf16.msra.mxu0 %v3328
        %3332 = vmatprep.subr.bf16.mxu0 0
        %3333 = vmatpush1.bf16.msra.mxu0 0
        %3334 = vmatprep.subr.bf16.mxu0 0
        %3335 = vmatpush1.bf16.msra.mxu0 0
        %3336 = vmatprep.subr.bf16.mxu0 0
        %3337 = vmatpush1.bf16.msra.mxu0 0
        %3338 = vmatprep.subr.bf16.mxu0 0
        %3339 = vmatpush1.bf16.msra.mxu0 0
        %3340 = vmatprep.subr.bf16.mxu0 0
        %3341 = vmatpush1.bf16.msra.mxu0 0
        %3342 = vmatprep.subr.bf16.mxu0 0
        %3343 = vmatpush1.bf16.msra.mxu0 0
        %3344 = vmatprep.subr.bf16.mxu0 0
        %3345 = vmatpush1.bf16.msra.mxu0 0
        %3346 = vmatprep.subr.bf16.mxu0 0
        %3347 = vmatpush1.bf16.msra.mxu0 0
        %3348 = vmatprep.subr.bf16.mxu0 0
        %3349 = vmatpush1.bf16.msra.mxu0 0
        %3350 = vmatprep.subr.bf16.mxu0 0
        %3351 = vmatpush1.bf16.msra.mxu0 0
        %3352 = vmatprep.subr.bf16.mxu0 0
        %3353 = vmatpush1.bf16.msra.mxu0 0
        %3354 = vmatprep.subr.bf16.mxu0 0
        %3355 = vmatpush1.bf16.msra.mxu0 0
        %3356 = vmatprep.subr.bf16.mxu0 0
        %3357 = vmatpush1.bf16.msra.mxu0 0
        %3358 = vmatprep.subr.bf16.mxu0 0
        %3359 = vmatpush1.bf16.msra.mxu0 0
        %3360 = vmatprep.subr.bf16.mxu0 0
        %3361 = vmatpush1.bf16.msra.mxu0 0
        %3362 = vmatprep.mubr.bf16.mxu0 0
        %3363 = vmatmul.mubr.bf16.gmra.mrb[0].mxu0 %v3325
        %v3364 = vpop.f32.mrb[0].mxu0
        %v3365 = vadd.f32 0.0, %v3364
        %v3366 = vpop.f32.mrb[0].mxu0
        %v3367 = vpop.f32.mrb[0].mxu0
        %v3368 = vpop.f32.mrb[0].mxu0
        %3369 = vdwg.mxu0
        %v3370 = vsel %vm870, %v3227, 0.0
        %v3371 = vsel %vm870, %v3273, 0.0
        %v3372 = vadd.f32 %v3370, %v3371
        %v3373 = vsel %vm870, %v3319, 0.0
        %v3374 = vadd.f32 %v3372, %v3373
        %v3375 = vsel %vm870, %v3365, 0.0
        %v3376 = vadd.f32 %v3374, %v3375
        %v3378 = vlaneseq
        %v3379 = vshrl.u32 %v3378, 7
        %v3380 = vsub.s32 0, %v3379
        %v3381 = vrot.slane %v2143, %v3380
        %v3383 = vadd.f32 %v3376, %v3381
        %v3384 = vld [vmem:[%s16] sm:$0x1]
        %v3385 = vld [vmem:[%s17] sm:$0x1]
        %v3386 = vadd.f32 %v3383, %v2126
        %v3387 = vsel %vm870, %v3386, 0.0
        %3388 = vadd.xlane.f32.xlu0 %v3387
        %v3389 = vpop.xlane.xlu0 %3388
        %v3390 = vmul.f32 %v3389, %v2102
        %v3391 = vsub.f32 %v3386, %v3390
        %v3392 = vmul.f32 %v3391, %v3391
        %v3393 = vsel %vm870, %v3392, 0.0
        %3394 = vadd.xlane.f32.xlu0 %v3393
        %v3395 = vpop.xlane.xlu0 %3394
        %v3396 = vmul.f32 %v3395, %v2102
        %v3397 = vadd.f32 %v3396, 1e-05
        %v3398 = vrsqrt.pop %v3397
        %v3399 = vmul.f32 %v3391, %v3398
        %v3401 = vlaneseq
        %v3402 = vshrl.u32 %v3401, 7
        %v3403 = vsub.s32 0, %v3402
        %v3404 = vrot.slane %v3384, %v3403
        %v3406 = vmul.f32 %v3399, %v3404
        %v3408 = vlaneseq
        %v3409 = vshrl.u32 %v3408, 7
        %v3410 = vsub.s32 0, %v3409
        %v3411 = vrot.slane %v3385, %v3410
        %v3413 = vadd.f32 %v3406, %v3411
        %v3414 = vpack.c.bf16 %v3413, %v3413
        %v3415 = vld [vmem:[%s18] sm:$0xf]
        %v3416 = vld [vmem:[%s18 + $0x4] sm:$0xf]
        %v3417 = vld [vmem:[%s18 + $0x8] sm:$0xf]
        %v3418 = vld [vmem:[%s18 + $0xc] sm:$0xf]
        %v3419 = vld [vmem:[#allocation2] sm:$0x1]
        %v3421 = vlaneseq
        %v3422 = vshrl.u32 %v3421, 7
        %v3423 = vsub.s32 0, %v3422
        %v3424 = vrot.slane %v3419, %v3423
        %v3430 = vunpack.c.l.b16 %v3415
        %v3431 = vunpack.c.l.b16 %v3416
        %v3432 = vunpack.c.l.b16 %v3417
        %v3433 = vunpack.c.l.b16 %v3418
        %v3434 = vpack.c.b16 %v3431, %v3430
        %v3435 = vpack.c.b16 %v3433, %v3432
        %v3439 = vsel %vm870, %v3414, 0
        %3441 = vmatprep.subr.bf16.mxu0 0
        %3442 = vmatpush1.bf16.msra.mxu0 %v3434
        %3443 = vmatprep.subr.bf16.mxu0 0
        %3444 = vmatpush1.bf16.msra.mxu0 %v3435
        %3445 = vmatprep.subr.bf16.mxu0 0
        %3446 = vmatpush1.bf16.msra.mxu0 0
        %3447 = vmatprep.subr.bf16.mxu0 0
        %3448 = vmatpush1.bf16.msra.mxu0 0
        %3449 = vmatprep.subr.bf16.mxu0 0
        %3450 = vmatpush1.bf16.msra.mxu0 0
        %3451 = vmatprep.subr.bf16.mxu0 0
        %3452 = vmatpush1.bf16.msra.mxu0 0
        %3453 = vmatprep.subr.bf16.mxu0 0
        %3454 = vmatpush1.bf16.msra.mxu0 0
        %3455 = vmatprep.subr.bf16.mxu0 0
        %3456 = vmatpush1.bf16.msra.mxu0 0
        %3457 = vmatprep.subr.bf16.mxu0 0
        %3458 = vmatpush1.bf16.msra.mxu0 0
        %3459 = vmatprep.subr.bf16.mxu0 0
        %3460 = vmatpush1.bf16.msra.mxu0 0
        %3461 = vmatprep.subr.bf16.mxu0 0
        %3462 = vmatpush1.bf16.msra.mxu0 0
        %3463 = vmatprep.subr.bf16.mxu0 0
        %3464 = vmatpush1.bf16.msra.mxu0 0
        %3465 = vmatprep.subr.bf16.mxu0 0
        %3466 = vmatpush1.bf16.msra.mxu0 0
        %3467 = vmatprep.subr.bf16.mxu0 0
        %3468 = vmatpush1.bf16.msra.mxu0 0
        %3469 = vmatprep.subr.bf16.mxu0 0
        %3470 = vmatpush1.bf16.msra.mxu0 0
        %3471 = vmatprep.subr.bf16.mxu0 0
        %3472 = vmatpush1.bf16.msra.mxu0 0
        %3473 = vmatprep.mubr.bf16.mxu0 0
        %3474 = vmatmul.mubr.bf16.gmra.mrb[0].mxu0 %v3439
        %v3475 = vpop.f32.mrb[0].mxu0
        %v3476 = vadd.f32 %v3424, %v3475
        %v3477 = vpop.f32.mrb[0].mxu0
        %v3478 = vpop.f32.mrb[0].mxu0
        %v3479 = vpop.f32.mrb[0].mxu0
        %3480 = vdwg.mxu0
        %v3481 = vmax.f32 %v3476, 0.0
        %v3482 = vpack.c.bf16 %v3481, %v3481
        %v3483 = vld [vmem:[%s20] sm:$0xf]
        %v3484 = vld [vmem:[%s20 + $0x4] sm:$0xf]
        %v3485 = vld [vmem:[%s20 + $0x8] sm:$0xf]
        %v3486 = vld [vmem:[%s20 + $0xc] sm:$0xf]
        %v3487 = vld [vmem:[%s20 + $0x10] sm:$0xf]
        %v3488 = vld [vmem:[%s20 + $0x14] sm:$0xf]
        %v3489 = vld [vmem:[%s20 + $0x18] sm:$0xf]
        %v3490 = vld [vmem:[%s20 + $0x1c] sm:$0xf]
        %v3491 = vld [vmem:[#allocation4] sm:$0x1]
        %v3493 = vlaneseq
        %v3494 = vshrl.u32 %v3493, 7
        %v3495 = vsub.s32 0, %v3494
        %v3496 = vrot.slane %v3491, %v3495
        %v3506 = vunpack.c.l.b16 %v3483
        %v3507 = vunpack.c.l.b16 %v3484
        %v3508 = vunpack.c.l.b16 %v3485
        %v3509 = vunpack.c.l.b16 %v3486
        %v3510 = vunpack.c.l.b16 %v3487
        %v3511 = vunpack.c.l.b16 %v3488
        %v3512 = vunpack.c.l.b16 %v3489
        %v3513 = vunpack.c.l.b16 %v3490
        %v3514 = vpack.c.b16 %v3507, %v3506
        %v3515 = vpack.c.b16 %v3509, %v3508
        %v3516 = vpack.c.b16 %v3511, %v3510
        %v3517 = vpack.c.b16 %v3513, %v3512
        %vm3522 = vcmask 523264
        %v3524 = vsel %vm3522, %v3482, 0
        %3526 = vmatprep.subr.bf16.mxu0 0
        %3527 = vmatpush1.bf16.msra.mxu0 %v3514
        %3528 = vmatprep.subr.bf16.mxu0 0
        %3529 = vmatpush1.bf16.msra.mxu0 %v3515
        %3530 = vmatprep.subr.bf16.mxu0 0
        %3531 = vmatpush1.bf16.msra.mxu0 %v3516
        %3532 = vmatprep.subr.bf16.mxu0 0
        %3533 = vmatpush1.bf16.msra.mxu0 %v3517
        %3534 = vmatprep.subr.bf16.mxu0 0
        %3535 = vmatpush1.bf16.msra.mxu0 0
        %3536 = vmatprep.subr.bf16.mxu0 0
        %3537 = vmatpush1.bf16.msra.mxu0 0
        %3538 = vmatprep.subr.bf16.mxu0 0
        %3539 = vmatpush1.bf16.msra.mxu0 0
        %3540 = vmatprep.subr.bf16.mxu0 0
        %3541 = vmatpush1.bf16.msra.mxu0 0
        %3542 = vmatprep.subr.bf16.mxu0 0
        %3543 = vmatpush1.bf16.msra.mxu0 0
        %3544 = vmatprep.subr.bf16.mxu0 0
        %3545 = vmatpush1.bf16.msra.mxu0 0
        %3546 = vmatprep.subr.bf16.mxu0 0
        %3547 = vmatpush1.bf16.msra.mxu0 0
        %3548 = vmatprep.subr.bf16.mxu0 0
        %3549 = vmatpush1.bf16.msra.mxu0 0
        %3550 = vmatprep.subr.bf16.mxu0 0
        %3551 = vmatpush1.bf16.msra.mxu0 0
        %3552 = vmatprep.subr.bf16.mxu0 0
        %3553 = vmatpush1.bf16.msra.mxu0 0
        %3554 = vmatprep.subr.bf16.mxu0 0
        %3555 = vmatpush1.bf16.msra.mxu0 0
        %3556 = vmatprep.subr.bf16.mxu0 0
        %3557 = vmatpush1.bf16.msra.mxu0 0
        %3558 = vmatprep.mubr.bf16.mxu0 0
        %3559 = vmatmul.mubr.bf16.gmra.mrb[0].mxu0 %v3524
        %v3560 = vpop.f32.mrb[0].mxu0
        %v3561 = vadd.f32 %v3496, %v3560
        %v3562 = vpop.f32.mrb[0].mxu0
        %v3563 = vpop.f32.mrb[0].mxu0
        %v3564 = vpop.f32.mrb[0].mxu0
        %3565 = vdwg.mxu0
        %v3566 = vld [vmem:[#allocation6] sm:$0x1]
        %v3567 = vld [vmem:[#allocation7] sm:$0x1]
        %v3568 = vadd.f32 %v3561, %v3413
        %v3569 = vsel %vm870, %v3568, 0.0
        %3570 = vadd.xlane.f32.xlu0 %v3569
        %v3571 = vpop.xlane.xlu0 %3570
        %v3572 = vmul.f32 %v3571, %v2102
        %v3573 = vsub.f32 %v3568, %v3572
        %v3574 = vmul.f32 %v3573, %v3573
        %v3575 = vsel %vm870, %v3574, 0.0
        %3576 = vadd.xlane.f32.xlu0 %v3575
        %v3577 = vpop.xlane.xlu0 %3576
        %v3578 = vmul.f32 %v3577, %v2102
        %v3579 = vadd.f32 %v3578, 1e-05
        %v3580 = vrsqrt.pop %v3579
        %v3581 = vmul.f32 %v3573, %v3580
        %v3583 = vlaneseq
        %v3584 = vshrl.u32 %v3583, 7
        %v3585 = vsub.s32 0, %v3584
        %v3586 = vrot.slane %v3566, %v3585
        %v3588 = vmul.f32 %v3581, %v3586
        %v3590 = vlaneseq
        %v3591 = vshrl.u32 %v3590, 7
        %v3592 = vsub.s32 0, %v3591
        %v3593 = vrot.slane %v3567, %v3592
        %v3595 = vadd.f32 %v3588, %v3593
        %3596 = vst.msk [vmem:[%s834] sm:$0xff] %vm870, %v3595
        %p3597 = scmp.lt.s32.totalorder %s38, 1
        %s3598 = scalar_select %p3597, %s38, 1
        %s3599 = smul.addr %s3598, 8
        %s3600 = scalar_lea.vmem %s24, %s3599
        // Predicated region
        $region133: #{decoder_forward.4} parent=115 // pred_check
          %p3601 = pneg %p580
        $region134: #{decoder_forward.4} parent=115 // pred_check_branch
          %3603 = sbr.rel (%p3601) target = $region136
        $region135: #{decoder_forward.4} parent=115 // pred_region
          _
        $region136: #{decoder_forward.4} parent=115 // pred_fallthru
          _
      $region116: #{decoder_forward.4} parent=5 // pred_fallthru
        _
      %p3604 = scmp.le.s32.totalorder 2, %s33
      // Predicated region
      $region137: #{decoder_forward.4} parent=5 // pred_check
        %p3605 = pneg %p3604
      $region138: #{decoder_forward.4} parent=5 // pred_check_branch
        %3607 = sbr.rel (%p3605) target = $region140
      $region139: #{decoder_forward.4} parent=5 // pred_region
        %s3608 = ssub.s32 %s33, 2
        // Predicated region
        $region141: #{decoder_forward.4} parent=139 // pred_check
          %p3609 = pneg %p586
        $region142: #{decoder_forward.4} parent=139 // pred_check_branch
          %3611 = sbr.rel (%p3609) target = $region144
        $region143: #{decoder_forward.4} parent=139 // pred_region
          %p3612 = scmp.lt.s32.totalorder %s39, 1
          %s3613 = scalar_select %p3612, %s39, 1
          %s3614 = smul.addr %s3613, 8
          %s3615 = scalar_lea.vmem %s24, %s3614
        $region144: #{decoder_forward.4} parent=139 // pred_fallthru
          _
      $region140: #{decoder_forward.4} parent=5 // pred_fallthru
        _
    $region6: #{decoder_forward.4} parent=1 // loop_footer
      %s37 = sadd.s32 1, %s33
    $region7: #{decoder_forward.4} parent=1 // loop_footer_branch
      %32 = sbr.rel target = $region3
    $region8: #{decoder_forward.4} parent=1 // loop_exit
      _
    %3616 = vsyncpa [#allocation3], 1
    %s3617 = scalar_lea.sflag [#allocation3], 1
    %3618 = vsyncpa %s3617, 1
    %3619 = vsyncpa [#allocation5], 1
    %3620 = vsyncpa [#allocation8], 1

</llo_original>
